<compile_context>
chip_gen: v7x
topology: tpu7x:2x2x1
jax: 0.10.0
libtpu: 0.0.40
codegen_flags: <defaults>
</compile_context>

<pallas_src>
import functools

import jax
import jax.numpy as jnp
from jax.experimental import pallas as pl
from jax.experimental.pallas import tpu as pltpu

EPS = 1e-5
_VMEM_LIMIT = 48 * 1024 * 1024   # conservative scoped-VMEM ceiling (ok on v5e/v6e/v7x)


def _cparams(dimension_semantics=None):
    if dimension_semantics is None:
        return pltpu.CompilerParams(vmem_limit_bytes=_VMEM_LIMIT)
    return pltpu.CompilerParams(dimension_semantics=dimension_semantics,
                                vmem_limit_bytes=_VMEM_LIMIT)


def _pick_row_tile(m, cap):
    """Largest multiple-of-8 divisor of m that is <= cap (rows per grid step)."""
    cap = max(8, min(cap, m))
    for t in range(cap, 7, -1):
        if m % t == 0 and t % 8 == 0:
            return t
    return m


# ---------------------------------------------------------------------------
# P1: 1x1 conv (bf16 matmul) + per-channel sum / sum-of-squares for BN.
# ---------------------------------------------------------------------------
def _conv1x1_stats_kernel(x_ref, w_ref, y_ref, s_ref, q_ref):
    @pl.when(pl.program_id(0) == 0)
    def _():
        s_ref[...] = jnp.zeros_like(s_ref)
        q_ref[...] = jnp.zeros_like(q_ref)

    y = jnp.dot(x_ref[...], w_ref[...], preferred_element_type=jnp.float32)
    y_ref[...] = y.astype(y_ref.dtype)
    s_ref[...] += jnp.sum(y, axis=0, keepdims=True)
    q_ref[...] += jnp.sum(y * y, axis=0, keepdims=True)


def _conv1x1_stats(x, w, tile_m):
    m, cin = x.shape
    cout = w.shape[1]
    return pl.pallas_call(
        _conv1x1_stats_kernel,
        grid=(m // tile_m,),
        in_specs=[
            pl.BlockSpec((tile_m, cin), lambda i: (i, 0)),
            pl.BlockSpec((cin, cout), lambda i: (0, 0)),
        ],
        out_specs=(
            pl.BlockSpec((tile_m, cout), lambda i: (i, 0)),
            pl.BlockSpec((1, cout), lambda i: (0, 0)),   # resident accumulator
            pl.BlockSpec((1, cout), lambda i: (0, 0)),
        ),
        out_shape=(
            jax.ShapeDtypeStruct((m, cout), jnp.bfloat16),
            jax.ShapeDtypeStruct((1, cout), jnp.float32),
            jax.ShapeDtypeStruct((1, cout), jnp.float32),
        ),
        compiler_params=_cparams(("arbitrary",)),
    )(x, w)


# ---------------------------------------------------------------------------
# P2: BatchNorm (from accumulated stats) + ReLU, row-tiled.
# ---------------------------------------------------------------------------
def _bn_relu_kernel(y_ref, s_ref, q_ref, g_ref, b_ref, o_ref, *, count):
    inv = 1.0 / count
    mean = s_ref[...] * inv
    var = q_ref[...] * inv - mean * mean
    scale = g_ref[...] * jax.lax.rsqrt(var + EPS)
    shift = b_ref[...] - mean * scale
    y = y_ref[...].astype(jnp.float32)
    o_ref[...] = jnp.maximum(y * scale + shift, 0.0).astype(o_ref.dtype)


def _bn_relu(y, s, q, gamma, beta, count, tile_m):
    m, c = y.shape
    vec = pl.BlockSpec((1, c), lambda i: (0, 0))
    return pl.pallas_call(
        functools.partial(_bn_relu_kernel, count=float(count)),
        grid=(m // tile_m,),
        in_specs=[pl.BlockSpec((tile_m, c), lambda i: (i, 0)), vec, vec, vec, vec],
        out_specs=pl.BlockSpec((tile_m, c), lambda i: (i, 0)),
        out_shape=jax.ShapeDtypeStruct((m, c), jnp.bfloat16),
        compiler_params=_cparams(("parallel",)),
    )(y, s, q, gamma, beta)


# ---------------------------------------------------------------------------
# P3: 3x3 conv with in-kernel im2col (9 shifted slices of the padded image,
# 9 bf16 matmuls accumulated in f32) + bn2 stats.
# ---------------------------------------------------------------------------
def _conv3x3_stats_kernel(xp_ref, w_ref, y_ref, s_ref, q_ref, *, h, w):
    @pl.when(pl.program_id(0) == 0)
    def _():
        s_ref[...] = jnp.zeros_like(s_ref)
        q_ref[...] = jnp.zeros_like(q_ref)

    cin = xp_ref.shape[-1]
    cout = w_ref.shape[-1]
    acc = jnp.zeros((h * w, cout), jnp.float32)
    for t in range(9):                             # unrolled: 9 taps of the 3x3 kernel
        dy, dx = divmod(t, 3)
        tap = xp_ref[dy:dy + h, dx:dx + w, :].reshape(h * w, cin)
        acc = acc + jnp.dot(tap, w_ref[t], preferred_element_type=jnp.float32)
    y_ref[...] = acc.astype(y_ref.dtype)
    s_ref[...] += jnp.sum(acc, axis=0, keepdims=True)
    q_ref[...] += jnp.sum(acc * acc, axis=0, keepdims=True)


def _conv3x3_stats(xp, w9, h, w):
    n = xp.shape[0]
    cin = xp.shape[-1]
    cout = w9.shape[-1]
    hw = h * w
    m = n * hw
    return pl.pallas_call(
        functools.partial(_conv3x3_stats_kernel, h=h, w=w),
        grid=(n,),
        in_specs=[
            pl.BlockSpec((None, h + 2, w + 2, cin), lambda i: (i, 0, 0, 0)),
            pl.BlockSpec((9, cin, cout), lambda i: (0, 0, 0)),
        ],
        out_specs=(
            pl.BlockSpec((hw, cout), lambda i: (i, 0)),
            pl.BlockSpec((1, cout), lambda i: (0, 0)),
            pl.BlockSpec((1, cout), lambda i: (0, 0)),
        ),
        out_shape=(
            jax.ShapeDtypeStruct((m, cout), jnp.bfloat16),
            jax.ShapeDtypeStruct((1, cout), jnp.float32),
            jax.ShapeDtypeStruct((1, cout), jnp.float32),
        ),
        compiler_params=_cparams(("arbitrary",)),
    )(xp, w9)


# ---------------------------------------------------------------------------
# P4: bn2 + relu + conv3 (1x1) + bn3 stats + per-image SE pool sums.
# ---------------------------------------------------------------------------
def _bn_relu_conv1x1_kernel(y2_ref, s2_ref, q2_ref, g_ref, b_ref, w_ref,
                            y3_ref, s3_ref, q3_ref, pool_ref, *, count):
    @pl.when(pl.program_id(0) == 0)
    def _():
        s3_ref[...] = jnp.zeros_like(s3_ref)
        q3_ref[...] = jnp.zeros_like(q3_ref)

    inv = 1.0 / count
    mean = s2_ref[...] * inv
    var = q2_ref[...] * inv - mean * mean
    scale = g_ref[...] * jax.lax.rsqrt(var + EPS)
    shift = b_ref[...] - mean * scale
    yn = jnp.maximum(y2_ref[...].astype(jnp.float32) * scale + shift, 0.0)
    y3 = jnp.dot(yn.astype(w_ref.dtype), w_ref[...],
                 preferred_element_type=jnp.float32)
    y3_ref[...] = y3.astype(y3_ref.dtype)
    ssum = jnp.sum(y3, axis=0, keepdims=True)
    s3_ref[...] += ssum
    q3_ref[...] += jnp.sum(y3 * y3, axis=0, keepdims=True)
    pool_ref[...] = ssum            # per-image SE pool numerator (sum over H*W)


def _bn_relu_conv1x1(y2, s2, q2, gamma, beta, w3, n, hw, count):
    m, cin = y2.shape
    cout = w3.shape[1]
    vec = pl.BlockSpec((1, cin), lambda i: (0, 0))
    return pl.pallas_call(
        functools.partial(_bn_relu_conv1x1_kernel, count=float(count)),
        grid=(n,),
        in_specs=[
            pl.BlockSpec((hw, cin), lambda i: (i, 0)),
            vec, vec, vec, vec,
            pl.BlockSpec((cin, cout), lambda i: (0, 0)),
        ],
        out_specs=(
            pl.BlockSpec((hw, cout), lambda i: (i, 0)),
            pl.BlockSpec((1, cout), lambda i: (0, 0)),
            pl.BlockSpec((1, cout), lambda i: (0, 0)),
            pl.BlockSpec((None, 1, cout), lambda i: (i, 0, 0)),
        ),
        out_shape=(
            jax.ShapeDtypeStruct((m, cout), jnp.bfloat16),
            jax.ShapeDtypeStruct((1, cout), jnp.float32),
            jax.ShapeDtypeStruct((1, cout), jnp.float32),
            jax.ShapeDtypeStruct((n, 1, cout), jnp.float32),
        ),
        compiler_params=_cparams(("arbitrary",)),
    )(y2, s2, q2, gamma, beta, w3)


# ---------------------------------------------------------------------------
# P5: SE squeeze/excitation (tiny) + bn3 affine coefficients.
#     Pool of the bn3 output is derived analytically: bn3 is affine per channel,
#     so mean_hw(bn3(y3)) = (sum_hw(y3)/HW) * scale3 + shift3.
# ---------------------------------------------------------------------------
def _se_kernel(pool_ref, s3_ref, q3_ref, g_ref, b_ref, w1_ref, w2_ref,
               se_ref, scale_ref, shift_ref, *, count, hw):
    inv = 1.0 / count
    mean = s3_ref[...] * inv
    var = q3_ref[...] * inv - mean * mean
    scale = g_ref[...] * jax.lax.rsqrt(var + EPS)
    shift = b_ref[...] - mean * scale
    scale_ref[...] = scale
    shift_ref[...] = shift
    pooled = pool_ref[...].reshape(pool_ref.shape[0], pool_ref.shape[-1]) * (1.0 / hw)
    pooled = pooled * scale + shift                                    # (N, C3)
    hid = jnp.maximum(jnp.dot(pooled.astype(w1_ref.dtype), w1_ref[...],
                              preferred_element_type=jnp.float32), 0.0)
    s = jax.nn.sigmoid(jnp.dot(hid.astype(w2_ref.dtype), w2_ref[...],
                               preferred_element_type=jnp.float32))
    se_ref[...] = s.reshape(se_ref.shape)


def _se(pool, s3, q3, gamma, beta, wfc1, wfc2, count, hw):
    n, _, c3 = pool.shape
    vmem = pl.BlockSpec(memory_space=pltpu.MemorySpace.VMEM)
    return pl.pallas_call(
        functools.partial(_se_kernel, count=float(count), hw=float(hw)),
        in_specs=[vmem] * 7,
        out_specs=(vmem, vmem, vmem),
        out_shape=(
            jax.ShapeDtypeStruct((n, 1, c3), jnp.float32),
            jax.ShapeDtypeStruct((1, c3), jnp.float32),
            jax.ShapeDtypeStruct((1, c3), jnp.float32),
        ),
        compiler_params=_cparams(),
    )(pool, s3, q3, gamma, beta, wfc1, wfc2)


# ---------------------------------------------------------------------------
# P6: bn3 * SE scale + residual + relu.
# ---------------------------------------------------------------------------
def _bn_se_res_relu_kernel(y3_ref, scale_ref, shift_ref, se_ref, res_ref, o_ref):
    y3 = y3_ref[...].astype(jnp.float32)
    out = (y3 * scale_ref[...] + shift_ref[...]) * se_ref[...] + res_ref[...]
    o_ref[...] = jnp.maximum(out, 0.0)


def _bn_se_res_relu(y3, scale3, shift3, se, residual, n, hw):
    m, c3 = y3.shape
    vec = pl.BlockSpec((1, c3), lambda i: (0, 0))
    return pl.pallas_call(
        _bn_se_res_relu_kernel,
        grid=(n,),
        in_specs=[
            pl.BlockSpec((hw, c3), lambda i: (i, 0)),
            vec, vec,
            pl.BlockSpec((None, 1, c3), lambda i: (i, 0, 0)),
            pl.BlockSpec((hw, c3), lambda i: (i, 0)),
        ],
        out_specs=pl.BlockSpec((hw, c3), lambda i: (i, 0)),
        out_shape=jax.ShapeDtypeStruct((m, c3), jnp.float32),
        compiler_params=_cparams(("parallel",)),
    )(y3, scale3, shift3, se, residual)


# ---------------------------------------------------------------------------
# Forward pass (layout/dtype glue + the six pallas_calls).
# ---------------------------------------------------------------------------
@functools.partial(jax.jit, static_argnames=("row_tile",))
def se_bottleneck_forward(x_nchw, params, row_tile=512):
    n, cin, h, w = x_nchw.shape
    p = params["conv1_w"].shape[0]
    c3 = 4 * p
    if cin != c3:
        raise ValueError("downsample=None requires inplanes == planes * expansion")
    m = n * h * w
    hw = h * w
    assert m % 8 == 0 and hw % 8 == 0, "N*H*W and H*W must be multiples of 8"
    tile_m = _pick_row_tile(m, row_tile)

    # ---- layout / dtype glue (no compute) ----
    x_nhwc = jnp.transpose(x_nchw, (0, 2, 3, 1)).astype(jnp.float32)
    x_res = x_nhwc.reshape(m, c3)                        # residual path, f32
    x_bf = x_res.astype(jnp.bfloat16)                    # MXU input

    w1 = params["conv1_w"].reshape(p, c3).T.astype(jnp.bfloat16)                     # (Cin, p)
    w2 = jnp.transpose(params["conv2_w"], (2, 3, 1, 0)).reshape(9, p, p).astype(jnp.bfloat16)
    w3 = params["conv3_w"].reshape(c3, p).T.astype(jnp.bfloat16)                     # (p, 4p)
    wfc1 = params["fc1_w"].astype(jnp.bfloat16)                                      # (4p, hid)
    wfc2 = params["fc2_w"].astype(jnp.bfloat16)                                      # (hid, 4p)

    # P1: conv1 (1x1) + bn1 stats
    y1, s1, q1 = _conv1x1_stats(x_bf, w1, tile_m)
    # P2: bn1 + relu
    y1n = _bn_relu(y1, s1, q1, params["bn1_gamma"], params["bn1_beta"], m, tile_m)
    # zero-pad spatially for the 3x3 conv (layout glue only)
    y1p = jnp.pad(y1n.reshape(n, h, w, p), ((0, 0), (1, 1), (1, 1), (0, 0)))
    # P3: conv2 (3x3, in-kernel im2col) + bn2 stats
    y2, s2, q2 = _conv3x3_stats(y1p, w2, h, w)
    # P4: bn2 + relu + conv3 (1x1) + bn3 stats + SE pool sums
    y3, s3, q3, pool = _bn_relu_conv1x1(y2, s2, q2, params["bn2_gamma"],
                                        params["bn2_beta"], w3, n, hw, m)
    # P5: SE squeeze/excite + bn3 affine
    se, scale3, shift3 = _se(pool, s3, q3, params["bn3_gamma"], params["bn3_beta"],
                             wfc1, wfc2, m, hw)
    # P6: bn3 * SE + residual + relu
    out_flat = _bn_se_res_relu(y3, scale3, shift3, se, x_res, n, hw)

    out = out_flat.reshape(n, h, w, c3)
    return jnp.transpose(out, (0, 3, 1, 2))              # back to NCHW


def init_params(key, inplanes, planes, reduction=16):
    c3 = planes * 4
    hidden = c3 // reduction
    ks = jax.random.split(key, 11)
    sc = 0.1
    return {
        "conv1_w": sc * jax.random.normal(ks[0], (planes, inplanes, 1, 1), jnp.float32),
        "bn1_gamma": 1.0 + sc * jax.random.normal(ks[1], (1, planes), jnp.float32),
        "bn1_beta": sc * jax.random.normal(ks[2], (1, planes), jnp.float32),
        "conv2_w": sc * jax.random.normal(ks[3], (planes, planes, 3, 3), jnp.float32),
        "bn2_gamma": 1.0 + sc * jax.random.normal(ks[4], (1, planes), jnp.float32),
        "bn2_beta": sc * jax.random.normal(ks[5], (1, planes), jnp.float32),
        "conv3_w": sc * jax.random.normal(ks[6], (c3, planes, 1, 1), jnp.float32),
        "bn3_gamma": 1.0 + sc * jax.random.normal(ks[7], (1, c3), jnp.float32),
        "bn3_beta": sc * jax.random.normal(ks[8], (1, c3), jnp.float32),
        # SE fc weights stored directly in matmul orientation (y @ W), bias=False as in the spec
        "fc1_w": sc * jax.random.normal(ks[9], (c3, hidden), jnp.float32),
        "fc2_w": sc * jax.random.normal(ks[10], (hidden, c3), jnp.float32),
    }


def _reference_forward(x, params):
    """Plain-JAX reference (training-mode BN), for a loose numerical sanity check."""
    dn = ("NCHW", "OIHW", "NCHW")

    def bn(y, g, b):
        mean = jnp.mean(y, axis=(0, 2, 3), keepdims=True)
        var = jnp.mean((y - mean) ** 2, axis=(0, 2, 3), keepdims=True)
        return (y - mean) * jax.lax.rsqrt(var + EPS) * g.reshape(1, -1, 1, 1) \
            + b.reshape(1, -1, 1, 1)

    y = jax.lax.conv_general_dilated(x, params["conv1_w"], (1, 1), "VALID",
                                     dimension_numbers=dn)
    y = jnp.maximum(bn(y, params["bn1_gamma"], params["bn1_beta"]), 0.0)
    y = jax.lax.conv_general_dilated(y, params["conv2_w"], (1, 1), ((1, 1), (1, 1)),
                                     dimension_numbers=dn)
    y = jnp.maximum(bn(y, params["bn2_gamma"], params["bn2_beta"]), 0.0)
    y = jax.lax.conv_general_dilated(y, params["conv3_w"], (1, 1), "VALID",
                                     dimension_numbers=dn)
    y = bn(y, params["bn3_gamma"], params["bn3_beta"])
    s = jnp.mean(y, axis=(2, 3))
    s = jnp.maximum(s @ params["fc1_w"], 0.0)
    s = jax.nn.sigmoid(s @ params["fc2_w"])
    y = y * s[:, :, None, None]
    return jnp.maximum(y + x, 0.0)


if __name__ == "__main__":
    # Module defaults: stride=1, downsample=None  =>  inplanes == planes * 4.
    N, PLANES, H, W = 2, 32, 16, 16
    INPLANES = PLANES * 4          # 128 -> lane-dense channel axis for the big tensors
    key = jax.random.PRNGKey(0)
    kx, kp = jax.random.split(key)
    x = jax.random.normal(kx, (N, INPLANES, H, W), jnp.float32)
    params = init_params(kp, inplanes=INPLANES, planes=PLANES, reduction=16)

    # row_tile=128 -> multi-step row grid even at this small test size.
    out = se_bottleneck_forward(x, params, row_tile=128)
    jax.block_until_ready(out)
    assert out.shape == (N, INPLANES, H, W) and out.dtype == jnp.float32

    # Loose sanity check vs a plain-JAX reference (bf16 MXU inputs => small drift).
    ref = _reference_forward(x.astype(jnp.float32), params)
    max_err = float(jnp.max(jnp.abs(out - ref)))
    assert max_err < 0.5, f"mismatch vs reference: max_err={max_err}"

    print("KERNEL_OK")
</pallas_src>

<mosaic_0001>
module attributes {stable_mosaic.version = 11 : i64} {
  func.func @_conv1x1_stats_kernel(%arg0: i32, %arg1: memref<128x128xbf16, #tpu.memory_space<vmem>>, %arg2: memref<128x32xbf16, #tpu.memory_space<vmem>>, %arg3: memref<128x32xbf16, #tpu.memory_space<vmem>>, %arg4: memref<1x32xf32, #tpu.memory_space<vmem>>, %arg5: memref<1x32xf32, #tpu.memory_space<vmem>>) attributes {dimension_semantics = [#tpu.dimension_semantics<arbitrary>], iteration_bounds = array<i64: 4>, scalar_prefetch = 0 : i64, scratch_operands = 0 : i64, tpu.core_type = #tpu.core_type<tc>, window_params = [{transform_indices = @transform_0, window_bounds = array<i64: 128, 128>}, {pipeline_mode = #tpu.pipeline_mode<synchronous>, transform_indices = @transform_1, window_bounds = array<i64: 128, 32>}, {transform_indices = @transform_2, window_bounds = array<i64: 128, 32>}, {pipeline_mode = #tpu.pipeline_mode<synchronous>, transform_indices = @transform_3, window_bounds = array<i64: 1, 32>}, {pipeline_mode = #tpu.pipeline_mode<synchronous>, transform_indices = @transform_4, window_bounds = array<i64: 1, 32>}]} {
    %c0_i32 = arith.constant 0 : i32
    %0 = arith.cmpi eq, %arg0, %c0_i32 : i32
    %1 = arith.extui %0 : i1 to i32
    %c0_i32_0 = arith.constant 0 : i32
    %2 = arith.cmpi ne, %1, %c0_i32_0 : i32
    scf.if %2 {
      %cst_16 = arith.constant 0.000000e+00 : f32
      %19 = vector.broadcast %cst_16 : f32 to vector<1x32xf32>
      %c0_17 = arith.constant 0 : index
      %c0_18 = arith.constant 0 : index
      %20 = vector.load %arg4[%c0_17, %c0_18] : memref<1x32xf32, #tpu.memory_space<vmem>>, vector<1x32xf32>
      tpu.vector_store %arg4[%c0_17, %c0_18], %19 {strides = array<i32>} : memref<1x32xf32, #tpu.memory_space<vmem>>, vector<1x32xf32>,
      %cst_19 = arith.constant 0.000000e+00 : f32
      %21 = vector.broadcast %cst_19 : f32 to vector<1x32xf32>
      %c0_20 = arith.constant 0 : index
      %c0_21 = arith.constant 0 : index
      %22 = vector.load %arg5[%c0_20, %c0_21] : memref<1x32xf32, #tpu.memory_space<vmem>>, vector<1x32xf32>
      tpu.vector_store %arg5[%c0_20, %c0_21], %21 {strides = array<i32>} : memref<1x32xf32, #tpu.memory_space<vmem>>, vector<1x32xf32>,
    } else {
    }
    %c0 = arith.constant 0 : index
    %c0_1 = arith.constant 0 : index
    %3 = vector.load %arg1[%c0, %c0_1] : memref<128x128xbf16, #tpu.memory_space<vmem>>, vector<128x128xbf16>
    %c0_2 = arith.constant 0 : index
    %c0_3 = arith.constant 0 : index
    %4 = vector.load %arg2[%c0_2, %c0_3] : memref<128x32xbf16, #tpu.memory_space<vmem>>, vector<128x32xbf16>
    %cst = arith.constant dense<0.000000e+00> : vector<128x32xf32>
    %5 = tpu.matmul %3, %4, %cst {dimension_numbers = #tpu.dot_dimension_numbers<[1], [0], [0], [1], [0, 0, 1, 1], [], []>} : vector<128x128xbf16>, vector<128x32xbf16>, vector<128x32xf32> -> vector<128x32xf32>
    %6 = arith.truncf %5 : vector<128x32xf32> to vector<128x32xbf16>
    %c0_4 = arith.constant 0 : index
    %c0_5 = arith.constant 0 : index
    %7 = vector.load %arg3[%c0_4, %c0_5] : memref<128x32xbf16, #tpu.memory_space<vmem>>, vector<128x32xbf16>
    tpu.vector_store %arg3[%c0_4, %c0_5], %6 {strides = array<i32>} : memref<128x32xbf16, #tpu.memory_space<vmem>>, vector<128x32xbf16>,
    %c0_6 = arith.constant 0 : index
    %c0_7 = arith.constant 0 : index
    %8 = vector.load %arg4[%c0_6, %c0_7] : memref<1x32xf32, #tpu.memory_space<vmem>>, vector<1x32xf32>
    %cst_8 = arith.constant dense<0.000000e+00> : vector<32xf32>
    %9 = vector.multi_reduction <add>, %5, %cst_8 [0] : vector<128x32xf32> to vector<32xf32>
    %10 = vector.shape_cast %9 : vector<32xf32> to vector<1x32xf32>
    %11 = arith.addf %8, %10 : vector<1x32xf32>
    %c0_9 = arith.constant 0 : index
    %c0_10 = arith.constant 0 : index
    %12 = vector.load %arg4[%c0_9, %c0_10] : memref<1x32xf32, #tpu.memory_space<vmem>>, vector<1x32xf32>
    tpu.vector_store %arg4[%c0_9, %c0_10], %11 {strides = array<i32>} : memref<1x32xf32, #tpu.memory_space<vmem>>, vector<1x32xf32>,
    %c0_11 = arith.constant 0 : index
    %c0_12 = arith.constant 0 : index
    %13 = vector.load %arg5[%c0_11, %c0_12] : memref<1x32xf32, #tpu.memory_space<vmem>>, vector<1x32xf32>
    %14 = arith.mulf %5, %5 : vector<128x32xf32>
    %cst_13 = arith.constant dense<0.000000e+00> : vector<32xf32>
    %15 = vector.multi_reduction <add>, %14, %cst_13 [0] : vector<128x32xf32> to vector<32xf32>
    %16 = vector.shape_cast %15 : vector<32xf32> to vector<1x32xf32>
    %17 = arith.addf %13, %16 : vector<1x32xf32>
    %c0_14 = arith.constant 0 : index
    %c0_15 = arith.constant 0 : index
    %18 = vector.load %arg5[%c0_14, %c0_15] : memref<1x32xf32, #tpu.memory_space<vmem>>, vector<1x32xf32>
    tpu.vector_store %arg5[%c0_14, %c0_15], %17 {strides = array<i32>} : memref<1x32xf32, #tpu.memory_space<vmem>>, vector<1x32xf32>,
    return
  }
  func.func @transform_0(%arg0: i32) -> (i32, i32) {
    %c0_i32 = arith.constant 0 : i32
    %c0_i32_0 = arith.constant 0 : i32
    return %arg0, %c0_i32 : i32, i32
  }
  func.func @transform_1(%arg0: i32) -> (i32, i32) {
    %c0_i32 = arith.constant 0 : i32
    %c0_i32_0 = arith.constant 0 : i32
    %c0_i32_1 = arith.constant 0 : i32
    return %c0_i32, %c0_i32_0 : i32, i32
  }
  func.func @transform_2(%arg0: i32) -> (i32, i32) {
    %c0_i32 = arith.constant 0 : i32
    %c0_i32_0 = arith.constant 0 : i32
    return %arg0, %c0_i32 : i32, i32
  }
  func.func @transform_3(%arg0: i32) -> (i32, i32) {
    %c0_i32 = arith.constant 0 : i32
    %c0_i32_0 = arith.constant 0 : i32
    %c0_i32_1 = arith.constant 0 : i32
    return %c0_i32, %c0_i32_0 : i32, i32
  }
  func.func @transform_4(%arg0: i32) -> (i32, i32) {
    %c0_i32 = arith.constant 0 : i32
    %c0_i32_0 = arith.constant 0 : i32
    %c0_i32_1 = arith.constant 0 : i32
    return %c0_i32, %c0_i32_0 : i32, i32
  }
}

module attributes {stable_mosaic.version = 11 : i64} {
  func.func @_bn_relu_kernel(%arg0: i32, %arg1: memref<128x32xbf16, #tpu.memory_space<vmem>>, %arg2: memref<1x32xf32, #tpu.memory_space<vmem>>, %arg3: memref<1x32xf32, #tpu.memory_space<vmem>>, %arg4: memref<1x32xf32, #tpu.memory_space<vmem>>, %arg5: memref<1x32xf32, #tpu.memory_space<vmem>>, %arg6: memref<128x32xbf16, #tpu.memory_space<vmem>>) attributes {dimension_semantics = [#tpu.dimension_semantics<parallel>], iteration_bounds = array<i64: 4>, scalar_prefetch = 0 : i64, scratch_operands = 0 : i64, tpu.core_type = #tpu.core_type<tc>, window_params = [{transform_indices = @transform_0, window_bounds = array<i64: 128, 32>}, {pipeline_mode = #tpu.pipeline_mode<synchronous>, transform_indices = @transform_1, window_bounds = array<i64: 1, 32>}, {pipeline_mode = #tpu.pipeline_mode<synchronous>, transform_indices = @transform_2, window_bounds = array<i64: 1, 32>}, {pipeline_mode = #tpu.pipeline_mode<synchronous>, transform_indices = @transform_3, window_bounds = array<i64: 1, 32>}, {pipeline_mode = #tpu.pipeline_mode<synchronous>, transform_indices = @transform_4, window_bounds = array<i64: 1, 32>}, {transform_indices = @transform_5, window_bounds = array<i64: 128, 32>}]} {
    %c0 = arith.constant 0 : index
    %c0_0 = arith.constant 0 : index
    %0 = vector.load %arg2[%c0, %c0_0] : memref<1x32xf32, #tpu.memory_space<vmem>>, vector<1x32xf32>
    %cst = arith.constant 0.001953125 : f32
    %1 = vector.broadcast %cst : f32 to vector<1x32xf32>
    %2 = arith.mulf %0, %1 : vector<1x32xf32>
    %c0_1 = arith.constant 0 : index
    %c0_2 = arith.constant 0 : index
    %3 = vector.load %arg3[%c0_1, %c0_2] : memref<1x32xf32, #tpu.memory_space<vmem>>, vector<1x32xf32>
    %cst_3 = arith.constant 0.001953125 : f32
    %4 = vector.broadcast %cst_3 : f32 to vector<1x32xf32>
    %5 = arith.mulf %3, %4 : vector<1x32xf32>
    %6 = arith.mulf %2, %2 : vector<1x32xf32>
    %7 = arith.subf %5, %6 : vector<1x32xf32>
    %c0_4 = arith.constant 0 : index
    %c0_5 = arith.constant 0 : index
    %8 = vector.load %arg4[%c0_4, %c0_5] : memref<1x32xf32, #tpu.memory_space<vmem>>, vector<1x32xf32>
    %cst_6 = arith.constant 9.99999974E-6 : f32
    %9 = vector.broadcast %cst_6 : f32 to vector<1x32xf32>
    %10 = arith.addf %7, %9 : vector<1x32xf32>
    %11 = math.rsqrt %10 : vector<1x32xf32>
    %12 = arith.mulf %8, %11 : vector<1x32xf32>
    %c0_7 = arith.constant 0 : index
    %c0_8 = arith.constant 0 : index
    %13 = vector.load %arg5[%c0_7, %c0_8] : memref<1x32xf32, #tpu.memory_space<vmem>>, vector<1x32xf32>
    %14 = arith.mulf %2, %12 : vector<1x32xf32>
    %15 = arith.subf %13, %14 : vector<1x32xf32>
    %c0_9 = arith.constant 0 : index
    %c0_10 = arith.constant 0 : index
    %16 = vector.load %arg1[%c0_9, %c0_10] : memref<128x32xbf16, #tpu.memory_space<vmem>>, vector<128x32xbf16>
    %17 = arith.extf %16 : vector<128x32xbf16> to vector<128x32xf32>
    %18 = vector.broadcast %12 : vector<1x32xf32> to vector<128x32xf32>
    %19 = arith.mulf %17, %18 : vector<128x32xf32>
    %20 = vector.broadcast %15 : vector<1x32xf32> to vector<128x32xf32>
    %21 = arith.addf %19, %20 : vector<128x32xf32>
    %cst_11 = arith.constant 0.000000e+00 : f32
    %22 = vector.broadcast %cst_11 : f32 to vector<128x32xf32>
    %23 = arith.maximumf %21, %22 : vector<128x32xf32>
    %24 = arith.truncf %23 : vector<128x32xf32> to vector<128x32xbf16>
    %c0_12 = arith.constant 0 : index
    %c0_13 = arith.constant 0 : index
    %25 = vector.load %arg6[%c0_12, %c0_13] : memref<128x32xbf16, #tpu.memory_space<vmem>>, vector<128x32xbf16>
    tpu.vector_store %arg6[%c0_12, %c0_13], %24 {strides = array<i32>} : memref<128x32xbf16, #tpu.memory_space<vmem>>, vector<128x32xbf16>,
    return
  }
  func.func @transform_0(%arg0: i32) -> (i32, i32) {
    %c0_i32 = arith.constant 0 : i32
    %c0_i32_0 = arith.constant 0 : i32
    return %arg0, %c0_i32 : i32, i32
  }
  func.func @transform_1(%arg0: i32) -> (i32, i32) {
    %c0_i32 = arith.constant 0 : i32
    %c0_i32_0 = arith.constant 0 : i32
    %c0_i32_1 = arith.constant 0 : i32
    return %c0_i32, %c0_i32_0 : i32, i32
  }
  func.func @transform_2(%arg0: i32) -> (i32, i32) {
    %c0_i32 = arith.constant 0 : i32
    %c0_i32_0 = arith.constant 0 : i32
    %c0_i32_1 = arith.constant 0 : i32
    return %c0_i32, %c0_i32_0 : i32, i32
  }
  func.func @transform_3(%arg0: i32) -> (i32, i32) {
    %c0_i32 = arith.constant 0 : i32
    %c0_i32_0 = arith.constant 0 : i32
    %c0_i32_1 = arith.constant 0 : i32
    return %c0_i32, %c0_i32_0 : i32, i32
  }
  func.func @transform_4(%arg0: i32) -> (i32, i32) {
    %c0_i32 = arith.constant 0 : i32
    %c0_i32_0 = arith.constant 0 : i32
    %c0_i32_1 = arith.constant 0 : i32
    return %c0_i32, %c0_i32_0 : i32, i32
  }
  func.func @transform_5(%arg0: i32) -> (i32, i32) {
    %c0_i32 = arith.constant 0 : i32
    %c0_i32_0 = arith.constant 0 : i32
    return %arg0, %c0_i32 : i32, i32
  }
}

module attributes {stable_mosaic.version = 11 : i64} {
  func.func @_conv3x3_stats_kernel(%arg0: i32, %arg1: memref<1x18x18x32xbf16, #tpu.memory_space<vmem>>, %arg2: memref<9x32x32xbf16, #tpu.memory_space<vmem>>, %arg3: memref<256x32xbf16, #tpu.memory_space<vmem>>, %arg4: memref<1x32xf32, #tpu.memory_space<vmem>>, %arg5: memref<1x32xf32, #tpu.memory_space<vmem>>) attributes {dimension_semantics = [#tpu.dimension_semantics<arbitrary>], iteration_bounds = array<i64: 2>, scalar_prefetch = 0 : i64, scratch_operands = 0 : i64, tpu.core_type = #tpu.core_type<tc>, window_params = [{transform_indices = @transform_0, window_bounds = array<i64: 1, 18, 18, 32>}, {pipeline_mode = #tpu.pipeline_mode<synchronous>, transform_indices = @transform_1, window_bounds = array<i64: 9, 32, 32>}, {transform_indices = @transform_2, window_bounds = array<i64: 256, 32>}, {pipeline_mode = #tpu.pipeline_mode<synchronous>, transform_indices = @transform_3, window_bounds = array<i64: 1, 32>}, {pipeline_mode = #tpu.pipeline_mode<synchronous>, transform_indices = @transform_4, window_bounds = array<i64: 1, 32>}]} {
    %c0_i32 = arith.constant 0 : i32
    %0 = arith.cmpi eq, %arg0, %c0_i32 : i32
    %1 = arith.extui %0 : i1 to i32
    %c0_i32_0 = arith.constant 0 : i32
    %2 = arith.cmpi ne, %1, %c0_i32_0 : i32
    scf.if %2 {
      %cst_76 = arith.constant 0.000000e+00 : f32
      %80 = vector.broadcast %cst_76 : f32 to vector<1x32xf32>
      %c0_77 = arith.constant 0 : index
      %c0_78 = arith.constant 0 : index
      %81 = vector.load %arg4[%c0_77, %c0_78] : memref<1x32xf32, #tpu.memory_space<vmem>>, vector<1x32xf32>
      tpu.vector_store %arg4[%c0_77, %c0_78], %80 {strides = array<i32>} : memref<1x32xf32, #tpu.memory_space<vmem>>, vector<1x32xf32>,
      %cst_79 = arith.constant 0.000000e+00 : f32
      %82 = vector.broadcast %cst_79 : f32 to vector<1x32xf32>
      %c0_80 = arith.constant 0 : index
      %c0_81 = arith.constant 0 : index
      %83 = vector.load %arg5[%c0_80, %c0_81] : memref<1x32xf32, #tpu.memory_space<vmem>>, vector<1x32xf32>
      tpu.vector_store %arg5[%c0_80, %c0_81], %82 {strides = array<i32>} : memref<1x32xf32, #tpu.memory_space<vmem>>, vector<1x32xf32>,
    } else {
    }
    %cst = arith.constant 0.000000e+00 : f32
    %3 = vector.broadcast %cst : f32 to vector<256x32xf32>
    %c0 = arith.constant 0 : index
    %c0_1 = arith.constant 0 : index
    %c0_2 = arith.constant 0 : index
    %c0_3 = arith.constant 0 : index
    %4 = vector.load %arg1[%c0, %c0_1, %c0_2, %c0_3] : memref<1x18x18x32xbf16, #tpu.memory_space<vmem>>, vector<1x16x16x32xbf16>
    %5 = vector.shape_cast %4 : vector<1x16x16x32xbf16> to vector<16x16x32xbf16>
    %6 = vector.shape_cast %5 : vector<16x16x32xbf16> to vector<256x32xbf16>
    %c0_4 = arith.constant 0 : index
    %c0_5 = arith.constant 0 : index
    %c0_6 = arith.constant 0 : index
    %7 = vector.load %arg2[%c0_4, %c0_5, %c0_6] : memref<9x32x32xbf16, #tpu.memory_space<vmem>>, vector<1x32x32xbf16>
    %8 = vector.shape_cast %7 : vector<1x32x32xbf16> to vector<32x32xbf16>
    %cst_7 = arith.constant dense<0.000000e+00> : vector<256x32xf32>
    %9 = tpu.matmul %6, %8, %cst_7 {dimension_numbers = #tpu.dot_dimension_numbers<[1], [0], [0], [1], [0, 0, 1, 1], [], []>} : vector<256x32xbf16>, vector<32x32xbf16>, vector<256x32xf32> -> vector<256x32xf32>
    %10 = arith.addf %3, %9 : vector<256x32xf32>
    %c0_8 = arith.constant 0 : index
    %c0_9 = arith.constant 0 : index
    %c1 = arith.constant 1 : index
    %c0_10 = arith.constant 0 : index
    %11 = vector.load %arg1[%c0_8, %c0_9, %c1, %c0_10] : memref<1x18x18x32xbf16, #tpu.memory_space<vmem>>, vector<1x16x16x32xbf16>
    %12 = vector.shape_cast %11 : vector<1x16x16x32xbf16> to vector<16x16x32xbf16>
    %13 = vector.shape_cast %12 : vector<16x16x32xbf16> to vector<256x32xbf16>
    %c1_11 = arith.constant 1 : index
    %c0_12 = arith.constant 0 : index
    %c0_13 = arith.constant 0 : index
    %14 = vector.load %arg2[%c1_11, %c0_12, %c0_13] : memref<9x32x32xbf16, #tpu.memory_space<vmem>>, vector<1x32x32xbf16>
    %15 = vector.shape_cast %14 : vector<1x32x32xbf16> to vector<32x32xbf16>
    %cst_14 = arith.constant dense<0.000000e+00> : vector<256x32xf32>
    %16 = tpu.matmul %13, %15, %cst_14 {dimension_numbers = #tpu.dot_dimension_numbers<[1], [0], [0], [1], [0, 0, 1, 1], [], []>} : vector<256x32xbf16>, vector<32x32xbf16>, vector<256x32xf32> -> vector<256x32xf32>
    %17 = arith.addf %10, %16 : vector<256x32xf32>
    %c0_15 = arith.constant 0 : index
    %c0_16 = arith.constant 0 : index
    %c2 = arith.constant 2 : index
    %c0_17 = arith.constant 0 : index
    %18 = vector.load %arg1[%c0_15, %c0_16, %c2, %c0_17] : memref<1x18x18x32xbf16, #tpu.memory_space<vmem>>, vector<1x16x16x32xbf16>
    %19 = vector.shape_cast %18 : vector<1x16x16x32xbf16> to vector<16x16x32xbf16>
    %20 = vector.shape_cast %19 : vector<16x16x32xbf16> to vector<256x32xbf16>
    %c2_18 = arith.constant 2 : index
    %c0_19 = arith.constant 0 : index
    %c0_20 = arith.constant 0 : index
    %21 = vector.load %arg2[%c2_18, %c0_19, %c0_20] : memref<9x32x32xbf16, #tpu.memory_space<vmem>>, vector<1x32x32xbf16>
    %22 = vector.shape_cast %21 : vector<1x32x32xbf16> to vector<32x32xbf16>
    %cst_21 = arith.constant dense<0.000000e+00> : vector<256x32xf32>
    %23 = tpu.matmul %20, %22, %cst_21 {dimension_numbers = #tpu.dot_dimension_numbers<[1], [0], [0], [1], [0, 0, 1, 1], [], []>} : vector<256x32xbf16>, vector<32x32xbf16>, vector<256x32xf32> -> vector<256x32xf32>
    %24 = arith.addf %17, %23 : vector<256x32xf32>
    %c0_22 = arith.constant 0 : index
    %c1_23 = arith.constant 1 : index
    %c0_24 = arith.constant 0 : index
    %c0_25 = arith.constant 0 : index
    %25 = vector.load %arg1[%c0_22, %c1_23, %c0_24, %c0_25] : memref<1x18x18x32xbf16, #tpu.memory_space<vmem>>, vector<1x16x16x32xbf16>
    %26 = vector.shape_cast %25 : vector<1x16x16x32xbf16> to vector<16x16x32xbf16>
    %27 = vector.shape_cast %26 : vector<16x16x32xbf16> to vector<256x32xbf16>
    %c3 = arith.constant 3 : index
    %c0_26 = arith.constant 0 : index
    %c0_27 = arith.constant 0 : index
    %28 = vector.load %arg2[%c3, %c0_26, %c0_27] : memref<9x32x32xbf16, #tpu.memory_space<vmem>>, vector<1x32x32xbf16>
    %29 = vector.shape_cast %28 : vector<1x32x32xbf16> to vector<32x32xbf16>
    %cst_28 = arith.constant dense<0.000000e+00> : vector<256x32xf32>
    %30 = tpu.matmul %27, %29, %cst_28 {dimension_numbers = #tpu.dot_dimension_numbers<[1], [0], [0], [1], [0, 0, 1, 1], [], []>} : vector<256x32xbf16>, vector<32x32xbf16>, vector<256x32xf32> -> vector<256x32xf32>
    %31 = arith.addf %24, %30 : vector<256x32xf32>
    %c0_29 = arith.constant 0 : index
    %c1_30 = arith.constant 1 : index
    %c1_31 = arith.constant 1 : index
    %c0_32 = arith.constant 0 : index
    %32 = vector.load %arg1[%c0_29, %c1_30, %c1_31, %c0_32] : memref<1x18x18x32xbf16, #tpu.memory_space<vmem>>, vector<1x16x16x32xbf16>
    %33 = vector.shape_cast %32 : vector<1x16x16x32xbf16> to vector<16x16x32xbf16>
    %34 = vector.shape_cast %33 : vector<16x16x32xbf16> to vector<256x32xbf16>
    %c4 = arith.constant 4 : index
    %c0_33 = arith.constant 0 : index
    %c0_34 = arith.constant 0 : index
    %35 = vector.load %arg2[%c4, %c0_33, %c0_34] : memref<9x32x32xbf16, #tpu.memory_space<vmem>>, vector<1x32x32xbf16>
    %36 = vector.shape_cast %35 : vector<1x32x32xbf16> to vector<32x32xbf16>
    %cst_35 = arith.constant dense<0.000000e+00> : vector<256x32xf32>
    %37 = tpu.matmul %34, %36, %cst_35 {dimension_numbers = #tpu.dot_dimension_numbers<[1], [0], [0], [1], [0, 0, 1, 1], [], []>} : vector<256x32xbf16>, vector<32x32xbf16>, vector<256x32xf32> -> vector<256x32xf32>
    %38 = arith.addf %31, %37 : vector<256x32xf32>
    %c0_36 = arith.constant 0 : index
    %c1_37 = arith.constant 1 : index
    %c2_38 = arith.constant 2 : index
    %c0_39 = arith.constant 0 : index
    %39 = vector.load %arg1[%c0_36, %c1_37, %c2_38, %c0_39] : memref<1x18x18x32xbf16, #tpu.memory_space<vmem>>, vector<1x16x16x32xbf16>
    %40 = vector.shape_cast %39 : vector<1x16x16x32xbf16> to vector<16x16x32xbf16>
    %41 = vector.shape_cast %40 : vector<16x16x32xbf16> to vector<256x32xbf16>
    %c5 = arith.constant 5 : index
    %c0_40 = arith.constant 0 : index
    %c0_41 = arith.constant 0 : index
    %42 = vector.load %arg2[%c5, %c0_40, %c0_41] : memref<9x32x32xbf16, #tpu.memory_space<vmem>>, vector<1x32x32xbf16>
    %43 = vector.shape_cast %42 : vector<1x32x32xbf16> to vector<32x32xbf16>
    %cst_42 = arith.constant dense<0.000000e+00> : vector<256x32xf32>
    %44 = tpu.matmul %41, %43, %cst_42 {dimension_numbers = #tpu.dot_dimension_numbers<[1], [0], [0], [1], [0, 0, 1, 1], [], []>} : vector<256x32xbf16>, vector<32x32xbf16>, vector<256x32xf32> -> vector<256x32xf32>
    %45 = arith.addf %38, %44 : vector<256x32xf32>
    %c0_43 = arith.constant 0 : index
    %c2_44 = arith.constant 2 : index
    %c0_45 = arith.constant 0 : index
    %c0_46 = arith.constant 0 : index
    %46 = vector.load %arg1[%c0_43, %c2_44, %c0_45, %c0_46] : memref<1x18x18x32xbf16, #tpu.memory_space<vmem>>, vector<1x16x16x32xbf16>
    %47 = vector.shape_cast %46 : vector<1x16x16x32xbf16> to vector<16x16x32xbf16>
    %48 = vector.shape_cast %47 : vector<16x16x32xbf16> to vector<256x32xbf16>
    %c6 = arith.constant 6 : index
    %c0_47 = arith.constant 0 : index
    %c0_48 = arith.constant 0 : index
    %49 = vector.load %arg2[%c6, %c0_47, %c0_48] : memref<9x32x32xbf16, #tpu.memory_space<vmem>>, vector<1x32x32xbf16>
    %50 = vector.shape_cast %49 : vector<1x32x32xbf16> to vector<32x32xbf16>
    %cst_49 = arith.constant dense<0.000000e+00> : vector<256x32xf32>
    %51 = tpu.matmul %48, %50, %cst_49 {dimension_numbers = #tpu.dot_dimension_numbers<[1], [0], [0], [1], [0, 0, 1, 1], [], []>} : vector<256x32xbf16>, vector<32x32xbf16>, vector<256x32xf32> -> vector<256x32xf32>
    %52 = arith.addf %45, %51 : vector<256x32xf32>
    %c0_50 = arith.constant 0 : index
    %c2_51 = arith.constant 2 : index
    %c1_52 = arith.constant 1 : index
    %c0_53 = arith.constant 0 : index
    %53 = vector.load %arg1[%c0_50, %c2_51, %c1_52, %c0_53] : memref<1x18x18x32xbf16, #tpu.memory_space<vmem>>, vector<1x16x16x32xbf16>
    %54 = vector.shape_cast %53 : vector<1x16x16x32xbf16> to vector<16x16x32xbf16>
    %55 = vector.shape_cast %54 : vector<16x16x32xbf16> to vector<256x32xbf16>
    %c7 = arith.constant 7 : index
    %c0_54 = arith.constant 0 : index
    %c0_55 = arith.constant 0 : index
    %56 = vector.load %arg2[%c7, %c0_54, %c0_55] : memref<9x32x32xbf16, #tpu.memory_space<vmem>>, vector<1x32x32xbf16>
    %57 = vector.shape_cast %56 : vector<1x32x32xbf16> to vector<32x32xbf16>
    %cst_56 = arith.constant dense<0.000000e+00> : vector<256x32xf32>
    %58 = tpu.matmul %55, %57, %cst_56 {dimension_numbers = #tpu.dot_dimension_numbers<[1], [0], [0], [1], [0, 0, 1, 1], [], []>} : vector<256x32xbf16>, vector<32x32xbf16>, vector<256x32xf32> -> vector<256x32xf32>
    %59 = arith.addf %52, %58 : vector<256x32xf32>
    %c0_57 = arith.constant 0 : index
    %c2_58 = arith.constant 2 : index
    %c2_59 = arith.constant 2 : index
    %c0_60 = arith.constant 0 : index
    %60 = vector.load %arg1[%c0_57, %c2_58, %c2_59, %c0_60] : memref<1x18x18x32xbf16, #tpu.memory_space<vmem>>, vector<1x16x16x32xbf16>
    %61 = vector.shape_cast %60 : vector<1x16x16x32xbf16> to vector<16x16x32xbf16>
    %62 = vector.shape_cast %61 : vector<16x16x32xbf16> to vector<256x32xbf16>
    %c8 = arith.constant 8 : index
    %c0_61 = arith.constant 0 : index
    %c0_62 = arith.constant 0 : index
    %63 = vector.load %arg2[%c8, %c0_61, %c0_62] : memref<9x32x32xbf16, #tpu.memory_space<vmem>>, vector<1x32x32xbf16>
    %64 = vector.shape_cast %63 : vector<1x32x32xbf16> to vector<32x32xbf16>
    %cst_63 = arith.constant dense<0.000000e+00> : vector<256x32xf32>
    %65 = tpu.matmul %62, %64, %cst_63 {dimension_numbers = #tpu.dot_dimension_numbers<[1], [0], [0], [1], [0, 0, 1, 1], [], []>} : vector<256x32xbf16>, vector<32x32xbf16>, vector<256x32xf32> -> vector<256x32xf32>
    %66 = arith.addf %59, %65 : vector<256x32xf32>
    %67 = arith.truncf %66 : vector<256x32xf32> to vector<256x32xbf16>
    %c0_64 = arith.constant 0 : index
    %c0_65 = arith.constant 0 : index
    %68 = vector.load %arg3[%c0_64, %c0_65] : memref<256x32xbf16, #tpu.memory_space<vmem>>, vector<256x32xbf16>
    tpu.vector_store %arg3[%c0_64, %c0_65], %67 {strides = array<i32>} : memref<256x32xbf16, #tpu.memory_space<vmem>>, vector<256x32xbf16>,
    %c0_66 = arith.constant 0 : index
    %c0_67 = arith.constant 0 : index
    %69 = vector.load %arg4[%c0_66, %c0_67] : memref<1x32xf32, #tpu.memory_space<vmem>>, vector<1x32xf32>
    %cst_68 = arith.constant dense<0.000000e+00> : vector<32xf32>
    %70 = vector.multi_reduction <add>, %66, %cst_68 [0] : vector<256x32xf32> to vector<32xf32>
    %71 = vector.shape_cast %70 : vector<32xf32> to vector<1x32xf32>
    %72 = arith.addf %69, %71 : vector<1x32xf32>
    %c0_69 = arith.constant 0 : index
    %c0_70 = arith.constant 0 : index
    %73 = vector.load %arg4[%c0_69, %c0_70] : memref<1x32xf32, #tpu.memory_space<vmem>>, vector<1x32xf32>
    tpu.vector_store %arg4[%c0_69, %c0_70], %72 {strides = array<i32>} : memref<1x32xf32, #tpu.memory_space<vmem>>, vector<1x32xf32>,
    %c0_71 = arith.constant 0 : index
    %c0_72 = arith.constant 0 : index
    %74 = vector.load %arg5[%c0_71, %c0_72] : memref<1x32xf32, #tpu.memory_space<vmem>>, vector<1x32xf32>
    %75 = arith.mulf %66, %66 : vector<256x32xf32>
    %cst_73 = arith.constant dense<0.000000e+00> : vector<32xf32>
    %76 = vector.multi_reduction <add>, %75, %cst_73 [0] : vector<256x32xf32> to vector<32xf32>
    %77 = vector.shape_cast %76 : vector<32xf32> to vector<1x32xf32>
    %78 = arith.addf %74, %77 : vector<1x32xf32>
    %c0_74 = arith.constant 0 : index
    %c0_75 = arith.constant 0 : index
    %79 = vector.load %arg5[%c0_74, %c0_75] : memref<1x32xf32, #tpu.memory_space<vmem>>, vector<1x32xf32>
    tpu.vector_store %arg5[%c0_74, %c0_75], %78 {strides = array<i32>} : memref<1x32xf32, #tpu.memory_space<vmem>>, vector<1x32xf32>,
    return
  }
  func.func @transform_0(%arg0: i32) -> (i32, i32, i32, i32) {
    %c0_i32 = arith.constant 0 : i32
    %c0_i32_0 = arith.constant 0 : i32
    %c0_i32_1 = arith.constant 0 : i32
    %c0_i32_2 = arith.constant 0 : i32
    return %arg0, %c0_i32, %c0_i32_0, %c0_i32_1 : i32, i32, i32, i32
  }
  func.func @transform_1(%arg0: i32) -> (i32, i32, i32) {
    %c0_i32 = arith.constant 0 : i32
    %c0_i32_0 = arith.constant 0 : i32
    %c0_i32_1 = arith.constant 0 : i32
    %c0_i32_2 = arith.constant 0 : i32
    return %c0_i32, %c0_i32_0, %c0_i32_1 : i32, i32, i32
  }
  func.func @transform_2(%arg0: i32) -> (i32, i32) {
    %c0_i32 = arith.constant 0 : i32
    %c0_i32_0 = arith.constant 0 : i32
    return %arg0, %c0_i32 : i32, i32
  }
  func.func @transform_3(%arg0: i32) -> (i32, i32) {
    %c0_i32 = arith.constant 0 : i32
    %c0_i32_0 = arith.constant 0 : i32
    %c0_i32_1 = arith.constant 0 : i32
    return %c0_i32, %c0_i32_0 : i32, i32
  }
  func.func @transform_4(%arg0: i32) -> (i32, i32) {
    %c0_i32 = arith.constant 0 : i32
    %c0_i32_0 = arith.constant 0 : i32
    %c0_i32_1 = arith.constant 0 : i32
    return %c0_i32, %c0_i32_0 : i32, i32
  }
}

module attributes {stable_mosaic.version = 11 : i64} {
  func.func @_bn_relu_conv1x1_kernel(%arg0: i32, %arg1: memref<256x32xbf16, #tpu.memory_space<vmem>>, %arg2: memref<1x32xf32, #tpu.memory_space<vmem>>, %arg3: memref<1x32xf32, #tpu.memory_space<vmem>>, %arg4: memref<1x32xf32, #tpu.memory_space<vmem>>, %arg5: memref<1x32xf32, #tpu.memory_space<vmem>>, %arg6: memref<32x128xbf16, #tpu.memory_space<vmem>>, %arg7: memref<256x128xbf16, #tpu.memory_space<vmem>>, %arg8: memref<1x128xf32, #tpu.memory_space<vmem>>, %arg9: memref<1x128xf32, #tpu.memory_space<vmem>>, %arg10: memref<1x1x128xf32, #tpu.memory_space<vmem>>) attributes {dimension_semantics = [#tpu.dimension_semantics<arbitrary>], iteration_bounds = array<i64: 2>, scalar_prefetch = 0 : i64, scratch_operands = 0 : i64, tpu.core_type = #tpu.core_type<tc>, window_params = [{transform_indices = @transform_0, window_bounds = array<i64: 256, 32>}, {pipeline_mode = #tpu.pipeline_mode<synchronous>, transform_indices = @transform_1, window_bounds = array<i64: 1, 32>}, {pipeline_mode = #tpu.pipeline_mode<synchronous>, transform_indices = @transform_2, window_bounds = array<i64: 1, 32>}, {pipeline_mode = #tpu.pipeline_mode<synchronous>, transform_indices = @transform_3, window_bounds = array<i64: 1, 32>}, {pipeline_mode = #tpu.pipeline_mode<synchronous>, transform_indices = @transform_4, window_bounds = array<i64: 1, 32>}, {pipeline_mode = #tpu.pipeline_mode<synchronous>, transform_indices = @transform_5, window_bounds = array<i64: 32, 128>}, {transform_indices = @transform_6, window_bounds = array<i64: 256, 128>}, {pipeline_mode = #tpu.pipeline_mode<synchronous>, transform_indices = @transform_7, window_bounds = array<i64: 1, 128>}, {pipeline_mode = #tpu.pipeline_mode<synchronous>, transform_indices = @transform_8, window_bounds = array<i64: 1, 128>}, {transform_indices = @transform_9, window_bounds = array<i64: 1, 1, 128>}]} {
    %c0_i32 = arith.constant 0 : i32
    %0 = arith.cmpi eq, %arg0, %c0_i32 : i32
    %1 = arith.extui %0 : i1 to i32
    %c0_i32_0 = arith.constant 0 : i32
    %2 = arith.cmpi ne, %1, %c0_i32_0 : i32
    scf.if %2 {
      %cst_31 = arith.constant 0.000000e+00 : f32
      %46 = vector.broadcast %cst_31 : f32 to vector<1x128xf32>
      %c0_32 = arith.constant 0 : index
      %c0_33 = arith.constant 0 : index
      %47 = vector.load %arg8[%c0_32, %c0_33] : memref<1x128xf32, #tpu.memory_space<vmem>>, vector<1x128xf32>
      tpu.vector_store %arg8[%c0_32, %c0_33], %46 {strides = array<i32>} : memref<1x128xf32, #tpu.memory_space<vmem>>, vector<1x128xf32>,
      %cst_34 = arith.constant 0.000000e+00 : f32
      %48 = vector.broadcast %cst_34 : f32 to vector<1x128xf32>
      %c0_35 = arith.constant 0 : index
      %c0_36 = arith.constant 0 : index
      %49 = vector.load %arg9[%c0_35, %c0_36] : memref<1x128xf32, #tpu.memory_space<vmem>>, vector<1x128xf32>
      tpu.vector_store %arg9[%c0_35, %c0_36], %48 {strides = array<i32>} : memref<1x128xf32, #tpu.memory_space<vmem>>, vector<1x128xf32>,
    } else {
    }
    %c0 = arith.constant 0 : index
    %c0_1 = arith.constant 0 : index
    %3 = vector.load %arg2[%c0, %c0_1] : memref<1x32xf32, #tpu.memory_space<vmem>>, vector<1x32xf32>
    %cst = arith.constant 0.001953125 : f32
    %4 = vector.broadcast %cst : f32 to vector<1x32xf32>
    %5 = arith.mulf %3, %4 : vector<1x32xf32>
    %c0_2 = arith.constant 0 : index
    %c0_3 = arith.constant 0 : index
    %6 = vector.load %arg3[%c0_2, %c0_3] : memref<1x32xf32, #tpu.memory_space<vmem>>, vector<1x32xf32>
    %cst_4 = arith.constant 0.001953125 : f32
    %7 = vector.broadcast %cst_4 : f32 to vector<1x32xf32>
    %8 = arith.mulf %6, %7 : vector<1x32xf32>
    %9 = arith.mulf %5, %5 : vector<1x32xf32>
    %10 = arith.subf %8, %9 : vector<1x32xf32>
    %c0_5 = arith.constant 0 : index
    %c0_6 = arith.constant 0 : index
    %11 = vector.load %arg4[%c0_5, %c0_6] : memref<1x32xf32, #tpu.memory_space<vmem>>, vector<1x32xf32>
    %cst_7 = arith.constant 9.99999974E-6 : f32
    %12 = vector.broadcast %cst_7 : f32 to vector<1x32xf32>
    %13 = arith.addf %10, %12 : vector<1x32xf32>
    %14 = math.rsqrt %13 : vector<1x32xf32>
    %15 = arith.mulf %11, %14 : vector<1x32xf32>
    %c0_8 = arith.constant 0 : index
    %c0_9 = arith.constant 0 : index
    %16 = vector.load %arg5[%c0_8, %c0_9] : memref<1x32xf32, #tpu.memory_space<vmem>>, vector<1x32xf32>
    %17 = arith.mulf %5, %15 : vector<1x32xf32>
    %18 = arith.subf %16, %17 : vector<1x32xf32>
    %c0_10 = arith.constant 0 : index
    %c0_11 = arith.constant 0 : index
    %19 = vector.load %arg1[%c0_10, %c0_11] : memref<256x32xbf16, #tpu.memory_space<vmem>>, vector<256x32xbf16>
    %20 = arith.extf %19 : vector<256x32xbf16> to vector<256x32xf32>
    %21 = vector.broadcast %15 : vector<1x32xf32> to vector<256x32xf32>
    %22 = arith.mulf %20, %21 : vector<256x32xf32>
    %23 = vector.broadcast %18 : vector<1x32xf32> to vector<256x32xf32>
    %24 = arith.addf %22, %23 : vector<256x32xf32>
    %cst_12 = arith.constant 0.000000e+00 : f32
    %25 = vector.broadcast %cst_12 : f32 to vector<256x32xf32>
    %26 = arith.maximumf %24, %25 : vector<256x32xf32>
    %27 = arith.truncf %26 : vector<256x32xf32> to vector<256x32xbf16>
    %c0_13 = arith.constant 0 : index
    %c0_14 = arith.constant 0 : index
    %28 = vector.load %arg6[%c0_13, %c0_14] : memref<32x128xbf16, #tpu.memory_space<vmem>>, vector<32x128xbf16>
    %cst_15 = arith.constant dense<0.000000e+00> : vector<256x128xf32>
    %29 = tpu.matmul %27, %28, %cst_15 {dimension_numbers = #tpu.dot_dimension_numbers<[1], [0], [0], [1], [0, 0, 1, 1], [], []>} : vector<256x32xbf16>, vector<32x128xbf16>, vector<256x128xf32> -> vector<256x128xf32>
    %30 = arith.truncf %29 : vector<256x128xf32> to vector<256x128xbf16>
    %c0_16 = arith.constant 0 : index
    %c0_17 = arith.constant 0 : index
    %31 = vector.load %arg7[%c0_16, %c0_17] : memref<256x128xbf16, #tpu.memory_space<vmem>>, vector<256x128xbf16>
    tpu.vector_store %arg7[%c0_16, %c0_17], %30 {strides = array<i32>} : memref<256x128xbf16, #tpu.memory_space<vmem>>, vector<256x128xbf16>,
    %cst_18 = arith.constant dense<0.000000e+00> : vector<128xf32>
    %32 = vector.multi_reduction <add>, %29, %cst_18 [0] : vector<256x128xf32> to vector<128xf32>
    %33 = vector.shape_cast %32 : vector<128xf32> to vector<1x128xf32>
    %c0_19 = arith.constant 0 : index
    %c0_20 = arith.constant 0 : index
    %34 = vector.load %arg8[%c0_19, %c0_20] : memref<1x128xf32, #tpu.memory_space<vmem>>, vector<1x128xf32>
    %35 = arith.addf %34, %33 : vector<1x128xf32>
    %c0_21 = arith.constant 0 : index
    %c0_22 = arith.constant 0 : index
    %36 = vector.load %arg8[%c0_21, %c0_22] : memref<1x128xf32, #tpu.memory_space<vmem>>, vector<1x128xf32>
    tpu.vector_store %arg8[%c0_21, %c0_22], %35 {strides = array<i32>} : memref<1x128xf32, #tpu.memory_space<vmem>>, vector<1x128xf32>,
    %c0_23 = arith.constant 0 : index
    %c0_24 = arith.constant 0 : index
    %37 = vector.load %arg9[%c0_23, %c0_24] : memref<1x128xf32, #tpu.memory_space<vmem>>, vector<1x128xf32>
    %38 = arith.mulf %29, %29 : vector<256x128xf32>
    %cst_25 = arith.constant dense<0.000000e+00> : vector<128xf32>
    %39 = vector.multi_reduction <add>, %38, %cst_25 [0] : vector<256x128xf32> to vector<128xf32>
    %40 = vector.shape_cast %39 : vector<128xf32> to vector<1x128xf32>
    %41 = arith.addf %37, %40 : vector<1x128xf32>
    %c0_26 = arith.constant 0 : index
    %c0_27 = arith.constant 0 : index
    %42 = vector.load %arg9[%c0_26, %c0_27] : memref<1x128xf32, #tpu.memory_space<vmem>>, vector<1x128xf32>
    tpu.vector_store %arg9[%c0_26, %c0_27], %41 {strides = array<i32>} : memref<1x128xf32, #tpu.memory_space<vmem>>, vector<1x128xf32>,
    %c0_28 = arith.constant 0 : index
    %c0_29 = arith.constant 0 : index
    %c0_30 = arith.constant 0 : index
    %43 = vector.load %arg10[%c0_28, %c0_29, %c0_30] : memref<1x1x128xf32, #tpu.memory_space<vmem>>, vector<1x1x128xf32>
    %44 = vector.shape_cast %43 : vector<1x1x128xf32> to vector<1x128xf32>
    %45 = vector.shape_cast %33 : vector<1x128xf32> to vector<1x1x128xf32>
    tpu.vector_store %arg10[%c0_28, %c0_29, %c0_30], %45 {strides = array<i32>} : memref<1x1x128xf32, #tpu.memory_space<vmem>>, vector<1x1x128xf32>,
    return
  }
  func.func @transform_0(%arg0: i32) -> (i32, i32) {
    %c0_i32 = arith.constant 0 : i32
    %c0_i32_0 = arith.constant 0 : i32
    return %arg0, %c0_i32 : i32, i32
  }
  func.func @transform_1(%arg0: i32) -> (i32, i32) {
    %c0_i32 = arith.constant 0 : i32
    %c0_i32_0 = arith.constant 0 : i32
    %c0_i32_1 = arith.constant 0 : i32
    return %c0_i32, %c0_i32_0 : i32, i32
  }
  func.func @transform_2(%arg0: i32) -> (i32, i32) {
    %c0_i32 = arith.constant 0 : i32
    %c0_i32_0 = arith.constant 0 : i32
    %c0_i32_1 = arith.constant 0 : i32
    return %c0_i32, %c0_i32_0 : i32, i32
  }
  func.func @transform_3(%arg0: i32) -> (i32, i32) {
    %c0_i32 = arith.constant 0 : i32
    %c0_i32_0 = arith.constant 0 : i32
    %c0_i32_1 = arith.constant 0 : i32
    return %c0_i32, %c0_i32_0 : i32, i32
  }
  func.func @transform_4(%arg0: i32) -> (i32, i32) {
    %c0_i32 = arith.constant 0 : i32
    %c0_i32_0 = arith.constant 0 : i32
    %c0_i32_1 = arith.constant 0 : i32
    return %c0_i32, %c0_i32_0 : i32, i32
  }
  func.func @transform_5(%arg0: i32) -> (i32, i32) {
    %c0_i32 = arith.constant 0 : i32
    %c0_i32_0 = arith.constant 0 : i32
    %c0_i32_1 = arith.constant 0 : i32
    return %c0_i32, %c0_i32_0 : i32, i32
  }
  func.func @transform_6(%arg0: i32) -> (i32, i32) {
    %c0_i32 = arith.constant 0 : i32
    %c0_i32_0 = arith.constant 0 : i32
    return %arg0, %c0_i32 : i32, i32
  }
  func.func @transform_7(%arg0: i32) -> (i32, i32) {
    %c0_i32 = arith.constant 0 : i32
    %c0_i32_0 = arith.constant 0 : i32
    %c0_i32_1 = arith.constant 0 : i32
    return %c0_i32, %c0_i32_0 : i32, i32
  }
  func.func @transform_8(%arg0: i32) -> (i32, i32) {
    %c0_i32 = arith.constant 0 : i32
    %c0_i32_0 = arith.constant 0 : i32
    %c0_i32_1 = arith.constant 0 : i32
    return %c0_i32, %c0_i32_0 : i32, i32
  }
  func.func @transform_9(%arg0: i32) -> (i32, i32, i32) {
    %c0_i32 = arith.constant 0 : i32
    %c0_i32_0 = arith.constant 0 : i32
    %c0_i32_1 = arith.constant 0 : i32
    return %arg0, %c0_i32, %c0_i32_0 : i32, i32, i32
  }
}

module attributes {stable_mosaic.version = 11 : i64} {
  func.func @_se_kernel(%arg0: memref<2x1x128xf32, #tpu.memory_space<vmem>>, %arg1: memref<1x128xf32, #tpu.memory_space<vmem>>, %arg2: memref<1x128xf32, #tpu.memory_space<vmem>>, %arg3: memref<1x128xf32, #tpu.memory_space<vmem>>, %arg4: memref<1x128xf32, #tpu.memory_space<vmem>>, %arg5: memref<128x8xbf16, #tpu.memory_space<vmem>>, %arg6: memref<8x128xbf16, #tpu.memory_space<vmem>>, %arg7: memref<2x1x128xf32, #tpu.memory_space<vmem>>, %arg8: memref<1x128xf32, #tpu.memory_space<vmem>>, %arg9: memref<1x128xf32, #tpu.memory_space<vmem>>) attributes {dimension_semantics = [], scalar_prefetch = 0 : i64, scratch_operands = 0 : i64, tpu.core_type = #tpu.core_type<tc>} {
    %c0 = arith.constant 0 : index
    %c0_0 = arith.constant 0 : index
    %0 = vector.load %arg1[%c0, %c0_0] : memref<1x128xf32, #tpu.memory_space<vmem>>, vector<1x128xf32>
    %cst = arith.constant 0.001953125 : f32
    %1 = vector.broadcast %cst : f32 to vector<1x128xf32>
    %2 = arith.mulf %0, %1 : vector<1x128xf32>
    %c0_1 = arith.constant 0 : index
    %c0_2 = arith.constant 0 : index
    %3 = vector.load %arg2[%c0_1, %c0_2] : memref<1x128xf32, #tpu.memory_space<vmem>>, vector<1x128xf32>
    %cst_3 = arith.constant 0.001953125 : f32
    %4 = vector.broadcast %cst_3 : f32 to vector<1x128xf32>
    %5 = arith.mulf %3, %4 : vector<1x128xf32>
    %6 = arith.mulf %2, %2 : vector<1x128xf32>
    %7 = arith.subf %5, %6 : vector<1x128xf32>
    %c0_4 = arith.constant 0 : index
    %c0_5 = arith.constant 0 : index
    %8 = vector.load %arg3[%c0_4, %c0_5] : memref<1x128xf32, #tpu.memory_space<vmem>>, vector<1x128xf32>
    %cst_6 = arith.constant 9.99999974E-6 : f32
    %9 = vector.broadcast %cst_6 : f32 to vector<1x128xf32>
    %10 = arith.addf %7, %9 : vector<1x128xf32>
    %11 = math.rsqrt %10 : vector<1x128xf32>
    %12 = arith.mulf %8, %11 : vector<1x128xf32>
    %c0_7 = arith.constant 0 : index
    %c0_8 = arith.constant 0 : index
    %13 = vector.load %arg4[%c0_7, %c0_8] : memref<1x128xf32, #tpu.memory_space<vmem>>, vector<1x128xf32>
    %14 = arith.mulf %2, %12 : vector<1x128xf32>
    %15 = arith.subf %13, %14 : vector<1x128xf32>
    %c0_9 = arith.constant 0 : index
    %c0_10 = arith.constant 0 : index
    %16 = vector.load %arg8[%c0_9, %c0_10] : memref<1x128xf32, #tpu.memory_space<vmem>>, vector<1x128xf32>
    tpu.vector_store %arg8[%c0_9, %c0_10], %12 {strides = array<i32>} : memref<1x128xf32, #tpu.memory_space<vmem>>, vector<1x128xf32>,
    %c0_11 = arith.constant 0 : index
    %c0_12 = arith.constant 0 : index
    %17 = vector.load %arg9[%c0_11, %c0_12] : memref<1x128xf32, #tpu.memory_space<vmem>>, vector<1x128xf32>
    tpu.vector_store %arg9[%c0_11, %c0_12], %15 {strides = array<i32>} : memref<1x128xf32, #tpu.memory_space<vmem>>, vector<1x128xf32>,
    %c0_13 = arith.constant 0 : index
    %c0_14 = arith.constant 0 : index
    %c0_15 = arith.constant 0 : index
    %18 = vector.load %arg0[%c0_13, %c0_14, %c0_15] : memref<2x1x128xf32, #tpu.memory_space<vmem>>, vector<2x1x128xf32>
    %19 = vector.shape_cast %18 : vector<2x1x128xf32> to vector<2x128xf32>
    %cst_16 = arith.constant 3.906250e-03 : f32
    %20 = vector.broadcast %cst_16 : f32 to vector<2x128xf32>
    %21 = arith.mulf %19, %20 : vector<2x128xf32>
    %22 = vector.broadcast %12 : vector<1x128xf32> to vector<2x128xf32>
    %23 = arith.mulf %21, %22 : vector<2x128xf32>
    %24 = vector.broadcast %15 : vector<1x128xf32> to vector<2x128xf32>
    %25 = arith.addf %23, %24 : vector<2x128xf32>
    %26 = arith.truncf %25 : vector<2x128xf32> to vector<2x128xbf16>
    %c0_17 = arith.constant 0 : index
    %c0_18 = arith.constant 0 : index
    %27 = vector.load %arg5[%c0_17, %c0_18] : memref<128x8xbf16, #tpu.memory_space<vmem>>, vector<128x8xbf16>
    %cst_19 = arith.constant dense<0.000000e+00> : vector<2x8xf32>
    %28 = tpu.matmul %26, %27, %cst_19 {dimension_numbers = #tpu.dot_dimension_numbers<[1], [0], [0], [1], [0, 0, 1, 1], [], []>} : vector<2x128xbf16>, vector<128x8xbf16>, vector<2x8xf32> -> vector<2x8xf32>
    %cst_20 = arith.constant 0.000000e+00 : f32
    %29 = vector.broadcast %cst_20 : f32 to vector<2x8xf32>
    %30 = arith.maximumf %28, %29 : vector<2x8xf32>
    %31 = arith.truncf %30 : vector<2x8xf32> to vector<2x8xbf16>
    %c0_21 = arith.constant 0 : index
    %c0_22 = arith.constant 0 : index
    %32 = vector.load %arg6[%c0_21, %c0_22] : memref<8x128xbf16, #tpu.memory_space<vmem>>, vector<8x128xbf16>
    %cst_23 = arith.constant dense<0.000000e+00> : vector<2x128xf32>
    %33 = tpu.matmul %31, %32, %cst_23 {dimension_numbers = #tpu.dot_dimension_numbers<[1], [0], [0], [1], [0, 0, 1, 1], [], []>} : vector<2x8xbf16>, vector<8x128xbf16>, vector<2x128xf32> -> vector<2x128xf32>
    %34 = arith.negf %33 : vector<2x128xf32>
    %35 = math.exp %34 : vector<2x128xf32>
    %cst_24 = arith.constant 1.000000e+00 : f32
    %36 = vector.broadcast %cst_24 : f32 to vector<2x128xf32>
    %37 = arith.addf %36, %35 : vector<2x128xf32>
    %38 = arith.divf %36, %37 : vector<2x128xf32>
    %39 = vector.shape_cast %38 : vector<2x128xf32> to vector<2x1x128xf32>
    %c0_25 = arith.constant 0 : index
    %c0_26 = arith.constant 0 : index
    %c0_27 = arith.constant 0 : index
    %40 = vector.load %arg7[%c0_25, %c0_26, %c0_27] : memref<2x1x128xf32, #tpu.memory_space<vmem>>, vector<2x1x128xf32>
    tpu.vector_store %arg7[%c0_25, %c0_26, %c0_27], %39 {strides = array<i32>} : memref<2x1x128xf32, #tpu.memory_space<vmem>>, vector<2x1x128xf32>,
    return
  }
}

module attributes {stable_mosaic.version = 11 : i64} {
  func.func @_bn_se_res_relu_kernel(%arg0: i32, %arg1: memref<256x128xbf16, #tpu.memory_space<vmem>>, %arg2: memref<1x128xf32, #tpu.memory_space<vmem>>, %arg3: memref<1x128xf32, #tpu.memory_space<vmem>>, %arg4: memref<1x1x128xf32, #tpu.memory_space<vmem>>, %arg5: memref<256x128xf32, #tpu.memory_space<vmem>>, %arg6: memref<256x128xf32, #tpu.memory_space<vmem>>) attributes {dimension_semantics = [#tpu.dimension_semantics<parallel>], iteration_bounds = array<i64: 2>, scalar_prefetch = 0 : i64, scratch_operands = 0 : i64, tpu.core_type = #tpu.core_type<tc>, window_params = [{transform_indices = @transform_0, window_bounds = array<i64: 256, 128>}, {pipeline_mode = #tpu.pipeline_mode<synchronous>, transform_indices = @transform_1, window_bounds = array<i64: 1, 128>}, {pipeline_mode = #tpu.pipeline_mode<synchronous>, transform_indices = @transform_2, window_bounds = array<i64: 1, 128>}, {transform_indices = @transform_3, window_bounds = array<i64: 1, 1, 128>}, {transform_indices = @transform_4, window_bounds = array<i64: 256, 128>}, {transform_indices = @transform_5, window_bounds = array<i64: 256, 128>}]} {
    %c0 = arith.constant 0 : index
    %c0_0 = arith.constant 0 : index
    %0 = vector.load %arg1[%c0, %c0_0] : memref<256x128xbf16, #tpu.memory_space<vmem>>, vector<256x128xbf16>
    %1 = arith.extf %0 : vector<256x128xbf16> to vector<256x128xf32>
    %c0_1 = arith.constant 0 : index
    %c0_2 = arith.constant 0 : index
    %2 = vector.load %arg2[%c0_1, %c0_2] : memref<1x128xf32, #tpu.memory_space<vmem>>, vector<1x128xf32>
    %3 = vector.broadcast %2 : vector<1x128xf32> to vector<256x128xf32>
    %4 = arith.mulf %1, %3 : vector<256x128xf32>
    %c0_3 = arith.constant 0 : index
    %c0_4 = arith.constant 0 : index
    %5 = vector.load %arg3[%c0_3, %c0_4] : memref<1x128xf32, #tpu.memory_space<vmem>>, vector<1x128xf32>
    %6 = vector.broadcast %5 : vector<1x128xf32> to vector<256x128xf32>
    %7 = arith.addf %4, %6 : vector<256x128xf32>
    %c0_5 = arith.constant 0 : index
    %c0_6 = arith.constant 0 : index
    %c0_7 = arith.constant 0 : index
    %8 = vector.load %arg4[%c0_5, %c0_6, %c0_7] : memref<1x1x128xf32, #tpu.memory_space<vmem>>, vector<1x1x128xf32>
    %9 = vector.shape_cast %8 : vector<1x1x128xf32> to vector<1x128xf32>
    %10 = vector.broadcast %9 : vector<1x128xf32> to vector<256x128xf32>
    %11 = arith.mulf %7, %10 : vector<256x128xf32>
    %c0_8 = arith.constant 0 : index
    %c0_9 = arith.constant 0 : index
    %12 = vector.load %arg5[%c0_8, %c0_9] : memref<256x128xf32, #tpu.memory_space<vmem>>, vector<256x128xf32>
    %13 = arith.addf %11, %12 : vector<256x128xf32>
    %cst = arith.constant 0.000000e+00 : f32
    %14 = vector.broadcast %cst : f32 to vector<256x128xf32>
    %15 = arith.maximumf %13, %14 : vector<256x128xf32>
    %c0_10 = arith.constant 0 : index
    %c0_11 = arith.constant 0 : index
    %16 = vector.load %arg6[%c0_10, %c0_11] : memref<256x128xf32, #tpu.memory_space<vmem>>, vector<256x128xf32>
    tpu.vector_store %arg6[%c0_10, %c0_11], %15 {strides = array<i32>} : memref<256x128xf32, #tpu.memory_space<vmem>>, vector<256x128xf32>,
    return
  }
  func.func @transform_0(%arg0: i32) -> (i32, i32) {
    %c0_i32 = arith.constant 0 : i32
    %c0_i32_0 = arith.constant 0 : i32
    return %arg0, %c0_i32 : i32, i32
  }
  func.func @transform_1(%arg0: i32) -> (i32, i32) {
    %c0_i32 = arith.constant 0 : i32
    %c0_i32_0 = arith.constant 0 : i32
    %c0_i32_1 = arith.constant 0 : i32
    return %c0_i32, %c0_i32_0 : i32, i32
  }
  func.func @transform_2(%arg0: i32) -> (i32, i32) {
    %c0_i32 = arith.constant 0 : i32
    %c0_i32_0 = arith.constant 0 : i32
    %c0_i32_1 = arith.constant 0 : i32
    return %c0_i32, %c0_i32_0 : i32, i32
  }
  func.func @transform_3(%arg0: i32) -> (i32, i32, i32) {
    %c0_i32 = arith.constant 0 : i32
    %c0_i32_0 = arith.constant 0 : i32
    %c0_i32_1 = arith.constant 0 : i32
    return %arg0, %c0_i32, %c0_i32_0 : i32, i32, i32
  }
  func.func @transform_4(%arg0: i32) -> (i32, i32) {
    %c0_i32 = arith.constant 0 : i32
    %c0_i32_0 = arith.constant 0 : i32
    return %arg0, %c0_i32 : i32, i32
  }
  func.func @transform_5(%arg0: i32) -> (i32, i32) {
    %c0_i32 = arith.constant 0 : i32
    %c0_i32_0 = arith.constant 0 : i32
    return %arg0, %c0_i32 : i32, i32
  }
}

</mosaic_0001>

<llo_original>
// kernel: se_bottleneck_forward.7
$region0: #{se_bottleneck_forward.7}
  #allocation0 [shape = 'u32[]', space=smem, size = 0x4, offset = 0x4, fixed_abs, tag = 'smem constant byte address 0x4 - core index']
  #allocation1 [shape = 'u32[144,128]{1,0:T(1,128)}', space=vmem, size = 0x12000, scoped, tag = 'internal scratch']
  %s0 = inlined_call_operand.vmem [shape: bf16[512,32], index: 0, kind: input, shape index: {}]
  %s1 = inlined_call_operand.vmem [shape: f32[1,32], index: 1, kind: input, shape index: {}]
  %s2 = inlined_call_operand.vmem [shape: f32[1,32], index: 2, kind: input, shape index: {}]
  %s3 = inlined_call_operand.vmem [shape: f32[1,32], index: 3, kind: input, shape index: {}]
  %s4 = inlined_call_operand.vmem [shape: f32[1,32], index: 4, kind: input, shape index: {}]
  %s5 = inlined_call_operand.vmem [shape: bf16[512,32], index: 5, kind: output, shape index: {}]
  %s6 = sld [smem:[#allocation0]]
  $region53: #{se_bottleneck_forward.7} parent=0
    _
  %s8 = ssub.s32 1, %s6
  %s9 = scalar_select 0, %s8, %s6
  loop: start=0, step=1, limit=6
  $region2: #{se_bottleneck_forward.7} parent=0 // loop_pre_header
    _
  $region3: #{se_bottleneck_forward.7} parent=0 // loop_header
    %s11 = sphi 0, %s15
    %p12 = scmp.ge.s32.totalorder %s11, 6
    %s21 = sphi 0, %s23
    %s24 = sphi 0, %s21
    %s25 = sphi 0, %s24
    %s41 = sphi 0, %s25
    %s45 = sphi 0, %s45
    %s47 = sphi 0, %s45
    %s48 = sphi 0, %s47
    %s62 = sphi 0, %s48
    %s66 = sphi 0, %s66
    %s68 = sphi 0, %s66
    %s69 = sphi 0, %s68
    %s83 = sphi 0, %s69
    %s87 = sphi 0, %s87
    %s89 = sphi 0, %s87
    %s90 = sphi 0, %s89
    %s104 = sphi 0, %s90
    %s108 = sphi 0, %s108
    %s110 = sphi 0, %s108
    %s111 = sphi 0, %s110
    %s125 = sphi 0, %s111
    %s131 = sphi 0, %s133
    %s134 = sphi 0, %s131
    %s135 = sphi 0, %s134
    %s151 = sphi 0, %s135
  $region4: #{se_bottleneck_forward.7} parent=0 // loop_header_branch
    %14 = sbr.rel (%p12) target = $region8
  $region5: #{se_bottleneck_forward.7} parent=0 // loop_body
    %s16 = ssub.s32 %s11, 1
    %s17 = ssub.s32 %s11, 2
    %s18 = sadd.s32 %s11, 1
    %s19 = ssub.s32 %s11, %s18
    %p20 = scmp.eq.s32.totalorder %s19, 0
    %s22 = sadd.s32 %s21, 1
    %s23 = scalar_select %p20, %s21, %s22
    %p26 = pneg %p20
    %p27 = scmp.eq.s32.totalorder %s11, 3
    %p28 = por %p26, %p27
    %p29 = scmp.ne.s32.totalorder %s21, %s24
    %p30 = scmp.eq.s32.totalorder %s11, 0
    %p31 = por %p29, %p30
    %p32 = scmp.ne.s32.totalorder %s21, %s24
    %p33 = scmp.eq.s32.totalorder %s16, 3
    %p34 = por %p32, %p33
    %p35 = scmp.ne.s32.totalorder %s24, %s25
    %p36 = scmp.eq.s32.totalorder %s16, 0
    %p37 = por %p35, %p36
    %p38 = scmp.ne.s32.totalorder %s24, %s25
    %p39 = scmp.eq.s32.totalorder %s17, 3
    %p40 = por %p38, %p39
    %p42 = scmp.ne.s32.totalorder %s25, %s41
    %p43 = scmp.eq.s32.totalorder %s17, 0
    %p44 = por %p42, %p43
    %s46 = sadd.s32 %s45, 1
    %p49 = scmp.eq.s32.totalorder %s11, 3
    %p50 = scmp.ne.s32.totalorder %s45, %s47
    %p51 = scmp.eq.s32.totalorder %s11, 0
    %p52 = por %p50, %p51
    %p53 = scmp.ne.s32.totalorder %s45, %s47
    %p54 = scmp.eq.s32.totalorder %s16, 3
    %p55 = por %p53, %p54
    %p56 = scmp.ne.s32.totalorder %s47, %s48
    %p57 = scmp.eq.s32.totalorder %s16, 0
    %p58 = por %p56, %p57
    %p59 = scmp.ne.s32.totalorder %s47, %s48
    %p60 = scmp.eq.s32.totalorder %s17, 3
    %p61 = por %p59, %p60
    %p63 = scmp.ne.s32.totalorder %s48, %s62
    %p64 = scmp.eq.s32.totalorder %s17, 0
    %p65 = por %p63, %p64
    %s67 = sadd.s32 %s66, 1
    %p70 = scmp.eq.s32.totalorder %s11, 3
    %p71 = scmp.ne.s32.totalorder %s66, %s68
    %p72 = scmp.eq.s32.totalorder %s11, 0
    %p73 = por %p71, %p72
    %p74 = scmp.ne.s32.totalorder %s66, %s68
    %p75 = scmp.eq.s32.totalorder %s16, 3
    %p76 = por %p74, %p75
    %p77 = scmp.ne.s32.totalorder %s68, %s69
    %p78 = scmp.eq.s32.totalorder %s16, 0
    %p79 = por %p77, %p78
    %p80 = scmp.ne.s32.totalorder %s68, %s69
    %p81 = scmp.eq.s32.totalorder %s17, 3
    %p82 = por %p80, %p81
    %p84 = scmp.ne.s32.totalorder %s69, %s83
    %p85 = scmp.eq.s32.totalorder %s17, 0
    %p86 = por %p84, %p85
    %s88 = sadd.s32 %s87, 1
    %p91 = scmp.eq.s32.totalorder %s11, 3
    %p92 = scmp.ne.s32.totalorder %s87, %s89
    %p93 = scmp.eq.s32.totalorder %s11, 0
    %p94 = por %p92, %p93
    %p95 = scmp.ne.s32.totalorder %s87, %s89
    %p96 = scmp.eq.s32.totalorder %s16, 3
    %p97 = por %p95, %p96
    %p98 = scmp.ne.s32.totalorder %s89, %s90
    %p99 = scmp.eq.s32.totalorder %s16, 0
    %p100 = por %p98, %p99
    %p101 = scmp.ne.s32.totalorder %s89, %s90
    %p102 = scmp.eq.s32.totalorder %s17, 3
    %p103 = por %p101, %p102
    %p105 = scmp.ne.s32.totalorder %s90, %s104
    %p106 = scmp.eq.s32.totalorder %s17, 0
    %p107 = por %p105, %p106
    %s109 = sadd.s32 %s108, 1
    %p112 = scmp.eq.s32.totalorder %s11, 3
    %p113 = scmp.ne.s32.totalorder %s108, %s110
    %p114 = scmp.eq.s32.totalorder %s11, 0
    %p115 = por %p113, %p114
    %p116 = scmp.ne.s32.totalorder %s108, %s110
    %p117 = scmp.eq.s32.totalorder %s16, 3
    %p118 = por %p116, %p117
    %p119 = scmp.ne.s32.totalorder %s110, %s111
    %p120 = scmp.eq.s32.totalorder %s16, 0
    %p121 = por %p119, %p120
    %p122 = scmp.ne.s32.totalorder %s110, %s111
    %p123 = scmp.eq.s32.totalorder %s17, 3
    %p124 = por %p122, %p123
    %p126 = scmp.ne.s32.totalorder %s111, %s125
    %p127 = scmp.eq.s32.totalorder %s17, 0
    %p128 = por %p126, %p127
    %s129 = ssub.s32 %s11, %s18
    %p130 = scmp.eq.s32.totalorder %s129, 0
    %s132 = sadd.s32 %s131, 1
    %s133 = scalar_select %p130, %s131, %s132
    %p136 = pneg %p130
    %p137 = scmp.eq.s32.totalorder %s11, 3
    %p138 = por %p136, %p137
    %p139 = scmp.ne.s32.totalorder %s131, %s134
    %p140 = scmp.eq.s32.totalorder %s11, 0
    %p141 = por %p139, %p140
    %p142 = scmp.ne.s32.totalorder %s131, %s134
    %p143 = scmp.eq.s32.totalorder %s16, 3
    %p144 = por %p142, %p143
    %p145 = scmp.ne.s32.totalorder %s134, %s135
    %p146 = scmp.eq.s32.totalorder %s16, 0
    %p147 = por %p145, %p146
    %p148 = scmp.ne.s32.totalorder %s134, %s135
    %p149 = scmp.eq.s32.totalorder %s17, 3
    %p150 = por %p148, %p149
    %p152 = scmp.ne.s32.totalorder %s135, %s151
    %p153 = scmp.eq.s32.totalorder %s17, 0
    %p154 = por %p152, %p153
    %p155 = scmp.le.s32.totalorder 1, %s11
    %p156 = scmp.lt.s32.totalorder %s11, 5
    %p157 = pnand %p155, %p156
    %p158 = pneg %p157
    // Predicated region
    $region9: #{se_bottleneck_forward.7} parent=5 // pred_check
      _
    $region10: #{se_bottleneck_forward.7} parent=5 // pred_check_branch
      %160 = sbr.rel (%p157) target = $region12
    $region11: #{se_bottleneck_forward.7} parent=5 // pred_region
      %s161 = ssub.s32 %s11, 1
      // Predicated region
      $region13: #{se_bottleneck_forward.7} parent=11 // pred_check
        %p162 = pneg %p58
      $region14: #{se_bottleneck_forward.7} parent=11 // pred_check_branch
        %164 = sbr.rel (%p162) target = $region16
      $region15: #{se_bottleneck_forward.7} parent=11 // pred_region
        _
      $region16: #{se_bottleneck_forward.7} parent=11 // pred_fallthru
        _
      // Predicated region
      $region17: #{se_bottleneck_forward.7} parent=11 // pred_check
        %p165 = pneg %p79
      $region18: #{se_bottleneck_forward.7} parent=11 // pred_check_branch
        %167 = sbr.rel (%p165) target = $region20
      $region19: #{se_bottleneck_forward.7} parent=11 // pred_region
        _
      $region20: #{se_bottleneck_forward.7} parent=11 // pred_fallthru
        _
      // Predicated region
      $region21: #{se_bottleneck_forward.7} parent=11 // pred_check
        %p168 = pneg %p100
      $region22: #{se_bottleneck_forward.7} parent=11 // pred_check_branch
        %170 = sbr.rel (%p168) target = $region24
      $region23: #{se_bottleneck_forward.7} parent=11 // pred_region
        _
      $region24: #{se_bottleneck_forward.7} parent=11 // pred_fallthru
        _
      // Predicated region
      $region25: #{se_bottleneck_forward.7} parent=11 // pred_check
        %p171 = pneg %p121
      $region26: #{se_bottleneck_forward.7} parent=11 // pred_check_branch
        %173 = sbr.rel (%p171) target = $region28
      $region27: #{se_bottleneck_forward.7} parent=11 // pred_region
        _
      $region28: #{se_bottleneck_forward.7} parent=11 // pred_fallthru
        _
    $region12: #{se_bottleneck_forward.7} parent=5 // pred_fallthru
      _
    %p174 = scmp.lt.s32.totalorder %s11, 4
    // Predicated region
    $region29: #{se_bottleneck_forward.7} parent=5 // pred_check
      %p175 = pneg %p174
    $region30: #{se_bottleneck_forward.7} parent=5 // pred_check_branch
      %177 = sbr.rel (%p175) target = $region32
    $region31: #{se_bottleneck_forward.7} parent=5 // pred_region
      // Predicated region
      $region33: #{se_bottleneck_forward.7} parent=31 // pred_check
        %p178 = pneg %p31
      $region34: #{se_bottleneck_forward.7} parent=31 // pred_check_branch
        %180 = sbr.rel (%p178) target = $region36
      $region35: #{se_bottleneck_forward.7} parent=31 // pred_region
        %s181 = smul.u32 16, %s11
        %p182 = scmp.lt.s32.totalorder %s181, 63
        %s183 = scalar_select %p182, %s181, 63
        %s184 = smul.addr %s183, 4
        %s185 = scalar_lea.vmem %s0, %s184
        %s186 = smul.u32 16, %s11
      $region36: #{se_bottleneck_forward.7} parent=31 // pred_fallthru
        _
    $region32: #{se_bottleneck_forward.7} parent=5 // pred_fallthru
      _
    %p187 = scmp.le.s32.totalorder 1, %s11
    %p188 = scmp.lt.s32.totalorder %s11, 5
    %p189 = pnand %p187, %p188
    %p190 = pneg %p189
    // Predicated region
    $region37: #{se_bottleneck_forward.7} parent=5 // pred_check
      _
    $region38: #{se_bottleneck_forward.7} parent=5 // pred_check_branch
      %192 = sbr.rel (%p189) target = $region40
    $region39: #{se_bottleneck_forward.7} parent=5 // pred_region
      %s193 = ssub.s32 %s11, 1
      %s194 = smul.u32 16, %s16
      %p195 = scmp.lt.s32.totalorder %s194, 63
      %s196 = scalar_select %p195, %s194, 63
      %s197 = smul.addr %s196, 4
      %s198 = scalar_lea.vmem %s0, %s197
      %p199 = pneg %p37
      %p200 = pneg %p34
      %p201 = pneg %p58
      %p202 = pneg %p55
      %p203 = pneg %p79
      %p204 = pneg %p76
      %p205 = pneg %p100
      %p206 = pneg %p97
      %p207 = pneg %p121
      %p208 = pneg %p118
      %p209 = pneg %p147
      %p210 = pneg %p144
      %s211 = smul.u32 16, %s16
      %p212 = scmp.lt.s32.totalorder %s211, 63
      %s213 = scalar_select %p212, %s211, 63
      %s214 = smul.addr %s213, 4
      %s215 = scalar_lea.vmem %s5, %s214
      %s216 = smul.u32 16, %s16
      %p217 = scmp.lt.s32.totalorder %s216, 63
      %s218 = scalar_select %p217, %s216, 63
      %s219 = smul.addr %s218, 4
      %s220 = scalar_lea.vmem %s0, %s219
      %s221 = smul.u32 16, %s16
      %s222 = smul.u32 16, %s16
      %p223 = scmp.lt.s32.totalorder %s222, 63
      %s224 = scalar_select %p223, %s222, 63
      %s225 = smul.addr %s224, 4
      %s226 = scalar_lea.vmem %s5, %s225
      %s227 = smul.u32 16, %s16
      %v228 = vld [vmem:[%s1] sm:$0x1]
      %v229 = vmul.f32 %v228, 0.001953125
      %v230 = vld [vmem:[%s2] sm:$0x1]
      %v231 = vmul.f32 %v230, 0.001953125
      %v232 = vmul.f32 %v229, %v229
      %v233 = vsub.f32 %v231, %v232
      %v234 = vld [vmem:[%s3] sm:$0x1]
      %v235 = vadd.f32 %v233, 1e-05
      %v236 = vrsqrt.pop %v235
      %v237 = vmul.f32 %v234, %v236
      %v238 = vld [vmem:[%s4] sm:$0x1]
      %v239 = vmul.f32 %v229, %v237
      %v240 = vsub.f32 %v238, %v239
      %v241 = vld [vmem:[%s220] sm:$0xf]
      %v242 = vld [vmem:[%s220 + $0x4] sm:$0xf]
      %v243 = vld [vmem:[%s220 + $0x8] sm:$0xf]
      %v244 = vld [vmem:[%s220 + $0xc] sm:$0xf]
      %v245 = vld [vmem:[%s220 + $0x10] sm:$0xf]
      %v246 = vld [vmem:[%s220 + $0x14] sm:$0xf]
      %v247 = vld [vmem:[%s220 + $0x18] sm:$0xf]
      %v248 = vld [vmem:[%s220 + $0x1c] sm:$0xf]
      %v249 = vld [vmem:[%s220 + $0x20] sm:$0xf]
      %v250 = vld [vmem:[%s220 + $0x24] sm:$0xf]
      %v251 = vld [vmem:[%s220 + $0x28] sm:$0xf]
      %v252 = vld [vmem:[%s220 + $0x2c] sm:$0xf]
      %v253 = vld [vmem:[%s220 + $0x30] sm:$0xf]
      %v254 = vld [vmem:[%s220 + $0x34] sm:$0xf]
      %v255 = vld [vmem:[%s220 + $0x38] sm:$0xf]
      %v256 = vld [vmem:[%s220 + $0x3c] sm:$0xf]
      %v257 = vunpack.c.l.bf16 %v241
      %v258 = vunpack.c.l.bf16 %v242
      %v259 = vunpack.c.l.bf16 %v243
      %v260 = vunpack.c.l.bf16 %v244
      %v261 = vunpack.c.l.bf16 %v245
      %v262 = vunpack.c.l.bf16 %v246
      %v263 = vunpack.c.l.bf16 %v247
      %v264 = vunpack.c.l.bf16 %v248
      %v265 = vunpack.c.l.bf16 %v249
      %v266 = vunpack.c.l.bf16 %v250
      %v267 = vunpack.c.l.bf16 %v251
      %v268 = vunpack.c.l.bf16 %v252
      %v269 = vunpack.c.l.bf16 %v253
      %v270 = vunpack.c.l.bf16 %v254
      %v271 = vunpack.c.l.bf16 %v255
      %v272 = vunpack.c.l.bf16 %v256
      %v274 = vlaneseq
      %v275 = vshrl.u32 %v274, 7
      %v276 = vsub.s32 0, %v275
      %v277 = vrot.slane %v237, %v276
      %v279 = vmul.f32 %v257, %v277
      %v280 = vmul.f32 %v258, %v277
      %v281 = vmul.f32 %v259, %v277
      %v282 = vmul.f32 %v260, %v277
      %v283 = vmul.f32 %v261, %v277
      %v284 = vmul.f32 %v262, %v277
      %v285 = vmul.f32 %v263, %v277
      %v286 = vmul.f32 %v264, %v277
      %v287 = vmul.f32 %v265, %v277
      %v288 = vmul.f32 %v266, %v277
      %v289 = vmul.f32 %v267, %v277
      %v290 = vmul.f32 %v268, %v277
      %v291 = vmul.f32 %v269, %v277
      %v292 = vmul.f32 %v270, %v277
      %v293 = vmul.f32 %v271, %v277
      %v294 = vmul.f32 %v272, %v277
      %v296 = vlaneseq
      %v297 = vshrl.u32 %v296, 7
      %v298 = vsub.s32 0, %v297
      %v299 = vrot.slane %v240, %v298
      %v301 = vadd.f32 %v279, %v299
      %v302 = vadd.f32 %v280, %v299
      %v303 = vadd.f32 %v281, %v299
      %v304 = vadd.f32 %v282, %v299
      %v305 = vadd.f32 %v283, %v299
      %v306 = vadd.f32 %v284, %v299
      %v307 = vadd.f32 %v285, %v299
      %v308 = vadd.f32 %v286, %v299
      %v309 = vadd.f32 %v287, %v299
      %v310 = vadd.f32 %v288, %v299
      %v311 = vadd.f32 %v289, %v299
      %v312 = vadd.f32 %v290, %v299
      %v313 = vadd.f32 %v291, %v299
      %v314 = vadd.f32 %v292, %v299
      %v315 = vadd.f32 %v293, %v299
      %v316 = vadd.f32 %v294, %v299
      %v317 = vmax.f32 %v301, 0.0
      %v318 = vmax.f32 %v302, 0.0
      %v319 = vmax.f32 %v303, 0.0
      %v320 = vmax.f32 %v304, 0.0
      %v321 = vmax.f32 %v305, 0.0
      %v322 = vmax.f32 %v306, 0.0
      %v323 = vmax.f32 %v307, 0.0
      %v324 = vmax.f32 %v308, 0.0
      %v325 = vmax.f32 %v309, 0.0
      %v326 = vmax.f32 %v310, 0.0
      %v327 = vmax.f32 %v311, 0.0
      %v328 = vmax.f32 %v312, 0.0
      %v329 = vmax.f32 %v313, 0.0
      %v330 = vmax.f32 %v314, 0.0
      %v331 = vmax.f32 %v315, 0.0
      %v332 = vmax.f32 %v316, 0.0
      %v333 = vpack.c.bf16 %v318, %v317
      %v334 = vpack.c.bf16 %v320, %v319
      %v335 = vpack.c.bf16 %v322, %v321
      %v336 = vpack.c.bf16 %v324, %v323
      %v337 = vpack.c.bf16 %v326, %v325
      %v338 = vpack.c.bf16 %v328, %v327
      %v339 = vpack.c.bf16 %v330, %v329
      %v340 = vpack.c.bf16 %v332, %v331
      %v349 = vunpack.c.l.b16 %v333
      %v350 = vunpack.c.h.b16 %v333
      %v351 = vunpack.c.l.b16 %v334
      %v352 = vunpack.c.h.b16 %v334
      %v353 = vunpack.c.l.b16 %v335
      %v354 = vunpack.c.h.b16 %v335
      %v355 = vunpack.c.l.b16 %v336
      %v356 = vunpack.c.h.b16 %v336
      %v357 = vunpack.c.l.b16 %v337
      %v358 = vunpack.c.h.b16 %v337
      %v359 = vunpack.c.l.b16 %v338
      %v360 = vunpack.c.h.b16 %v338
      %v361 = vunpack.c.l.b16 %v339
      %v362 = vunpack.c.h.b16 %v339
      %v363 = vunpack.c.l.b16 %v340
      %v364 = vunpack.c.h.b16 %v340
      %v365 = vpack.c.b16 %v349, %v349
      %v366 = vpack.c.b16 %v350, %v350
      %v367 = vpack.c.b16 %v351, %v351
      %v368 = vpack.c.b16 %v352, %v352
      %v369 = vpack.c.b16 %v353, %v353
      %v370 = vpack.c.b16 %v354, %v354
      %v371 = vpack.c.b16 %v355, %v355
      %v372 = vpack.c.b16 %v356, %v356
      %v373 = vpack.c.b16 %v357, %v357
      %v374 = vpack.c.b16 %v358, %v358
      %v375 = vpack.c.b16 %v359, %v359
      %v376 = vpack.c.b16 %v360, %v360
      %v377 = vpack.c.b16 %v361, %v361
      %v378 = vpack.c.b16 %v362, %v362
      %v379 = vpack.c.b16 %v363, %v363
      %v380 = vpack.c.b16 %v364, %v364
      %vm397 = vcmask 257024
      %398 = vst.msk [vmem:[%s226] sm:$0xf] %vm397, %v365
      %399 = vst.msk [vmem:[%s226 + $0x4] sm:$0xf] %vm397, %v366
      %400 = vst.msk [vmem:[%s226 + $0x8] sm:$0xf] %vm397, %v367
      %401 = vst.msk [vmem:[%s226 + $0xc] sm:$0xf] %vm397, %v368
      %402 = vst.msk [vmem:[%s226 + $0x10] sm:$0xf] %vm397, %v369
      %403 = vst.msk [vmem:[%s226 + $0x14] sm:$0xf] %vm397, %v370
      %404 = vst.msk [vmem:[%s226 + $0x18] sm:$0xf] %vm397, %v371
      %405 = vst.msk [vmem:[%s226 + $0x1c] sm:$0xf] %vm397, %v372
      %406 = vst.msk [vmem:[%s226 + $0x20] sm:$0xf] %vm397, %v373
      %407 = vst.msk [vmem:[%s226 + $0x24] sm:$0xf] %vm397, %v374
      %408 = vst.msk [vmem:[%s226 + $0x28] sm:$0xf] %vm397, %v375
      %409 = vst.msk [vmem:[%s226 + $0x2c] sm:$0xf] %vm397, %v376
      %410 = vst.msk [vmem:[%s226 + $0x30] sm:$0xf] %vm397, %v377
      %411 = vst.msk [vmem:[%s226 + $0x34] sm:$0xf] %vm397, %v378
      %412 = vst.msk [vmem:[%s226 + $0x38] sm:$0xf] %vm397, %v379
      %413 = vst.msk [vmem:[%s226 + $0x3c] sm:$0xf] %vm397, %v380
      %s414 = smul.u32 16, %s16
      %p415 = scmp.lt.s32.totalorder %s414, 63
      %s416 = scalar_select %p415, %s414, 63
      %s417 = smul.addr %s416, 4
      %s418 = scalar_lea.vmem %s5, %s417
      // Predicated region
      $region41: #{se_bottleneck_forward.7} parent=39 // pred_check
        %p419 = pneg %p144
      $region42: #{se_bottleneck_forward.7} parent=39 // pred_check_branch
        %421 = sbr.rel (%p419) target = $region44
      $region43: #{se_bottleneck_forward.7} parent=39 // pred_region
        %s422 = smul.u32 16, %s16
      $region44: #{se_bottleneck_forward.7} parent=39 // pred_fallthru
        _
    $region40: #{se_bottleneck_forward.7} parent=5 // pred_fallthru
      _
    %p423 = scmp.le.s32.totalorder 2, %s11
    // Predicated region
    $region45: #{se_bottleneck_forward.7} parent=5 // pred_check
      %p424 = pneg %p423
    $region46: #{se_bottleneck_forward.7} parent=5 // pred_check_branch
      %426 = sbr.rel (%p424) target = $region48
    $region47: #{se_bottleneck_forward.7} parent=5 // pred_region
      %s427 = ssub.s32 %s11, 2
      // Predicated region
      $region49: #{se_bottleneck_forward.7} parent=47 // pred_check
        %p428 = pneg %p150
      $region50: #{se_bottleneck_forward.7} parent=47 // pred_check_branch
        %430 = sbr.rel (%p428) target = $region52
      $region51: #{se_bottleneck_forward.7} parent=47 // pred_region
        %s431 = smul.u32 16, %s17
        %p432 = scmp.lt.s32.totalorder %s431, 63
        %s433 = scalar_select %p432, %s431, 63
        %s434 = smul.addr %s433, 4
        %s435 = scalar_lea.vmem %s5, %s434
      $region52: #{se_bottleneck_forward.7} parent=47 // pred_fallthru
        _
    $region48: #{se_bottleneck_forward.7} parent=5 // pred_fallthru
      _
  $region6: #{se_bottleneck_forward.7} parent=0 // loop_footer
    %s15 = sadd.s32 1, %s11
  $region7: #{se_bottleneck_forward.7} parent=0 // loop_footer_branch
    %10 = sbr.rel target = $region3
  $region8: #{se_bottleneck_forward.7} parent=0 // loop_exit
    _

// kernel: se_bottleneck_forward.6
$region0: #{se_bottleneck_forward.6}
  #allocation0 [shape = 'u32[]', space=smem, size = 0x4, offset = 0x4, fixed_abs, tag = 'smem constant byte address 0x4 - core index']
  #allocation1 [shape = 'u32[144,128]{1,0:T(1,128)}', space=vmem, size = 0x12000, scoped, tag = 'internal scratch']
  %s0 = inlined_call_operand.vmem [shape: bf16[512,128], index: 0, kind: input, shape index: {}]
  %s1 = inlined_call_operand.vmem [shape: bf16[128,32], index: 1, kind: input, shape index: {}]
  %s2 = inlined_call_operand.vmem [shape: bf16[512,32], index: 2, kind: output, shape index: {0}]
  %s3 = inlined_call_operand.vmem [shape: f32[1,32], index: 3, kind: output, shape index: {1}]
  %s4 = inlined_call_operand.vmem [shape: f32[1,32], index: 4, kind: output, shape index: {2}]
  %5 = xla_tuple %s2, %s3, %s4
  %s6 = sld [smem:[#allocation0]]
  $region61: #{se_bottleneck_forward.6} parent=0
    _
  %s8 = ssub.s32 1, %s6
  %s9 = scalar_select 0, %s8, %s6
  loop: start=0, step=1, limit=6
  $region2: #{se_bottleneck_forward.6} parent=0 // loop_pre_header
    _
  $region3: #{se_bottleneck_forward.6} parent=0 // loop_header
    %s11 = sphi 0, %s15
    %p12 = scmp.ge.s32.totalorder %s11, 6
    %s21 = sphi 0, %s23
    %s24 = sphi 0, %s21
    %s25 = sphi 0, %s24
    %s41 = sphi 0, %s25
    %s45 = sphi 0, %s45
    %s47 = sphi 0, %s45
    %s48 = sphi 0, %s47
    %s62 = sphi 0, %s48
    %s68 = sphi 0, %s70
    %s71 = sphi 0, %s68
    %s72 = sphi 0, %s71
    %s88 = sphi 0, %s72
    %s92 = sphi 0, %s92
    %s94 = sphi 0, %s92
    %s95 = sphi 0, %s94
    %s109 = sphi 0, %s95
    %s113 = sphi 0, %s113
    %s115 = sphi 0, %s113
    %s116 = sphi 0, %s115
    %s130 = sphi 0, %s116
  $region4: #{se_bottleneck_forward.6} parent=0 // loop_header_branch
    %14 = sbr.rel (%p12) target = $region8
  $region5: #{se_bottleneck_forward.6} parent=0 // loop_body
    %s16 = ssub.s32 %s11, 1
    %s17 = ssub.s32 %s11, 2
    %s18 = sadd.s32 %s11, 1
    %s19 = ssub.s32 %s11, %s18
    %p20 = scmp.eq.s32.totalorder %s19, 0
    %s22 = sadd.s32 %s21, 1
    %s23 = scalar_select %p20, %s21, %s22
    %p26 = pneg %p20
    %p27 = scmp.eq.s32.totalorder %s11, 3
    %p28 = por %p26, %p27
    %p29 = scmp.ne.s32.totalorder %s21, %s24
    %p30 = scmp.eq.s32.totalorder %s11, 0
    %p31 = por %p29, %p30
    %p32 = scmp.ne.s32.totalorder %s21, %s24
    %p33 = scmp.eq.s32.totalorder %s16, 3
    %p34 = por %p32, %p33
    %p35 = scmp.ne.s32.totalorder %s24, %s25
    %p36 = scmp.eq.s32.totalorder %s16, 0
    %p37 = por %p35, %p36
    %p38 = scmp.ne.s32.totalorder %s24, %s25
    %p39 = scmp.eq.s32.totalorder %s17, 3
    %p40 = por %p38, %p39
    %p42 = scmp.ne.s32.totalorder %s25, %s41
    %p43 = scmp.eq.s32.totalorder %s17, 0
    %p44 = por %p42, %p43
    %s46 = sadd.s32 %s45, 1
    %p49 = scmp.eq.s32.totalorder %s11, 3
    %p50 = scmp.ne.s32.totalorder %s45, %s47
    %p51 = scmp.eq.s32.totalorder %s11, 0
    %p52 = por %p50, %p51
    %p53 = scmp.ne.s32.totalorder %s45, %s47
    %p54 = scmp.eq.s32.totalorder %s16, 3
    %p55 = por %p53, %p54
    %p56 = scmp.ne.s32.totalorder %s47, %s48
    %p57 = scmp.eq.s32.totalorder %s16, 0
    %p58 = por %p56, %p57
    %p59 = scmp.ne.s32.totalorder %s47, %s48
    %p60 = scmp.eq.s32.totalorder %s17, 3
    %p61 = por %p59, %p60
    %p63 = scmp.ne.s32.totalorder %s48, %s62
    %p64 = scmp.eq.s32.totalorder %s17, 0
    %p65 = por %p63, %p64
    %s66 = ssub.s32 %s11, %s18
    %p67 = scmp.eq.s32.totalorder %s66, 0
    %s69 = sadd.s32 %s68, 1
    %s70 = scalar_select %p67, %s68, %s69
    %p73 = pneg %p67
    %p74 = scmp.eq.s32.totalorder %s11, 3
    %p75 = por %p73, %p74
    %p76 = scmp.ne.s32.totalorder %s68, %s71
    %p77 = scmp.eq.s32.totalorder %s11, 0
    %p78 = por %p76, %p77
    %p79 = scmp.ne.s32.totalorder %s68, %s71
    %p80 = scmp.eq.s32.totalorder %s16, 3
    %p81 = por %p79, %p80
    %p82 = scmp.ne.s32.totalorder %s71, %s72
    %p83 = scmp.eq.s32.totalorder %s16, 0
    %p84 = por %p82, %p83
    %p85 = scmp.ne.s32.totalorder %s71, %s72
    %p86 = scmp.eq.s32.totalorder %s17, 3
    %p87 = por %p85, %p86
    %p89 = scmp.ne.s32.totalorder %s72, %s88
    %p90 = scmp.eq.s32.totalorder %s17, 0
    %p91 = por %p89, %p90
    %s93 = sadd.s32 %s92, 1
    %p96 = scmp.eq.s32.totalorder %s11, 3
    %p97 = scmp.ne.s32.totalorder %s92, %s94
    %p98 = scmp.eq.s32.totalorder %s11, 0
    %p99 = por %p97, %p98
    %p100 = scmp.ne.s32.totalorder %s92, %s94
    %p101 = scmp.eq.s32.totalorder %s16, 3
    %p102 = por %p100, %p101
    %p103 = scmp.ne.s32.totalorder %s94, %s95
    %p104 = scmp.eq.s32.totalorder %s16, 0
    %p105 = por %p103, %p104
    %p106 = scmp.ne.s32.totalorder %s94, %s95
    %p107 = scmp.eq.s32.totalorder %s17, 3
    %p108 = por %p106, %p107
    %p110 = scmp.ne.s32.totalorder %s95, %s109
    %p111 = scmp.eq.s32.totalorder %s17, 0
    %p112 = por %p110, %p111
    %s114 = sadd.s32 %s113, 1
    %p117 = scmp.eq.s32.totalorder %s11, 3
    %p118 = scmp.ne.s32.totalorder %s113, %s115
    %p119 = scmp.eq.s32.totalorder %s11, 0
    %p120 = por %p118, %p119
    %p121 = scmp.ne.s32.totalorder %s113, %s115
    %p122 = scmp.eq.s32.totalorder %s16, 3
    %p123 = por %p121, %p122
    %p124 = scmp.ne.s32.totalorder %s115, %s116
    %p125 = scmp.eq.s32.totalorder %s16, 0
    %p126 = por %p124, %p125
    %p127 = scmp.ne.s32.totalorder %s115, %s116
    %p128 = scmp.eq.s32.totalorder %s17, 3
    %p129 = por %p127, %p128
    %p131 = scmp.ne.s32.totalorder %s116, %s130
    %p132 = scmp.eq.s32.totalorder %s17, 0
    %p133 = por %p131, %p132
    %p134 = scmp.le.s32.totalorder 1, %s11
    %p135 = scmp.lt.s32.totalorder %s11, 5
    %p136 = pnand %p134, %p135
    %p137 = pneg %p136
    // Predicated region
    $region9: #{se_bottleneck_forward.6} parent=5 // pred_check
      _
    $region10: #{se_bottleneck_forward.6} parent=5 // pred_check_branch
      %139 = sbr.rel (%p136) target = $region12
    $region11: #{se_bottleneck_forward.6} parent=5 // pred_region
      %s140 = ssub.s32 %s11, 1
      // Predicated region
      $region13: #{se_bottleneck_forward.6} parent=11 // pred_check
        %p141 = pneg %p58
      $region14: #{se_bottleneck_forward.6} parent=11 // pred_check_branch
        %143 = sbr.rel (%p141) target = $region16
      $region15: #{se_bottleneck_forward.6} parent=11 // pred_region
        _
      $region16: #{se_bottleneck_forward.6} parent=11 // pred_fallthru
        _
    $region12: #{se_bottleneck_forward.6} parent=5 // pred_fallthru
      _
    %p144 = scmp.lt.s32.totalorder %s11, 4
    // Predicated region
    $region17: #{se_bottleneck_forward.6} parent=5 // pred_check
      %p145 = pneg %p144
    $region18: #{se_bottleneck_forward.6} parent=5 // pred_check_branch
      %147 = sbr.rel (%p145) target = $region20
    $region19: #{se_bottleneck_forward.6} parent=5 // pred_region
      // Predicated region
      $region21: #{se_bottleneck_forward.6} parent=19 // pred_check
        %p148 = pneg %p31
      $region22: #{se_bottleneck_forward.6} parent=19 // pred_check_branch
        %150 = sbr.rel (%p148) target = $region24
      $region23: #{se_bottleneck_forward.6} parent=19 // pred_region
        %s151 = smul.u32 16, %s11
        %p152 = scmp.lt.s32.totalorder %s151, 63
        %s153 = scalar_select %p152, %s151, 63
        %s154 = smul.addr %s153, 4
        %s155 = scalar_lea.vmem %s0, %s154
        %s156 = smul.u32 16, %s11
      $region24: #{se_bottleneck_forward.6} parent=19 // pred_fallthru
        _
    $region20: #{se_bottleneck_forward.6} parent=5 // pred_fallthru
      _
    %p157 = scmp.le.s32.totalorder 1, %s11
    %p158 = scmp.lt.s32.totalorder %s11, 5
    %p159 = pnand %p157, %p158
    %p160 = pneg %p159
    // Predicated region
    $region25: #{se_bottleneck_forward.6} parent=5 // pred_check
      _
    $region26: #{se_bottleneck_forward.6} parent=5 // pred_check_branch
      %162 = sbr.rel (%p159) target = $region28
    $region27: #{se_bottleneck_forward.6} parent=5 // pred_region
      %s163 = ssub.s32 %s11, 1
      %s164 = smul.u32 16, %s16
      %p165 = scmp.lt.s32.totalorder %s164, 63
      %s166 = scalar_select %p165, %s164, 63
      %s167 = smul.addr %s166, 4
      %s168 = scalar_lea.vmem %s0, %s167
      %p169 = pneg %p37
      %p170 = pneg %p34
      %p171 = pneg %p58
      %p172 = pneg %p55
      %p173 = pneg %p84
      %p174 = pneg %p81
      %s175 = smul.u32 16, %s16
      %p176 = scmp.lt.s32.totalorder %s175, 63
      %s177 = scalar_select %p176, %s175, 63
      %s178 = smul.addr %s177, 4
      %s179 = scalar_lea.vmem %s2, %s178
      %p180 = pneg %p105
      %p181 = pneg %p102
      %p182 = pneg %p126
      %p183 = pneg %p123
      %s184 = smul.u32 16, %s16
      %p185 = scmp.lt.s32.totalorder %s184, 63
      %s186 = scalar_select %p185, %s184, 63
      %s187 = smul.addr %s186, 4
      %s188 = scalar_lea.vmem %s0, %s187
      %s189 = smul.u32 16, %s16
      %s190 = smul.u32 16, %s16
      %p191 = scmp.lt.s32.totalorder %s190, 63
      %s192 = scalar_select %p191, %s190, 63
      %s193 = smul.addr %s192, 4
      %s194 = scalar_lea.vmem %s2, %s193
      %s195 = smul.u32 16, %s16
      %p197 = scmp.eq.s32.totalorder %s16, 0
      // Predicated region
      $region29: #{se_bottleneck_forward.6} parent=27 // pred_check
        %p198 = pneg %p197
      $region30: #{se_bottleneck_forward.6} parent=27 // pred_check_branch
        %200 = sbr.rel (%p198) target = $region32
      $region31: #{se_bottleneck_forward.6} parent=27 // pred_region
        %vm201 = vcmask 253952
        %202 = vst.msk [vmem:[%s3] sm:$0x1] %vm201, 0.0
        %203 = vst.msk [vmem:[%s4] sm:$0x1] %vm201, 0.0
      $region32: #{se_bottleneck_forward.6} parent=27 // pred_fallthru
        _
      %v204 = vld [vmem:[%s188] sm:$0xf]
      %v205 = vld [vmem:[%s188 + $0x4] sm:$0xf]
      %v206 = vld [vmem:[%s188 + $0x8] sm:$0xf]
      %v207 = vld [vmem:[%s188 + $0xc] sm:$0xf]
      %v208 = vld [vmem:[%s188 + $0x10] sm:$0xf]
      %v209 = vld [vmem:[%s188 + $0x14] sm:$0xf]
      %v210 = vld [vmem:[%s188 + $0x18] sm:$0xf]
      %v211 = vld [vmem:[%s188 + $0x1c] sm:$0xf]
      %v212 = vld [vmem:[%s188 + $0x20] sm:$0xf]
      %v213 = vld [vmem:[%s188 + $0x24] sm:$0xf]
      %v214 = vld [vmem:[%s188 + $0x28] sm:$0xf]
      %v215 = vld [vmem:[%s188 + $0x2c] sm:$0xf]
      %v216 = vld [vmem:[%s188 + $0x30] sm:$0xf]
      %v217 = vld [vmem:[%s188 + $0x34] sm:$0xf]
      %v218 = vld [vmem:[%s188 + $0x38] sm:$0xf]
      %v219 = vld [vmem:[%s188 + $0x3c] sm:$0xf]
      %v220 = vld [vmem:[%s1] sm:$0xf]
      %v221 = vld [vmem:[%s1 + $0x4] sm:$0xf]
      %v222 = vld [vmem:[%s1 + $0x8] sm:$0xf]
      %v223 = vld [vmem:[%s1 + $0xc] sm:$0xf]
      %v224 = vld [vmem:[%s1 + $0x10] sm:$0xf]
      %v225 = vld [vmem:[%s1 + $0x14] sm:$0xf]
      %v226 = vld [vmem:[%s1 + $0x18] sm:$0xf]
      %v227 = vld [vmem:[%s1 + $0x1c] sm:$0xf]
      %v228 = vld [vmem:[%s1 + $0x20] sm:$0xf]
      %v229 = vld [vmem:[%s1 + $0x24] sm:$0xf]
      %v230 = vld [vmem:[%s1 + $0x28] sm:$0xf]
      %v231 = vld [vmem:[%s1 + $0x2c] sm:$0xf]
      %v232 = vld [vmem:[%s1 + $0x30] sm:$0xf]
      %v233 = vld [vmem:[%s1 + $0x34] sm:$0xf]
      %v234 = vld [vmem:[%s1 + $0x38] sm:$0xf]
      %v235 = vld [vmem:[%s1 + $0x3c] sm:$0xf]
      %v252 = vunpack.c.l.b16 %v204
      %v253 = vunpack.c.l.b16 %v205
      %v254 = vunpack.c.l.b16 %v206
      %v255 = vunpack.c.l.b16 %v207
      %v256 = vunpack.c.l.b16 %v208
      %v257 = vunpack.c.l.b16 %v209
      %v258 = vunpack.c.l.b16 %v210
      %v259 = vunpack.c.l.b16 %v211
      %v260 = vunpack.c.l.b16 %v212
      %v261 = vunpack.c.l.b16 %v213
      %v262 = vunpack.c.l.b16 %v214
      %v263 = vunpack.c.l.b16 %v215
      %v264 = vunpack.c.l.b16 %v216
      %v265 = vunpack.c.l.b16 %v217
      %v266 = vunpack.c.l.b16 %v218
      %v267 = vunpack.c.l.b16 %v219
      %v268 = vpack.c.b16 %v253, %v252
      %v269 = vpack.c.b16 %v255, %v254
      %v270 = vpack.c.b16 %v257, %v256
      %v271 = vpack.c.b16 %v259, %v258
      %v272 = vpack.c.b16 %v261, %v260
      %v273 = vpack.c.b16 %v263, %v262
      %v274 = vpack.c.b16 %v265, %v264
      %v275 = vpack.c.b16 %v267, %v266
      %v300 = vunpack.c.l.b16 %v220
      %v301 = vunpack.c.l.b16 %v221
      %v302 = vunpack.c.l.b16 %v222
      %v303 = vunpack.c.l.b16 %v223
      %v304 = vunpack.c.l.b16 %v224
      %v305 = vunpack.c.l.b16 %v225
      %v306 = vunpack.c.l.b16 %v226
      %v307 = vunpack.c.l.b16 %v227
      %v308 = vunpack.c.l.b16 %v228
      %v309 = vunpack.c.l.b16 %v229
      %v310 = vunpack.c.l.b16 %v230
      %v311 = vunpack.c.l.b16 %v231
      %v312 = vunpack.c.l.b16 %v232
      %v313 = vunpack.c.l.b16 %v233
      %v314 = vunpack.c.l.b16 %v234
      %v315 = vunpack.c.l.b16 %v235
      %v316 = vpack.c.b16 %v301, %v300
      %v317 = vpack.c.b16 %v303, %v302
      %v318 = vpack.c.b16 %v305, %v304
      %v319 = vpack.c.b16 %v307, %v306
      %v320 = vpack.c.b16 %v309, %v308
      %v321 = vpack.c.b16 %v311, %v310
      %v322 = vpack.c.b16 %v313, %v312
      %v323 = vpack.c.b16 %v315, %v314
      %332 = vmatprep.subr.bf16.mxu0 0
      %333 = vmatpush1.bf16.msra.mxu0 %v316
      %334 = vmatprep.subr.bf16.mxu0 0
      %335 = vmatpush1.bf16.msra.mxu0 %v317
      %336 = vmatprep.subr.bf16.mxu0 0
      %337 = vmatpush1.bf16.msra.mxu0 %v318
      %338 = vmatprep.subr.bf16.mxu0 0
      %339 = vmatpush1.bf16.msra.mxu0 %v319
      %340 = vmatprep.subr.bf16.mxu0 0
      %341 = vmatpush1.bf16.msra.mxu0 %v320
      %342 = vmatprep.subr.bf16.mxu0 0
      %343 = vmatpush1.bf16.msra.mxu0 %v321
      %344 = vmatprep.subr.bf16.mxu0 0
      %345 = vmatpush1.bf16.msra.mxu0 %v322
      %346 = vmatprep.subr.bf16.mxu0 0
      %347 = vmatpush1.bf16.msra.mxu0 %v323
      %348 = vmatprep.subr.bf16.mxu0 0
      %349 = vmatpush1.bf16.msra.mxu0 0
      %350 = vmatprep.subr.bf16.mxu0 0
      %351 = vmatpush1.bf16.msra.mxu0 0
      %352 = vmatprep.subr.bf16.mxu0 0
      %353 = vmatpush1.bf16.msra.mxu0 0
      %354 = vmatprep.subr.bf16.mxu0 0
      %355 = vmatpush1.bf16.msra.mxu0 0
      %356 = vmatprep.subr.bf16.mxu0 0
      %357 = vmatpush1.bf16.msra.mxu0 0
      %358 = vmatprep.subr.bf16.mxu0 0
      %359 = vmatpush1.bf16.msra.mxu0 0
      %360 = vmatprep.subr.bf16.mxu0 0
      %361 = vmatpush1.bf16.msra.mxu0 0
      %362 = vmatprep.subr.bf16.mxu0 0
      %363 = vmatpush1.bf16.msra.mxu0 0
      %364 = vmatprep.mubr.bf16.mxu0 0
      %365 = vmatmul.mubr.bf16.gmra.mrb[0].mxu0 %v268
      %v366 = vpop.f32.mrb[0].mxu0
      %v367 = vadd.f32 0.0, %v366
      %v368 = vpop.f32.mrb[0].mxu0
      %v369 = vpop.f32.mrb[0].mxu0
      %v370 = vadd.f32 0.0, %v369
      %v371 = vpop.f32.mrb[0].mxu0
      %372 = vmatprep.mubr.bf16.mxu0 0
      %373 = vmatmul.mubr.bf16.gmra.mrb[0].mxu0 %v269
      %v374 = vpop.f32.mrb[0].mxu0
      %v375 = vadd.f32 0.0, %v374
      %v376 = vpop.f32.mrb[0].mxu0
      %v377 = vpop.f32.mrb[0].mxu0
      %v378 = vadd.f32 0.0, %v377
      %v379 = vpop.f32.mrb[0].mxu0
      %380 = vmatprep.mubr.bf16.mxu0 0
      %381 = vmatmul.mubr.bf16.gmra.mrb[0].mxu0 %v270
      %v382 = vpop.f32.mrb[0].mxu0
      %v383 = vadd.f32 0.0, %v382
      %v384 = vpop.f32.mrb[0].mxu0
      %v385 = vpop.f32.mrb[0].mxu0
      %v386 = vadd.f32 0.0, %v385
      %v387 = vpop.f32.mrb[0].mxu0
      %388 = vmatprep.mubr.bf16.mxu0 0
      %389 = vmatmul.mubr.bf16.gmra.mrb[0].mxu0 %v271
      %v390 = vpop.f32.mrb[0].mxu0
      %v391 = vadd.f32 0.0, %v390
      %v392 = vpop.f32.mrb[0].mxu0
      %v393 = vpop.f32.mrb[0].mxu0
      %v394 = vadd.f32 0.0, %v393
      %v395 = vpop.f32.mrb[0].mxu0
      %396 = vmatprep.mubr.bf16.mxu0 0
      %397 = vmatmul.mubr.bf16.gmra.mrb[0].mxu0 %v272
      %v398 = vpop.f32.mrb[0].mxu0
      %v399 = vadd.f32 0.0, %v398
      %v400 = vpop.f32.mrb[0].mxu0
      %v401 = vpop.f32.mrb[0].mxu0
      %v402 = vadd.f32 0.0, %v401
      %v403 = vpop.f32.mrb[0].mxu0
      %404 = vmatprep.mubr.bf16.mxu0 0
      %405 = vmatmul.mubr.bf16.gmra.mrb[0].mxu0 %v273
      %v406 = vpop.f32.mrb[0].mxu0
      %v407 = vadd.f32 0.0, %v406
      %v408 = vpop.f32.mrb[0].mxu0
      %v409 = vpop.f32.mrb[0].mxu0
      %v410 = vadd.f32 0.0, %v409
      %v411 = vpop.f32.mrb[0].mxu0
      %412 = vmatprep.mubr.bf16.mxu0 0
      %413 = vmatmul.mubr.bf16.gmra.mrb[0].mxu0 %v274
      %v414 = vpop.f32.mrb[0].mxu0
      %v415 = vadd.f32 0.0, %v414
      %v416 = vpop.f32.mrb[0].mxu0
      %v417 = vpop.f32.mrb[0].mxu0
      %v418 = vadd.f32 0.0, %v417
      %v419 = vpop.f32.mrb[0].mxu0
      %420 = vmatprep.mubr.bf16.mxu0 0
      %421 = vmatmul.mubr.bf16.gmra.mrb[0].mxu0 %v275
      %v422 = vpop.f32.mrb[0].mxu0
      %v423 = vadd.f32 0.0, %v422
      %v424 = vpop.f32.mrb[0].mxu0
      %v425 = vpop.f32.mrb[0].mxu0
      %v426 = vadd.f32 0.0, %v425
      %v427 = vpop.f32.mrb[0].mxu0
      %428 = vdwg.mxu0
      %v429 = vpack.c.bf16 %v370, %v367
      %v430 = vpack.c.bf16 %v378, %v375
      %v431 = vpack.c.bf16 %v386, %v383
      %v432 = vpack.c.bf16 %v394, %v391
      %v433 = vpack.c.bf16 %v402, %v399
      %v434 = vpack.c.bf16 %v410, %v407
      %v435 = vpack.c.bf16 %v418, %v415
      %v436 = vpack.c.bf16 %v426, %v423
      %v445 = vunpack.c.l.b16 %v429
      %v446 = vunpack.c.h.b16 %v429
      %v447 = vunpack.c.l.b16 %v430
      %v448 = vunpack.c.h.b16 %v430
      %v449 = vunpack.c.l.b16 %v431
      %v450 = vunpack.c.h.b16 %v431
      %v451 = vunpack.c.l.b16 %v432
      %v452 = vunpack.c.h.b16 %v432
      %v453 = vunpack.c.l.b16 %v433
      %v454 = vunpack.c.h.b16 %v433
      %v455 = vunpack.c.l.b16 %v434
      %v456 = vunpack.c.h.b16 %v434
      %v457 = vunpack.c.l.b16 %v435
      %v458 = vunpack.c.h.b16 %v435
      %v459 = vunpack.c.l.b16 %v436
      %v460 = vunpack.c.h.b16 %v436
      %v461 = vpack.c.b16 %v445, %v445
      %v462 = vpack.c.b16 %v446, %v446
      %v463 = vpack.c.b16 %v447, %v447
      %v464 = vpack.c.b16 %v448, %v448
      %v465 = vpack.c.b16 %v449, %v449
      %v466 = vpack.c.b16 %v450, %v450
      %v467 = vpack.c.b16 %v451, %v451
      %v468 = vpack.c.b16 %v452, %v452
      %v469 = vpack.c.b16 %v453, %v453
      %v470 = vpack.c.b16 %v454, %v454
      %v471 = vpack.c.b16 %v455, %v455
      %v472 = vpack.c.b16 %v456, %v456
      %v473 = vpack.c.b16 %v457, %v457
      %v474 = vpack.c.b16 %v458, %v458
      %v475 = vpack.c.b16 %v459, %v459
      %v476 = vpack.c.b16 %v460, %v460
      %vm493 = vcmask 257024
      %494 = vst.msk [vmem:[%s194] sm:$0xf] %vm493, %v461
      %495 = vst.msk [vmem:[%s194 + $0x4] sm:$0xf] %vm493, %v462
      %496 = vst.msk [vmem:[%s194 + $0x8] sm:$0xf] %vm493, %v463
      %497 = vst.msk [vmem:[%s194 + $0xc] sm:$0xf] %vm493, %v464
      %498 = vst.msk [vmem:[%s194 + $0x10] sm:$0xf] %vm493, %v465
      %499 = vst.msk [vmem:[%s194 + $0x14] sm:$0xf] %vm493, %v466
      %500 = vst.msk [vmem:[%s194 + $0x18] sm:$0xf] %vm493, %v467
      %501 = vst.msk [vmem:[%s194 + $0x1c] sm:$0xf] %vm493, %v468
      %502 = vst.msk [vmem:[%s194 + $0x20] sm:$0xf] %vm493, %v469
      %503 = vst.msk [vmem:[%s194 + $0x24] sm:$0xf] %vm493, %v470
      %504 = vst.msk [vmem:[%s194 + $0x28] sm:$0xf] %vm493, %v471
      %505 = vst.msk [vmem:[%s194 + $0x2c] sm:$0xf] %vm493, %v472
      %506 = vst.msk [vmem:[%s194 + $0x30] sm:$0xf] %vm493, %v473
      %507 = vst.msk [vmem:[%s194 + $0x34] sm:$0xf] %vm493, %v474
      %508 = vst.msk [vmem:[%s194 + $0x38] sm:$0xf] %vm493, %v475
      %509 = vst.msk [vmem:[%s194 + $0x3c] sm:$0xf] %vm493, %v476
      %v510 = vld [vmem:[%s3] sm:$0x1]
      %vm511 = vcmask 261120
      %v512 = vsel %vm511, %v367, 0.0
      %v513 = vsel %vm511, %v370, 0.0
      %v514 = vadd.f32 %v512, %v513
      %v515 = vsel %vm511, %v375, 0.0
      %v516 = vadd.f32 %v514, %v515
      %v517 = vsel %vm511, %v378, 0.0
      %v518 = vadd.f32 %v516, %v517
      %v519 = vsel %vm511, %v383, 0.0
      %v520 = vadd.f32 %v518, %v519
      %v521 = vsel %vm511, %v386, 0.0
      %v522 = vadd.f32 %v520, %v521
      %v523 = vsel %vm511, %v391, 0.0
      %v524 = vadd.f32 %v522, %v523
      %v525 = vsel %vm511, %v394, 0.0
      %v526 = vadd.f32 %v524, %v525
      %v527 = vsel %vm511, %v399, 0.0
      %v528 = vadd.f32 %v526, %v527
      %v529 = vsel %vm511, %v402, 0.0
      %v530 = vadd.f32 %v528, %v529
      %v531 = vsel %vm511, %v407, 0.0
      %v532 = vadd.f32 %v530, %v531
      %v533 = vsel %vm511, %v410, 0.0
      %v534 = vadd.f32 %v532, %v533
      %v535 = vsel %vm511, %v415, 0.0
      %v536 = vadd.f32 %v534, %v535
      %v537 = vsel %vm511, %v418, 0.0
      %v538 = vadd.f32 %v536, %v537
      %v539 = vsel %vm511, %v423, 0.0
      %v540 = vadd.f32 %v538, %v539
      %v541 = vsel %vm511, %v426, 0.0
      %v542 = vadd.f32 %v540, %v541
      %v543 = vrot.slane %v542, 4
      %v544 = vadd.f32 %v542, %v543
      %v545 = vrot.slane %v544, 2
      %v546 = vadd.f32 %v544, %v545
      %v547 = vrot.slane %v546, 1
      %v548 = vadd.f32 %v546, %v547
      %v549 = vadd.f32 %v510, %v548
      %vm550 = vcmask 253952
      %551 = vst.msk [vmem:[%s3] sm:$0x1] %vm550, %v549
      %v552 = vld [vmem:[%s4] sm:$0x1]
      %v553 = vmul.f32 %v367, %v367
      %v554 = vmul.f32 %v370, %v370
      %v555 = vmul.f32 %v375, %v375
      %v556 = vmul.f32 %v378, %v378
      %v557 = vmul.f32 %v383, %v383
      %v558 = vmul.f32 %v386, %v386
      %v559 = vmul.f32 %v391, %v391
      %v560 = vmul.f32 %v394, %v394
      %v561 = vmul.f32 %v399, %v399
      %v562 = vmul.f32 %v402, %v402
      %v563 = vmul.f32 %v407, %v407
      %v564 = vmul.f32 %v410, %v410
      %v565 = vmul.f32 %v415, %v415
      %v566 = vmul.f32 %v418, %v418
      %v567 = vmul.f32 %v423, %v423
      %v568 = vmul.f32 %v426, %v426
      %v569 = vsel %vm511, %v553, 0.0
      %v570 = vsel %vm511, %v554, 0.0
      %v571 = vadd.f32 %v569, %v570
      %v572 = vsel %vm511, %v555, 0.0
      %v573 = vadd.f32 %v571, %v572
      %v574 = vsel %vm511, %v556, 0.0
      %v575 = vadd.f32 %v573, %v574
      %v576 = vsel %vm511, %v557, 0.0
      %v577 = vadd.f32 %v575, %v576
      %v578 = vsel %vm511, %v558, 0.0
      %v579 = vadd.f32 %v577, %v578
      %v580 = vsel %vm511, %v559, 0.0
      %v581 = vadd.f32 %v579, %v580
      %v582 = vsel %vm511, %v560, 0.0
      %v583 = vadd.f32 %v581, %v582
      %v584 = vsel %vm511, %v561, 0.0
      %v585 = vadd.f32 %v583, %v584
      %v586 = vsel %vm511, %v562, 0.0
      %v587 = vadd.f32 %v585, %v586
      %v588 = vsel %vm511, %v563, 0.0
      %v589 = vadd.f32 %v587, %v588
      %v590 = vsel %vm511, %v564, 0.0
      %v591 = vadd.f32 %v589, %v590
      %v592 = vsel %vm511, %v565, 0.0
      %v593 = vadd.f32 %v591, %v592
      %v594 = vsel %vm511, %v566, 0.0
      %v595 = vadd.f32 %v593, %v594
      %v596 = vsel %vm511, %v567, 0.0
      %v597 = vadd.f32 %v595, %v596
      %v598 = vsel %vm511, %v568, 0.0
      %v599 = vadd.f32 %v597, %v598
      %v600 = vrot.slane %v599, 4
      %v601 = vadd.f32 %v599, %v600
      %v602 = vrot.slane %v601, 2
      %v603 = vadd.f32 %v601, %v602
      %v604 = vrot.slane %v603, 1
      %v605 = vadd.f32 %v603, %v604
      %v606 = vadd.f32 %v552, %v605
      %607 = vst.msk [vmem:[%s4] sm:$0x1] %vm550, %v606
      %s608 = smul.u32 16, %s16
      %p609 = scmp.lt.s32.totalorder %s608, 63
      %s610 = scalar_select %p609, %s608, 63
      %s611 = smul.addr %s610, 4
      %s612 = scalar_lea.vmem %s2, %s611
      // Predicated region
      $region33: #{se_bottleneck_forward.6} parent=27 // pred_check
        %p613 = pneg %p81
      $region34: #{se_bottleneck_forward.6} parent=27 // pred_check_branch
        %615 = sbr.rel (%p613) target = $region36
      $region35: #{se_bottleneck_forward.6} parent=27 // pred_region
        %s616 = smul.u32 16, %s16
      $region36: #{se_bottleneck_forward.6} parent=27 // pred_fallthru
        _
      // Predicated region
      $region37: #{se_bottleneck_forward.6} parent=27 // pred_check
        %p617 = pneg %p102
      $region38: #{se_bottleneck_forward.6} parent=27 // pred_check_branch
        %619 = sbr.rel (%p617) target = $region40
      $region39: #{se_bottleneck_forward.6} parent=27 // pred_region
        _
      $region40: #{se_bottleneck_forward.6} parent=27 // pred_fallthru
        _
      // Predicated region
      $region41: #{se_bottleneck_forward.6} parent=27 // pred_check
        %p620 = pneg %p123
      $region42: #{se_bottleneck_forward.6} parent=27 // pred_check_branch
        %622 = sbr.rel (%p620) target = $region44
      $region43: #{se_bottleneck_forward.6} parent=27 // pred_region
        _
      $region44: #{se_bottleneck_forward.6} parent=27 // pred_fallthru
        _
      // Predicated region
      $region45: #{se_bottleneck_forward.6} parent=27 // pred_check
        %p623 = pneg %p102
      $region46: #{se_bottleneck_forward.6} parent=27 // pred_check_branch
        %625 = sbr.rel (%p623) target = $region48
      $region47: #{se_bottleneck_forward.6} parent=27 // pred_region
        _
      $region48: #{se_bottleneck_forward.6} parent=27 // pred_fallthru
        _
      // Predicated region
      $region49: #{se_bottleneck_forward.6} parent=27 // pred_check
        %p626 = pneg %p123
      $region50: #{se_bottleneck_forward.6} parent=27 // pred_check_branch
        %628 = sbr.rel (%p626) target = $region52
      $region51: #{se_bottleneck_forward.6} parent=27 // pred_region
        _
      $region52: #{se_bottleneck_forward.6} parent=27 // pred_fallthru
        _
    $region28: #{se_bottleneck_forward.6} parent=5 // pred_fallthru
      _
    %p629 = scmp.le.s32.totalorder 2, %s11
    // Predicated region
    $region53: #{se_bottleneck_forward.6} parent=5 // pred_check
      %p630 = pneg %p629
    $region54: #{se_bottleneck_forward.6} parent=5 // pred_check_branch
      %632 = sbr.rel (%p630) target = $region56
    $region55: #{se_bottleneck_forward.6} parent=5 // pred_region
      %s633 = ssub.s32 %s11, 2
      // Predicated region
      $region57: #{se_bottleneck_forward.6} parent=55 // pred_check
        %p634 = pneg %p87
      $region58: #{se_bottleneck_forward.6} parent=55 // pred_check_branch
        %636 = sbr.rel (%p634) target = $region60
      $region59: #{se_bottleneck_forward.6} parent=55 // pred_region
        %s637 = smul.u32 16, %s17
        %p638 = scmp.lt.s32.totalorder %s637, 63
        %s639 = scalar_select %p638, %s637, 63
        %s640 = smul.addr %s639, 4
        %s641 = scalar_lea.vmem %s2, %s640
      $region60: #{se_bottleneck_forward.6} parent=55 // pred_fallthru
        _
    $region56: #{se_bottleneck_forward.6} parent=5 // pred_fallthru
      _
  $region6: #{se_bottleneck_forward.6} parent=0 // loop_footer
    %s15 = sadd.s32 1, %s11
  $region7: #{se_bottleneck_forward.6} parent=0 // loop_footer_branch
    %10 = sbr.rel target = $region3
  $region8: #{se_bottleneck_forward.6} parent=0 // loop_exit
    _

// kernel: se_bottleneck_forward.9
$region0: #{se_bottleneck_forward.9}
  #allocation0 [shape = 'u32[]', space=smem, size = 0x4, offset = 0x4, fixed_abs, tag = 'smem constant byte address 0x4 - core index']
  #allocation1 [shape = 'u32[144,128]{1,0:T(1,128)}', space=vmem, size = 0x12000, scoped, tag = 'internal scratch']
  %s0 = inlined_call_operand.vmem [shape: bf16[512,32], index: 0, kind: input, shape index: {}]
  %s1 = inlined_call_operand.vmem [shape: f32[1,32], index: 1, kind: input, shape index: {}]
  %s2 = inlined_call_operand.vmem [shape: f32[1,32], index: 2, kind: input, shape index: {}]
  %s3 = inlined_call_operand.vmem [shape: f32[1,32], index: 3, kind: input, shape index: {}]
  %s4 = inlined_call_operand.vmem [shape: f32[1,32], index: 4, kind: input, shape index: {}]
  %s5 = inlined_call_operand.vmem [shape: bf16[32,128], index: 5, kind: input, shape index: {}]
  %s6 = inlined_call_operand.vmem [shape: bf16[512,128], index: 6, kind: output, shape index: {0}]
  %s7 = inlined_call_operand.vmem [shape: f32[1,128], index: 7, kind: output, shape index: {1}]
  %s8 = inlined_call_operand.vmem [shape: f32[1,128], index: 8, kind: output, shape index: {2}]
  %s9 = inlined_call_operand.vmem [shape: f32[2,1,128], index: 9, kind: output, shape index: {3}]
  %10 = xla_tuple %s6, %s7, %s8, %s9
  %s11 = sld [smem:[#allocation0]]
  $region85: #{se_bottleneck_forward.9} parent=0
    _
  %s13 = ssub.s32 1, %s11
  %s14 = scalar_select 0, %s13, %s11
  loop: start=0, step=1, limit=4
  $region2: #{se_bottleneck_forward.9} parent=0 // loop_pre_header
    _
  $region3: #{se_bottleneck_forward.9} parent=0 // loop_header
    %s16 = sphi 0, %s20
    %p17 = scmp.ge.s32.totalorder %s16, 4
    %s26 = sphi 0, %s28
    %s29 = sphi 0, %s26
    %s30 = sphi 0, %s29
    %s46 = sphi 0, %s30
    %s50 = sphi 0, %s50
    %s52 = sphi 0, %s50
    %s53 = sphi 0, %s52
    %s67 = sphi 0, %s53
    %s71 = sphi 0, %s71
    %s73 = sphi 0, %s71
    %s74 = sphi 0, %s73
    %s88 = sphi 0, %s74
    %s92 = sphi 0, %s92
    %s94 = sphi 0, %s92
    %s95 = sphi 0, %s94
    %s109 = sphi 0, %s95
    %s113 = sphi 0, %s113
    %s115 = sphi 0, %s113
    %s116 = sphi 0, %s115
    %s130 = sphi 0, %s116
    %s134 = sphi 0, %s134
    %s136 = sphi 0, %s134
    %s137 = sphi 0, %s136
    %s151 = sphi 0, %s137
    %s157 = sphi 0, %s159
    %s160 = sphi 0, %s157
    %s161 = sphi 0, %s160
    %s177 = sphi 0, %s161
    %s181 = sphi 0, %s181
    %s183 = sphi 0, %s181
    %s184 = sphi 0, %s183
    %s198 = sphi 0, %s184
    %s202 = sphi 0, %s202
    %s204 = sphi 0, %s202
    %s205 = sphi 0, %s204
    %s219 = sphi 0, %s205
    %s225 = sphi 0, %s227
    %s228 = sphi 0, %s225
    %s229 = sphi 0, %s228
    %s245 = sphi 0, %s229
  $region4: #{se_bottleneck_forward.9} parent=0 // loop_header_branch
    %19 = sbr.rel (%p17) target = $region8
  $region5: #{se_bottleneck_forward.9} parent=0 // loop_body
    %s21 = ssub.s32 %s16, 1
    %s22 = ssub.s32 %s16, 2
    %s23 = sadd.s32 %s16, 1
    %s24 = ssub.s32 %s16, %s23
    %p25 = scmp.eq.s32.totalorder %s24, 0
    %s27 = sadd.s32 %s26, 1
    %s28 = scalar_select %p25, %s26, %s27
    %p31 = pneg %p25
    %p32 = scmp.eq.s32.totalorder %s16, 1
    %p33 = por %p31, %p32
    %p34 = scmp.ne.s32.totalorder %s26, %s29
    %p35 = scmp.eq.s32.totalorder %s16, 0
    %p36 = por %p34, %p35
    %p37 = scmp.ne.s32.totalorder %s26, %s29
    %p38 = scmp.eq.s32.totalorder %s21, 1
    %p39 = por %p37, %p38
    %p40 = scmp.ne.s32.totalorder %s29, %s30
    %p41 = scmp.eq.s32.totalorder %s21, 0
    %p42 = por %p40, %p41
    %p43 = scmp.ne.s32.totalorder %s29, %s30
    %p44 = scmp.eq.s32.totalorder %s22, 1
    %p45 = por %p43, %p44
    %p47 = scmp.ne.s32.totalorder %s30, %s46
    %p48 = scmp.eq.s32.totalorder %s22, 0
    %p49 = por %p47, %p48
    %s51 = sadd.s32 %s50, 1
    %p54 = scmp.eq.s32.totalorder %s16, 1
    %p55 = scmp.ne.s32.totalorder %s50, %s52
    %p56 = scmp.eq.s32.totalorder %s16, 0
    %p57 = por %p55, %p56
    %p58 = scmp.ne.s32.totalorder %s50, %s52
    %p59 = scmp.eq.s32.totalorder %s21, 1
    %p60 = por %p58, %p59
    %p61 = scmp.ne.s32.totalorder %s52, %s53
    %p62 = scmp.eq.s32.totalorder %s21, 0
    %p63 = por %p61, %p62
    %p64 = scmp.ne.s32.totalorder %s52, %s53
    %p65 = scmp.eq.s32.totalorder %s22, 1
    %p66 = por %p64, %p65
    %p68 = scmp.ne.s32.totalorder %s53, %s67
    %p69 = scmp.eq.s32.totalorder %s22, 0
    %p70 = por %p68, %p69
    %s72 = sadd.s32 %s71, 1
    %p75 = scmp.eq.s32.totalorder %s16, 1
    %p76 = scmp.ne.s32.totalorder %s71, %s73
    %p77 = scmp.eq.s32.totalorder %s16, 0
    %p78 = por %p76, %p77
    %p79 = scmp.ne.s32.totalorder %s71, %s73
    %p80 = scmp.eq.s32.totalorder %s21, 1
    %p81 = por %p79, %p80
    %p82 = scmp.ne.s32.totalorder %s73, %s74
    %p83 = scmp.eq.s32.totalorder %s21, 0
    %p84 = por %p82, %p83
    %p85 = scmp.ne.s32.totalorder %s73, %s74
    %p86 = scmp.eq.s32.totalorder %s22, 1
    %p87 = por %p85, %p86
    %p89 = scmp.ne.s32.totalorder %s74, %s88
    %p90 = scmp.eq.s32.totalorder %s22, 0
    %p91 = por %p89, %p90
    %s93 = sadd.s32 %s92, 1
    %p96 = scmp.eq.s32.totalorder %s16, 1
    %p97 = scmp.ne.s32.totalorder %s92, %s94
    %p98 = scmp.eq.s32.totalorder %s16, 0
    %p99 = por %p97, %p98
    %p100 = scmp.ne.s32.totalorder %s92, %s94
    %p101 = scmp.eq.s32.totalorder %s21, 1
    %p102 = por %p100, %p101
    %p103 = scmp.ne.s32.totalorder %s94, %s95
    %p104 = scmp.eq.s32.totalorder %s21, 0
    %p105 = por %p103, %p104
    %p106 = scmp.ne.s32.totalorder %s94, %s95
    %p107 = scmp.eq.s32.totalorder %s22, 1
    %p108 = por %p106, %p107
    %p110 = scmp.ne.s32.totalorder %s95, %s109
    %p111 = scmp.eq.s32.totalorder %s22, 0
    %p112 = por %p110, %p111
    %s114 = sadd.s32 %s113, 1
    %p117 = scmp.eq.s32.totalorder %s16, 1
    %p118 = scmp.ne.s32.totalorder %s113, %s115
    %p119 = scmp.eq.s32.totalorder %s16, 0
    %p120 = por %p118, %p119
    %p121 = scmp.ne.s32.totalorder %s113, %s115
    %p122 = scmp.eq.s32.totalorder %s21, 1
    %p123 = por %p121, %p122
    %p124 = scmp.ne.s32.totalorder %s115, %s116
    %p125 = scmp.eq.s32.totalorder %s21, 0
    %p126 = por %p124, %p125
    %p127 = scmp.ne.s32.totalorder %s115, %s116
    %p128 = scmp.eq.s32.totalorder %s22, 1
    %p129 = por %p127, %p128
    %p131 = scmp.ne.s32.totalorder %s116, %s130
    %p132 = scmp.eq.s32.totalorder %s22, 0
    %p133 = por %p131, %p132
    %s135 = sadd.s32 %s134, 1
    %p138 = scmp.eq.s32.totalorder %s16, 1
    %p139 = scmp.ne.s32.totalorder %s134, %s136
    %p140 = scmp.eq.s32.totalorder %s16, 0
    %p141 = por %p139, %p140
    %p142 = scmp.ne.s32.totalorder %s134, %s136
    %p143 = scmp.eq.s32.totalorder %s21, 1
    %p144 = por %p142, %p143
    %p145 = scmp.ne.s32.totalorder %s136, %s137
    %p146 = scmp.eq.s32.totalorder %s21, 0
    %p147 = por %p145, %p146
    %p148 = scmp.ne.s32.totalorder %s136, %s137
    %p149 = scmp.eq.s32.totalorder %s22, 1
    %p150 = por %p148, %p149
    %p152 = scmp.ne.s32.totalorder %s137, %s151
    %p153 = scmp.eq.s32.totalorder %s22, 0
    %p154 = por %p152, %p153
    %s155 = ssub.s32 %s16, %s23
    %p156 = scmp.eq.s32.totalorder %s155, 0
    %s158 = sadd.s32 %s157, 1
    %s159 = scalar_select %p156, %s157, %s158
    %p162 = pneg %p156
    %p163 = scmp.eq.s32.totalorder %s16, 1
    %p164 = por %p162, %p163
    %p165 = scmp.ne.s32.totalorder %s157, %s160
    %p166 = scmp.eq.s32.totalorder %s16, 0
    %p167 = por %p165, %p166
    %p168 = scmp.ne.s32.totalorder %s157, %s160
    %p169 = scmp.eq.s32.totalorder %s21, 1
    %p170 = por %p168, %p169
    %p171 = scmp.ne.s32.totalorder %s160, %s161
    %p172 = scmp.eq.s32.totalorder %s21, 0
    %p173 = por %p171, %p172
    %p174 = scmp.ne.s32.totalorder %s160, %s161
    %p175 = scmp.eq.s32.totalorder %s22, 1
    %p176 = por %p174, %p175
    %p178 = scmp.ne.s32.totalorder %s161, %s177
    %p179 = scmp.eq.s32.totalorder %s22, 0
    %p180 = por %p178, %p179
    %s182 = sadd.s32 %s181, 1
    %p185 = scmp.eq.s32.totalorder %s16, 1
    %p186 = scmp.ne.s32.totalorder %s181, %s183
    %p187 = scmp.eq.s32.totalorder %s16, 0
    %p188 = por %p186, %p187
    %p189 = scmp.ne.s32.totalorder %s181, %s183
    %p190 = scmp.eq.s32.totalorder %s21, 1
    %p191 = por %p189, %p190
    %p192 = scmp.ne.s32.totalorder %s183, %s184
    %p193 = scmp.eq.s32.totalorder %s21, 0
    %p194 = por %p192, %p193
    %p195 = scmp.ne.s32.totalorder %s183, %s184
    %p196 = scmp.eq.s32.totalorder %s22, 1
    %p197 = por %p195, %p196
    %p199 = scmp.ne.s32.totalorder %s184, %s198
    %p200 = scmp.eq.s32.totalorder %s22, 0
    %p201 = por %p199, %p200
    %s203 = sadd.s32 %s202, 1
    %p206 = scmp.eq.s32.totalorder %s16, 1
    %p207 = scmp.ne.s32.totalorder %s202, %s204
    %p208 = scmp.eq.s32.totalorder %s16, 0
    %p209 = por %p207, %p208
    %p210 = scmp.ne.s32.totalorder %s202, %s204
    %p211 = scmp.eq.s32.totalorder %s21, 1
    %p212 = por %p210, %p211
    %p213 = scmp.ne.s32.totalorder %s204, %s205
    %p214 = scmp.eq.s32.totalorder %s21, 0
    %p215 = por %p213, %p214
    %p216 = scmp.ne.s32.totalorder %s204, %s205
    %p217 = scmp.eq.s32.totalorder %s22, 1
    %p218 = por %p216, %p217
    %p220 = scmp.ne.s32.totalorder %s205, %s219
    %p221 = scmp.eq.s32.totalorder %s22, 0
    %p222 = por %p220, %p221
    %s223 = ssub.s32 %s16, %s23
    %p224 = scmp.eq.s32.totalorder %s223, 0
    %s226 = sadd.s32 %s225, 1
    %s227 = scalar_select %p224, %s225, %s226
    %p230 = pneg %p224
    %p231 = scmp.eq.s32.totalorder %s16, 1
    %p232 = por %p230, %p231
    %p233 = scmp.ne.s32.totalorder %s225, %s228
    %p234 = scmp.eq.s32.totalorder %s16, 0
    %p235 = por %p233, %p234
    %p236 = scmp.ne.s32.totalorder %s225, %s228
    %p237 = scmp.eq.s32.totalorder %s21, 1
    %p238 = por %p236, %p237
    %p239 = scmp.ne.s32.totalorder %s228, %s229
    %p240 = scmp.eq.s32.totalorder %s21, 0
    %p241 = por %p239, %p240
    %p242 = scmp.ne.s32.totalorder %s228, %s229
    %p243 = scmp.eq.s32.totalorder %s22, 1
    %p244 = por %p242, %p243
    %p246 = scmp.ne.s32.totalorder %s229, %s245
    %p247 = scmp.eq.s32.totalorder %s22, 0
    %p248 = por %p246, %p247
    %p249 = scmp.le.s32.totalorder 1, %s16
    %p250 = scmp.lt.s32.totalorder %s16, 3
    %p251 = pnand %p249, %p250
    %p252 = pneg %p251
    // Predicated region
    $region9: #{se_bottleneck_forward.9} parent=5 // pred_check
      _
    $region10: #{se_bottleneck_forward.9} parent=5 // pred_check_branch
      %254 = sbr.rel (%p251) target = $region12
    $region11: #{se_bottleneck_forward.9} parent=5 // pred_region
      %s255 = ssub.s32 %s16, 1
      // Predicated region
      $region13: #{se_bottleneck_forward.9} parent=11 // pred_check
        %p256 = pneg %p63
      $region14: #{se_bottleneck_forward.9} parent=11 // pred_check_branch
        %258 = sbr.rel (%p256) target = $region16
      $region15: #{se_bottleneck_forward.9} parent=11 // pred_region
        _
      $region16: #{se_bottleneck_forward.9} parent=11 // pred_fallthru
        _
      // Predicated region
      $region17: #{se_bottleneck_forward.9} parent=11 // pred_check
        %p259 = pneg %p84
      $region18: #{se_bottleneck_forward.9} parent=11 // pred_check_branch
        %261 = sbr.rel (%p259) target = $region20
      $region19: #{se_bottleneck_forward.9} parent=11 // pred_region
        _
      $region20: #{se_bottleneck_forward.9} parent=11 // pred_fallthru
        _
      // Predicated region
      $region21: #{se_bottleneck_forward.9} parent=11 // pred_check
        %p262 = pneg %p105
      $region22: #{se_bottleneck_forward.9} parent=11 // pred_check_branch
        %264 = sbr.rel (%p262) target = $region24
      $region23: #{se_bottleneck_forward.9} parent=11 // pred_region
        _
      $region24: #{se_bottleneck_forward.9} parent=11 // pred_fallthru
        _
      // Predicated region
      $region25: #{se_bottleneck_forward.9} parent=11 // pred_check
        %p265 = pneg %p126
      $region26: #{se_bottleneck_forward.9} parent=11 // pred_check_branch
        %267 = sbr.rel (%p265) target = $region28
      $region27: #{se_bottleneck_forward.9} parent=11 // pred_region
        _
      $region28: #{se_bottleneck_forward.9} parent=11 // pred_fallthru
        _
      // Predicated region
      $region29: #{se_bottleneck_forward.9} parent=11 // pred_check
        %p268 = pneg %p147
      $region30: #{se_bottleneck_forward.9} parent=11 // pred_check_branch
        %270 = sbr.rel (%p268) target = $region32
      $region31: #{se_bottleneck_forward.9} parent=11 // pred_region
        _
      $region32: #{se_bottleneck_forward.9} parent=11 // pred_fallthru
        _
    $region12: #{se_bottleneck_forward.9} parent=5 // pred_fallthru
      _
    %p271 = scmp.lt.s32.totalorder %s16, 2
    // Predicated region
    $region33: #{se_bottleneck_forward.9} parent=5 // pred_check
      %p272 = pneg %p271
    $region34: #{se_bottleneck_forward.9} parent=5 // pred_check_branch
      %274 = sbr.rel (%p272) target = $region36
    $region35: #{se_bottleneck_forward.9} parent=5 // pred_region
      // Predicated region
      $region37: #{se_bottleneck_forward.9} parent=35 // pred_check
        %p275 = pneg %p36
      $region38: #{se_bottleneck_forward.9} parent=35 // pred_check_branch
        %277 = sbr.rel (%p275) target = $region40
      $region39: #{se_bottleneck_forward.9} parent=35 // pred_region
        %s278 = smul.u32 32, %s16
        %p279 = scmp.lt.s32.totalorder %s278, 63
        %s280 = scalar_select %p279, %s278, 63
        %s281 = smul.addr %s280, 4
        %s282 = scalar_lea.vmem %s0, %s281
        %s283 = smul.u32 32, %s16
      $region40: #{se_bottleneck_forward.9} parent=35 // pred_fallthru
        _
    $region36: #{se_bottleneck_forward.9} parent=5 // pred_fallthru
      _
    %p284 = scmp.le.s32.totalorder 1, %s16
    %p285 = scmp.lt.s32.totalorder %s16, 3
    %p286 = pnand %p284, %p285
    %p287 = pneg %p286
    // Predicated region
    $region41: #{se_bottleneck_forward.9} parent=5 // pred_check
      _
    $region42: #{se_bottleneck_forward.9} parent=5 // pred_check_branch
      %289 = sbr.rel (%p286) target = $region44
    $region43: #{se_bottleneck_forward.9} parent=5 // pred_region
      %s290 = ssub.s32 %s16, 1
      %s291 = smul.u32 32, %s21
      %p292 = scmp.lt.s32.totalorder %s291, 63
      %s293 = scalar_select %p292, %s291, 63
      %s294 = smul.addr %s293, 4
      %s295 = scalar_lea.vmem %s0, %s294
      %p296 = pneg %p42
      %p297 = pneg %p39
      %p298 = pneg %p63
      %p299 = pneg %p60
      %p300 = pneg %p84
      %p301 = pneg %p81
      %p302 = pneg %p105
      %p303 = pneg %p102
      %p304 = pneg %p126
      %p305 = pneg %p123
      %p306 = pneg %p147
      %p307 = pneg %p144
      %p308 = pneg %p173
      %p309 = pneg %p170
      %s310 = smul.u32 32, %s21
      %p311 = scmp.lt.s32.totalorder %s310, 63
      %s312 = scalar_select %p311, %s310, 63
      %s313 = smul.addr %s312, 4
      %s314 = scalar_lea.vmem %s6, %s313
      %p315 = pneg %p194
      %p316 = pneg %p191
      %p317 = pneg %p215
      %p318 = pneg %p212
      %p319 = pneg %p241
      %p320 = pneg %p238
      %p321 = scmp.lt.s32.totalorder %s21, 1
      %s322 = scalar_select %p321, %s21, 1
      %s323 = scalar_lea.vmem %s9, %s322
      %s324 = smul.u32 32, %s21
      %p325 = scmp.lt.s32.totalorder %s324, 63
      %s326 = scalar_select %p325, %s324, 63
      %s327 = smul.addr %s326, 4
      %s328 = scalar_lea.vmem %s0, %s327
      %s329 = smul.u32 32, %s21
      %s330 = smul.u32 32, %s21
      %p331 = scmp.lt.s32.totalorder %s330, 63
      %s332 = scalar_select %p331, %s330, 63
      %s333 = smul.addr %s332, 4
      %s334 = scalar_lea.vmem %s6, %s333
      %s335 = smul.u32 32, %s21
      %p336 = scmp.lt.s32.totalorder %s21, 1
      %s337 = scalar_select %p336, %s21, 1
      %s338 = scalar_lea.vmem %s9, %s337
      %p340 = scmp.eq.s32.totalorder %s21, 0
      // Predicated region
      $region45: #{se_bottleneck_forward.9} parent=43 // pred_check
        %p341 = pneg %p340
      $region46: #{se_bottleneck_forward.9} parent=43 // pred_check_branch
        %343 = sbr.rel (%p341) target = $region48
      $region47: #{se_bottleneck_forward.9} parent=43 // pred_region
        %344 = vst [vmem:[%s7] sm:$0x1] 0.0
        %345 = vst [vmem:[%s8] sm:$0x1] 0.0
      $region48: #{se_bottleneck_forward.9} parent=43 // pred_fallthru
        _
      %v346 = vld [vmem:[%s1] sm:$0x1]
      %v347 = vmul.f32 %v346, 0.001953125
      %v348 = vld [vmem:[%s2] sm:$0x1]
      %v349 = vmul.f32 %v348, 0.001953125
      %v350 = vmul.f32 %v347, %v347
      %v351 = vsub.f32 %v349, %v350
      %v352 = vld [vmem:[%s3] sm:$0x1]
      %v353 = vadd.f32 %v351, 1e-05
      %v354 = vrsqrt.pop %v353
      %v355 = vmul.f32 %v352, %v354
      %v356 = vld [vmem:[%s4] sm:$0x1]
      %v357 = vmul.f32 %v347, %v355
      %v358 = vsub.f32 %v356, %v357
      %v359 = vld [vmem:[%s328] sm:$0xf]
      %v360 = vld [vmem:[%s328 + $0x4] sm:$0xf]
      %v361 = vld [vmem:[%s328 + $0x8] sm:$0xf]
      %v362 = vld [vmem:[%s328 + $0xc] sm:$0xf]
      %v363 = vld [vmem:[%s328 + $0x10] sm:$0xf]
      %v364 = vld [vmem:[%s328 + $0x14] sm:$0xf]
      %v365 = vld [vmem:[%s328 + $0x18] sm:$0xf]
      %v366 = vld [vmem:[%s328 + $0x1c] sm:$0xf]
      %v367 = vld [vmem:[%s328 + $0x20] sm:$0xf]
      %v368 = vld [vmem:[%s328 + $0x24] sm:$0xf]
      %v369 = vld [vmem:[%s328 + $0x28] sm:$0xf]
      %v370 = vld [vmem:[%s328 + $0x2c] sm:$0xf]
      %v371 = vld [vmem:[%s328 + $0x30] sm:$0xf]
      %v372 = vld [vmem:[%s328 + $0x34] sm:$0xf]
      %v373 = vld [vmem:[%s328 + $0x38] sm:$0xf]
      %v374 = vld [vmem:[%s328 + $0x3c] sm:$0xf]
      %v375 = vld [vmem:[%s328 + $0x40] sm:$0xf]
      %v376 = vld [vmem:[%s328 + $0x44] sm:$0xf]
      %v377 = vld [vmem:[%s328 + $0x48] sm:$0xf]
      %v378 = vld [vmem:[%s328 + $0x4c] sm:$0xf]
      %v379 = vld [vmem:[%s328 + $0x50] sm:$0xf]
      %v380 = vld [vmem:[%s328 + $0x54] sm:$0xf]
      %v381 = vld [vmem:[%s328 + $0x58] sm:$0xf]
      %v382 = vld [vmem:[%s328 + $0x5c] sm:$0xf]
      %v383 = vld [vmem:[%s328 + $0x60] sm:$0xf]
      %v384 = vld [vmem:[%s328 + $0x64] sm:$0xf]
      %v385 = vld [vmem:[%s328 + $0x68] sm:$0xf]
      %v386 = vld [vmem:[%s328 + $0x6c] sm:$0xf]
      %v387 = vld [vmem:[%s328 + $0x70] sm:$0xf]
      %v388 = vld [vmem:[%s328 + $0x74] sm:$0xf]
      %v389 = vld [vmem:[%s328 + $0x78] sm:$0xf]
      %v390 = vld [vmem:[%s328 + $0x7c] sm:$0xf]
      %v391 = vunpack.c.l.bf16 %v359
      %v392 = vunpack.c.l.bf16 %v360
      %v393 = vunpack.c.l.bf16 %v361
      %v394 = vunpack.c.l.bf16 %v362
      %v395 = vunpack.c.l.bf16 %v363
      %v396 = vunpack.c.l.bf16 %v364
      %v397 = vunpack.c.l.bf16 %v365
      %v398 = vunpack.c.l.bf16 %v366
      %v399 = vunpack.c.l.bf16 %v367
      %v400 = vunpack.c.l.bf16 %v368
      %v401 = vunpack.c.l.bf16 %v369
      %v402 = vunpack.c.l.bf16 %v370
      %v403 = vunpack.c.l.bf16 %v371
      %v404 = vunpack.c.l.bf16 %v372
      %v405 = vunpack.c.l.bf16 %v373
      %v406 = vunpack.c.l.bf16 %v374
      %v407 = vunpack.c.l.bf16 %v375
      %v408 = vunpack.c.l.bf16 %v376
      %v409 = vunpack.c.l.bf16 %v377
      %v410 = vunpack.c.l.bf16 %v378
      %v411 = vunpack.c.l.bf16 %v379
      %v412 = vunpack.c.l.bf16 %v380
      %v413 = vunpack.c.l.bf16 %v381
      %v414 = vunpack.c.l.bf16 %v382
      %v415 = vunpack.c.l.bf16 %v383
      %v416 = vunpack.c.l.bf16 %v384
      %v417 = vunpack.c.l.bf16 %v385
      %v418 = vunpack.c.l.bf16 %v386
      %v419 = vunpack.c.l.bf16 %v387
      %v420 = vunpack.c.l.bf16 %v388
      %v421 = vunpack.c.l.bf16 %v389
      %v422 = vunpack.c.l.bf16 %v390
      %v424 = vlaneseq
      %v425 = vshrl.u32 %v424, 7
      %v426 = vsub.s32 0, %v425
      %v427 = vrot.slane %v355, %v426
      %v429 = vmul.f32 %v391, %v427
      %v430 = vmul.f32 %v392, %v427
      %v431 = vmul.f32 %v393, %v427
      %v432 = vmul.f32 %v394, %v427
      %v433 = vmul.f32 %v395, %v427
      %v434 = vmul.f32 %v396, %v427
      %v435 = vmul.f32 %v397, %v427
      %v436 = vmul.f32 %v398, %v427
      %v437 = vmul.f32 %v399, %v427
      %v438 = vmul.f32 %v400, %v427
      %v439 = vmul.f32 %v401, %v427
      %v440 = vmul.f32 %v402, %v427
      %v441 = vmul.f32 %v403, %v427
      %v442 = vmul.f32 %v404, %v427
      %v443 = vmul.f32 %v405, %v427
      %v444 = vmul.f32 %v406, %v427
      %v445 = vmul.f32 %v407, %v427
      %v446 = vmul.f32 %v408, %v427
      %v447 = vmul.f32 %v409, %v427
      %v448 = vmul.f32 %v410, %v427
      %v449 = vmul.f32 %v411, %v427
      %v450 = vmul.f32 %v412, %v427
      %v451 = vmul.f32 %v413, %v427
      %v452 = vmul.f32 %v414, %v427
      %v453 = vmul.f32 %v415, %v427
      %v454 = vmul.f32 %v416, %v427
      %v455 = vmul.f32 %v417, %v427
      %v456 = vmul.f32 %v418, %v427
      %v457 = vmul.f32 %v419, %v427
      %v458 = vmul.f32 %v420, %v427
      %v459 = vmul.f32 %v421, %v427
      %v460 = vmul.f32 %v422, %v427
      %v462 = vlaneseq
      %v463 = vshrl.u32 %v462, 7
      %v464 = vsub.s32 0, %v463
      %v465 = vrot.slane %v358, %v464
      %v467 = vadd.f32 %v429, %v465
      %v468 = vadd.f32 %v430, %v465
      %v469 = vadd.f32 %v431, %v465
      %v470 = vadd.f32 %v432, %v465
      %v471 = vadd.f32 %v433, %v465
      %v472 = vadd.f32 %v434, %v465
      %v473 = vadd.f32 %v435, %v465
      %v474 = vadd.f32 %v436, %v465
      %v475 = vadd.f32 %v437, %v465
      %v476 = vadd.f32 %v438, %v465
      %v477 = vadd.f32 %v439, %v465
      %v478 = vadd.f32 %v440, %v465
      %v479 = vadd.f32 %v441, %v465
      %v480 = vadd.f32 %v442, %v465
      %v481 = vadd.f32 %v443, %v465
      %v482 = vadd.f32 %v444, %v465
      %v483 = vadd.f32 %v445, %v465
      %v484 = vadd.f32 %v446, %v465
      %v485 = vadd.f32 %v447, %v465
      %v486 = vadd.f32 %v448, %v465
      %v487 = vadd.f32 %v449, %v465
      %v488 = vadd.f32 %v450, %v465
      %v489 = vadd.f32 %v451, %v465
      %v490 = vadd.f32 %v452, %v465
      %v491 = vadd.f32 %v453, %v465
      %v492 = vadd.f32 %v454, %v465
      %v493 = vadd.f32 %v455, %v465
      %v494 = vadd.f32 %v456, %v465
      %v495 = vadd.f32 %v457, %v465
      %v496 = vadd.f32 %v458, %v465
      %v497 = vadd.f32 %v459, %v465
      %v498 = vadd.f32 %v460, %v465
      %v499 = vmax.f32 %v467, 0.0
      %v500 = vmax.f32 %v468, 0.0
      %v501 = vmax.f32 %v469, 0.0
      %v502 = vmax.f32 %v470, 0.0
      %v503 = vmax.f32 %v471, 0.0
      %v504 = vmax.f32 %v472, 0.0
      %v505 = vmax.f32 %v473, 0.0
      %v506 = vmax.f32 %v474, 0.0
      %v507 = vmax.f32 %v475, 0.0
      %v508 = vmax.f32 %v476, 0.0
      %v509 = vmax.f32 %v477, 0.0
      %v510 = vmax.f32 %v478, 0.0
      %v511 = vmax.f32 %v479, 0.0
      %v512 = vmax.f32 %v480, 0.0
      %v513 = vmax.f32 %v481, 0.0
      %v514 = vmax.f32 %v482, 0.0
      %v515 = vmax.f32 %v483, 0.0
      %v516 = vmax.f32 %v484, 0.0
      %v517 = vmax.f32 %v485, 0.0
      %v518 = vmax.f32 %v486, 0.0
      %v519 = vmax.f32 %v487, 0.0
      %v520 = vmax.f32 %v488, 0.0
      %v521 = vmax.f32 %v489, 0.0
      %v522 = vmax.f32 %v490, 0.0
      %v523 = vmax.f32 %v491, 0.0
      %v524 = vmax.f32 %v492, 0.0
      %v525 = vmax.f32 %v493, 0.0
      %v526 = vmax.f32 %v494, 0.0
      %v527 = vmax.f32 %v495, 0.0
      %v528 = vmax.f32 %v496, 0.0
      %v529 = vmax.f32 %v497, 0.0
      %v530 = vmax.f32 %v498, 0.0
      %v531 = vpack.c.bf16 %v500, %v499
      %v532 = vpack.c.bf16 %v502, %v501
      %v533 = vpack.c.bf16 %v504, %v503
      %v534 = vpack.c.bf16 %v506, %v505
      %v535 = vpack.c.bf16 %v508, %v507
      %v536 = vpack.c.bf16 %v510, %v509
      %v537 = vpack.c.bf16 %v512, %v511
      %v538 = vpack.c.bf16 %v514, %v513
      %v539 = vpack.c.bf16 %v516, %v515
      %v540 = vpack.c.bf16 %v518, %v517
      %v541 = vpack.c.bf16 %v520, %v519
      %v542 = vpack.c.bf16 %v522, %v521
      %v543 = vpack.c.bf16 %v524, %v523
      %v544 = vpack.c.bf16 %v526, %v525
      %v545 = vpack.c.bf16 %v528, %v527
      %v546 = vpack.c.bf16 %v530, %v529
      %v547 = vld [vmem:[%s5] sm:$0xf]
      %v548 = vld [vmem:[%s5 + $0x4] sm:$0xf]
      %v549 = vld [vmem:[%s5 + $0x8] sm:$0xf]
      %v550 = vld [vmem:[%s5 + $0xc] sm:$0xf]
      %v555 = vunpack.c.l.b16 %v547
      %v556 = vunpack.c.l.b16 %v548
      %v557 = vunpack.c.l.b16 %v549
      %v558 = vunpack.c.l.b16 %v550
      %v559 = vpack.c.b16 %v556, %v555
      %v560 = vpack.c.b16 %v558, %v557
      %vm563 = vcmask 261120
      %v565 = vsel %vm563, %v531, 0
      %v568 = vsel %vm563, %v532, 0
      %v571 = vsel %vm563, %v533, 0
      %v574 = vsel %vm563, %v534, 0
      %v577 = vsel %vm563, %v535, 0
      %v580 = vsel %vm563, %v536, 0
      %v583 = vsel %vm563, %v537, 0
      %v586 = vsel %vm563, %v538, 0
      %v589 = vsel %vm563, %v539, 0
      %v592 = vsel %vm563, %v540, 0
      %v595 = vsel %vm563, %v541, 0
      %v598 = vsel %vm563, %v542, 0
      %v601 = vsel %vm563, %v543, 0
      %v604 = vsel %vm563, %v544, 0
      %v607 = vsel %vm563, %v545, 0
      %v610 = vsel %vm563, %v546, 0
      %612 = vmatprep.subr.bf16.mxu0 0
      %613 = vmatpush1.bf16.msra.mxu0 %v559
      %614 = vmatprep.subr.bf16.mxu0 0
      %615 = vmatpush1.bf16.msra.mxu0 %v560
      %616 = vmatprep.subr.bf16.mxu0 0
      %617 = vmatpush1.bf16.msra.mxu0 0
      %618 = vmatprep.subr.bf16.mxu0 0
      %619 = vmatpush1.bf16.msra.mxu0 0
      %620 = vmatprep.subr.bf16.mxu0 0
      %621 = vmatpush1.bf16.msra.mxu0 0
      %622 = vmatprep.subr.bf16.mxu0 0
      %623 = vmatpush1.bf16.msra.mxu0 0
      %624 = vmatprep.subr.bf16.mxu0 0
      %625 = vmatpush1.bf16.msra.mxu0 0
      %626 = vmatprep.subr.bf16.mxu0 0
      %627 = vmatpush1.bf16.msra.mxu0 0
      %628 = vmatprep.subr.bf16.mxu0 0
      %629 = vmatpush1.bf16.msra.mxu0 0
      %630 = vmatprep.subr.bf16.mxu0 0
      %631 = vmatpush1.bf16.msra.mxu0 0
      %632 = vmatprep.subr.bf16.mxu0 0
      %633 = vmatpush1.bf16.msra.mxu0 0
      %634 = vmatprep.subr.bf16.mxu0 0
      %635 = vmatpush1.bf16.msra.mxu0 0
      %636 = vmatprep.subr.bf16.mxu0 0
      %637 = vmatpush1.bf16.msra.mxu0 0
      %638 = vmatprep.subr.bf16.mxu0 0
      %639 = vmatpush1.bf16.msra.mxu0 0
      %640 = vmatprep.subr.bf16.mxu0 0
      %641 = vmatpush1.bf16.msra.mxu0 0
      %642 = vmatprep.subr.bf16.mxu0 0
      %643 = vmatpush1.bf16.msra.mxu0 0
      %644 = vmatprep.mubr.bf16.mxu0 0
      %645 = vmatmul.mubr.bf16.gmra.mrb[0].mxu0 %v565
      %v646 = vpop.f32.mrb[0].mxu0
      %v647 = vadd.f32 0.0, %v646
      %v648 = vpop.f32.mrb[0].mxu0
      %v649 = vpop.f32.mrb[0].mxu0
      %v650 = vadd.f32 0.0, %v649
      %v651 = vpop.f32.mrb[0].mxu0
      %652 = vmatprep.mubr.bf16.mxu0 0
      %653 = vmatmul.mubr.bf16.gmra.mrb[0].mxu0 %v568
      %v654 = vpop.f32.mrb[0].mxu0
      %v655 = vadd.f32 0.0, %v654
      %v656 = vpop.f32.mrb[0].mxu0
      %v657 = vpop.f32.mrb[0].mxu0
      %v658 = vadd.f32 0.0, %v657
      %v659 = vpop.f32.mrb[0].mxu0
      %660 = vmatprep.mubr.bf16.mxu0 0
      %661 = vmatmul.mubr.bf16.gmra.mrb[0].mxu0 %v571
      %v662 = vpop.f32.mrb[0].mxu0
      %v663 = vadd.f32 0.0, %v662
      %v664 = vpop.f32.mrb[0].mxu0
      %v665 = vpop.f32.mrb[0].mxu0
      %v666 = vadd.f32 0.0, %v665
      %v667 = vpop.f32.mrb[0].mxu0
      %668 = vmatprep.mubr.bf16.mxu0 0
      %669 = vmatmul.mubr.bf16.gmra.mrb[0].mxu0 %v574
      %v670 = vpop.f32.mrb[0].mxu0
      %v671 = vadd.f32 0.0, %v670
      %v672 = vpop.f32.mrb[0].mxu0
      %v673 = vpop.f32.mrb[0].mxu0
      %v674 = vadd.f32 0.0, %v673
      %v675 = vpop.f32.mrb[0].mxu0
      %676 = vmatprep.mubr.bf16.mxu0 0
      %677 = vmatmul.mubr.bf16.gmra.mrb[0].mxu0 %v577
      %v678 = vpop.f32.mrb[0].mxu0
      %v679 = vadd.f32 0.0, %v678
      %v680 = vpop.f32.mrb[0].mxu0
      %v681 = vpop.f32.mrb[0].mxu0
      %v682 = vadd.f32 0.0, %v681
      %v683 = vpop.f32.mrb[0].mxu0
      %684 = vmatprep.mubr.bf16.mxu0 0
      %685 = vmatmul.mubr.bf16.gmra.mrb[0].mxu0 %v580
      %v686 = vpop.f32.mrb[0].mxu0
      %v687 = vadd.f32 0.0, %v686
      %v688 = vpop.f32.mrb[0].mxu0
      %v689 = vpop.f32.mrb[0].mxu0
      %v690 = vadd.f32 0.0, %v689
      %v691 = vpop.f32.mrb[0].mxu0
      %692 = vmatprep.mubr.bf16.mxu0 0
      %693 = vmatmul.mubr.bf16.gmra.mrb[0].mxu0 %v583
      %v694 = vpop.f32.mrb[0].mxu0
      %v695 = vadd.f32 0.0, %v694
      %v696 = vpop.f32.mrb[0].mxu0
      %v697 = vpop.f32.mrb[0].mxu0
      %v698 = vadd.f32 0.0, %v697
      %v699 = vpop.f32.mrb[0].mxu0
      %700 = vmatprep.mubr.bf16.mxu0 0
      %701 = vmatmul.mubr.bf16.gmra.mrb[0].mxu0 %v586
      %v702 = vpop.f32.mrb[0].mxu0
      %v703 = vadd.f32 0.0, %v702
      %v704 = vpop.f32.mrb[0].mxu0
      %v705 = vpop.f32.mrb[0].mxu0
      %v706 = vadd.f32 0.0, %v705
      %v707 = vpop.f32.mrb[0].mxu0
      %708 = vmatprep.mubr.bf16.mxu0 0
      %709 = vmatmul.mubr.bf16.gmra.mrb[0].mxu0 %v589
      %v710 = vpop.f32.mrb[0].mxu0
      %v711 = vadd.f32 0.0, %v710
      %v712 = vpop.f32.mrb[0].mxu0
      %v713 = vpop.f32.mrb[0].mxu0
      %v714 = vadd.f32 0.0, %v713
      %v715 = vpop.f32.mrb[0].mxu0
      %716 = vmatprep.mubr.bf16.mxu0 0
      %717 = vmatmul.mubr.bf16.gmra.mrb[0].mxu0 %v592
      %v718 = vpop.f32.mrb[0].mxu0
      %v719 = vadd.f32 0.0, %v718
      %v720 = vpop.f32.mrb[0].mxu0
      %v721 = vpop.f32.mrb[0].mxu0
      %v722 = vadd.f32 0.0, %v721
      %v723 = vpop.f32.mrb[0].mxu0
      %724 = vmatprep.mubr.bf16.mxu0 0
      %725 = vmatmul.mubr.bf16.gmra.mrb[0].mxu0 %v595
      %v726 = vpop.f32.mrb[0].mxu0
      %v727 = vadd.f32 0.0, %v726
      %v728 = vpop.f32.mrb[0].mxu0
      %v729 = vpop.f32.mrb[0].mxu0
      %v730 = vadd.f32 0.0, %v729
      %v731 = vpop.f32.mrb[0].mxu0
      %732 = vmatprep.mubr.bf16.mxu0 0
      %733 = vmatmul.mubr.bf16.gmra.mrb[0].mxu0 %v598
      %v734 = vpop.f32.mrb[0].mxu0
      %v735 = vadd.f32 0.0, %v734
      %v736 = vpop.f32.mrb[0].mxu0
      %v737 = vpop.f32.mrb[0].mxu0
      %v738 = vadd.f32 0.0, %v737
      %v739 = vpop.f32.mrb[0].mxu0
      %740 = vmatprep.mubr.bf16.mxu0 0
      %741 = vmatmul.mubr.bf16.gmra.mrb[0].mxu0 %v601
      %v742 = vpop.f32.mrb[0].mxu0
      %v743 = vadd.f32 0.0, %v742
      %v744 = vpop.f32.mrb[0].mxu0
      %v745 = vpop.f32.mrb[0].mxu0
      %v746 = vadd.f32 0.0, %v745
      %v747 = vpop.f32.mrb[0].mxu0
      %748 = vmatprep.mubr.bf16.mxu0 0
      %749 = vmatmul.mubr.bf16.gmra.mrb[0].mxu0 %v604
      %v750 = vpop.f32.mrb[0].mxu0
      %v751 = vadd.f32 0.0, %v750
      %v752 = vpop.f32.mrb[0].mxu0
      %v753 = vpop.f32.mrb[0].mxu0
      %v754 = vadd.f32 0.0, %v753
      %v755 = vpop.f32.mrb[0].mxu0
      %756 = vmatprep.mubr.bf16.mxu0 0
      %757 = vmatmul.mubr.bf16.gmra.mrb[0].mxu0 %v607
      %v758 = vpop.f32.mrb[0].mxu0
      %v759 = vadd.f32 0.0, %v758
      %v760 = vpop.f32.mrb[0].mxu0
      %v761 = vpop.f32.mrb[0].mxu0
      %v762 = vadd.f32 0.0, %v761
      %v763 = vpop.f32.mrb[0].mxu0
      %764 = vmatprep.mubr.bf16.mxu0 0
      %765 = vmatmul.mubr.bf16.gmra.mrb[0].mxu0 %v610
      %v766 = vpop.f32.mrb[0].mxu0
      %v767 = vadd.f32 0.0, %v766
      %v768 = vpop.f32.mrb[0].mxu0
      %v769 = vpop.f32.mrb[0].mxu0
      %v770 = vadd.f32 0.0, %v769
      %v771 = vpop.f32.mrb[0].mxu0
      %772 = vdwg.mxu0
      %v773 = vpack.c.bf16 %v650, %v647
      %v774 = vpack.c.bf16 %v658, %v655
      %v775 = vpack.c.bf16 %v666, %v663
      %v776 = vpack.c.bf16 %v674, %v671
      %v777 = vpack.c.bf16 %v682, %v679
      %v778 = vpack.c.bf16 %v690, %v687
      %v779 = vpack.c.bf16 %v698, %v695
      %v780 = vpack.c.bf16 %v706, %v703
      %v781 = vpack.c.bf16 %v714, %v711
      %v782 = vpack.c.bf16 %v722, %v719
      %v783 = vpack.c.bf16 %v730, %v727
      %v784 = vpack.c.bf16 %v738, %v735
      %v785 = vpack.c.bf16 %v746, %v743
      %v786 = vpack.c.bf16 %v754, %v751
      %v787 = vpack.c.bf16 %v762, %v759
      %v788 = vpack.c.bf16 %v770, %v767
      %v805 = vunpack.c.l.b16 %v773
      %v806 = vunpack.c.h.b16 %v773
      %v807 = vunpack.c.l.b16 %v774
      %v808 = vunpack.c.h.b16 %v774
      %v809 = vunpack.c.l.b16 %v775
      %v810 = vunpack.c.h.b16 %v775
      %v811 = vunpack.c.l.b16 %v776
      %v812 = vunpack.c.h.b16 %v776
      %v813 = vunpack.c.l.b16 %v777
      %v814 = vunpack.c.h.b16 %v777
      %v815 = vunpack.c.l.b16 %v778
      %v816 = vunpack.c.h.b16 %v778
      %v817 = vunpack.c.l.b16 %v779
      %v818 = vunpack.c.h.b16 %v779
      %v819 = vunpack.c.l.b16 %v780
      %v820 = vunpack.c.h.b16 %v780
      %v821 = vunpack.c.l.b16 %v781
      %v822 = vunpack.c.h.b16 %v781
      %v823 = vunpack.c.l.b16 %v782
      %v824 = vunpack.c.h.b16 %v782
      %v825 = vunpack.c.l.b16 %v783
      %v826 = vunpack.c.h.b16 %v783
      %v827 = vunpack.c.l.b16 %v784
      %v828 = vunpack.c.h.b16 %v784
      %v829 = vunpack.c.l.b16 %v785
      %v830 = vunpack.c.h.b16 %v785
      %v831 = vunpack.c.l.b16 %v786
      %v832 = vunpack.c.h.b16 %v786
      %v833 = vunpack.c.l.b16 %v787
      %v834 = vunpack.c.h.b16 %v787
      %v835 = vunpack.c.l.b16 %v788
      %v836 = vunpack.c.h.b16 %v788
      %v837 = vpack.c.b16 %v805, %v805
      %v838 = vpack.c.b16 %v806, %v806
      %v839 = vpack.c.b16 %v807, %v807
      %v840 = vpack.c.b16 %v808, %v808
      %v841 = vpack.c.b16 %v809, %v809
      %v842 = vpack.c.b16 %v810, %v810
      %v843 = vpack.c.b16 %v811, %v811
      %v844 = vpack.c.b16 %v812, %v812
      %v845 = vpack.c.b16 %v813, %v813
      %v846 = vpack.c.b16 %v814, %v814
      %v847 = vpack.c.b16 %v815, %v815
      %v848 = vpack.c.b16 %v816, %v816
      %v849 = vpack.c.b16 %v817, %v817
      %v850 = vpack.c.b16 %v818, %v818
      %v851 = vpack.c.b16 %v819, %v819
      %v852 = vpack.c.b16 %v820, %v820
      %v853 = vpack.c.b16 %v821, %v821
      %v854 = vpack.c.b16 %v822, %v822
      %v855 = vpack.c.b16 %v823, %v823
      %v856 = vpack.c.b16 %v824, %v824
      %v857 = vpack.c.b16 %v825, %v825
      %v858 = vpack.c.b16 %v826, %v826
      %v859 = vpack.c.b16 %v827, %v827
      %v860 = vpack.c.b16 %v828, %v828
      %v861 = vpack.c.b16 %v829, %v829
      %v862 = vpack.c.b16 %v830, %v830
      %v863 = vpack.c.b16 %v831, %v831
      %v864 = vpack.c.b16 %v832, %v832
      %v865 = vpack.c.b16 %v833, %v833
      %v866 = vpack.c.b16 %v834, %v834
      %v867 = vpack.c.b16 %v835, %v835
      %v868 = vpack.c.b16 %v836, %v836
      %901 = vst [vmem:[%s334] sm:$0xf] %v837
      %902 = vst [vmem:[%s334 + $0x4] sm:$0xf] %v838
      %903 = vst [vmem:[%s334 + $0x8] sm:$0xf] %v839
      %904 = vst [vmem:[%s334 + $0xc] sm:$0xf] %v840
      %905 = vst [vmem:[%s334 + $0x10] sm:$0xf] %v841
      %906 = vst [vmem:[%s334 + $0x14] sm:$0xf] %v842
      %907 = vst [vmem:[%s334 + $0x18] sm:$0xf] %v843
      %908 = vst [vmem:[%s334 + $0x1c] sm:$0xf] %v844
      %909 = vst [vmem:[%s334 + $0x20] sm:$0xf] %v845
      %910 = vst [vmem:[%s334 + $0x24] sm:$0xf] %v846
      %911 = vst [vmem:[%s334 + $0x28] sm:$0xf] %v847
      %912 = vst [vmem:[%s334 + $0x2c] sm:$0xf] %v848
      %913 = vst [vmem:[%s334 + $0x30] sm:$0xf] %v849
      %914 = vst [vmem:[%s334 + $0x34] sm:$0xf] %v850
      %915 = vst [vmem:[%s334 + $0x38] sm:$0xf] %v851
      %916 = vst [vmem:[%s334 + $0x3c] sm:$0xf] %v852
      %917 = vst [vmem:[%s334 + $0x40] sm:$0xf] %v853
      %918 = vst [vmem:[%s334 + $0x44] sm:$0xf] %v854
      %919 = vst [vmem:[%s334 + $0x48] sm:$0xf] %v855
      %920 = vst [vmem:[%s334 + $0x4c] sm:$0xf] %v856
      %921 = vst [vmem:[%s334 + $0x50] sm:$0xf] %v857
      %922 = vst [vmem:[%s334 + $0x54] sm:$0xf] %v858
      %923 = vst [vmem:[%s334 + $0x58] sm:$0xf] %v859
      %924 = vst [vmem:[%s334 + $0x5c] sm:$0xf] %v860
      %925 = vst [vmem:[%s334 + $0x60] sm:$0xf] %v861
      %926 = vst [vmem:[%s334 + $0x64] sm:$0xf] %v862
      %927 = vst [vmem:[%s334 + $0x68] sm:$0xf] %v863
      %928 = vst [vmem:[%s334 + $0x6c] sm:$0xf] %v864
      %929 = vst [vmem:[%s334 + $0x70] sm:$0xf] %v865
      %930 = vst [vmem:[%s334 + $0x74] sm:$0xf] %v866
      %931 = vst [vmem:[%s334 + $0x78] sm:$0xf] %v867
      %932 = vst [vmem:[%s334 + $0x7c] sm:$0xf] %v868
      %v933 = vadd.f32 %v647, %v650
      %v934 = vadd.f32 %v933, %v655
      %v935 = vadd.f32 %v934, %v658
      %v936 = vadd.f32 %v935, %v663
      %v937 = vadd.f32 %v936, %v666
      %v938 = vadd.f32 %v937, %v671
      %v939 = vadd.f32 %v938, %v674
      %v940 = vadd.f32 %v939, %v679
      %v941 = vadd.f32 %v940, %v682
      %v942 = vadd.f32 %v941, %v687
      %v943 = vadd.f32 %v942, %v690
      %v944 = vadd.f32 %v943, %v695
      %v945 = vadd.f32 %v944, %v698
      %v946 = vadd.f32 %v945, %v703
      %v947 = vadd.f32 %v946, %v706
      %v948 = vadd.f32 %v947, %v711
      %v949 = vadd.f32 %v948, %v714
      %v950 = vadd.f32 %v949, %v719
      %v951 = vadd.f32 %v950, %v722
      %v952 = vadd.f32 %v951, %v727
      %v953 = vadd.f32 %v952, %v730
      %v954 = vadd.f32 %v953, %v735
      %v955 = vadd.f32 %v954, %v738
      %v956 = vadd.f32 %v955, %v743
      %v957 = vadd.f32 %v956, %v746
      %v958 = vadd.f32 %v957, %v751
      %v959 = vadd.f32 %v958, %v754
      %v960 = vadd.f32 %v959, %v759
      %v961 = vadd.f32 %v960, %v762
      %v962 = vadd.f32 %v961, %v767
      %v963 = vadd.f32 %v962, %v770
      %v964 = vrot.slane %v963, 4
      %v965 = vadd.f32 %v963, %v964
      %v966 = vrot.slane %v965, 2
      %v967 = vadd.f32 %v965, %v966
      %v968 = vrot.slane %v967, 1
      %v969 = vadd.f32 %v967, %v968
      %v970 = vld [vmem:[%s7] sm:$0x1]
      %v971 = vadd.f32 %v970, %v969
      %972 = vst [vmem:[%s7] sm:$0x1] %v971
      %v973 = vld [vmem:[%s8] sm:$0x1]
      %v974 = vmul.f32 %v647, %v647
      %v975 = vmul.f32 %v650, %v650
      %v976 = vmul.f32 %v655, %v655
      %v977 = vmul.f32 %v658, %v658
      %v978 = vmul.f32 %v663, %v663
      %v979 = vmul.f32 %v666, %v666
      %v980 = vmul.f32 %v671, %v671
      %v981 = vmul.f32 %v674, %v674
      %v982 = vmul.f32 %v679, %v679
      %v983 = vmul.f32 %v682, %v682
      %v984 = vmul.f32 %v687, %v687
      %v985 = vmul.f32 %v690, %v690
      %v986 = vmul.f32 %v695, %v695
      %v987 = vmul.f32 %v698, %v698
      %v988 = vmul.f32 %v703, %v703
      %v989 = vmul.f32 %v706, %v706
      %v990 = vmul.f32 %v711, %v711
      %v991 = vmul.f32 %v714, %v714
      %v992 = vmul.f32 %v719, %v719
      %v993 = vmul.f32 %v722, %v722
      %v994 = vmul.f32 %v727, %v727
      %v995 = vmul.f32 %v730, %v730
      %v996 = vmul.f32 %v735, %v735
      %v997 = vmul.f32 %v738, %v738
      %v998 = vmul.f32 %v743, %v743
      %v999 = vmul.f32 %v746, %v746
      %v1000 = vmul.f32 %v751, %v751
      %v1001 = vmul.f32 %v754, %v754
      %v1002 = vmul.f32 %v759, %v759
      %v1003 = vmul.f32 %v762, %v762
      %v1004 = vmul.f32 %v767, %v767
      %v1005 = vmul.f32 %v770, %v770
      %v1006 = vadd.f32 %v974, %v975
      %v1007 = vadd.f32 %v1006, %v976
      %v1008 = vadd.f32 %v1007, %v977
      %v1009 = vadd.f32 %v1008, %v978
      %v1010 = vadd.f32 %v1009, %v979
      %v1011 = vadd.f32 %v1010, %v980
      %v1012 = vadd.f32 %v1011, %v981
      %v1013 = vadd.f32 %v1012, %v982
      %v1014 = vadd.f32 %v1013, %v983
      %v1015 = vadd.f32 %v1014, %v984
      %v1016 = vadd.f32 %v1015, %v985
      %v1017 = vadd.f32 %v1016, %v986
      %v1018 = vadd.f32 %v1017, %v987
      %v1019 = vadd.f32 %v1018, %v988
      %v1020 = vadd.f32 %v1019, %v989
      %v1021 = vadd.f32 %v1020, %v990
      %v1022 = vadd.f32 %v1021, %v991
      %v1023 = vadd.f32 %v1022, %v992
      %v1024 = vadd.f32 %v1023, %v993
      %v1025 = vadd.f32 %v1024, %v994
      %v1026 = vadd.f32 %v1025, %v995
      %v1027 = vadd.f32 %v1026, %v996
      %v1028 = vadd.f32 %v1027, %v997
      %v1029 = vadd.f32 %v1028, %v998
      %v1030 = vadd.f32 %v1029, %v999
      %v1031 = vadd.f32 %v1030, %v1000
      %v1032 = vadd.f32 %v1031, %v1001
      %v1033 = vadd.f32 %v1032, %v1002
      %v1034 = vadd.f32 %v1033, %v1003
      %v1035 = vadd.f32 %v1034, %v1004
      %v1036 = vadd.f32 %v1035, %v1005
      %v1037 = vrot.slane %v1036, 4
      %v1038 = vadd.f32 %v1036, %v1037
      %v1039 = vrot.slane %v1038, 2
      %v1040 = vadd.f32 %v1038, %v1039
      %v1041 = vrot.slane %v1040, 1
      %v1042 = vadd.f32 %v1040, %v1041
      %v1043 = vadd.f32 %v973, %v1042
      %1044 = vst [vmem:[%s8] sm:$0x1] %v1043
      %1045 = vst [vmem:[%s338] sm:$0x1] %v969
      %s1046 = smul.u32 32, %s21
      %p1047 = scmp.lt.s32.totalorder %s1046, 63
      %s1048 = scalar_select %p1047, %s1046, 63
      %s1049 = smul.addr %s1048, 4
      %s1050 = scalar_lea.vmem %s6, %s1049
      %p1051 = scmp.lt.s32.totalorder %s21, 1
      %s1052 = scalar_select %p1051, %s21, 1
      %s1053 = scalar_lea.vmem %s9, %s1052
      // Predicated region
      $region49: #{se_bottleneck_forward.9} parent=43 // pred_check
        %p1054 = pneg %p170
      $region50: #{se_bottleneck_forward.9} parent=43 // pred_check_branch
        %1056 = sbr.rel (%p1054) target = $region52
      $region51: #{se_bottleneck_forward.9} parent=43 // pred_region
        %s1057 = smul.u32 32, %s21
      $region52: #{se_bottleneck_forward.9} parent=43 // pred_fallthru
        _
      // Predicated region
      $region53: #{se_bottleneck_forward.9} parent=43 // pred_check
        %p1058 = pneg %p191
      $region54: #{se_bottleneck_forward.9} parent=43 // pred_check_branch
        %1060 = sbr.rel (%p1058) target = $region56
      $region55: #{se_bottleneck_forward.9} parent=43 // pred_region
        _
      $region56: #{se_bottleneck_forward.9} parent=43 // pred_fallthru
        _
      // Predicated region
      $region57: #{se_bottleneck_forward.9} parent=43 // pred_check
        %p1061 = pneg %p212
      $region58: #{se_bottleneck_forward.9} parent=43 // pred_check_branch
        %1063 = sbr.rel (%p1061) target = $region60
      $region59: #{se_bottleneck_forward.9} parent=43 // pred_region
        _
      $region60: #{se_bottleneck_forward.9} parent=43 // pred_fallthru
        _
      // Predicated region
      $region61: #{se_bottleneck_forward.9} parent=43 // pred_check
        %p1064 = pneg %p238
      $region62: #{se_bottleneck_forward.9} parent=43 // pred_check_branch
        %1066 = sbr.rel (%p1064) target = $region64
      $region63: #{se_bottleneck_forward.9} parent=43 // pred_region
        _
      $region64: #{se_bottleneck_forward.9} parent=43 // pred_fallthru
        _
      // Predicated region
      $region65: #{se_bottleneck_forward.9} parent=43 // pred_check
        %p1067 = pneg %p191
      $region66: #{se_bottleneck_forward.9} parent=43 // pred_check_branch
        %1069 = sbr.rel (%p1067) target = $region68
      $region67: #{se_bottleneck_forward.9} parent=43 // pred_region
        _
      $region68: #{se_bottleneck_forward.9} parent=43 // pred_fallthru
        _
      // Predicated region
      $region69: #{se_bottleneck_forward.9} parent=43 // pred_check
        %p1070 = pneg %p212
      $region70: #{se_bottleneck_forward.9} parent=43 // pred_check_branch
        %1072 = sbr.rel (%p1070) target = $region72
      $region71: #{se_bottleneck_forward.9} parent=43 // pred_region
        _
      $region72: #{se_bottleneck_forward.9} parent=43 // pred_fallthru
        _
    $region44: #{se_bottleneck_forward.9} parent=5 // pred_fallthru
      _
    %p1073 = scmp.le.s32.totalorder 2, %s16
    // Predicated region
    $region73: #{se_bottleneck_forward.9} parent=5 // pred_check
      %p1074 = pneg %p1073
    $region74: #{se_bottleneck_forward.9} parent=5 // pred_check_branch
      %1076 = sbr.rel (%p1074) target = $region76
    $region75: #{se_bottleneck_forward.9} parent=5 // pred_region
      %s1077 = ssub.s32 %s16, 2
      // Predicated region
      $region77: #{se_bottleneck_forward.9} parent=75 // pred_check
        %p1078 = pneg %p176
      $region78: #{se_bottleneck_forward.9} parent=75 // pred_check_branch
        %1080 = sbr.rel (%p1078) target = $region80
      $region79: #{se_bottleneck_forward.9} parent=75 // pred_region
        %s1081 = smul.u32 32, %s22
        %p1082 = scmp.lt.s32.totalorder %s1081, 63
        %s1083 = scalar_select %p1082, %s1081, 63
        %s1084 = smul.addr %s1083, 4
        %s1085 = scalar_lea.vmem %s6, %s1084
      $region80: #{se_bottleneck_forward.9} parent=75 // pred_fallthru
        _
      // Predicated region
      $region81: #{se_bottleneck_forward.9} parent=75 // pred_check
        %p1086 = pneg %p244
      $region82: #{se_bottleneck_forward.9} parent=75 // pred_check_branch
        %1088 = sbr.rel (%p1086) target = $region84
      $region83: #{se_bottleneck_forward.9} parent=75 // pred_region
        %p1089 = scmp.lt.s32.totalorder %s22, 1
        %s1090 = scalar_select %p1089, %s22, 1
        %s1091 = scalar_lea.vmem %s9, %s1090
      $region84: #{se_bottleneck_forward.9} parent=75 // pred_fallthru
        _
    $region76: #{se_bottleneck_forward.9} parent=5 // pred_fallthru
      _
  $region6: #{se_bottleneck_forward.9} parent=0 // loop_footer
    %s20 = sadd.s32 1, %s16
  $region7: #{se_bottleneck_forward.9} parent=0 // loop_footer_branch
    %15 = sbr.rel target = $region3
  $region8: #{se_bottleneck_forward.9} parent=0 // loop_exit
    _

// kernel: se_bottleneck_forward.10
$region0: #{se_bottleneck_forward.10}
  #allocation0 [shape = 'u32[]', space=smem, size = 0x4, offset = 0x4, fixed_abs, tag = 'smem constant byte address 0x4 - core index']
  #allocation1 [shape = 'u32[144,128]{1,0:T(1,128)}', space=vmem, size = 0x12000, scoped, tag = 'internal scratch']
  %s0 = inlined_call_operand.vmem [shape: f32[2,1,128], index: 0, kind: input, shape index: {}]
  %s1 = inlined_call_operand.vmem [shape: f32[1,128], index: 1, kind: input, shape index: {}]
  %s2 = inlined_call_operand.vmem [shape: f32[1,128], index: 2, kind: input, shape index: {}]
  %s3 = inlined_call_operand.vmem [shape: f32[1,128], index: 3, kind: input, shape index: {}]
  %s4 = inlined_call_operand.vmem [shape: f32[1,128], index: 4, kind: input, shape index: {}]
  %s5 = inlined_call_operand.vmem [shape: bf16[128,8], index: 5, kind: input, shape index: {}]
  %s6 = inlined_call_operand.vmem [shape: bf16[8,128], index: 6, kind: input, shape index: {}]
  %s7 = inlined_call_operand.vmem [shape: f32[2,1,128], index: 7, kind: output, shape index: {0}]
  %s8 = inlined_call_operand.vmem [shape: f32[1,128], index: 8, kind: output, shape index: {1}]
  %s9 = inlined_call_operand.vmem [shape: f32[1,128], index: 9, kind: output, shape index: {2}]
  %10 = xla_tuple %s7, %s8, %s9
  %s11 = sld [smem:[#allocation0]]
  $region54: #{se_bottleneck_forward.10} parent=0
    _
  %s13 = ssub.s32 1, %s11
  %s14 = scalar_select 0, %s13, %s11
  // Predicated region
  $region2: #{se_bottleneck_forward.10} parent=0 // pred_check
    _
  $region3: #{se_bottleneck_forward.10} parent=0 // pred_check_branch
    %16 = sbr.rel (0) target = $region5
  $region4: #{se_bottleneck_forward.10} parent=0 // pred_region
    _
  $region5: #{se_bottleneck_forward.10} parent=0 // pred_fallthru
    _
  // Predicated region
  $region6: #{se_bottleneck_forward.10} parent=0 // pred_check
    _
  $region7: #{se_bottleneck_forward.10} parent=0 // pred_check_branch
    %18 = sbr.rel (0) target = $region9
  $region8: #{se_bottleneck_forward.10} parent=0 // pred_region
    _
  $region9: #{se_bottleneck_forward.10} parent=0 // pred_fallthru
    _
  // Predicated region
  $region10: #{se_bottleneck_forward.10} parent=0 // pred_check
    _
  $region11: #{se_bottleneck_forward.10} parent=0 // pred_check_branch
    %20 = sbr.rel (0) target = $region13
  $region12: #{se_bottleneck_forward.10} parent=0 // pred_region
    _
  $region13: #{se_bottleneck_forward.10} parent=0 // pred_fallthru
    _
  // Predicated region
  $region14: #{se_bottleneck_forward.10} parent=0 // pred_check
    _
  $region15: #{se_bottleneck_forward.10} parent=0 // pred_check_branch
    %22 = sbr.rel (0) target = $region17
  $region16: #{se_bottleneck_forward.10} parent=0 // pred_region
    _
  $region17: #{se_bottleneck_forward.10} parent=0 // pred_fallthru
    _
  // Predicated region
  $region18: #{se_bottleneck_forward.10} parent=0 // pred_check
    _
  $region19: #{se_bottleneck_forward.10} parent=0 // pred_check_branch
    %24 = sbr.rel (0) target = $region21
  $region20: #{se_bottleneck_forward.10} parent=0 // pred_region
    _
  $region21: #{se_bottleneck_forward.10} parent=0 // pred_fallthru
    _
  // Predicated region
  $region22: #{se_bottleneck_forward.10} parent=0 // pred_check
    _
  $region23: #{se_bottleneck_forward.10} parent=0 // pred_check_branch
    %26 = sbr.rel (0) target = $region25
  $region24: #{se_bottleneck_forward.10} parent=0 // pred_region
    _
  $region25: #{se_bottleneck_forward.10} parent=0 // pred_fallthru
    _
  // Predicated region
  $region26: #{se_bottleneck_forward.10} parent=0 // pred_check
    _
  $region27: #{se_bottleneck_forward.10} parent=0 // pred_check_branch
    %28 = sbr.rel (0) target = $region29
  $region28: #{se_bottleneck_forward.10} parent=0 // pred_region
    _
  $region29: #{se_bottleneck_forward.10} parent=0 // pred_fallthru
    _
  %v30 = vld [vmem:[%s1] sm:$0x1]
  %v31 = vmul.f32 %v30, 0.001953125
  %v32 = vld [vmem:[%s2] sm:$0x1]
  %v33 = vmul.f32 %v32, 0.001953125
  %v34 = vmul.f32 %v31, %v31
  %v35 = vsub.f32 %v33, %v34
  %v36 = vld [vmem:[%s3] sm:$0x1]
  %v37 = vadd.f32 %v35, 1e-05
  %v38 = vrsqrt.pop %v37
  %v39 = vmul.f32 %v36, %v38
  %v40 = vld [vmem:[%s4] sm:$0x1]
  %v41 = vmul.f32 %v31, %v39
  %v42 = vsub.f32 %v40, %v41
  %43 = vst [vmem:[%s8] sm:$0x1] %v39
  %44 = vst [vmem:[%s9] sm:$0x1] %v42
  %v45 = vld [vmem:[%s0] sm:$0x1]
  %v46 = vld [vmem:[%s0 + $0x1] sm:$0x1]
  %v47 = vmul.f32 %v45, 0.00390625
  %v48 = vmul.f32 %v46, 0.00390625
  %v50 = vlaneseq
  %v51 = vshrl.u32 %v50, 7
  %v52 = vsub.s32 0, %v51
  %v53 = vrot.slane %v39, %v52
  %v55 = vunpack.c.l.s4 1966171168
  %v56 = vunpack.c.0.s8 %v55
  %v57 = vlaneseq
  %v58 = vshrl.u32 %v57, 7
  %v59 = vsub.s32 %v56, %v58
  %v60 = vrot.slane %v53, %v59
  %v61 = vcombine.high %v60, %v60
  %v63 = vunpack.c.l.s4 1966171168
  %v64 = vunpack.c.0.s8 %v63
  %v65 = vlaneseq
  %v66 = vshrl.u32 %v65, 7
  %v67 = vsub.s32 %v64, %v66
  %v68 = vrot.slane %v60, %v67
  %v70 = vunpack.c.l.s4 1966171168
  %v71 = vunpack.c.0.s8 %v70
  %v72 = vlaneseq
  %v73 = vshrl.u32 %v72, 7
  %v74 = vsub.s32 %v71, %v73
  %v75 = vrot.slane %v61, %v74
  %v78 = vmul.f32 %v47, %v68
  %v79 = vmul.f32 %v48, %v75
  %v81 = vlaneseq
  %v82 = vshrl.u32 %v81, 7
  %v83 = vsub.s32 0, %v82
  %v84 = vrot.slane %v42, %v83
  %v86 = vunpack.c.l.s4 1966171168
  %v87 = vunpack.c.0.s8 %v86
  %v88 = vlaneseq
  %v89 = vshrl.u32 %v88, 7
  %v90 = vsub.s32 %v87, %v89
  %v91 = vrot.slane %v84, %v90
  %v92 = vcombine.high %v91, %v91
  %v94 = vunpack.c.l.s4 1966171168
  %v95 = vunpack.c.0.s8 %v94
  %v96 = vlaneseq
  %v97 = vshrl.u32 %v96, 7
  %v98 = vsub.s32 %v95, %v97
  %v99 = vrot.slane %v91, %v98
  %v101 = vunpack.c.l.s4 1966171168
  %v102 = vunpack.c.0.s8 %v101
  %v103 = vlaneseq
  %v104 = vshrl.u32 %v103, 7
  %v105 = vsub.s32 %v102, %v104
  %v106 = vrot.slane %v92, %v105
  %v109 = vadd.f32 %v78, %v99
  %v110 = vadd.f32 %v79, %v106
  %v111 = vpack.c.bf16 %v109, %v109
  %v112 = vpack.c.bf16 %v110, %v110
  %v113 = vld [vmem:[%s5] sm:$0xf]
  %v114 = vld [vmem:[%s5 + $0x4] sm:$0xf]
  %v115 = vld [vmem:[%s5 + $0x8] sm:$0xf]
  %v116 = vld [vmem:[%s5 + $0xc] sm:$0xf]
  %v117 = vld [vmem:[%s5 + $0x10] sm:$0xf]
  %v118 = vld [vmem:[%s5 + $0x14] sm:$0xf]
  %v119 = vld [vmem:[%s5 + $0x18] sm:$0xf]
  %v120 = vld [vmem:[%s5 + $0x1c] sm:$0xf]
  %v121 = vld [vmem:[%s5 + $0x20] sm:$0xf]
  %v122 = vld [vmem:[%s5 + $0x24] sm:$0xf]
  %v123 = vld [vmem:[%s5 + $0x28] sm:$0xf]
  %v124 = vld [vmem:[%s5 + $0x2c] sm:$0xf]
  %v125 = vld [vmem:[%s5 + $0x30] sm:$0xf]
  %v126 = vld [vmem:[%s5 + $0x34] sm:$0xf]
  %v127 = vld [vmem:[%s5 + $0x38] sm:$0xf]
  %v128 = vld [vmem:[%s5 + $0x3c] sm:$0xf]
  %v131 = vunpack.c.l.b16 %v111
  %v132 = vunpack.c.l.b16 %v112
  %v133 = vrot.slane %v132, 7
  %vm134 = vcmask 1041409
  %v135 = vsel %vm134, %v133, %v131
  %v136 = vpack.c.b16 %v135, %v135
  %v154 = vunpack.c.l.b16 %v113
  %v155 = vunpack.c.l.b16 %v114
  %v156 = vunpack.c.l.b16 %v115
  %v157 = vunpack.c.l.b16 %v116
  %v158 = vunpack.c.l.b16 %v117
  %v159 = vunpack.c.l.b16 %v118
  %v160 = vunpack.c.l.b16 %v119
  %v161 = vunpack.c.l.b16 %v120
  %v162 = vunpack.c.l.b16 %v121
  %v163 = vunpack.c.l.b16 %v122
  %v164 = vunpack.c.l.b16 %v123
  %v165 = vunpack.c.l.b16 %v124
  %v166 = vunpack.c.l.b16 %v125
  %v167 = vunpack.c.l.b16 %v126
  %v168 = vunpack.c.l.b16 %v127
  %v169 = vunpack.c.l.b16 %v128
  %v170 = vpack.c.b16 %v155, %v154
  %v171 = vpack.c.b16 %v157, %v156
  %v172 = vpack.c.b16 %v159, %v158
  %v173 = vpack.c.b16 %v161, %v160
  %v174 = vpack.c.b16 %v163, %v162
  %v175 = vpack.c.b16 %v165, %v164
  %v176 = vpack.c.b16 %v167, %v166
  %v177 = vpack.c.b16 %v169, %v168
  %186 = vmatprep.subr.bf16.mxu0 0
  %187 = vmatpush1.bf16.msra.mxu0 %v170
  %188 = vmatprep.subr.bf16.mxu0 0
  %189 = vmatpush1.bf16.msra.mxu0 %v171
  %190 = vmatprep.subr.bf16.mxu0 0
  %191 = vmatpush1.bf16.msra.mxu0 %v172
  %192 = vmatprep.subr.bf16.mxu0 0
  %193 = vmatpush1.bf16.msra.mxu0 %v173
  %194 = vmatprep.subr.bf16.mxu0 0
  %195 = vmatpush1.bf16.msra.mxu0 %v174
  %196 = vmatprep.subr.bf16.mxu0 0
  %197 = vmatpush1.bf16.msra.mxu0 %v175
  %198 = vmatprep.subr.bf16.mxu0 0
  %199 = vmatpush1.bf16.msra.mxu0 %v176
  %200 = vmatprep.subr.bf16.mxu0 0
  %201 = vmatpush1.bf16.msra.mxu0 %v177
  %202 = vmatprep.subr.bf16.mxu0 0
  %203 = vmatpush1.bf16.msra.mxu0 0
  %204 = vmatprep.subr.bf16.mxu0 0
  %205 = vmatpush1.bf16.msra.mxu0 0
  %206 = vmatprep.subr.bf16.mxu0 0
  %207 = vmatpush1.bf16.msra.mxu0 0
  %208 = vmatprep.subr.bf16.mxu0 0
  %209 = vmatpush1.bf16.msra.mxu0 0
  %210 = vmatprep.subr.bf16.mxu0 0
  %211 = vmatpush1.bf16.msra.mxu0 0
  %212 = vmatprep.subr.bf16.mxu0 0
  %213 = vmatpush1.bf16.msra.mxu0 0
  %214 = vmatprep.subr.bf16.mxu0 0
  %215 = vmatpush1.bf16.msra.mxu0 0
  %216 = vmatprep.subr.bf16.mxu0 0
  %217 = vmatpush1.bf16.msra.mxu0 0
  %218 = vmatprep.mubr.bf16.mxu0 0
  %219 = vmatmul.mubr.bf16.gmra.mrb[0].mxu0 %v136
  %v220 = vpop.f32.mrb[0].mxu0
  %v221 = vadd.f32 0.0, %v220
  %v222 = vpop.f32.mrb[0].mxu0
  %v223 = vpop.f32.mrb[0].mxu0
  %v224 = vpop.f32.mrb[0].mxu0
  %225 = vdwg.mxu0
  %v226 = vmax.f32 %v221, 0.0
  %v227 = vpack.c.bf16 %v226, %v226
  %v228 = vld [vmem:[%s6] sm:$0xf]
  %vm229 = vcmask 64512
  %v231 = vsel %vm229, %v227, 0
  %vm233 = vcmask 1043456
  %v235 = vsel %vm233, %v228, 0
  %237 = vmatprep.subr.bf16.mxu0 0
  %238 = vmatpush1.bf16.msra.mxu0 %v235
  %239 = vmatprep.subr.bf16.mxu0 0
  %240 = vmatpush1.bf16.msra.mxu0 0
  %241 = vmatprep.subr.bf16.mxu0 0
  %242 = vmatpush1.bf16.msra.mxu0 0
  %243 = vmatprep.subr.bf16.mxu0 0
  %244 = vmatpush1.bf16.msra.mxu0 0
  %245 = vmatprep.subr.bf16.mxu0 0
  %246 = vmatpush1.bf16.msra.mxu0 0
  %247 = vmatprep.subr.bf16.mxu0 0
  %248 = vmatpush1.bf16.msra.mxu0 0
  %249 = vmatprep.subr.bf16.mxu0 0
  %250 = vmatpush1.bf16.msra.mxu0 0
  %251 = vmatprep.subr.bf16.mxu0 0
  %252 = vmatpush1.bf16.msra.mxu0 0
  %253 = vmatprep.subr.bf16.mxu0 0
  %254 = vmatpush1.bf16.msra.mxu0 0
  %255 = vmatprep.subr.bf16.mxu0 0
  %256 = vmatpush1.bf16.msra.mxu0 0
  %257 = vmatprep.subr.bf16.mxu0 0
  %258 = vmatpush1.bf16.msra.mxu0 0
  %259 = vmatprep.subr.bf16.mxu0 0
  %260 = vmatpush1.bf16.msra.mxu0 0
  %261 = vmatprep.subr.bf16.mxu0 0
  %262 = vmatpush1.bf16.msra.mxu0 0
  %263 = vmatprep.subr.bf16.mxu0 0
  %264 = vmatpush1.bf16.msra.mxu0 0
  %265 = vmatprep.subr.bf16.mxu0 0
  %266 = vmatpush1.bf16.msra.mxu0 0
  %267 = vmatprep.subr.bf16.mxu0 0
  %268 = vmatpush1.bf16.msra.mxu0 0
  %269 = vmatprep.mubr.bf16.mxu0 0
  %270 = vmatmul.mubr.bf16.gmra.mrb[0].mxu0 %v231
  %v271 = vpop.f32.mrb[0].mxu0
  %v272 = vadd.f32 0.0, %v271
  %v273 = vpop.f32.mrb[0].mxu0
  %v274 = vpop.f32.mrb[0].mxu0
  %v275 = vpop.f32.mrb[0].mxu0
  %276 = vdwg.mxu0
  %v277 = vxor.u32 %v272, 2147483648
  %v278 = vmul.f32 %v277, 1.442695
  %v279 = vpow.pop %v278
  %v280 = vadd.f32 %v279, 1.0
  %v281 = vrcp.pop %v280
  %v282 = vmul.f32 1.0, %v281
  %v285 = vunpack.c.l.s4 1966171168
  %v286 = vunpack.c.0.s8 %v285
  %v287 = vlaneseq
  %v288 = vshrl.u32 %v287, 7
  %v289 = vsub.s32 %v286, %v288
  %v290 = vrot.slane %v282, %v289
  %v291 = vcombine.high %v290, %v290
  %v293 = vunpack.c.l.s4 1966171168
  %v294 = vunpack.c.0.s8 %v293
  %v295 = vlaneseq
  %v296 = vshrl.u32 %v295, 7
  %v297 = vsub.s32 %v294, %v296
  %v298 = vrot.slane %v290, %v297
  %v300 = vunpack.c.l.s4 1966171168
  %v301 = vunpack.c.0.s8 %v300
  %v302 = vlaneseq
  %v303 = vshrl.u32 %v302, 7
  %v304 = vsub.s32 %v301, %v303
  %v305 = vrot.slane %v291, %v304
  %308 = vst [vmem:[%s7] sm:$0x1] %v298
  %309 = vst [vmem:[%s7 + $0x1] sm:$0x1] %v305
  // Predicated region
  $region30: #{se_bottleneck_forward.10} parent=0 // pred_check
    _
  $region31: #{se_bottleneck_forward.10} parent=0 // pred_check_branch
    %311 = sbr.rel (0) target = $region33
  $region32: #{se_bottleneck_forward.10} parent=0 // pred_region
    _
  $region33: #{se_bottleneck_forward.10} parent=0 // pred_fallthru
    _
  // Predicated region
  $region34: #{se_bottleneck_forward.10} parent=0 // pred_check
    _
  $region35: #{se_bottleneck_forward.10} parent=0 // pred_check_branch
    %313 = sbr.rel (0) target = $region37
  $region36: #{se_bottleneck_forward.10} parent=0 // pred_region
    _
  $region37: #{se_bottleneck_forward.10} parent=0 // pred_fallthru
    _
  // Predicated region
  $region38: #{se_bottleneck_forward.10} parent=0 // pred_check
    _
  $region39: #{se_bottleneck_forward.10} parent=0 // pred_check_branch
    %315 = sbr.rel (0) target = $region41
  $region40: #{se_bottleneck_forward.10} parent=0 // pred_region
    _
  $region41: #{se_bottleneck_forward.10} parent=0 // pred_fallthru
    _
  // Predicated region
  $region42: #{se_bottleneck_forward.10} parent=0 // pred_check
    _
  $region43: #{se_bottleneck_forward.10} parent=0 // pred_check_branch
    %317 = sbr.rel (0) target = $region45
  $region44: #{se_bottleneck_forward.10} parent=0 // pred_region
    _
  $region45: #{se_bottleneck_forward.10} parent=0 // pred_fallthru
    _
  // Predicated region
  $region46: #{se_bottleneck_forward.10} parent=0 // pred_check
    _
  $region47: #{se_bottleneck_forward.10} parent=0 // pred_check_branch
    %319 = sbr.rel (0) target = $region49
  $region48: #{se_bottleneck_forward.10} parent=0 // pred_region
    _
  $region49: #{se_bottleneck_forward.10} parent=0 // pred_fallthru
    _
  // Predicated region
  $region50: #{se_bottleneck_forward.10} parent=0 // pred_check
    _
  $region51: #{se_bottleneck_forward.10} parent=0 // pred_check_branch
    %321 = sbr.rel (0) target = $region53
  $region52: #{se_bottleneck_forward.10} parent=0 // pred_region
    _
  $region53: #{se_bottleneck_forward.10} parent=0 // pred_fallthru
    _

// kernel: se_bottleneck_forward.11
$region0: #{se_bottleneck_forward.11}
  #allocation0 [shape = 'u32[]', space=smem, size = 0x4, offset = 0x4, fixed_abs, tag = 'smem constant byte address 0x4 - core index']
  #allocation1 [shape = 'u32[144,128]{1,0:T(1,128)}', space=vmem, size = 0x12000, scoped, tag = 'internal scratch']
  %s0 = inlined_call_operand.vmem [shape: bf16[512,128], index: 0, kind: input, shape index: {}]
  %s1 = inlined_call_operand.vmem [shape: f32[1,128], index: 1, kind: input, shape index: {}]
  %s2 = inlined_call_operand.vmem [shape: f32[1,128], index: 2, kind: input, shape index: {}]
  %s3 = inlined_call_operand.vmem [shape: f32[2,1,128], index: 3, kind: input, shape index: {}]
  %s4 = inlined_call_operand.vmem [shape: f32[512,128], index: 4, kind: input, shape index: {}]
  %s5 = inlined_call_operand.hbm [shape: f32[512,128], index: 5, kind: output, shape index: {}]
  %s6 = sld [smem:[#allocation0]]
  $region53: #{se_bottleneck_forward.11} parent=0
    _
  %s8 = ssub.s32 1, %s6
  %s9 = scalar_select 0, %s8, %s6
  $region1: #{se_bottleneck_forward.11} parent=0
    #allocation2 [shape = 'u8[262144]{0}', space=vmem, size = 0x40000, scoped, tag = 'output window, operand 0']
    #allocation3 [shape = 's32[2]{0}', space=sflag, size = 0x8, scoped, tag = 'scoped memory for se_bottleneck_forward.11']
    %10 = vsyncpa [#allocation3], 0
    %s11 = scalar_lea.sflag [#allocation3], 1
    %12 = vsyncpa %s11, 0
    loop: start=0, step=1, limit=4
    $region2: #{se_bottleneck_forward.11} parent=1 // loop_pre_header
      _
    $region3: #{se_bottleneck_forward.11} parent=1 // loop_header
      %s14 = sphi 0, %s18
      %p15 = scmp.ge.s32.totalorder %s14, 4
      %s24 = sphi 0, %s26
      %s27 = sphi 0, %s24
      %s28 = sphi 0, %s27
      %s44 = sphi 0, %s28
      %s48 = sphi 0, %s48
      %s50 = sphi 0, %s48
      %s51 = sphi 0, %s50
      %s65 = sphi 0, %s51
      %s69 = sphi 0, %s69
      %s71 = sphi 0, %s69
      %s72 = sphi 0, %s71
      %s86 = sphi 0, %s72
      %s92 = sphi 0, %s94
      %s95 = sphi 0, %s92
      %s96 = sphi 0, %s95
      %s112 = sphi 0, %s96
      %s118 = sphi 0, %s120
      %s121 = sphi 0, %s118
      %s122 = sphi 0, %s121
      %s138 = sphi 0, %s122
      %s144 = sphi 0, %s146
      %s147 = sphi 0, %s144
      %s148 = sphi 0, %s147
      %s164 = sphi 0, %s148
    $region4: #{se_bottleneck_forward.11} parent=1 // loop_header_branch
      %17 = sbr.rel (%p15) target = $region8
    $region5: #{se_bottleneck_forward.11} parent=1 // loop_body
      %s19 = ssub.s32 %s14, 1
      %s20 = ssub.s32 %s14, 2
      %s21 = sadd.s32 %s14, 1
      %s22 = ssub.s32 %s14, %s21
      %p23 = scmp.eq.s32.totalorder %s22, 0
      %s25 = sadd.s32 %s24, 1
      %s26 = scalar_select %p23, %s24, %s25
      %p29 = pneg %p23
      %p30 = scmp.eq.s32.totalorder %s14, 1
      %p31 = por %p29, %p30
      %p32 = scmp.ne.s32.totalorder %s24, %s27
      %p33 = scmp.eq.s32.totalorder %s14, 0
      %p34 = por %p32, %p33
      %p35 = scmp.ne.s32.totalorder %s24, %s27
      %p36 = scmp.eq.s32.totalorder %s19, 1
      %p37 = por %p35, %p36
      %p38 = scmp.ne.s32.totalorder %s27, %s28
      %p39 = scmp.eq.s32.totalorder %s19, 0
      %p40 = por %p38, %p39
      %p41 = scmp.ne.s32.totalorder %s27, %s28
      %p42 = scmp.eq.s32.totalorder %s20, 1
      %p43 = por %p41, %p42
      %p45 = scmp.ne.s32.totalorder %s28, %s44
      %p46 = scmp.eq.s32.totalorder %s20, 0
      %p47 = por %p45, %p46
      %s49 = sadd.s32 %s48, 1
      %p52 = scmp.eq.s32.totalorder %s14, 1
      %p53 = scmp.ne.s32.totalorder %s48, %s50
      %p54 = scmp.eq.s32.totalorder %s14, 0
      %p55 = por %p53, %p54
      %p56 = scmp.ne.s32.totalorder %s48, %s50
      %p57 = scmp.eq.s32.totalorder %s19, 1
      %p58 = por %p56, %p57
      %p59 = scmp.ne.s32.totalorder %s50, %s51
      %p60 = scmp.eq.s32.totalorder %s19, 0
      %p61 = por %p59, %p60
      %p62 = scmp.ne.s32.totalorder %s50, %s51
      %p63 = scmp.eq.s32.totalorder %s20, 1
      %p64 = por %p62, %p63
      %p66 = scmp.ne.s32.totalorder %s51, %s65
      %p67 = scmp.eq.s32.totalorder %s20, 0
      %p68 = por %p66, %p67
      %s70 = sadd.s32 %s69, 1
      %p73 = scmp.eq.s32.totalorder %s14, 1
      %p74 = scmp.ne.s32.totalorder %s69, %s71
      %p75 = scmp.eq.s32.totalorder %s14, 0
      %p76 = por %p74, %p75
      %p77 = scmp.ne.s32.totalorder %s69, %s71
      %p78 = scmp.eq.s32.totalorder %s19, 1
      %p79 = por %p77, %p78
      %p80 = scmp.ne.s32.totalorder %s71, %s72
      %p81 = scmp.eq.s32.totalorder %s19, 0
      %p82 = por %p80, %p81
      %p83 = scmp.ne.s32.totalorder %s71, %s72
      %p84 = scmp.eq.s32.totalorder %s20, 1
      %p85 = por %p83, %p84
      %p87 = scmp.ne.s32.totalorder %s72, %s86
      %p88 = scmp.eq.s32.totalorder %s20, 0
      %p89 = por %p87, %p88
      %s90 = ssub.s32 %s14, %s21
      %p91 = scmp.eq.s32.totalorder %s90, 0
      %s93 = sadd.s32 %s92, 1
      %s94 = scalar_select %p91, %s92, %s93
      %p97 = pneg %p91
      %p98 = scmp.eq.s32.totalorder %s14, 1
      %p99 = por %p97, %p98
      %p100 = scmp.ne.s32.totalorder %s92, %s95
      %p101 = scmp.eq.s32.totalorder %s14, 0
      %p102 = por %p100, %p101
      %p103 = scmp.ne.s32.totalorder %s92, %s95
      %p104 = scmp.eq.s32.totalorder %s19, 1
      %p105 = por %p103, %p104
      %p106 = scmp.ne.s32.totalorder %s95, %s96
      %p107 = scmp.eq.s32.totalorder %s19, 0
      %p108 = por %p106, %p107
      %p109 = scmp.ne.s32.totalorder %s95, %s96
      %p110 = scmp.eq.s32.totalorder %s20, 1
      %p111 = por %p109, %p110
      %p113 = scmp.ne.s32.totalorder %s96, %s112
      %p114 = scmp.eq.s32.totalorder %s20, 0
      %p115 = por %p113, %p114
      %s116 = ssub.s32 %s14, %s21
      %p117 = scmp.eq.s32.totalorder %s116, 0
      %s119 = sadd.s32 %s118, 1
      %s120 = scalar_select %p117, %s118, %s119
      %p123 = pneg %p117
      %p124 = scmp.eq.s32.totalorder %s14, 1
      %p125 = por %p123, %p124
      %p126 = scmp.ne.s32.totalorder %s118, %s121
      %p127 = scmp.eq.s32.totalorder %s14, 0
      %p128 = por %p126, %p127
      %p129 = scmp.ne.s32.totalorder %s118, %s121
      %p130 = scmp.eq.s32.totalorder %s19, 1
      %p131 = por %p129, %p130
      %p132 = scmp.ne.s32.totalorder %s121, %s122
      %p133 = scmp.eq.s32.totalorder %s19, 0
      %p134 = por %p132, %p133
      %p135 = scmp.ne.s32.totalorder %s121, %s122
      %p136 = scmp.eq.s32.totalorder %s20, 1
      %p137 = por %p135, %p136
      %p139 = scmp.ne.s32.totalorder %s122, %s138
      %p140 = scmp.eq.s32.totalorder %s20, 0
      %p141 = por %p139, %p140
      %s142 = ssub.s32 %s14, %s21
      %p143 = scmp.eq.s32.totalorder %s142, 0
      %s145 = sadd.s32 %s144, 1
      %s146 = scalar_select %p143, %s144, %s145
      %p149 = pneg %p143
      %p150 = scmp.eq.s32.totalorder %s14, 1
      %p151 = por %p149, %p150
      %p152 = scmp.ne.s32.totalorder %s144, %s147
      %p153 = scmp.eq.s32.totalorder %s14, 0
      %p154 = por %p152, %p153
      %p155 = scmp.ne.s32.totalorder %s144, %s147
      %p156 = scmp.eq.s32.totalorder %s19, 1
      %p157 = por %p155, %p156
      %p158 = scmp.ne.s32.totalorder %s147, %s148
      %p159 = scmp.eq.s32.totalorder %s19, 0
      %p160 = por %p158, %p159
      %p161 = scmp.ne.s32.totalorder %s147, %s148
      %p162 = scmp.eq.s32.totalorder %s20, 1
      %p163 = por %p161, %p162
      %p165 = scmp.ne.s32.totalorder %s148, %s164
      %p166 = scmp.eq.s32.totalorder %s20, 0
      %p167 = por %p165, %p166
      %p168 = scmp.le.s32.totalorder 1, %s14
      %p169 = scmp.lt.s32.totalorder %s14, 3
      %p170 = pnand %p168, %p169
      %p171 = pneg %p170
      // Predicated region
      $region9: #{se_bottleneck_forward.11} parent=5 // pred_check
        _
      $region10: #{se_bottleneck_forward.11} parent=5 // pred_check_branch
        %173 = sbr.rel (%p170) target = $region12
      $region11: #{se_bottleneck_forward.11} parent=5 // pred_region
        %s174 = ssub.s32 %s14, 1
        // Predicated region
        $region13: #{se_bottleneck_forward.11} parent=11 // pred_check
          %p175 = pneg %p61
        $region14: #{se_bottleneck_forward.11} parent=11 // pred_check_branch
          %177 = sbr.rel (%p175) target = $region16
        $region15: #{se_bottleneck_forward.11} parent=11 // pred_region
          _
        $region16: #{se_bottleneck_forward.11} parent=11 // pred_fallthru
          _
        // Predicated region
        $region17: #{se_bottleneck_forward.11} parent=11 // pred_check
          %p178 = pneg %p82
        $region18: #{se_bottleneck_forward.11} parent=11 // pred_check_branch
          %180 = sbr.rel (%p178) target = $region20
        $region19: #{se_bottleneck_forward.11} parent=11 // pred_region
          _
        $region20: #{se_bottleneck_forward.11} parent=11 // pred_fallthru
          _
      $region12: #{se_bottleneck_forward.11} parent=5 // pred_fallthru
        _
      %p181 = scmp.lt.s32.totalorder %s14, 2
      // Predicated region
      $region21: #{se_bottleneck_forward.11} parent=5 // pred_check
        %p182 = pneg %p181
      $region22: #{se_bottleneck_forward.11} parent=5 // pred_check_branch
        %184 = sbr.rel (%p182) target = $region24
      $region23: #{se_bottleneck_forward.11} parent=5 // pred_region
        // Predicated region
        $region25: #{se_bottleneck_forward.11} parent=23 // pred_check
          %p185 = pneg %p34
        $region26: #{se_bottleneck_forward.11} parent=23 // pred_check_branch
          %187 = sbr.rel (%p185) target = $region28
        $region27: #{se_bottleneck_forward.11} parent=23 // pred_region
          %s188 = smul.u32 32, %s14
          %p189 = scmp.lt.s32.totalorder %s188, 63
          %s190 = scalar_select %p189, %s188, 63
          %s191 = smul.addr %s190, 4
          %s192 = scalar_lea.vmem %s0, %s191
          %s193 = smul.u32 32, %s14
        $region28: #{se_bottleneck_forward.11} parent=23 // pred_fallthru
          _
        // Predicated region
        $region29: #{se_bottleneck_forward.11} parent=23 // pred_check
          %p194 = pneg %p102
        $region30: #{se_bottleneck_forward.11} parent=23 // pred_check_branch
          %196 = sbr.rel (%p194) target = $region32
        $region31: #{se_bottleneck_forward.11} parent=23 // pred_region
          %p197 = scmp.lt.s32.totalorder %s14, 1
          %s198 = scalar_select %p197, %s14, 1
          %s199 = scalar_lea.vmem %s3, %s198
        $region32: #{se_bottleneck_forward.11} parent=23 // pred_fallthru
          _
        // Predicated region
        $region33: #{se_bottleneck_forward.11} parent=23 // pred_check
          %p200 = pneg %p128
        $region34: #{se_bottleneck_forward.11} parent=23 // pred_check_branch
          %202 = sbr.rel (%p200) target = $region36
        $region35: #{se_bottleneck_forward.11} parent=23 // pred_region
          %s203 = smul.u32 32, %s14
          %p204 = scmp.lt.s32.totalorder %s203, 63
          %s205 = scalar_select %p204, %s203, 63
          %s206 = smul.addr %s205, 8
          %s207 = scalar_lea.vmem %s4, %s206
          %s208 = smul.u32 32, %s14
        $region36: #{se_bottleneck_forward.11} parent=23 // pred_fallthru
          _
      $region24: #{se_bottleneck_forward.11} parent=5 // pred_fallthru
        _
      %p209 = scmp.le.s32.totalorder 1, %s14
      %p210 = scmp.lt.s32.totalorder %s14, 3
      %p211 = pnand %p209, %p210
      %p212 = pneg %p211
      // Predicated region
      $region37: #{se_bottleneck_forward.11} parent=5 // pred_check
        _
      $region38: #{se_bottleneck_forward.11} parent=5 // pred_check_branch
        %214 = sbr.rel (%p211) target = $region40
      $region39: #{se_bottleneck_forward.11} parent=5 // pred_region
        %s215 = ssub.s32 %s14, 1
        %s216 = smul.u32 32, %s19
        %p217 = scmp.lt.s32.totalorder %s216, 63
        %s218 = scalar_select %p217, %s216, 63
        %s219 = smul.addr %s218, 4
        %s220 = scalar_lea.vmem %s0, %s219
        %p221 = pneg %p40
        %p222 = pneg %p37
        %p223 = pneg %p61
        %p224 = pneg %p58
        %p225 = pneg %p82
        %p226 = pneg %p79
        %p227 = scmp.lt.s32.totalorder %s19, 1
        %s228 = scalar_select %p227, %s19, 1
        %s229 = scalar_lea.vmem %s3, %s228
        %p230 = pneg %p108
        %p231 = pneg %p105
        %s232 = smul.u32 32, %s19
        %p233 = scmp.lt.s32.totalorder %s232, 63
        %s234 = scalar_select %p233, %s232, 63
        %s235 = smul.addr %s234, 8
        %s236 = scalar_lea.vmem %s4, %s235
        %p237 = pneg %p134
        %p238 = pneg %p131
        %p239 = pneg %p160
        %p240 = pneg %p157
        %s241 = sand.u32 %s147, 1
        %s242 = scalar_lea.sflag [#allocation3], %s241
        %s243 = sand.u32 %s147, 1
        %s244 = smul.addr %s243, 256
        %s245 = scalar_lea.vmem [#allocation2], %s244
        %s246 = smul.u32 32, %s19
        %p247 = scmp.lt.s32.totalorder %s246, 63
        %s248 = scalar_select %p247, %s246, 63
        %s249 = smul.addr %s248, 4
        %s250 = scalar_lea.vmem %s0, %s249
        %s251 = smul.u32 32, %s19
        %p252 = scmp.lt.s32.totalorder %s19, 1
        %s253 = scalar_select %p252, %s19, 1
        %s254 = scalar_lea.vmem %s3, %s253
        %s255 = smul.u32 32, %s19
        %p256 = scmp.lt.s32.totalorder %s255, 63
        %s257 = scalar_select %p256, %s255, 63
        %s258 = smul.addr %s257, 8
        %s259 = scalar_lea.vmem %s4, %s258
        %s260 = smul.u32 32, %s19
        %s261 = smul.u32 32, %s19
        %v262 = vld [vmem:[%s250] sm:$0xf]
        %v263 = vld [vmem:[%s250 + $0x4] sm:$0xf]
        %v264 = vld [vmem:[%s250 + $0x8] sm:$0xf]
        %v265 = vld [vmem:[%s250 + $0xc] sm:$0xf]
        %v266 = vld [vmem:[%s250 + $0x10] sm:$0xf]
        %v267 = vld [vmem:[%s250 + $0x14] sm:$0xf]
        %v268 = vld [vmem:[%s250 + $0x18] sm:$0xf]
        %v269 = vld [vmem:[%s250 + $0x1c] sm:$0xf]
        %v270 = vld [vmem:[%s250 + $0x20] sm:$0xf]
        %v271 = vld [vmem:[%s250 + $0x24] sm:$0xf]
        %v272 = vld [vmem:[%s250 + $0x28] sm:$0xf]
        %v273 = vld [vmem:[%s250 + $0x2c] sm:$0xf]
        %v274 = vld [vmem:[%s250 + $0x30] sm:$0xf]
        %v275 = vld [vmem:[%s250 + $0x34] sm:$0xf]
        %v276 = vld [vmem:[%s250 + $0x38] sm:$0xf]
        %v277 = vld [vmem:[%s250 + $0x3c] sm:$0xf]
        %v278 = vld [vmem:[%s250 + $0x40] sm:$0xf]
        %v279 = vld [vmem:[%s250 + $0x44] sm:$0xf]
        %v280 = vld [vmem:[%s250 + $0x48] sm:$0xf]
        %v281 = vld [vmem:[%s250 + $0x4c] sm:$0xf]
        %v282 = vld [vmem:[%s250 + $0x50] sm:$0xf]
        %v283 = vld [vmem:[%s250 + $0x54] sm:$0xf]
        %v284 = vld [vmem:[%s250 + $0x58] sm:$0xf]
        %v285 = vld [vmem:[%s250 + $0x5c] sm:$0xf]
        %v286 = vld [vmem:[%s250 + $0x60] sm:$0xf]
        %v287 = vld [vmem:[%s250 + $0x64] sm:$0xf]
        %v288 = vld [vmem:[%s250 + $0x68] sm:$0xf]
        %v289 = vld [vmem:[%s250 + $0x6c] sm:$0xf]
        %v290 = vld [vmem:[%s250 + $0x70] sm:$0xf]
        %v291 = vld [vmem:[%s250 + $0x74] sm:$0xf]
        %v292 = vld [vmem:[%s250 + $0x78] sm:$0xf]
        %v293 = vld [vmem:[%s250 + $0x7c] sm:$0xf]
        %v294 = vunpack.c.l.bf16 %v262
        %v295 = vunpack.c.l.bf16 %v263
        %v296 = vunpack.c.l.bf16 %v264
        %v297 = vunpack.c.l.bf16 %v265
        %v298 = vunpack.c.l.bf16 %v266
        %v299 = vunpack.c.l.bf16 %v267
        %v300 = vunpack.c.l.bf16 %v268
        %v301 = vunpack.c.l.bf16 %v269
        %v302 = vunpack.c.l.bf16 %v270
        %v303 = vunpack.c.l.bf16 %v271
        %v304 = vunpack.c.l.bf16 %v272
        %v305 = vunpack.c.l.bf16 %v273
        %v306 = vunpack.c.l.bf16 %v274
        %v307 = vunpack.c.l.bf16 %v275
        %v308 = vunpack.c.l.bf16 %v276
        %v309 = vunpack.c.l.bf16 %v277
        %v310 = vunpack.c.l.bf16 %v278
        %v311 = vunpack.c.l.bf16 %v279
        %v312 = vunpack.c.l.bf16 %v280
        %v313 = vunpack.c.l.bf16 %v281
        %v314 = vunpack.c.l.bf16 %v282
        %v315 = vunpack.c.l.bf16 %v283
        %v316 = vunpack.c.l.bf16 %v284
        %v317 = vunpack.c.l.bf16 %v285
        %v318 = vunpack.c.l.bf16 %v286
        %v319 = vunpack.c.l.bf16 %v287
        %v320 = vunpack.c.l.bf16 %v288
        %v321 = vunpack.c.l.bf16 %v289
        %v322 = vunpack.c.l.bf16 %v290
        %v323 = vunpack.c.l.bf16 %v291
        %v324 = vunpack.c.l.bf16 %v292
        %v325 = vunpack.c.l.bf16 %v293
        %v326 = vld [vmem:[%s1] sm:$0x1]
        %v328 = vlaneseq
        %v329 = vshrl.u32 %v328, 7
        %v330 = vsub.s32 0, %v329
        %v331 = vrot.slane %v326, %v330
        %v333 = vmul.f32 %v294, %v331
        %v334 = vmul.f32 %v295, %v331
        %v335 = vmul.f32 %v296, %v331
        %v336 = vmul.f32 %v297, %v331
        %v337 = vmul.f32 %v298, %v331
        %v338 = vmul.f32 %v299, %v331
        %v339 = vmul.f32 %v300, %v331
        %v340 = vmul.f32 %v301, %v331
        %v341 = vmul.f32 %v302, %v331
        %v342 = vmul.f32 %v303, %v331
        %v343 = vmul.f32 %v304, %v331
        %v344 = vmul.f32 %v305, %v331
        %v345 = vmul.f32 %v306, %v331
        %v346 = vmul.f32 %v307, %v331
        %v347 = vmul.f32 %v308, %v331
        %v348 = vmul.f32 %v309, %v331
        %v349 = vmul.f32 %v310, %v331
        %v350 = vmul.f32 %v311, %v331
        %v351 = vmul.f32 %v312, %v331
        %v352 = vmul.f32 %v313, %v331
        %v353 = vmul.f32 %v314, %v331
        %v354 = vmul.f32 %v315, %v331
        %v355 = vmul.f32 %v316, %v331
        %v356 = vmul.f32 %v317, %v331
        %v357 = vmul.f32 %v318, %v331
        %v358 = vmul.f32 %v319, %v331
        %v359 = vmul.f32 %v320, %v331
        %v360 = vmul.f32 %v321, %v331
        %v361 = vmul.f32 %v322, %v331
        %v362 = vmul.f32 %v323, %v331
        %v363 = vmul.f32 %v324, %v331
        %v364 = vmul.f32 %v325, %v331
        %v365 = vld [vmem:[%s2] sm:$0x1]
        %v367 = vlaneseq
        %v368 = vshrl.u32 %v367, 7
        %v369 = vsub.s32 0, %v368
        %v370 = vrot.slane %v365, %v369
        %v372 = vadd.f32 %v333, %v370
        %v373 = vadd.f32 %v334, %v370
        %v374 = vadd.f32 %v335, %v370
        %v375 = vadd.f32 %v336, %v370
        %v376 = vadd.f32 %v337, %v370
        %v377 = vadd.f32 %v338, %v370
        %v378 = vadd.f32 %v339, %v370
        %v379 = vadd.f32 %v340, %v370
        %v380 = vadd.f32 %v341, %v370
        %v381 = vadd.f32 %v342, %v370
        %v382 = vadd.f32 %v343, %v370
        %v383 = vadd.f32 %v344, %v370
        %v384 = vadd.f32 %v345, %v370
        %v385 = vadd.f32 %v346, %v370
        %v386 = vadd.f32 %v347, %v370
        %v387 = vadd.f32 %v348, %v370
        %v388 = vadd.f32 %v349, %v370
        %v389 = vadd.f32 %v350, %v370
        %v390 = vadd.f32 %v351, %v370
        %v391 = vadd.f32 %v352, %v370
        %v392 = vadd.f32 %v353, %v370
        %v393 = vadd.f32 %v354, %v370
        %v394 = vadd.f32 %v355, %v370
        %v395 = vadd.f32 %v356, %v370
        %v396 = vadd.f32 %v357, %v370
        %v397 = vadd.f32 %v358, %v370
        %v398 = vadd.f32 %v359, %v370
        %v399 = vadd.f32 %v360, %v370
        %v400 = vadd.f32 %v361, %v370
        %v401 = vadd.f32 %v362, %v370
        %v402 = vadd.f32 %v363, %v370
        %v403 = vadd.f32 %v364, %v370
        %v404 = vld [vmem:[%s254] sm:$0x1]
        %v406 = vlaneseq
        %v407 = vshrl.u32 %v406, 7
        %v408 = vsub.s32 0, %v407
        %v409 = vrot.slane %v404, %v408
        %v411 = vmul.f32 %v372, %v409
        %v412 = vmul.f32 %v373, %v409
        %v413 = vmul.f32 %v374, %v409
        %v414 = vmul.f32 %v375, %v409
        %v415 = vmul.f32 %v376, %v409
        %v416 = vmul.f32 %v377, %v409
        %v417 = vmul.f32 %v378, %v409
        %v418 = vmul.f32 %v379, %v409
        %v419 = vmul.f32 %v380, %v409
        %v420 = vmul.f32 %v381, %v409
        %v421 = vmul.f32 %v382, %v409
        %v422 = vmul.f32 %v383, %v409
        %v423 = vmul.f32 %v384, %v409
        %v424 = vmul.f32 %v385, %v409
        %v425 = vmul.f32 %v386, %v409
        %v426 = vmul.f32 %v387, %v409
        %v427 = vmul.f32 %v388, %v409
        %v428 = vmul.f32 %v389, %v409
        %v429 = vmul.f32 %v390, %v409
        %v430 = vmul.f32 %v391, %v409
        %v431 = vmul.f32 %v392, %v409
        %v432 = vmul.f32 %v393, %v409
        %v433 = vmul.f32 %v394, %v409
        %v434 = vmul.f32 %v395, %v409
        %v435 = vmul.f32 %v396, %v409
        %v436 = vmul.f32 %v397, %v409
        %v437 = vmul.f32 %v398, %v409
        %v438 = vmul.f32 %v399, %v409
        %v439 = vmul.f32 %v400, %v409
        %v440 = vmul.f32 %v401, %v409
        %v441 = vmul.f32 %v402, %v409
        %v442 = vmul.f32 %v403, %v409
        %v443 = vld [vmem:[%s259] sm:$0xff]
        %v444 = vld [vmem:[%s259 + $0x8] sm:$0xff]
        %v445 = vld [vmem:[%s259 + $0x10] sm:$0xff]
        %v446 = vld [vmem:[%s259 + $0x18] sm:$0xff]
        %v447 = vld [vmem:[%s259 + $0x20] sm:$0xff]
        %v448 = vld [vmem:[%s259 + $0x28] sm:$0xff]
        %v449 = vld [vmem:[%s259 + $0x30] sm:$0xff]
        %v450 = vld [vmem:[%s259 + $0x38] sm:$0xff]
        %v451 = vld [vmem:[%s259 + $0x40] sm:$0xff]
        %v452 = vld [vmem:[%s259 + $0x48] sm:$0xff]
        %v453 = vld [vmem:[%s259 + $0x50] sm:$0xff]
        %v454 = vld [vmem:[%s259 + $0x58] sm:$0xff]
        %v455 = vld [vmem:[%s259 + $0x60] sm:$0xff]
        %v456 = vld [vmem:[%s259 + $0x68] sm:$0xff]
        %v457 = vld [vmem:[%s259 + $0x70] sm:$0xff]
        %v458 = vld [vmem:[%s259 + $0x78] sm:$0xff]
        %v459 = vld [vmem:[%s259 + $0x80] sm:$0xff]
        %v460 = vld [vmem:[%s259 + $0x88] sm:$0xff]
        %v461 = vld [vmem:[%s259 + $0x90] sm:$0xff]
        %v462 = vld [vmem:[%s259 + $0x98] sm:$0xff]
        %v463 = vld [vmem:[%s259 + $0xa0] sm:$0xff]
        %v464 = vld [vmem:[%s259 + $0xa8] sm:$0xff]
        %v465 = vld [vmem:[%s259 + $0xb0] sm:$0xff]
        %v466 = vld [vmem:[%s259 + $0xb8] sm:$0xff]
        %v467 = vld [vmem:[%s259 + $0xc0] sm:$0xff]
        %v468 = vld [vmem:[%s259 + $0xc8] sm:$0xff]
        %v469 = vld [vmem:[%s259 + $0xd0] sm:$0xff]
        %v470 = vld [vmem:[%s259 + $0xd8] sm:$0xff]
        %v471 = vld [vmem:[%s259 + $0xe0] sm:$0xff]
        %v472 = vld [vmem:[%s259 + $0xe8] sm:$0xff]
        %v473 = vld [vmem:[%s259 + $0xf0] sm:$0xff]
        %v474 = vld [vmem:[%s259 + $0xf8] sm:$0xff]
        %v475 = vadd.f32 %v411, %v443
        %v476 = vadd.f32 %v412, %v444
        %v477 = vadd.f32 %v413, %v445
        %v478 = vadd.f32 %v414, %v446
        %v479 = vadd.f32 %v415, %v447
        %v480 = vadd.f32 %v416, %v448
        %v481 = vadd.f32 %v417, %v449
        %v482 = vadd.f32 %v418, %v450
        %v483 = vadd.f32 %v419, %v451
        %v484 = vadd.f32 %v420, %v452
        %v485 = vadd.f32 %v421, %v453
        %v486 = vadd.f32 %v422, %v454
        %v487 = vadd.f32 %v423, %v455
        %v488 = vadd.f32 %v424, %v456
        %v489 = vadd.f32 %v425, %v457
        %v490 = vadd.f32 %v426, %v458
        %v491 = vadd.f32 %v427, %v459
        %v492 = vadd.f32 %v428, %v460
        %v493 = vadd.f32 %v429, %v461
        %v494 = vadd.f32 %v430, %v462
        %v495 = vadd.f32 %v431, %v463
        %v496 = vadd.f32 %v432, %v464
        %v497 = vadd.f32 %v433, %v465
        %v498 = vadd.f32 %v434, %v466
        %v499 = vadd.f32 %v435, %v467
        %v500 = vadd.f32 %v436, %v468
        %v501 = vadd.f32 %v437, %v469
        %v502 = vadd.f32 %v438, %v470
        %v503 = vadd.f32 %v439, %v471
        %v504 = vadd.f32 %v440, %v472
        %v505 = vadd.f32 %v441, %v473
        %v506 = vadd.f32 %v442, %v474
        %v507 = vmax.f32 %v475, 0.0
        %v508 = vmax.f32 %v476, 0.0
        %v509 = vmax.f32 %v477, 0.0
        %v510 = vmax.f32 %v478, 0.0
        %v511 = vmax.f32 %v479, 0.0
        %v512 = vmax.f32 %v480, 0.0
        %v513 = vmax.f32 %v481, 0.0
        %v514 = vmax.f32 %v482, 0.0
        %v515 = vmax.f32 %v483, 0.0
        %v516 = vmax.f32 %v484, 0.0
        %v517 = vmax.f32 %v485, 0.0
        %v518 = vmax.f32 %v486, 0.0
        %v519 = vmax.f32 %v487, 0.0
        %v520 = vmax.f32 %v488, 0.0
        %v521 = vmax.f32 %v489, 0.0
        %v522 = vmax.f32 %v490, 0.0
        %v523 = vmax.f32 %v491, 0.0
        %v524 = vmax.f32 %v492, 0.0
        %v525 = vmax.f32 %v493, 0.0
        %v526 = vmax.f32 %v494, 0.0
        %v527 = vmax.f32 %v495, 0.0
        %v528 = vmax.f32 %v496, 0.0
        %v529 = vmax.f32 %v497, 0.0
        %v530 = vmax.f32 %v498, 0.0
        %v531 = vmax.f32 %v499, 0.0
        %v532 = vmax.f32 %v500, 0.0
        %v533 = vmax.f32 %v501, 0.0
        %v534 = vmax.f32 %v502, 0.0
        %v535 = vmax.f32 %v503, 0.0
        %v536 = vmax.f32 %v504, 0.0
        %v537 = vmax.f32 %v505, 0.0
        %v538 = vmax.f32 %v506, 0.0
        %539 = vst [vmem:[%s245] sm:$0xff] %v507
        %540 = vst [vmem:[%s245 + $0x8] sm:$0xff] %v508
        %541 = vst [vmem:[%s245 + $0x10] sm:$0xff] %v509
        %542 = vst [vmem:[%s245 + $0x18] sm:$0xff] %v510
        %543 = vst [vmem:[%s245 + $0x20] sm:$0xff] %v511
        %544 = vst [vmem:[%s245 + $0x28] sm:$0xff] %v512
        %545 = vst [vmem:[%s245 + $0x30] sm:$0xff] %v513
        %546 = vst [vmem:[%s245 + $0x38] sm:$0xff] %v514
        %547 = vst [vmem:[%s245 + $0x40] sm:$0xff] %v515
        %548 = vst [vmem:[%s245 + $0x48] sm:$0xff] %v516
        %549 = vst [vmem:[%s245 + $0x50] sm:$0xff] %v517
        %550 = vst [vmem:[%s245 + $0x58] sm:$0xff] %v518
        %551 = vst [vmem:[%s245 + $0x60] sm:$0xff] %v519
        %552 = vst [vmem:[%s245 + $0x68] sm:$0xff] %v520
        %553 = vst [vmem:[%s245 + $0x70] sm:$0xff] %v521
        %554 = vst [vmem:[%s245 + $0x78] sm:$0xff] %v522
        %555 = vst [vmem:[%s245 + $0x80] sm:$0xff] %v523
        %556 = vst [vmem:[%s245 + $0x88] sm:$0xff] %v524
        %557 = vst [vmem:[%s245 + $0x90] sm:$0xff] %v525
        %558 = vst [vmem:[%s245 + $0x98] sm:$0xff] %v526
        %559 = vst [vmem:[%s245 + $0xa0] sm:$0xff] %v527
        %560 = vst [vmem:[%s245 + $0xa8] sm:$0xff] %v528
        %561 = vst [vmem:[%s245 + $0xb0] sm:$0xff] %v529
        %562 = vst [vmem:[%s245 + $0xb8] sm:$0xff] %v530
        %563 = vst [vmem:[%s245 + $0xc0] sm:$0xff] %v531
        %564 = vst [vmem:[%s245 + $0xc8] sm:$0xff] %v532
        %565 = vst [vmem:[%s245 + $0xd0] sm:$0xff] %v533
        %566 = vst [vmem:[%s245 + $0xd8] sm:$0xff] %v534
        %567 = vst [vmem:[%s245 + $0xe0] sm:$0xff] %v535
        %568 = vst [vmem:[%s245 + $0xe8] sm:$0xff] %v536
        %569 = vst [vmem:[%s245 + $0xf0] sm:$0xff] %v537
        %570 = vst [vmem:[%s245 + $0xf8] sm:$0xff] %v538
        %s571 = sand.u32 %s147, 1
        %s572 = scalar_lea.sflag [#allocation3], %s571
        %s573 = sand.u32 %s147, 1
        %s574 = smul.addr %s573, 256
        %s575 = scalar_lea.vmem [#allocation2], %s574
        // Predicated region
        $region41: #{se_bottleneck_forward.11} parent=39 // pred_check
          %p576 = pneg %p157
        $region42: #{se_bottleneck_forward.11} parent=39 // pred_check_branch
          %578 = sbr.rel (%p576) target = $region44
        $region43: #{se_bottleneck_forward.11} parent=39 // pred_region
          %s579 = smul.u32 32, %s19
          %s581 = ssub.s32 4096, 4096
          %582 = vsyncadd %s572, %s581
          %s583 = smul.addr %s579, 128
          %s584 = scalar_lea.hbm %s5, %s583
          %s585 = sshll.u32 %s575, 4
          %s586 = int_to_ptr.vmem [resolvable:$true] %s585
          %591 = dma.vmem_to_hbm [thread:$0]  %s586, 4096, %s584, %s572, 128, 128, 8
        $region44: #{se_bottleneck_forward.11} parent=39 // pred_fallthru
          _
      $region40: #{se_bottleneck_forward.11} parent=5 // pred_fallthru
        _
      %p592 = scmp.le.s32.totalorder 2, %s14
      // Predicated region
      $region45: #{se_bottleneck_forward.11} parent=5 // pred_check
        %p593 = pneg %p592
      $region46: #{se_bottleneck_forward.11} parent=5 // pred_check_branch
        %595 = sbr.rel (%p593) target = $region48
      $region47: #{se_bottleneck_forward.11} parent=5 // pred_region
        %s596 = ssub.s32 %s14, 2
        // Predicated region
        $region49: #{se_bottleneck_forward.11} parent=47 // pred_check
          %p597 = pneg %p163
        $region50: #{se_bottleneck_forward.11} parent=47 // pred_check_branch
          %599 = sbr.rel (%p597) target = $region52
        $region51: #{se_bottleneck_forward.11} parent=47 // pred_region
          %s600 = sand.u32 %s148, 1
          %s601 = scalar_lea.sflag [#allocation3], %s600
          %s602 = sand.u32 %s148, 1
          %s603 = smul.addr %s602, 256
          %s604 = scalar_lea.vmem [#allocation2], %s603
          %605 = dma.done %s601, 4096
        $region52: #{se_bottleneck_forward.11} parent=47 // pred_fallthru
          _
      $region48: #{se_bottleneck_forward.11} parent=5 // pred_fallthru
        _
    $region6: #{se_bottleneck_forward.11} parent=1 // loop_footer
      %s18 = sadd.s32 1, %s14
    $region7: #{se_bottleneck_forward.11} parent=1 // loop_footer_branch
      %13 = sbr.rel target = $region3
    $region8: #{se_bottleneck_forward.11} parent=1 // loop_exit
      _
    %606 = vsyncpa [#allocation3], 1
    %s607 = scalar_lea.sflag [#allocation3], 1
    %608 = vsyncpa %s607, 1

// kernel: se_bottleneck_forward.8
$region0: #{se_bottleneck_forward.8}
  #allocation0 [shape = 'u32[]', space=smem, size = 0x4, offset = 0x4, fixed_abs, tag = 'smem constant byte address 0x4 - core index']
  #allocation1 [shape = 'u32[144,128]{1,0:T(1,128)}', space=vmem, size = 0x12000, scoped, tag = 'internal scratch']
  %s0 = inlined_call_operand.vmem [shape: bf16[2,18,18,32], index: 0, kind: input, shape index: {}]
  %s1 = inlined_call_operand.vmem [shape: bf16[9,32,32], index: 1, kind: input, shape index: {}]
  %s2 = inlined_call_operand.vmem [shape: bf16[512,32], index: 2, kind: output, shape index: {0}]
  %s3 = inlined_call_operand.vmem [shape: f32[1,32], index: 3, kind: output, shape index: {1}]
  %s4 = inlined_call_operand.vmem [shape: f32[1,32], index: 4, kind: output, shape index: {2}]
  %5 = xla_tuple %s2, %s3, %s4
  %s6 = sld [smem:[#allocation0]]
  $region61: #{se_bottleneck_forward.8} parent=0
    _
  %s8 = ssub.s32 1, %s6
  %s9 = scalar_select 0, %s8, %s6
  loop: start=0, step=1, limit=4
  $region2: #{se_bottleneck_forward.8} parent=0 // loop_pre_header
    _
  $region3: #{se_bottleneck_forward.8} parent=0 // loop_header
    %s11 = sphi 0, %s15
    %p12 = scmp.ge.s32.totalorder %s11, 4
    %s21 = sphi 0, %s23
    %s24 = sphi 0, %s21
    %s25 = sphi 0, %s24
    %s41 = sphi 0, %s25
    %s45 = sphi 0, %s45
    %s47 = sphi 0, %s45
    %s48 = sphi 0, %s47
    %s62 = sphi 0, %s48
    %s68 = sphi 0, %s70
    %s71 = sphi 0, %s68
    %s72 = sphi 0, %s71
    %s88 = sphi 0, %s72
    %s92 = sphi 0, %s92
    %s94 = sphi 0, %s92
    %s95 = sphi 0, %s94
    %s109 = sphi 0, %s95
    %s113 = sphi 0, %s113
    %s115 = sphi 0, %s113
    %s116 = sphi 0, %s115
    %s130 = sphi 0, %s116
  $region4: #{se_bottleneck_forward.8} parent=0 // loop_header_branch
    %14 = sbr.rel (%p12) target = $region8
  $region5: #{se_bottleneck_forward.8} parent=0 // loop_body
    %s16 = ssub.s32 %s11, 1
    %s17 = ssub.s32 %s11, 2
    %s18 = sadd.s32 %s11, 1
    %s19 = ssub.s32 %s11, %s18
    %p20 = scmp.eq.s32.totalorder %s19, 0
    %s22 = sadd.s32 %s21, 1
    %s23 = scalar_select %p20, %s21, %s22
    %p26 = pneg %p20
    %p27 = scmp.eq.s32.totalorder %s11, 1
    %p28 = por %p26, %p27
    %p29 = scmp.ne.s32.totalorder %s21, %s24
    %p30 = scmp.eq.s32.totalorder %s11, 0
    %p31 = por %p29, %p30
    %p32 = scmp.ne.s32.totalorder %s21, %s24
    %p33 = scmp.eq.s32.totalorder %s16, 1
    %p34 = por %p32, %p33
    %p35 = scmp.ne.s32.totalorder %s24, %s25
    %p36 = scmp.eq.s32.totalorder %s16, 0
    %p37 = por %p35, %p36
    %p38 = scmp.ne.s32.totalorder %s24, %s25
    %p39 = scmp.eq.s32.totalorder %s17, 1
    %p40 = por %p38, %p39
    %p42 = scmp.ne.s32.totalorder %s25, %s41
    %p43 = scmp.eq.s32.totalorder %s17, 0
    %p44 = por %p42, %p43
    %s46 = sadd.s32 %s45, 1
    %p49 = scmp.eq.s32.totalorder %s11, 1
    %p50 = scmp.ne.s32.totalorder %s45, %s47
    %p51 = scmp.eq.s32.totalorder %s11, 0
    %p52 = por %p50, %p51
    %p53 = scmp.ne.s32.totalorder %s45, %s47
    %p54 = scmp.eq.s32.totalorder %s16, 1
    %p55 = por %p53, %p54
    %p56 = scmp.ne.s32.totalorder %s47, %s48
    %p57 = scmp.eq.s32.totalorder %s16, 0
    %p58 = por %p56, %p57
    %p59 = scmp.ne.s32.totalorder %s47, %s48
    %p60 = scmp.eq.s32.totalorder %s17, 1
    %p61 = por %p59, %p60
    %p63 = scmp.ne.s32.totalorder %s48, %s62
    %p64 = scmp.eq.s32.totalorder %s17, 0
    %p65 = por %p63, %p64
    %s66 = ssub.s32 %s11, %s18
    %p67 = scmp.eq.s32.totalorder %s66, 0
    %s69 = sadd.s32 %s68, 1
    %s70 = scalar_select %p67, %s68, %s69
    %p73 = pneg %p67
    %p74 = scmp.eq.s32.totalorder %s11, 1
    %p75 = por %p73, %p74
    %p76 = scmp.ne.s32.totalorder %s68, %s71
    %p77 = scmp.eq.s32.totalorder %s11, 0
    %p78 = por %p76, %p77
    %p79 = scmp.ne.s32.totalorder %s68, %s71
    %p80 = scmp.eq.s32.totalorder %s16, 1
    %p81 = por %p79, %p80
    %p82 = scmp.ne.s32.totalorder %s71, %s72
    %p83 = scmp.eq.s32.totalorder %s16, 0
    %p84 = por %p82, %p83
    %p85 = scmp.ne.s32.totalorder %s71, %s72
    %p86 = scmp.eq.s32.totalorder %s17, 1
    %p87 = por %p85, %p86
    %p89 = scmp.ne.s32.totalorder %s72, %s88
    %p90 = scmp.eq.s32.totalorder %s17, 0
    %p91 = por %p89, %p90
    %s93 = sadd.s32 %s92, 1
    %p96 = scmp.eq.s32.totalorder %s11, 1
    %p97 = scmp.ne.s32.totalorder %s92, %s94
    %p98 = scmp.eq.s32.totalorder %s11, 0
    %p99 = por %p97, %p98
    %p100 = scmp.ne.s32.totalorder %s92, %s94
    %p101 = scmp.eq.s32.totalorder %s16, 1
    %p102 = por %p100, %p101
    %p103 = scmp.ne.s32.totalorder %s94, %s95
    %p104 = scmp.eq.s32.totalorder %s16, 0
    %p105 = por %p103, %p104
    %p106 = scmp.ne.s32.totalorder %s94, %s95
    %p107 = scmp.eq.s32.totalorder %s17, 1
    %p108 = por %p106, %p107
    %p110 = scmp.ne.s32.totalorder %s95, %s109
    %p111 = scmp.eq.s32.totalorder %s17, 0
    %p112 = por %p110, %p111
    %s114 = sadd.s32 %s113, 1
    %p117 = scmp.eq.s32.totalorder %s11, 1
    %p118 = scmp.ne.s32.totalorder %s113, %s115
    %p119 = scmp.eq.s32.totalorder %s11, 0
    %p120 = por %p118, %p119
    %p121 = scmp.ne.s32.totalorder %s113, %s115
    %p122 = scmp.eq.s32.totalorder %s16, 1
    %p123 = por %p121, %p122
    %p124 = scmp.ne.s32.totalorder %s115, %s116
    %p125 = scmp.eq.s32.totalorder %s16, 0
    %p126 = por %p124, %p125
    %p127 = scmp.ne.s32.totalorder %s115, %s116
    %p128 = scmp.eq.s32.totalorder %s17, 1
    %p129 = por %p127, %p128
    %p131 = scmp.ne.s32.totalorder %s116, %s130
    %p132 = scmp.eq.s32.totalorder %s17, 0
    %p133 = por %p131, %p132
    %p134 = scmp.le.s32.totalorder 1, %s11
    %p135 = scmp.lt.s32.totalorder %s11, 3
    %p136 = pnand %p134, %p135
    %p137 = pneg %p136
    // Predicated region
    $region9: #{se_bottleneck_forward.8} parent=5 // pred_check
      _
    $region10: #{se_bottleneck_forward.8} parent=5 // pred_check_branch
      %139 = sbr.rel (%p136) target = $region12
    $region11: #{se_bottleneck_forward.8} parent=5 // pred_region
      %s140 = ssub.s32 %s11, 1
      // Predicated region
      $region13: #{se_bottleneck_forward.8} parent=11 // pred_check
        %p141 = pneg %p58
      $region14: #{se_bottleneck_forward.8} parent=11 // pred_check_branch
        %143 = sbr.rel (%p141) target = $region16
      $region15: #{se_bottleneck_forward.8} parent=11 // pred_region
        _
      $region16: #{se_bottleneck_forward.8} parent=11 // pred_fallthru
        _
    $region12: #{se_bottleneck_forward.8} parent=5 // pred_fallthru
      _
    %p144 = scmp.lt.s32.totalorder %s11, 2
    // Predicated region
    $region17: #{se_bottleneck_forward.8} parent=5 // pred_check
      %p145 = pneg %p144
    $region18: #{se_bottleneck_forward.8} parent=5 // pred_check_branch
      %147 = sbr.rel (%p145) target = $region20
    $region19: #{se_bottleneck_forward.8} parent=5 // pred_region
      // Predicated region
      $region21: #{se_bottleneck_forward.8} parent=19 // pred_check
        %p148 = pneg %p31
      $region22: #{se_bottleneck_forward.8} parent=19 // pred_check_branch
        %150 = sbr.rel (%p148) target = $region24
      $region23: #{se_bottleneck_forward.8} parent=19 // pred_region
        %p151 = scmp.lt.s32.totalorder %s11, 1
        %s152 = scalar_select %p151, %s11, 1
        %s153 = smul.addr %s152, 54
        %s154 = smul.addr %s153, 4
        %s155 = scalar_lea.vmem %s0, %s154
      $region24: #{se_bottleneck_forward.8} parent=19 // pred_fallthru
        _
    $region20: #{se_bottleneck_forward.8} parent=5 // pred_fallthru
      _
    %p156 = scmp.le.s32.totalorder 1, %s11
    %p157 = scmp.lt.s32.totalorder %s11, 3
    %p158 = pnand %p156, %p157
    %p159 = pneg %p158
    // Predicated region
    $region25: #{se_bottleneck_forward.8} parent=5 // pred_check
      _
    $region26: #{se_bottleneck_forward.8} parent=5 // pred_check_branch
      %161 = sbr.rel (%p158) target = $region28
    $region27: #{se_bottleneck_forward.8} parent=5 // pred_region
      %s162 = ssub.s32 %s11, 1
      %p163 = scmp.lt.s32.totalorder %s16, 1
      %s164 = scalar_select %p163, %s16, 1
      %s165 = smul.addr %s164, 54
      %s166 = smul.addr %s165, 4
      %s167 = scalar_lea.vmem %s0, %s166
      %p168 = pneg %p37
      %p169 = pneg %p34
      %p170 = pneg %p58
      %p171 = pneg %p55
      %p172 = pneg %p84
      %p173 = pneg %p81
      %s174 = smul.u32 32, %s16
      %p175 = scmp.lt.s32.totalorder %s174, 63
      %s176 = scalar_select %p175, %s174, 63
      %s177 = smul.addr %s176, 4
      %s178 = scalar_lea.vmem %s2, %s177
      %p179 = pneg %p105
      %p180 = pneg %p102
      %p181 = pneg %p126
      %p182 = pneg %p123
      %p183 = scmp.lt.s32.totalorder %s16, 1
      %s184 = scalar_select %p183, %s16, 1
      %s185 = smul.addr %s184, 54
      %s186 = smul.addr %s185, 4
      %s187 = scalar_lea.vmem %s0, %s186
      %s188 = smul.u32 32, %s16
      %p189 = scmp.lt.s32.totalorder %s188, 63
      %s190 = scalar_select %p189, %s188, 63
      %s191 = smul.addr %s190, 4
      %s192 = scalar_lea.vmem %s2, %s191
      %s193 = smul.u32 32, %s16
      %p195 = scmp.eq.s32.totalorder %s16, 0
      // Predicated region
      $region29: #{se_bottleneck_forward.8} parent=27 // pred_check
        %p196 = pneg %p195
      $region30: #{se_bottleneck_forward.8} parent=27 // pred_check_branch
        %198 = sbr.rel (%p196) target = $region32
      $region31: #{se_bottleneck_forward.8} parent=27 // pred_region
        %vm199 = vcmask 253952
        %200 = vst.msk [vmem:[%s3] sm:$0x1] %vm199, 0.0
        %201 = vst.msk [vmem:[%s4] sm:$0x1] %vm199, 0.0
      $region32: #{se_bottleneck_forward.8} parent=27 // pred_fallthru
        _
      %v202 = vld [vmem:[%s187] sm:$0xf]
      %v203 = vld [vmem:[%s187 + $0x4] sm:$0xf]
      %v204 = vld [vmem:[%s187 + $0xc] sm:$0xf]
      %v205 = vld [vmem:[%s187 + $0x10] sm:$0xf]
      %v206 = vld [vmem:[%s187 + $0x18] sm:$0xf]
      %v207 = vld [vmem:[%s187 + $0x1c] sm:$0xf]
      %v208 = vld [vmem:[%s187 + $0x24] sm:$0xf]
      %v209 = vld [vmem:[%s187 + $0x28] sm:$0xf]
      %v210 = vld [vmem:[%s187 + $0x30] sm:$0xf]
      %v211 = vld [vmem:[%s187 + $0x34] sm:$0xf]
      %v212 = vld [vmem:[%s187 + $0x3c] sm:$0xf]
      %v213 = vld [vmem:[%s187 + $0x40] sm:$0xf]
      %v214 = vld [vmem:[%s187 + $0x48] sm:$0xf]
      %v215 = vld [vmem:[%s187 + $0x4c] sm:$0xf]
      %v216 = vld [vmem:[%s187 + $0x54] sm:$0xf]
      %v217 = vld [vmem:[%s187 + $0x58] sm:$0xf]
      %v218 = vld [vmem:[%s187 + $0x60] sm:$0xf]
      %v219 = vld [vmem:[%s187 + $0x64] sm:$0xf]
      %v220 = vld [vmem:[%s187 + $0x6c] sm:$0xf]
      %v221 = vld [vmem:[%s187 + $0x70] sm:$0xf]
      %v222 = vld [vmem:[%s187 + $0x78] sm:$0xf]
      %v223 = vld [vmem:[%s187 + $0x7c] sm:$0xf]
      %v224 = vld [vmem:[%s187 + $0x84] sm:$0xf]
      %v225 = vld [vmem:[%s187 + $0x88] sm:$0xf]
      %v226 = vld [vmem:[%s187 + $0x90] sm:$0xf]
      %v227 = vld [vmem:[%s187 + $0x94] sm:$0xf]
      %v228 = vld [vmem:[%s187 + $0x9c] sm:$0xf]
      %v229 = vld [vmem:[%s187 + $0xa0] sm:$0xf]
      %v230 = vld [vmem:[%s187 + $0xa8] sm:$0xf]
      %v231 = vld [vmem:[%s187 + $0xac] sm:$0xf]
      %v232 = vld [vmem:[%s187 + $0xb4] sm:$0xf]
      %v233 = vld [vmem:[%s187 + $0xb8] sm:$0xf]
      %v234 = vld [vmem:[%s1] sm:$0xf]
      %v235 = vld [vmem:[%s1 + $0x4] sm:$0xf]
      %v236 = vld [vmem:[%s1 + $0x8] sm:$0xf]
      %v237 = vld [vmem:[%s1 + $0xc] sm:$0xf]
      %v238 = vld [vmem:[%s187 + $0x8] sm:$0x1]
      %v239 = vld [vmem:[%s187 + $0x14] sm:$0x1]
      %v240 = vld [vmem:[%s187 + $0x20] sm:$0x1]
      %v241 = vld [vmem:[%s187 + $0x2c] sm:$0x1]
      %v242 = vld [vmem:[%s187 + $0x38] sm:$0x1]
      %v243 = vld [vmem:[%s187 + $0x44] sm:$0x1]
      %v244 = vld [vmem:[%s187 + $0x50] sm:$0x1]
      %v245 = vld [vmem:[%s187 + $0x5c] sm:$0x1]
      %v246 = vld [vmem:[%s187 + $0x68] sm:$0x1]
      %v247 = vld [vmem:[%s187 + $0x74] sm:$0x1]
      %v248 = vld [vmem:[%s187 + $0x80] sm:$0x1]
      %v249 = vld [vmem:[%s187 + $0x8c] sm:$0x1]
      %v250 = vld [vmem:[%s187 + $0x98] sm:$0x1]
      %v251 = vld [vmem:[%s187 + $0xa4] sm:$0x1]
      %v252 = vld [vmem:[%s187 + $0xb0] sm:$0x1]
      %v253 = vld [vmem:[%s187 + $0xbc] sm:$0x1]
      %vm254 = vsmask.f32 3328
      %vm255 = vsmask.f32 7440
      %vm256 = vmor %vm254, %vm255
      %v258 = vshrl.u32 %v202, 16
      %v260 = vrot.slane %v258, 4
      %v261 = vshll.u32 %v202, 16
      %v263 = vrot.slane %v261, 5
      %v264 = vor.u32 %v260, %v263
      %v265 = vrot.slane %v264, 4
      %v267 = vshll.u32 %v203, 16
      %v269 = vrot.slane %v267, 5
      %v270 = vsel %vm256, %v265, %v269
      %v271 = vshrl.u32 %v203, 16
      %v273 = vrot.slane %v271, 4
      %v274 = vor.u32 %v273, %v269
      %v275 = vrot.slane %v274, 4
      %v277 = vshll.u32 %v238, 16
      %v279 = vrot.slane %v277, 5
      %v280 = vsel %vm256, %v275, %v279
      %v282 = vshrl.u32 %v204, 16
      %v284 = vrot.slane %v282, 4
      %v285 = vshll.u32 %v204, 16
      %v287 = vrot.slane %v285, 5
      %v288 = vor.u32 %v284, %v287
      %v289 = vrot.slane %v288, 4
      %v291 = vshll.u32 %v205, 16
      %v293 = vrot.slane %v291, 5
      %v294 = vsel %vm256, %v289, %v293
      %v295 = vshrl.u32 %v205, 16
      %v297 = vrot.slane %v295, 4
      %v298 = vor.u32 %v297, %v293
      %v299 = vrot.slane %v298, 4
      %v301 = vshll.u32 %v239, 16
      %v303 = vrot.slane %v301, 5
      %v304 = vsel %vm256, %v299, %v303
      %v306 = vshrl.u32 %v206, 16
      %v308 = vrot.slane %v306, 4
      %v309 = vshll.u32 %v206, 16
      %v311 = vrot.slane %v309, 5
      %v312 = vor.u32 %v308, %v311
      %v313 = vrot.slane %v312, 4
      %v315 = vshll.u32 %v207, 16
      %v317 = vrot.slane %v315, 5
      %v318 = vsel %vm256, %v313, %v317
      %v319 = vshrl.u32 %v207, 16
      %v321 = vrot.slane %v319, 4
      %v322 = vor.u32 %v321, %v317
      %v323 = vrot.slane %v322, 4
      %v325 = vshll.u32 %v240, 16
      %v327 = vrot.slane %v325, 5
      %v328 = vsel %vm256, %v323, %v327
      %v330 = vshrl.u32 %v208, 16
      %v332 = vrot.slane %v330, 4
      %v333 = vshll.u32 %v208, 16
      %v335 = vrot.slane %v333, 5
      %v336 = vor.u32 %v332, %v335
      %v337 = vrot.slane %v336, 4
      %v339 = vshll.u32 %v209, 16
      %v341 = vrot.slane %v339, 5
      %v342 = vsel %vm256, %v337, %v341
      %v343 = vshrl.u32 %v209, 16
      %v345 = vrot.slane %v343, 4
      %v346 = vor.u32 %v345, %v341
      %v347 = vrot.slane %v346, 4
      %v349 = vshll.u32 %v241, 16
      %v351 = vrot.slane %v349, 5
      %v352 = vsel %vm256, %v347, %v351
      %v354 = vshrl.u32 %v210, 16
      %v356 = vrot.slane %v354, 4
      %v357 = vshll.u32 %v210, 16
      %v359 = vrot.slane %v357, 5
      %v360 = vor.u32 %v356, %v359
      %v361 = vrot.slane %v360, 4
      %v363 = vshll.u32 %v211, 16
      %v365 = vrot.slane %v363, 5
      %v366 = vsel %vm256, %v361, %v365
      %v367 = vshrl.u32 %v211, 16
      %v369 = vrot.slane %v367, 4
      %v370 = vor.u32 %v369, %v365
      %v371 = vrot.slane %v370, 4
      %v373 = vshll.u32 %v242, 16
      %v375 = vrot.slane %v373, 5
      %v376 = vsel %vm256, %v371, %v375
      %v378 = vshrl.u32 %v212, 16
      %v380 = vrot.slane %v378, 4
      %v381 = vshll.u32 %v212, 16
      %v383 = vrot.slane %v381, 5
      %v384 = vor.u32 %v380, %v383
      %v385 = vrot.slane %v384, 4
      %v387 = vshll.u32 %v213, 16
      %v389 = vrot.slane %v387, 5
      %v390 = vsel %vm256, %v385, %v389
      %v391 = vshrl.u32 %v213, 16
      %v393 = vrot.slane %v391, 4
      %v394 = vor.u32 %v393, %v389
      %v395 = vrot.slane %v394, 4
      %v397 = vshll.u32 %v243, 16
      %v399 = vrot.slane %v397, 5
      %v400 = vsel %vm256, %v395, %v399
      %v402 = vshrl.u32 %v214, 16
      %v404 = vrot.slane %v402, 4
      %v405 = vshll.u32 %v214, 16
      %v407 = vrot.slane %v405, 5
      %v408 = vor.u32 %v404, %v407
      %v409 = vrot.slane %v408, 4
      %v411 = vshll.u32 %v215, 16
      %v413 = vrot.slane %v411, 5
      %v414 = vsel %vm256, %v409, %v413
      %v415 = vshrl.u32 %v215, 16
      %v417 = vrot.slane %v415, 4
      %v418 = vor.u32 %v417, %v413
      %v419 = vrot.slane %v418, 4
      %v421 = vshll.u32 %v244, 16
      %v423 = vrot.slane %v421, 5
      %v424 = vsel %vm256, %v419, %v423
      %v426 = vshrl.u32 %v216, 16
      %v428 = vrot.slane %v426, 4
      %v429 = vshll.u32 %v216, 16
      %v431 = vrot.slane %v429, 5
      %v432 = vor.u32 %v428, %v431
      %v433 = vrot.slane %v432, 4
      %v435 = vshll.u32 %v217, 16
      %v437 = vrot.slane %v435, 5
      %v438 = vsel %vm256, %v433, %v437
      %v439 = vshrl.u32 %v217, 16
      %v441 = vrot.slane %v439, 4
      %v442 = vor.u32 %v441, %v437
      %v443 = vrot.slane %v442, 4
      %v445 = vshll.u32 %v245, 16
      %v447 = vrot.slane %v445, 5
      %v448 = vsel %vm256, %v443, %v447
      %v450 = vshrl.u32 %v218, 16
      %v452 = vrot.slane %v450, 4
      %v453 = vshll.u32 %v218, 16
      %v455 = vrot.slane %v453, 5
      %v456 = vor.u32 %v452, %v455
      %v457 = vrot.slane %v456, 4
      %v459 = vshll.u32 %v219, 16
      %v461 = vrot.slane %v459, 5
      %v462 = vsel %vm256, %v457, %v461
      %v463 = vshrl.u32 %v219, 16
      %v465 = vrot.slane %v463, 4
      %v466 = vor.u32 %v465, %v461
      %v467 = vrot.slane %v466, 4
      %v469 = vshll.u32 %v246, 16
      %v471 = vrot.slane %v469, 5
      %v472 = vsel %vm256, %v467, %v471
      %v474 = vshrl.u32 %v220, 16
      %v476 = vrot.slane %v474, 4
      %v477 = vshll.u32 %v220, 16
      %v479 = vrot.slane %v477, 5
      %v480 = vor.u32 %v476, %v479
      %v481 = vrot.slane %v480, 4
      %v483 = vshll.u32 %v221, 16
      %v485 = vrot.slane %v483, 5
      %v486 = vsel %vm256, %v481, %v485
      %v487 = vshrl.u32 %v221, 16
      %v489 = vrot.slane %v487, 4
      %v490 = vor.u32 %v489, %v485
      %v491 = vrot.slane %v490, 4
      %v493 = vshll.u32 %v247, 16
      %v495 = vrot.slane %v493, 5
      %v496 = vsel %vm256, %v491, %v495
      %v498 = vshrl.u32 %v222, 16
      %v500 = vrot.slane %v498, 4
      %v501 = vshll.u32 %v222, 16
      %v503 = vrot.slane %v501, 5
      %v504 = vor.u32 %v500, %v503
      %v505 = vrot.slane %v504, 4
      %v507 = vshll.u32 %v223, 16
      %v509 = vrot.slane %v507, 5
      %v510 = vsel %vm256, %v505, %v509
      %v511 = vshrl.u32 %v223, 16
      %v513 = vrot.slane %v511, 4
      %v514 = vor.u32 %v513, %v509
      %v515 = vrot.slane %v514, 4
      %v517 = vshll.u32 %v248, 16
      %v519 = vrot.slane %v517, 5
      %v520 = vsel %vm256, %v515, %v519
      %v522 = vshrl.u32 %v224, 16
      %v524 = vrot.slane %v522, 4
      %v525 = vshll.u32 %v224, 16
      %v527 = vrot.slane %v525, 5
      %v528 = vor.u32 %v524, %v527
      %v529 = vrot.slane %v528, 4
      %v531 = vshll.u32 %v225, 16
      %v533 = vrot.slane %v531, 5
      %v534 = vsel %vm256, %v529, %v533
      %v535 = vshrl.u32 %v225, 16
      %v537 = vrot.slane %v535, 4
      %v538 = vor.u32 %v537, %v533
      %v539 = vrot.slane %v538, 4
      %v541 = vshll.u32 %v249, 16
      %v543 = vrot.slane %v541, 5
      %v544 = vsel %vm256, %v539, %v543
      %v546 = vshrl.u32 %v226, 16
      %v548 = vrot.slane %v546, 4
      %v549 = vshll.u32 %v226, 16
      %v551 = vrot.slane %v549, 5
      %v552 = vor.u32 %v548, %v551
      %v553 = vrot.slane %v552, 4
      %v555 = vshll.u32 %v227, 16
      %v557 = vrot.slane %v555, 5
      %v558 = vsel %vm256, %v553, %v557
      %v559 = vshrl.u32 %v227, 16
      %v561 = vrot.slane %v559, 4
      %v562 = vor.u32 %v561, %v557
      %v563 = vrot.slane %v562, 4
      %v565 = vshll.u32 %v250, 16
      %v567 = vrot.slane %v565, 5
      %v568 = vsel %vm256, %v563, %v567
      %v570 = vshrl.u32 %v228, 16
      %v572 = vrot.slane %v570, 4
      %v573 = vshll.u32 %v228, 16
      %v575 = vrot.slane %v573, 5
      %v576 = vor.u32 %v572, %v575
      %v577 = vrot.slane %v576, 4
      %v579 = vshll.u32 %v229, 16
      %v581 = vrot.slane %v579, 5
      %v582 = vsel %vm256, %v577, %v581
      %v583 = vshrl.u32 %v229, 16
      %v585 = vrot.slane %v583, 4
      %v586 = vor.u32 %v585, %v581
      %v587 = vrot.slane %v586, 4
      %v589 = vshll.u32 %v251, 16
      %v591 = vrot.slane %v589, 5
      %v592 = vsel %vm256, %v587, %v591
      %v594 = vshrl.u32 %v230, 16
      %v596 = vrot.slane %v594, 4
      %v597 = vshll.u32 %v230, 16
      %v599 = vrot.slane %v597, 5
      %v600 = vor.u32 %v596, %v599
      %v601 = vrot.slane %v600, 4
      %v603 = vshll.u32 %v231, 16
      %v605 = vrot.slane %v603, 5
      %v606 = vsel %vm256, %v601, %v605
      %v607 = vshrl.u32 %v231, 16
      %v609 = vrot.slane %v607, 4
      %v610 = vor.u32 %v609, %v605
      %v611 = vrot.slane %v610, 4
      %v613 = vshll.u32 %v252, 16
      %v615 = vrot.slane %v613, 5
      %v616 = vsel %vm256, %v611, %v615
      %v618 = vshrl.u32 %v232, 16
      %v620 = vrot.slane %v618, 4
      %v621 = vshll.u32 %v232, 16
      %v623 = vrot.slane %v621, 5
      %v624 = vor.u32 %v620, %v623
      %v625 = vrot.slane %v624, 4
      %v627 = vshll.u32 %v233, 16
      %v629 = vrot.slane %v627, 5
      %v630 = vsel %vm256, %v625, %v629
      %v631 = vshrl.u32 %v233, 16
      %v633 = vrot.slane %v631, 4
      %v634 = vor.u32 %v633, %v629
      %v635 = vrot.slane %v634, 4
      %v637 = vshll.u32 %v253, 16
      %v639 = vrot.slane %v637, 5
      %v640 = vsel %vm256, %v635, %v639
      %s641 = scalar_lea.vmem %s1, 16
      %v642 = vld [vmem:[%s641] sm:$0xf]
      %v643 = vld [vmem:[%s641 + $0x4] sm:$0xf]
      %v644 = vld [vmem:[%s641 + $0x8] sm:$0xf]
      %v645 = vld [vmem:[%s641 + $0xc] sm:$0xf]
      %v646 = vunpack.c.l.b16 %v270
      %v647 = vunpack.c.l.b16 %v280
      %v648 = vunpack.c.l.b16 %v294
      %v649 = vunpack.c.l.b16 %v304
      %v650 = vunpack.c.l.b16 %v318
      %v651 = vunpack.c.l.b16 %v328
      %v652 = vunpack.c.l.b16 %v342
      %v653 = vunpack.c.l.b16 %v352
      %v654 = vunpack.c.l.b16 %v366
      %v655 = vunpack.c.l.b16 %v376
      %v656 = vunpack.c.l.b16 %v390
      %v657 = vunpack.c.l.b16 %v400
      %v658 = vunpack.c.l.b16 %v414
      %v659 = vunpack.c.l.b16 %v424
      %v660 = vunpack.c.l.b16 %v438
      %v661 = vunpack.c.l.b16 %v448
      %v662 = vunpack.c.l.b16 %v462
      %v663 = vunpack.c.l.b16 %v472
      %v664 = vunpack.c.l.b16 %v486
      %v665 = vunpack.c.l.b16 %v496
      %v666 = vunpack.c.l.b16 %v510
      %v667 = vunpack.c.l.b16 %v520
      %v668 = vunpack.c.l.b16 %v534
      %v669 = vunpack.c.l.b16 %v544
      %v670 = vunpack.c.l.b16 %v558
      %v671 = vunpack.c.l.b16 %v568
      %v672 = vunpack.c.l.b16 %v582
      %v673 = vunpack.c.l.b16 %v592
      %v674 = vunpack.c.l.b16 %v606
      %v675 = vunpack.c.l.b16 %v616
      %v676 = vunpack.c.l.b16 %v630
      %v677 = vunpack.c.l.b16 %v640
      %v678 = vpack.c.b16 %v647, %v646
      %v679 = vpack.c.b16 %v649, %v648
      %v680 = vpack.c.b16 %v651, %v650
      %v681 = vpack.c.b16 %v653, %v652
      %v682 = vpack.c.b16 %v655, %v654
      %v683 = vpack.c.b16 %v657, %v656
      %v684 = vpack.c.b16 %v659, %v658
      %v685 = vpack.c.b16 %v661, %v660
      %v686 = vpack.c.b16 %v663, %v662
      %v687 = vpack.c.b16 %v665, %v664
      %v688 = vpack.c.b16 %v667, %v666
      %v689 = vpack.c.b16 %v669, %v668
      %v690 = vpack.c.b16 %v671, %v670
      %v691 = vpack.c.b16 %v673, %v672
      %v692 = vpack.c.b16 %v675, %v674
      %v693 = vpack.c.b16 %v677, %v676
      %v698 = vunpack.c.l.b16 %v642
      %v699 = vunpack.c.l.b16 %v643
      %v700 = vunpack.c.l.b16 %v644
      %v701 = vunpack.c.l.b16 %v645
      %v702 = vpack.c.b16 %v699, %v698
      %v703 = vpack.c.b16 %v701, %v700
      %vm706 = vcmask 261120
      %v708 = vsel %vm706, %v678, 0
      %v711 = vsel %vm706, %v679, 0
      %v714 = vsel %vm706, %v680, 0
      %v717 = vsel %vm706, %v681, 0
      %v720 = vsel %vm706, %v682, 0
      %v723 = vsel %vm706, %v683, 0
      %v726 = vsel %vm706, %v684, 0
      %v729 = vsel %vm706, %v685, 0
      %v732 = vsel %vm706, %v686, 0
      %v735 = vsel %vm706, %v687, 0
      %v738 = vsel %vm706, %v688, 0
      %v741 = vsel %vm706, %v689, 0
      %v744 = vsel %vm706, %v690, 0
      %v747 = vsel %vm706, %v691, 0
      %v750 = vsel %vm706, %v692, 0
      %v753 = vsel %vm706, %v693, 0
      %755 = vmatprep.subr.bf16.mxu0 0
      %756 = vmatpush1.bf16.msra.mxu0 %v702
      %757 = vmatprep.subr.bf16.mxu0 0
      %758 = vmatpush1.bf16.msra.mxu0 %v703
      %759 = vmatprep.subr.bf16.mxu0 0
      %760 = vmatpush1.bf16.msra.mxu0 0
      %761 = vmatprep.subr.bf16.mxu0 0
      %762 = vmatpush1.bf16.msra.mxu0 0
      %763 = vmatprep.subr.bf16.mxu0 0
      %764 = vmatpush1.bf16.msra.mxu0 0
      %765 = vmatprep.subr.bf16.mxu0 0
      %766 = vmatpush1.bf16.msra.mxu0 0
      %767 = vmatprep.subr.bf16.mxu0 0
      %768 = vmatpush1.bf16.msra.mxu0 0
      %769 = vmatprep.subr.bf16.mxu0 0
      %770 = vmatpush1.bf16.msra.mxu0 0
      %771 = vmatprep.subr.bf16.mxu0 0
      %772 = vmatpush1.bf16.msra.mxu0 0
      %773 = vmatprep.subr.bf16.mxu0 0
      %774 = vmatpush1.bf16.msra.mxu0 0
      %775 = vmatprep.subr.bf16.mxu0 0
      %776 = vmatpush1.bf16.msra.mxu0 0
      %777 = vmatprep.subr.bf16.mxu0 0
      %778 = vmatpush1.bf16.msra.mxu0 0
      %779 = vmatprep.subr.bf16.mxu0 0
      %780 = vmatpush1.bf16.msra.mxu0 0
      %781 = vmatprep.subr.bf16.mxu0 0
      %782 = vmatpush1.bf16.msra.mxu0 0
      %783 = vmatprep.subr.bf16.mxu0 0
      %784 = vmatpush1.bf16.msra.mxu0 0
      %785 = vmatprep.subr.bf16.mxu0 0
      %786 = vmatpush1.bf16.msra.mxu0 0
      %787 = vmatprep.mubr.bf16.mxu0 0
      %788 = vmatmul.mubr.bf16.gmra.mrb[0].mxu0 %v708
      %v789 = vpop.f32.mrb[0].mxu0
      %v790 = vadd.f32 0.0, %v789
      %v791 = vpop.f32.mrb[0].mxu0
      %v792 = vpop.f32.mrb[0].mxu0
      %v793 = vadd.f32 0.0, %v792
      %v794 = vpop.f32.mrb[0].mxu0
      %795 = vmatprep.mubr.bf16.mxu0 0
      %796 = vmatmul.mubr.bf16.gmra.mrb[0].mxu0 %v711
      %v797 = vpop.f32.mrb[0].mxu0
      %v798 = vadd.f32 0.0, %v797
      %v799 = vpop.f32.mrb[0].mxu0
      %v800 = vpop.f32.mrb[0].mxu0
      %v801 = vadd.f32 0.0, %v800
      %v802 = vpop.f32.mrb[0].mxu0
      %803 = vmatprep.mubr.bf16.mxu0 0
      %804 = vmatmul.mubr.bf16.gmra.mrb[0].mxu0 %v714
      %v805 = vpop.f32.mrb[0].mxu0
      %v806 = vadd.f32 0.0, %v805
      %v807 = vpop.f32.mrb[0].mxu0
      %v808 = vpop.f32.mrb[0].mxu0
      %v809 = vadd.f32 0.0, %v808
      %v810 = vpop.f32.mrb[0].mxu0
      %811 = vmatprep.mubr.bf16.mxu0 0
      %812 = vmatmul.mubr.bf16.gmra.mrb[0].mxu0 %v717
      %v813 = vpop.f32.mrb[0].mxu0
      %v814 = vadd.f32 0.0, %v813
      %v815 = vpop.f32.mrb[0].mxu0
      %v816 = vpop.f32.mrb[0].mxu0
      %v817 = vadd.f32 0.0, %v816
      %v818 = vpop.f32.mrb[0].mxu0
      %819 = vmatprep.mubr.bf16.mxu0 0
      %820 = vmatmul.mubr.bf16.gmra.mrb[0].mxu0 %v720
      %v821 = vpop.f32.mrb[0].mxu0
      %v822 = vadd.f32 0.0, %v821
      %v823 = vpop.f32.mrb[0].mxu0
      %v824 = vpop.f32.mrb[0].mxu0
      %v825 = vadd.f32 0.0, %v824
      %v826 = vpop.f32.mrb[0].mxu0
      %827 = vmatprep.mubr.bf16.mxu0 0
      %828 = vmatmul.mubr.bf16.gmra.mrb[0].mxu0 %v723
      %v829 = vpop.f32.mrb[0].mxu0
      %v830 = vadd.f32 0.0, %v829
      %v831 = vpop.f32.mrb[0].mxu0
      %v832 = vpop.f32.mrb[0].mxu0
      %v833 = vadd.f32 0.0, %v832
      %v834 = vpop.f32.mrb[0].mxu0
      %835 = vmatprep.mubr.bf16.mxu0 0
      %836 = vmatmul.mubr.bf16.gmra.mrb[0].mxu0 %v726
      %v837 = vpop.f32.mrb[0].mxu0
      %v838 = vadd.f32 0.0, %v837
      %v839 = vpop.f32.mrb[0].mxu0
      %v840 = vpop.f32.mrb[0].mxu0
      %v841 = vadd.f32 0.0, %v840
      %v842 = vpop.f32.mrb[0].mxu0
      %843 = vmatprep.mubr.bf16.mxu0 0
      %844 = vmatmul.mubr.bf16.gmra.mrb[0].mxu0 %v729
      %v845 = vpop.f32.mrb[0].mxu0
      %v846 = vadd.f32 0.0, %v845
      %v847 = vpop.f32.mrb[0].mxu0
      %v848 = vpop.f32.mrb[0].mxu0
      %v849 = vadd.f32 0.0, %v848
      %v850 = vpop.f32.mrb[0].mxu0
      %851 = vmatprep.mubr.bf16.mxu0 0
      %852 = vmatmul.mubr.bf16.gmra.mrb[0].mxu0 %v732
      %v853 = vpop.f32.mrb[0].mxu0
      %v854 = vadd.f32 0.0, %v853
      %v855 = vpop.f32.mrb[0].mxu0
      %v856 = vpop.f32.mrb[0].mxu0
      %v857 = vadd.f32 0.0, %v856
      %v858 = vpop.f32.mrb[0].mxu0
      %859 = vmatprep.mubr.bf16.mxu0 0
      %860 = vmatmul.mubr.bf16.gmra.mrb[0].mxu0 %v735
      %v861 = vpop.f32.mrb[0].mxu0
      %v862 = vadd.f32 0.0, %v861
      %v863 = vpop.f32.mrb[0].mxu0
      %v864 = vpop.f32.mrb[0].mxu0
      %v865 = vadd.f32 0.0, %v864
      %v866 = vpop.f32.mrb[0].mxu0
      %867 = vmatprep.mubr.bf16.mxu0 0
      %868 = vmatmul.mubr.bf16.gmra.mrb[0].mxu0 %v738
      %v869 = vpop.f32.mrb[0].mxu0
      %v870 = vadd.f32 0.0, %v869
      %v871 = vpop.f32.mrb[0].mxu0
      %v872 = vpop.f32.mrb[0].mxu0
      %v873 = vadd.f32 0.0, %v872
      %v874 = vpop.f32.mrb[0].mxu0
      %875 = vmatprep.mubr.bf16.mxu0 0
      %876 = vmatmul.mubr.bf16.gmra.mrb[0].mxu0 %v741
      %v877 = vpop.f32.mrb[0].mxu0
      %v878 = vadd.f32 0.0, %v877
      %v879 = vpop.f32.mrb[0].mxu0
      %v880 = vpop.f32.mrb[0].mxu0
      %v881 = vadd.f32 0.0, %v880
      %v882 = vpop.f32.mrb[0].mxu0
      %883 = vmatprep.mubr.bf16.mxu0 0
      %884 = vmatmul.mubr.bf16.gmra.mrb[0].mxu0 %v744
      %v885 = vpop.f32.mrb[0].mxu0
      %v886 = vadd.f32 0.0, %v885
      %v887 = vpop.f32.mrb[0].mxu0
      %v888 = vpop.f32.mrb[0].mxu0
      %v889 = vadd.f32 0.0, %v888
      %v890 = vpop.f32.mrb[0].mxu0
      %891 = vmatprep.mubr.bf16.mxu0 0
      %892 = vmatmul.mubr.bf16.gmra.mrb[0].mxu0 %v747
      %v893 = vpop.f32.mrb[0].mxu0
      %v894 = vadd.f32 0.0, %v893
      %v895 = vpop.f32.mrb[0].mxu0
      %v896 = vpop.f32.mrb[0].mxu0
      %v897 = vadd.f32 0.0, %v896
      %v898 = vpop.f32.mrb[0].mxu0
      %899 = vmatprep.mubr.bf16.mxu0 0
      %900 = vmatmul.mubr.bf16.gmra.mrb[0].mxu0 %v750
      %v901 = vpop.f32.mrb[0].mxu0
      %v902 = vadd.f32 0.0, %v901
      %v903 = vpop.f32.mrb[0].mxu0
      %v904 = vpop.f32.mrb[0].mxu0
      %v905 = vadd.f32 0.0, %v904
      %v906 = vpop.f32.mrb[0].mxu0
      %907 = vmatprep.mubr.bf16.mxu0 0
      %908 = vmatmul.mubr.bf16.gmra.mrb[0].mxu0 %v753
      %v909 = vpop.f32.mrb[0].mxu0
      %v910 = vadd.f32 0.0, %v909
      %v911 = vpop.f32.mrb[0].mxu0
      %v912 = vpop.f32.mrb[0].mxu0
      %v913 = vadd.f32 0.0, %v912
      %v914 = vpop.f32.mrb[0].mxu0
      %915 = vdwg.mxu0
      %v948 = vunpack.c.l.b16 %v202
      %v949 = vunpack.c.l.b16 %v203
      %v950 = vunpack.c.l.b16 %v204
      %v951 = vunpack.c.l.b16 %v205
      %v952 = vunpack.c.l.b16 %v206
      %v953 = vunpack.c.l.b16 %v207
      %v954 = vunpack.c.l.b16 %v208
      %v955 = vunpack.c.l.b16 %v209
      %v956 = vunpack.c.l.b16 %v210
      %v957 = vunpack.c.l.b16 %v211
      %v958 = vunpack.c.l.b16 %v212
      %v959 = vunpack.c.l.b16 %v213
      %v960 = vunpack.c.l.b16 %v214
      %v961 = vunpack.c.l.b16 %v215
      %v962 = vunpack.c.l.b16 %v216
      %v963 = vunpack.c.l.b16 %v217
      %v964 = vunpack.c.l.b16 %v218
      %v965 = vunpack.c.l.b16 %v219
      %v966 = vunpack.c.l.b16 %v220
      %v967 = vunpack.c.l.b16 %v221
      %v968 = vunpack.c.l.b16 %v222
      %v969 = vunpack.c.l.b16 %v223
      %v970 = vunpack.c.l.b16 %v224
      %v971 = vunpack.c.l.b16 %v225
      %v972 = vunpack.c.l.b16 %v226
      %v973 = vunpack.c.l.b16 %v227
      %v974 = vunpack.c.l.b16 %v228
      %v975 = vunpack.c.l.b16 %v229
      %v976 = vunpack.c.l.b16 %v230
      %v977 = vunpack.c.l.b16 %v231
      %v978 = vunpack.c.l.b16 %v232
      %v979 = vunpack.c.l.b16 %v233
      %v980 = vpack.c.b16 %v949, %v948
      %v981 = vpack.c.b16 %v951, %v950
      %v982 = vpack.c.b16 %v953, %v952
      %v983 = vpack.c.b16 %v955, %v954
      %v984 = vpack.c.b16 %v957, %v956
      %v985 = vpack.c.b16 %v959, %v958
      %v986 = vpack.c.b16 %v961, %v960
      %v987 = vpack.c.b16 %v963, %v962
      %v988 = vpack.c.b16 %v965, %v964
      %v989 = vpack.c.b16 %v967, %v966
      %v990 = vpack.c.b16 %v969, %v968
      %v991 = vpack.c.b16 %v971, %v970
      %v992 = vpack.c.b16 %v973, %v972
      %v993 = vpack.c.b16 %v975, %v974
      %v994 = vpack.c.b16 %v977, %v976
      %v995 = vpack.c.b16 %v979, %v978
      %v1000 = vunpack.c.l.b16 %v234
      %v1001 = vunpack.c.l.b16 %v235
      %v1002 = vunpack.c.l.b16 %v236
      %v1003 = vunpack.c.l.b16 %v237
      %v1004 = vpack.c.b16 %v1001, %v1000
      %v1005 = vpack.c.b16 %v1003, %v1002
      %v1009 = vsel %vm706, %v980, 0
      %v1012 = vsel %vm706, %v981, 0
      %v1015 = vsel %vm706, %v982, 0
      %v1018 = vsel %vm706, %v983, 0
      %v1021 = vsel %vm706, %v984, 0
      %v1024 = vsel %vm706, %v985, 0
      %v1027 = vsel %vm706, %v986, 0
      %v1030 = vsel %vm706, %v987, 0
      %v1033 = vsel %vm706, %v988, 0
      %v1036 = vsel %vm706, %v989, 0
      %v1039 = vsel %vm706, %v990, 0
      %v1042 = vsel %vm706, %v991, 0
      %v1045 = vsel %vm706, %v992, 0
      %v1048 = vsel %vm706, %v993, 0
      %v1051 = vsel %vm706, %v994, 0
      %v1054 = vsel %vm706, %v995, 0
      %1056 = vmatprep.subr.bf16.mxu0 0
      %1057 = vmatpush1.bf16.msra.mxu0 %v1004
      %1058 = vmatprep.subr.bf16.mxu0 0
      %1059 = vmatpush1.bf16.msra.mxu0 %v1005
      %1060 = vmatprep.subr.bf16.mxu0 0
      %1061 = vmatpush1.bf16.msra.mxu0 0
      %1062 = vmatprep.subr.bf16.mxu0 0
      %1063 = vmatpush1.bf16.msra.mxu0 0
      %1064 = vmatprep.subr.bf16.mxu0 0
      %1065 = vmatpush1.bf16.msra.mxu0 0
      %1066 = vmatprep.subr.bf16.mxu0 0
      %1067 = vmatpush1.bf16.msra.mxu0 0
      %1068 = vmatprep.subr.bf16.mxu0 0
      %1069 = vmatpush1.bf16.msra.mxu0 0
      %1070 = vmatprep.subr.bf16.mxu0 0
      %1071 = vmatpush1.bf16.msra.mxu0 0
      %1072 = vmatprep.subr.bf16.mxu0 0
      %1073 = vmatpush1.bf16.msra.mxu0 0
      %1074 = vmatprep.subr.bf16.mxu0 0
      %1075 = vmatpush1.bf16.msra.mxu0 0
      %1076 = vmatprep.subr.bf16.mxu0 0
      %1077 = vmatpush1.bf16.msra.mxu0 0
      %1078 = vmatprep.subr.bf16.mxu0 0
      %1079 = vmatpush1.bf16.msra.mxu0 0
      %1080 = vmatprep.subr.bf16.mxu0 0
      %1081 = vmatpush1.bf16.msra.mxu0 0
      %1082 = vmatprep.subr.bf16.mxu0 0
      %1083 = vmatpush1.bf16.msra.mxu0 0
      %1084 = vmatprep.subr.bf16.mxu0 0
      %1085 = vmatpush1.bf16.msra.mxu0 0
      %1086 = vmatprep.subr.bf16.mxu0 0
      %1087 = vmatpush1.bf16.msra.mxu0 0
      %1088 = vmatprep.mubr.bf16.mxu0 0
      %1089 = vmatmul.mubr.bf16.gmra.mrb[0].mxu0 %v1009
      %v1090 = vpop.f32.mrb[0].mxu0
      %v1091 = vadd.f32 %v790, %v1090
      %v1092 = vpop.f32.mrb[0].mxu0
      %v1093 = vpop.f32.mrb[0].mxu0
      %v1094 = vadd.f32 %v793, %v1093
      %v1095 = vpop.f32.mrb[0].mxu0
      %1096 = vmatprep.mubr.bf16.mxu0 0
      %1097 = vmatmul.mubr.bf16.gmra.mrb[0].mxu0 %v1012
      %v1098 = vpop.f32.mrb[0].mxu0
      %v1099 = vadd.f32 %v798, %v1098
      %v1100 = vpop.f32.mrb[0].mxu0
      %v1101 = vpop.f32.mrb[0].mxu0
      %v1102 = vadd.f32 %v801, %v1101
      %v1103 = vpop.f32.mrb[0].mxu0
      %1104 = vmatprep.mubr.bf16.mxu0 0
      %1105 = vmatmul.mubr.bf16.gmra.mrb[0].mxu0 %v1015
      %v1106 = vpop.f32.mrb[0].mxu0
      %v1107 = vadd.f32 %v806, %v1106
      %v1108 = vpop.f32.mrb[0].mxu0
      %v1109 = vpop.f32.mrb[0].mxu0
      %v1110 = vadd.f32 %v809, %v1109
      %v1111 = vpop.f32.mrb[0].mxu0
      %1112 = vmatprep.mubr.bf16.mxu0 0
      %1113 = vmatmul.mubr.bf16.gmra.mrb[0].mxu0 %v1018
      %v1114 = vpop.f32.mrb[0].mxu0
      %v1115 = vadd.f32 %v814, %v1114
      %v1116 = vpop.f32.mrb[0].mxu0
      %v1117 = vpop.f32.mrb[0].mxu0
      %v1118 = vadd.f32 %v817, %v1117
      %v1119 = vpop.f32.mrb[0].mxu0
      %1120 = vmatprep.mubr.bf16.mxu0 0
      %1121 = vmatmul.mubr.bf16.gmra.mrb[0].mxu0 %v1021
      %v1122 = vpop.f32.mrb[0].mxu0
      %v1123 = vadd.f32 %v822, %v1122
      %v1124 = vpop.f32.mrb[0].mxu0
      %v1125 = vpop.f32.mrb[0].mxu0
      %v1126 = vadd.f32 %v825, %v1125
      %v1127 = vpop.f32.mrb[0].mxu0
      %1128 = vmatprep.mubr.bf16.mxu0 0
      %1129 = vmatmul.mubr.bf16.gmra.mrb[0].mxu0 %v1024
      %v1130 = vpop.f32.mrb[0].mxu0
      %v1131 = vadd.f32 %v830, %v1130
      %v1132 = vpop.f32.mrb[0].mxu0
      %v1133 = vpop.f32.mrb[0].mxu0
      %v1134 = vadd.f32 %v833, %v1133
      %v1135 = vpop.f32.mrb[0].mxu0
      %1136 = vmatprep.mubr.bf16.mxu0 0
      %1137 = vmatmul.mubr.bf16.gmra.mrb[0].mxu0 %v1027
      %v1138 = vpop.f32.mrb[0].mxu0
      %v1139 = vadd.f32 %v838, %v1138
      %v1140 = vpop.f32.mrb[0].mxu0
      %v1141 = vpop.f32.mrb[0].mxu0
      %v1142 = vadd.f32 %v841, %v1141
      %v1143 = vpop.f32.mrb[0].mxu0
      %1144 = vmatprep.mubr.bf16.mxu0 0
      %1145 = vmatmul.mubr.bf16.gmra.mrb[0].mxu0 %v1030
      %v1146 = vpop.f32.mrb[0].mxu0
      %v1147 = vadd.f32 %v846, %v1146
      %v1148 = vpop.f32.mrb[0].mxu0
      %v1149 = vpop.f32.mrb[0].mxu0
      %v1150 = vadd.f32 %v849, %v1149
      %v1151 = vpop.f32.mrb[0].mxu0
      %1152 = vmatprep.mubr.bf16.mxu0 0
      %1153 = vmatmul.mubr.bf16.gmra.mrb[0].mxu0 %v1033
      %v1154 = vpop.f32.mrb[0].mxu0
      %v1155 = vadd.f32 %v854, %v1154
      %v1156 = vpop.f32.mrb[0].mxu0
      %v1157 = vpop.f32.mrb[0].mxu0
      %v1158 = vadd.f32 %v857, %v1157
      %v1159 = vpop.f32.mrb[0].mxu0
      %1160 = vmatprep.mubr.bf16.mxu0 0
      %1161 = vmatmul.mubr.bf16.gmra.mrb[0].mxu0 %v1036
      %v1162 = vpop.f32.mrb[0].mxu0
      %v1163 = vadd.f32 %v862, %v1162
      %v1164 = vpop.f32.mrb[0].mxu0
      %v1165 = vpop.f32.mrb[0].mxu0
      %v1166 = vadd.f32 %v865, %v1165
      %v1167 = vpop.f32.mrb[0].mxu0
      %1168 = vmatprep.mubr.bf16.mxu0 0
      %1169 = vmatmul.mubr.bf16.gmra.mrb[0].mxu0 %v1039
      %v1170 = vpop.f32.mrb[0].mxu0
      %v1171 = vadd.f32 %v870, %v1170
      %v1172 = vpop.f32.mrb[0].mxu0
      %v1173 = vpop.f32.mrb[0].mxu0
      %v1174 = vadd.f32 %v873, %v1173
      %v1175 = vpop.f32.mrb[0].mxu0
      %1176 = vmatprep.mubr.bf16.mxu0 0
      %1177 = vmatmul.mubr.bf16.gmra.mrb[0].mxu0 %v1042
      %v1178 = vpop.f32.mrb[0].mxu0
      %v1179 = vadd.f32 %v878, %v1178
      %v1180 = vpop.f32.mrb[0].mxu0
      %v1181 = vpop.f32.mrb[0].mxu0
      %v1182 = vadd.f32 %v881, %v1181
      %v1183 = vpop.f32.mrb[0].mxu0
      %1184 = vmatprep.mubr.bf16.mxu0 0
      %1185 = vmatmul.mubr.bf16.gmra.mrb[0].mxu0 %v1045
      %v1186 = vpop.f32.mrb[0].mxu0
      %v1187 = vadd.f32 %v886, %v1186
      %v1188 = vpop.f32.mrb[0].mxu0
      %v1189 = vpop.f32.mrb[0].mxu0
      %v1190 = vadd.f32 %v889, %v1189
      %v1191 = vpop.f32.mrb[0].mxu0
      %1192 = vmatprep.mubr.bf16.mxu0 0
      %1193 = vmatmul.mubr.bf16.gmra.mrb[0].mxu0 %v1048
      %v1194 = vpop.f32.mrb[0].mxu0
      %v1195 = vadd.f32 %v894, %v1194
      %v1196 = vpop.f32.mrb[0].mxu0
      %v1197 = vpop.f32.mrb[0].mxu0
      %v1198 = vadd.f32 %v897, %v1197
      %v1199 = vpop.f32.mrb[0].mxu0
      %1200 = vmatprep.mubr.bf16.mxu0 0
      %1201 = vmatmul.mubr.bf16.gmra.mrb[0].mxu0 %v1051
      %v1202 = vpop.f32.mrb[0].mxu0
      %v1203 = vadd.f32 %v902, %v1202
      %v1204 = vpop.f32.mrb[0].mxu0
      %v1205 = vpop.f32.mrb[0].mxu0
      %v1206 = vadd.f32 %v905, %v1205
      %v1207 = vpop.f32.mrb[0].mxu0
      %1208 = vmatprep.mubr.bf16.mxu0 0
      %1209 = vmatmul.mubr.bf16.gmra.mrb[0].mxu0 %v1054
      %v1210 = vpop.f32.mrb[0].mxu0
      %v1211 = vadd.f32 %v910, %v1210
      %v1212 = vpop.f32.mrb[0].mxu0
      %v1213 = vpop.f32.mrb[0].mxu0
      %v1214 = vadd.f32 %v913, %v1213
      %v1215 = vpop.f32.mrb[0].mxu0
      %1216 = vdwg.mxu0
      %v1217 = vld [vmem:[%s187] sm:$0xe]
      %v1218 = vld [vmem:[%s187 + $0xc] sm:$0xe]
      %v1219 = vld [vmem:[%s187 + $0x18] sm:$0xe]
      %v1220 = vld [vmem:[%s187 + $0x24] sm:$0xe]
      %v1221 = vld [vmem:[%s187 + $0x30] sm:$0xe]
      %v1222 = vld [vmem:[%s187 + $0x3c] sm:$0xe]
      %v1223 = vld [vmem:[%s187 + $0x48] sm:$0xe]
      %v1224 = vld [vmem:[%s187 + $0x54] sm:$0xe]
      %v1225 = vld [vmem:[%s187 + $0x60] sm:$0xe]
      %v1226 = vld [vmem:[%s187 + $0x6c] sm:$0xe]
      %v1227 = vld [vmem:[%s187 + $0x78] sm:$0xe]
      %v1228 = vld [vmem:[%s187 + $0x84] sm:$0xe]
      %v1229 = vld [vmem:[%s187 + $0x90] sm:$0xe]
      %v1230 = vld [vmem:[%s187 + $0x9c] sm:$0xe]
      %v1231 = vld [vmem:[%s187 + $0xa8] sm:$0xe]
      %v1232 = vld [vmem:[%s187 + $0xb4] sm:$0xe]
      %vm1265 = vcmask 1042432
      %vm1266 = vcmask 1046532
      %vm1267 = vmor %vm1265, %vm1266
      %v1268 = vrot.slane %v1217, 5
      %v1269 = vrot.slane %v1268, 4
      %v1270 = vrot.slane %v203, 5
      %v1271 = vsel %vm1267, %v1269, %v1270
      %v1272 = vrot.slane %v1270, 4
      %v1273 = vrot.slane %v238, 5
      %v1274 = vsel %vm1267, %v1272, %v1273
      %v1275 = vrot.slane %v1218, 5
      %v1276 = vrot.slane %v1275, 4
      %v1277 = vrot.slane %v205, 5
      %v1278 = vsel %vm1267, %v1276, %v1277
      %v1279 = vrot.slane %v1277, 4
      %v1280 = vrot.slane %v239, 5
      %v1281 = vsel %vm1267, %v1279, %v1280
      %v1282 = vrot.slane %v1219, 5
      %v1283 = vrot.slane %v1282, 4
      %v1284 = vrot.slane %v207, 5
      %v1285 = vsel %vm1267, %v1283, %v1284
      %v1286 = vrot.slane %v1284, 4
      %v1287 = vrot.slane %v240, 5
      %v1288 = vsel %vm1267, %v1286, %v1287
      %v1289 = vrot.slane %v1220, 5
      %v1290 = vrot.slane %v1289, 4
      %v1291 = vrot.slane %v209, 5
      %v1292 = vsel %vm1267, %v1290, %v1291
      %v1293 = vrot.slane %v1291, 4
      %v1294 = vrot.slane %v241, 5
      %v1295 = vsel %vm1267, %v1293, %v1294
      %v1296 = vrot.slane %v1221, 5
      %v1297 = vrot.slane %v1296, 4
      %v1298 = vrot.slane %v211, 5
      %v1299 = vsel %vm1267, %v1297, %v1298
      %v1300 = vrot.slane %v1298, 4
      %v1301 = vrot.slane %v242, 5
      %v1302 = vsel %vm1267, %v1300, %v1301
      %v1303 = vrot.slane %v1222, 5
      %v1304 = vrot.slane %v1303, 4
      %v1305 = vrot.slane %v213, 5
      %v1306 = vsel %vm1267, %v1304, %v1305
      %v1307 = vrot.slane %v1305, 4
      %v1308 = vrot.slane %v243, 5
      %v1309 = vsel %vm1267, %v1307, %v1308
      %v1310 = vrot.slane %v1223, 5
      %v1311 = vrot.slane %v1310, 4
      %v1312 = vrot.slane %v215, 5
      %v1313 = vsel %vm1267, %v1311, %v1312
      %v1314 = vrot.slane %v1312, 4
      %v1315 = vrot.slane %v244, 5
      %v1316 = vsel %vm1267, %v1314, %v1315
      %v1317 = vrot.slane %v1224, 5
      %v1318 = vrot.slane %v1317, 4
      %v1319 = vrot.slane %v217, 5
      %v1320 = vsel %vm1267, %v1318, %v1319
      %v1321 = vrot.slane %v1319, 4
      %v1322 = vrot.slane %v245, 5
      %v1323 = vsel %vm1267, %v1321, %v1322
      %v1324 = vrot.slane %v1225, 5
      %v1325 = vrot.slane %v1324, 4
      %v1326 = vrot.slane %v219, 5
      %v1327 = vsel %vm1267, %v1325, %v1326
      %v1328 = vrot.slane %v1326, 4
      %v1329 = vrot.slane %v246, 5
      %v1330 = vsel %vm1267, %v1328, %v1329
      %v1331 = vrot.slane %v1226, 5
      %v1332 = vrot.slane %v1331, 4
      %v1333 = vrot.slane %v221, 5
      %v1334 = vsel %vm1267, %v1332, %v1333
      %v1335 = vrot.slane %v1333, 4
      %v1336 = vrot.slane %v247, 5
      %v1337 = vsel %vm1267, %v1335, %v1336
      %v1338 = vrot.slane %v1227, 5
      %v1339 = vrot.slane %v1338, 4
      %v1340 = vrot.slane %v223, 5
      %v1341 = vsel %vm1267, %v1339, %v1340
      %v1342 = vrot.slane %v1340, 4
      %v1343 = vrot.slane %v248, 5
      %v1344 = vsel %vm1267, %v1342, %v1343
      %v1345 = vrot.slane %v1228, 5
      %v1346 = vrot.slane %v1345, 4
      %v1347 = vrot.slane %v225, 5
      %v1348 = vsel %vm1267, %v1346, %v1347
      %v1349 = vrot.slane %v1347, 4
      %v1350 = vrot.slane %v249, 5
      %v1351 = vsel %vm1267, %v1349, %v1350
      %v1352 = vrot.slane %v1229, 5
      %v1353 = vrot.slane %v1352, 4
      %v1354 = vrot.slane %v227, 5
      %v1355 = vsel %vm1267, %v1353, %v1354
      %v1356 = vrot.slane %v1354, 4
      %v1357 = vrot.slane %v250, 5
      %v1358 = vsel %vm1267, %v1356, %v1357
      %v1359 = vrot.slane %v1230, 5
      %v1360 = vrot.slane %v1359, 4
      %v1361 = vrot.slane %v229, 5
      %v1362 = vsel %vm1267, %v1360, %v1361
      %v1363 = vrot.slane %v1361, 4
      %v1364 = vrot.slane %v251, 5
      %v1365 = vsel %vm1267, %v1363, %v1364
      %v1366 = vrot.slane %v1231, 5
      %v1367 = vrot.slane %v1366, 4
      %v1368 = vrot.slane %v231, 5
      %v1369 = vsel %vm1267, %v1367, %v1368
      %v1370 = vrot.slane %v1368, 4
      %v1371 = vrot.slane %v252, 5
      %v1372 = vsel %vm1267, %v1370, %v1371
      %v1373 = vrot.slane %v1232, 5
      %v1374 = vrot.slane %v1373, 4
      %v1375 = vrot.slane %v233, 5
      %v1376 = vsel %vm1267, %v1374, %v1375
      %v1377 = vrot.slane %v1375, 4
      %v1378 = vrot.slane %v253, 5
      %v1379 = vsel %vm1267, %v1377, %v1378
      %s1380 = scalar_lea.vmem %s1, 32
      %v1381 = vld [vmem:[%s1380] sm:$0xf]
      %v1382 = vld [vmem:[%s1380 + $0x4] sm:$0xf]
      %v1383 = vld [vmem:[%s1380 + $0x8] sm:$0xf]
      %v1384 = vld [vmem:[%s1380 + $0xc] sm:$0xf]
      %v1385 = vunpack.c.l.b16 %v1271
      %v1386 = vunpack.c.l.b16 %v1274
      %v1387 = vunpack.c.l.b16 %v1278
      %v1388 = vunpack.c.l.b16 %v1281
      %v1389 = vunpack.c.l.b16 %v1285
      %v1390 = vunpack.c.l.b16 %v1288
      %v1391 = vunpack.c.l.b16 %v1292
      %v1392 = vunpack.c.l.b16 %v1295
      %v1393 = vunpack.c.l.b16 %v1299
      %v1394 = vunpack.c.l.b16 %v1302
      %v1395 = vunpack.c.l.b16 %v1306
      %v1396 = vunpack.c.l.b16 %v1309
      %v1397 = vunpack.c.l.b16 %v1313
      %v1398 = vunpack.c.l.b16 %v1316
      %v1399 = vunpack.c.l.b16 %v1320
      %v1400 = vunpack.c.l.b16 %v1323
      %v1401 = vunpack.c.l.b16 %v1327
      %v1402 = vunpack.c.l.b16 %v1330
      %v1403 = vunpack.c.l.b16 %v1334
      %v1404 = vunpack.c.l.b16 %v1337
      %v1405 = vunpack.c.l.b16 %v1341
      %v1406 = vunpack.c.l.b16 %v1344
      %v1407 = vunpack.c.l.b16 %v1348
      %v1408 = vunpack.c.l.b16 %v1351
      %v1409 = vunpack.c.l.b16 %v1355
      %v1410 = vunpack.c.l.b16 %v1358
      %v1411 = vunpack.c.l.b16 %v1362
      %v1412 = vunpack.c.l.b16 %v1365
      %v1413 = vunpack.c.l.b16 %v1369
      %v1414 = vunpack.c.l.b16 %v1372
      %v1415 = vunpack.c.l.b16 %v1376
      %v1416 = vunpack.c.l.b16 %v1379
      %v1417 = vpack.c.b16 %v1386, %v1385
      %v1418 = vpack.c.b16 %v1388, %v1387
      %v1419 = vpack.c.b16 %v1390, %v1389
      %v1420 = vpack.c.b16 %v1392, %v1391
      %v1421 = vpack.c.b16 %v1394, %v1393
      %v1422 = vpack.c.b16 %v1396, %v1395
      %v1423 = vpack.c.b16 %v1398, %v1397
      %v1424 = vpack.c.b16 %v1400, %v1399
      %v1425 = vpack.c.b16 %v1402, %v1401
      %v1426 = vpack.c.b16 %v1404, %v1403
      %v1427 = vpack.c.b16 %v1406, %v1405
      %v1428 = vpack.c.b16 %v1408, %v1407
      %v1429 = vpack.c.b16 %v1410, %v1409
      %v1430 = vpack.c.b16 %v1412, %v1411
      %v1431 = vpack.c.b16 %v1414, %v1413
      %v1432 = vpack.c.b16 %v1416, %v1415
      %v1437 = vunpack.c.l.b16 %v1381
      %v1438 = vunpack.c.l.b16 %v1382
      %v1439 = vunpack.c.l.b16 %v1383
      %v1440 = vunpack.c.l.b16 %v1384
      %v1441 = vpack.c.b16 %v1438, %v1437
      %v1442 = vpack.c.b16 %v1440, %v1439
      %v1446 = vsel %vm706, %v1417, 0
      %v1449 = vsel %vm706, %v1418, 0
      %v1452 = vsel %vm706, %v1419, 0
      %v1455 = vsel %vm706, %v1420, 0
      %v1458 = vsel %vm706, %v1421, 0
      %v1461 = vsel %vm706, %v1422, 0
      %v1464 = vsel %vm706, %v1423, 0
      %v1467 = vsel %vm706, %v1424, 0
      %v1470 = vsel %vm706, %v1425, 0
      %v1473 = vsel %vm706, %v1426, 0
      %v1476 = vsel %vm706, %v1427, 0
      %v1479 = vsel %vm706, %v1428, 0
      %v1482 = vsel %vm706, %v1429, 0
      %v1485 = vsel %vm706, %v1430, 0
      %v1488 = vsel %vm706, %v1431, 0
      %v1491 = vsel %vm706, %v1432, 0
      %1493 = vmatprep.subr.bf16.mxu0 0
      %1494 = vmatpush1.bf16.msra.mxu0 %v1441
      %1495 = vmatprep.subr.bf16.mxu0 0
      %1496 = vmatpush1.bf16.msra.mxu0 %v1442
      %1497 = vmatprep.subr.bf16.mxu0 0
      %1498 = vmatpush1.bf16.msra.mxu0 0
      %1499 = vmatprep.subr.bf16.mxu0 0
      %1500 = vmatpush1.bf16.msra.mxu0 0
      %1501 = vmatprep.subr.bf16.mxu0 0
      %1502 = vmatpush1.bf16.msra.mxu0 0
      %1503 = vmatprep.subr.bf16.mxu0 0
      %1504 = vmatpush1.bf16.msra.mxu0 0
      %1505 = vmatprep.subr.bf16.mxu0 0
      %1506 = vmatpush1.bf16.msra.mxu0 0
      %1507 = vmatprep.subr.bf16.mxu0 0
      %1508 = vmatpush1.bf16.msra.mxu0 0
      %1509 = vmatprep.subr.bf16.mxu0 0
      %1510 = vmatpush1.bf16.msra.mxu0 0
      %1511 = vmatprep.subr.bf16.mxu0 0
      %1512 = vmatpush1.bf16.msra.mxu0 0
      %1513 = vmatprep.subr.bf16.mxu0 0
      %1514 = vmatpush1.bf16.msra.mxu0 0
      %1515 = vmatprep.subr.bf16.mxu0 0
      %1516 = vmatpush1.bf16.msra.mxu0 0
      %1517 = vmatprep.subr.bf16.mxu0 0
      %1518 = vmatpush1.bf16.msra.mxu0 0
      %1519 = vmatprep.subr.bf16.mxu0 0
      %1520 = vmatpush1.bf16.msra.mxu0 0
      %1521 = vmatprep.subr.bf16.mxu0 0
      %1522 = vmatpush1.bf16.msra.mxu0 0
      %1523 = vmatprep.subr.bf16.mxu0 0
      %1524 = vmatpush1.bf16.msra.mxu0 0
      %1525 = vmatprep.mubr.bf16.mxu0 0
      %1526 = vmatmul.mubr.bf16.gmra.mrb[0].mxu0 %v1446
      %v1527 = vpop.f32.mrb[0].mxu0
      %v1528 = vadd.f32 0.0, %v1527
      %v1529 = vpop.f32.mrb[0].mxu0
      %v1530 = vpop.f32.mrb[0].mxu0
      %v1531 = vadd.f32 0.0, %v1530
      %v1532 = vpop.f32.mrb[0].mxu0
      %1533 = vmatprep.mubr.bf16.mxu0 0
      %1534 = vmatmul.mubr.bf16.gmra.mrb[0].mxu0 %v1449
      %v1535 = vpop.f32.mrb[0].mxu0
      %v1536 = vadd.f32 0.0, %v1535
      %v1537 = vpop.f32.mrb[0].mxu0
      %v1538 = vpop.f32.mrb[0].mxu0
      %v1539 = vadd.f32 0.0, %v1538
      %v1540 = vpop.f32.mrb[0].mxu0
      %1541 = vmatprep.mubr.bf16.mxu0 0
      %1542 = vmatmul.mubr.bf16.gmra.mrb[0].mxu0 %v1452
      %v1543 = vpop.f32.mrb[0].mxu0
      %v1544 = vadd.f32 0.0, %v1543
      %v1545 = vpop.f32.mrb[0].mxu0
      %v1546 = vpop.f32.mrb[0].mxu0
      %v1547 = vadd.f32 0.0, %v1546
      %v1548 = vpop.f32.mrb[0].mxu0
      %1549 = vmatprep.mubr.bf16.mxu0 0
      %1550 = vmatmul.mubr.bf16.gmra.mrb[0].mxu0 %v1455
      %v1551 = vpop.f32.mrb[0].mxu0
      %v1552 = vadd.f32 0.0, %v1551
      %v1553 = vpop.f32.mrb[0].mxu0
      %v1554 = vpop.f32.mrb[0].mxu0
      %v1555 = vadd.f32 0.0, %v1554
      %v1556 = vpop.f32.mrb[0].mxu0
      %1557 = vmatprep.mubr.bf16.mxu0 0
      %1558 = vmatmul.mubr.bf16.gmra.mrb[0].mxu0 %v1458
      %v1559 = vpop.f32.mrb[0].mxu0
      %v1560 = vadd.f32 0.0, %v1559
      %v1561 = vpop.f32.mrb[0].mxu0
      %v1562 = vpop.f32.mrb[0].mxu0
      %v1563 = vadd.f32 0.0, %v1562
      %v1564 = vpop.f32.mrb[0].mxu0
      %1565 = vmatprep.mubr.bf16.mxu0 0
      %1566 = vmatmul.mubr.bf16.gmra.mrb[0].mxu0 %v1461
      %v1567 = vpop.f32.mrb[0].mxu0
      %v1568 = vadd.f32 0.0, %v1567
      %v1569 = vpop.f32.mrb[0].mxu0
      %v1570 = vpop.f32.mrb[0].mxu0
      %v1571 = vadd.f32 0.0, %v1570
      %v1572 = vpop.f32.mrb[0].mxu0
      %1573 = vmatprep.mubr.bf16.mxu0 0
      %1574 = vmatmul.mubr.bf16.gmra.mrb[0].mxu0 %v1464
      %v1575 = vpop.f32.mrb[0].mxu0
      %v1576 = vadd.f32 0.0, %v1575
      %v1577 = vpop.f32.mrb[0].mxu0
      %v1578 = vpop.f32.mrb[0].mxu0
      %v1579 = vadd.f32 0.0, %v1578
      %v1580 = vpop.f32.mrb[0].mxu0
      %1581 = vmatprep.mubr.bf16.mxu0 0
      %1582 = vmatmul.mubr.bf16.gmra.mrb[0].mxu0 %v1467
      %v1583 = vpop.f32.mrb[0].mxu0
      %v1584 = vadd.f32 0.0, %v1583
      %v1585 = vpop.f32.mrb[0].mxu0
      %v1586 = vpop.f32.mrb[0].mxu0
      %v1587 = vadd.f32 0.0, %v1586
      %v1588 = vpop.f32.mrb[0].mxu0
      %1589 = vmatprep.mubr.bf16.mxu0 0
      %1590 = vmatmul.mubr.bf16.gmra.mrb[0].mxu0 %v1470
      %v1591 = vpop.f32.mrb[0].mxu0
      %v1592 = vadd.f32 0.0, %v1591
      %v1593 = vpop.f32.mrb[0].mxu0
      %v1594 = vpop.f32.mrb[0].mxu0
      %v1595 = vadd.f32 0.0, %v1594
      %v1596 = vpop.f32.mrb[0].mxu0
      %1597 = vmatprep.mubr.bf16.mxu0 0
      %1598 = vmatmul.mubr.bf16.gmra.mrb[0].mxu0 %v1473
      %v1599 = vpop.f32.mrb[0].mxu0
      %v1600 = vadd.f32 0.0, %v1599
      %v1601 = vpop.f32.mrb[0].mxu0
      %v1602 = vpop.f32.mrb[0].mxu0
      %v1603 = vadd.f32 0.0, %v1602
      %v1604 = vpop.f32.mrb[0].mxu0
      %1605 = vmatprep.mubr.bf16.mxu0 0
      %1606 = vmatmul.mubr.bf16.gmra.mrb[0].mxu0 %v1476
      %v1607 = vpop.f32.mrb[0].mxu0
      %v1608 = vadd.f32 0.0, %v1607
      %v1609 = vpop.f32.mrb[0].mxu0
      %v1610 = vpop.f32.mrb[0].mxu0
      %v1611 = vadd.f32 0.0, %v1610
      %v1612 = vpop.f32.mrb[0].mxu0
      %1613 = vmatprep.mubr.bf16.mxu0 0
      %1614 = vmatmul.mubr.bf16.gmra.mrb[0].mxu0 %v1479
      %v1615 = vpop.f32.mrb[0].mxu0
      %v1616 = vadd.f32 0.0, %v1615
      %v1617 = vpop.f32.mrb[0].mxu0
      %v1618 = vpop.f32.mrb[0].mxu0
      %v1619 = vadd.f32 0.0, %v1618
      %v1620 = vpop.f32.mrb[0].mxu0
      %1621 = vmatprep.mubr.bf16.mxu0 0
      %1622 = vmatmul.mubr.bf16.gmra.mrb[0].mxu0 %v1482
      %v1623 = vpop.f32.mrb[0].mxu0
      %v1624 = vadd.f32 0.0, %v1623
      %v1625 = vpop.f32.mrb[0].mxu0
      %v1626 = vpop.f32.mrb[0].mxu0
      %v1627 = vadd.f32 0.0, %v1626
      %v1628 = vpop.f32.mrb[0].mxu0
      %1629 = vmatprep.mubr.bf16.mxu0 0
      %1630 = vmatmul.mubr.bf16.gmra.mrb[0].mxu0 %v1485
      %v1631 = vpop.f32.mrb[0].mxu0
      %v1632 = vadd.f32 0.0, %v1631
      %v1633 = vpop.f32.mrb[0].mxu0
      %v1634 = vpop.f32.mrb[0].mxu0
      %v1635 = vadd.f32 0.0, %v1634
      %v1636 = vpop.f32.mrb[0].mxu0
      %1637 = vmatprep.mubr.bf16.mxu0 0
      %1638 = vmatmul.mubr.bf16.gmra.mrb[0].mxu0 %v1488
      %v1639 = vpop.f32.mrb[0].mxu0
      %v1640 = vadd.f32 0.0, %v1639
      %v1641 = vpop.f32.mrb[0].mxu0
      %v1642 = vpop.f32.mrb[0].mxu0
      %v1643 = vadd.f32 0.0, %v1642
      %v1644 = vpop.f32.mrb[0].mxu0
      %1645 = vmatprep.mubr.bf16.mxu0 0
      %1646 = vmatmul.mubr.bf16.gmra.mrb[0].mxu0 %v1491
      %v1647 = vpop.f32.mrb[0].mxu0
      %v1648 = vadd.f32 0.0, %v1647
      %v1649 = vpop.f32.mrb[0].mxu0
      %v1650 = vpop.f32.mrb[0].mxu0
      %v1651 = vadd.f32 0.0, %v1650
      %v1652 = vpop.f32.mrb[0].mxu0
      %1653 = vdwg.mxu0
      %v1654 = vadd.f32 %v1091, %v1528
      %v1655 = vadd.f32 %v1094, %v1531
      %v1656 = vadd.f32 %v1099, %v1536
      %v1657 = vadd.f32 %v1102, %v1539
      %v1658 = vadd.f32 %v1107, %v1544
      %v1659 = vadd.f32 %v1110, %v1547
      %v1660 = vadd.f32 %v1115, %v1552
      %v1661 = vadd.f32 %v1118, %v1555
      %v1662 = vadd.f32 %v1123, %v1560
      %v1663 = vadd.f32 %v1126, %v1563
      %v1664 = vadd.f32 %v1131, %v1568
      %v1665 = vadd.f32 %v1134, %v1571
      %v1666 = vadd.f32 %v1139, %v1576
      %v1667 = vadd.f32 %v1142, %v1579
      %v1668 = vadd.f32 %v1147, %v1584
      %v1669 = vadd.f32 %v1150, %v1587
      %v1670 = vadd.f32 %v1155, %v1592
      %v1671 = vadd.f32 %v1158, %v1595
      %v1672 = vadd.f32 %v1163, %v1600
      %v1673 = vadd.f32 %v1166, %v1603
      %v1674 = vadd.f32 %v1171, %v1608
      %v1675 = vadd.f32 %v1174, %v1611
      %v1676 = vadd.f32 %v1179, %v1616
      %v1677 = vadd.f32 %v1182, %v1619
      %v1678 = vadd.f32 %v1187, %v1624
      %v1679 = vadd.f32 %v1190, %v1627
      %v1680 = vadd.f32 %v1195, %v1632
      %v1681 = vadd.f32 %v1198, %v1635
      %v1682 = vadd.f32 %v1203, %v1640
      %v1683 = vadd.f32 %v1206, %v1643
      %v1684 = vadd.f32 %v1211, %v1648
      %v1685 = vadd.f32 %v1214, %v1651
      %s1686 = scalar_lea.vmem %s187, 12
      %v1687 = vld [vmem:[%s1686] sm:$0xf]
      %v1688 = vld [vmem:[%s1686 + $0x4] sm:$0xf]
      %v1689 = vld [vmem:[%s1686 + $0xc] sm:$0xf]
      %v1690 = vld [vmem:[%s1686 + $0x10] sm:$0xf]
      %v1691 = vld [vmem:[%s1686 + $0x18] sm:$0xf]
      %v1692 = vld [vmem:[%s1686 + $0x1c] sm:$0xf]
      %v1693 = vld [vmem:[%s1686 + $0x24] sm:$0xf]
      %v1694 = vld [vmem:[%s1686 + $0x28] sm:$0xf]
      %v1695 = vld [vmem:[%s1686 + $0x30] sm:$0xf]
      %v1696 = vld [vmem:[%s1686 + $0x34] sm:$0xf]
      %v1697 = vld [vmem:[%s1686 + $0x3c] sm:$0xf]
      %v1698 = vld [vmem:[%s1686 + $0x40] sm:$0xf]
      %v1699 = vld [vmem:[%s1686 + $0x48] sm:$0xf]
      %v1700 = vld [vmem:[%s1686 + $0x4c] sm:$0xf]
      %v1701 = vld [vmem:[%s1686 + $0x54] sm:$0xf]
      %v1702 = vld [vmem:[%s1686 + $0x58] sm:$0xf]
      %v1703 = vld [vmem:[%s1686 + $0x60] sm:$0xf]
      %v1704 = vld [vmem:[%s1686 + $0x64] sm:$0xf]
      %v1705 = vld [vmem:[%s1686 + $0x6c] sm:$0xf]
      %v1706 = vld [vmem:[%s1686 + $0x70] sm:$0xf]
      %v1707 = vld [vmem:[%s1686 + $0x78] sm:$0xf]
      %v1708 = vld [vmem:[%s1686 + $0x7c] sm:$0xf]
      %v1709 = vld [vmem:[%s1686 + $0x84] sm:$0xf]
      %v1710 = vld [vmem:[%s1686 + $0x88] sm:$0xf]
      %v1711 = vld [vmem:[%s1686 + $0x90] sm:$0xf]
      %v1712 = vld [vmem:[%s1686 + $0x94] sm:$0xf]
      %v1713 = vld [vmem:[%s1686 + $0x9c] sm:$0xf]
      %v1714 = vld [vmem:[%s1686 + $0xa0] sm:$0xf]
      %v1715 = vld [vmem:[%s1686 + $0xa8] sm:$0xf]
      %v1716 = vld [vmem:[%s1686 + $0xac] sm:$0xf]
      %v1717 = vld [vmem:[%s1686 + $0xb4] sm:$0xf]
      %v1718 = vld [vmem:[%s1686 + $0xb8] sm:$0xf]
      %s1719 = scalar_lea.vmem %s1, 48
      %v1720 = vld [vmem:[%s1719] sm:$0xf]
      %v1721 = vld [vmem:[%s1719 + $0x4] sm:$0xf]
      %v1722 = vld [vmem:[%s1719 + $0x8] sm:$0xf]
      %v1723 = vld [vmem:[%s1719 + $0xc] sm:$0xf]
      %v1756 = vunpack.c.l.b16 %v1687
      %v1757 = vunpack.c.l.b16 %v1688
      %v1758 = vunpack.c.l.b16 %v1689
      %v1759 = vunpack.c.l.b16 %v1690
      %v1760 = vunpack.c.l.b16 %v1691
      %v1761 = vunpack.c.l.b16 %v1692
      %v1762 = vunpack.c.l.b16 %v1693
      %v1763 = vunpack.c.l.b16 %v1694
      %v1764 = vunpack.c.l.b16 %v1695
      %v1765 = vunpack.c.l.b16 %v1696
      %v1766 = vunpack.c.l.b16 %v1697
      %v1767 = vunpack.c.l.b16 %v1698
      %v1768 = vunpack.c.l.b16 %v1699
      %v1769 = vunpack.c.l.b16 %v1700
      %v1770 = vunpack.c.l.b16 %v1701
      %v1771 = vunpack.c.l.b16 %v1702
      %v1772 = vunpack.c.l.b16 %v1703
      %v1773 = vunpack.c.l.b16 %v1704
      %v1774 = vunpack.c.l.b16 %v1705
      %v1775 = vunpack.c.l.b16 %v1706
      %v1776 = vunpack.c.l.b16 %v1707
      %v1777 = vunpack.c.l.b16 %v1708
      %v1778 = vunpack.c.l.b16 %v1709
      %v1779 = vunpack.c.l.b16 %v1710
      %v1780 = vunpack.c.l.b16 %v1711
      %v1781 = vunpack.c.l.b16 %v1712
      %v1782 = vunpack.c.l.b16 %v1713
      %v1783 = vunpack.c.l.b16 %v1714
      %v1784 = vunpack.c.l.b16 %v1715
      %v1785 = vunpack.c.l.b16 %v1716
      %v1786 = vunpack.c.l.b16 %v1717
      %v1787 = vunpack.c.l.b16 %v1718
      %v1788 = vpack.c.b16 %v1757, %v1756
      %v1789 = vpack.c.b16 %v1759, %v1758
      %v1790 = vpack.c.b16 %v1761, %v1760
      %v1791 = vpack.c.b16 %v1763, %v1762
      %v1792 = vpack.c.b16 %v1765, %v1764
      %v1793 = vpack.c.b16 %v1767, %v1766
      %v1794 = vpack.c.b16 %v1769, %v1768
      %v1795 = vpack.c.b16 %v1771, %v1770
      %v1796 = vpack.c.b16 %v1773, %v1772
      %v1797 = vpack.c.b16 %v1775, %v1774
      %v1798 = vpack.c.b16 %v1777, %v1776
      %v1799 = vpack.c.b16 %v1779, %v1778
      %v1800 = vpack.c.b16 %v1781, %v1780
      %v1801 = vpack.c.b16 %v1783, %v1782
      %v1802 = vpack.c.b16 %v1785, %v1784
      %v1803 = vpack.c.b16 %v1787, %v1786
      %v1808 = vunpack.c.l.b16 %v1720
      %v1809 = vunpack.c.l.b16 %v1721
      %v1810 = vunpack.c.l.b16 %v1722
      %v1811 = vunpack.c.l.b16 %v1723
      %v1812 = vpack.c.b16 %v1809, %v1808
      %v1813 = vpack.c.b16 %v1811, %v1810
      %v1817 = vsel %vm706, %v1788, 0
      %v1820 = vsel %vm706, %v1789, 0
      %v1823 = vsel %vm706, %v1790, 0
      %v1826 = vsel %vm706, %v1791, 0
      %v1829 = vsel %vm706, %v1792, 0
      %v1832 = vsel %vm706, %v1793, 0
      %v1835 = vsel %vm706, %v1794, 0
      %v1838 = vsel %vm706, %v1795, 0
      %v1841 = vsel %vm706, %v1796, 0
      %v1844 = vsel %vm706, %v1797, 0
      %v1847 = vsel %vm706, %v1798, 0
      %v1850 = vsel %vm706, %v1799, 0
      %v1853 = vsel %vm706, %v1800, 0
      %v1856 = vsel %vm706, %v1801, 0
      %v1859 = vsel %vm706, %v1802, 0
      %v1862 = vsel %vm706, %v1803, 0
      %1864 = vmatprep.subr.bf16.mxu0 0
      %1865 = vmatpush1.bf16.msra.mxu0 %v1812
      %1866 = vmatprep.subr.bf16.mxu0 0
      %1867 = vmatpush1.bf16.msra.mxu0 %v1813
      %1868 = vmatprep.subr.bf16.mxu0 0
      %1869 = vmatpush1.bf16.msra.mxu0 0
      %1870 = vmatprep.subr.bf16.mxu0 0
      %1871 = vmatpush1.bf16.msra.mxu0 0
      %1872 = vmatprep.subr.bf16.mxu0 0
      %1873 = vmatpush1.bf16.msra.mxu0 0
      %1874 = vmatprep.subr.bf16.mxu0 0
      %1875 = vmatpush1.bf16.msra.mxu0 0
      %1876 = vmatprep.subr.bf16.mxu0 0
      %1877 = vmatpush1.bf16.msra.mxu0 0
      %1878 = vmatprep.subr.bf16.mxu0 0
      %1879 = vmatpush1.bf16.msra.mxu0 0
      %1880 = vmatprep.subr.bf16.mxu0 0
      %1881 = vmatpush1.bf16.msra.mxu0 0
      %1882 = vmatprep.subr.bf16.mxu0 0
      %1883 = vmatpush1.bf16.msra.mxu0 0
      %1884 = vmatprep.subr.bf16.mxu0 0
      %1885 = vmatpush1.bf16.msra.mxu0 0
      %1886 = vmatprep.subr.bf16.mxu0 0
      %1887 = vmatpush1.bf16.msra.mxu0 0
      %1888 = vmatprep.subr.bf16.mxu0 0
      %1889 = vmatpush1.bf16.msra.mxu0 0
      %1890 = vmatprep.subr.bf16.mxu0 0
      %1891 = vmatpush1.bf16.msra.mxu0 0
      %1892 = vmatprep.subr.bf16.mxu0 0
      %1893 = vmatpush1.bf16.msra.mxu0 0
      %1894 = vmatprep.subr.bf16.mxu0 0
      %1895 = vmatpush1.bf16.msra.mxu0 0
      %1896 = vmatprep.mubr.bf16.mxu0 0
      %1897 = vmatmul.mubr.bf16.gmra.mrb[0].mxu0 %v1817
      %v1898 = vpop.f32.mrb[0].mxu0
      %v1899 = vadd.f32 0.0, %v1898
      %v1900 = vpop.f32.mrb[0].mxu0
      %v1901 = vpop.f32.mrb[0].mxu0
      %v1902 = vadd.f32 0.0, %v1901
      %v1903 = vpop.f32.mrb[0].mxu0
      %1904 = vmatprep.mubr.bf16.mxu0 0
      %1905 = vmatmul.mubr.bf16.gmra.mrb[0].mxu0 %v1820
      %v1906 = vpop.f32.mrb[0].mxu0
      %v1907 = vadd.f32 0.0, %v1906
      %v1908 = vpop.f32.mrb[0].mxu0
      %v1909 = vpop.f32.mrb[0].mxu0
      %v1910 = vadd.f32 0.0, %v1909
      %v1911 = vpop.f32.mrb[0].mxu0
      %1912 = vmatprep.mubr.bf16.mxu0 0
      %1913 = vmatmul.mubr.bf16.gmra.mrb[0].mxu0 %v1823
      %v1914 = vpop.f32.mrb[0].mxu0
      %v1915 = vadd.f32 0.0, %v1914
      %v1916 = vpop.f32.mrb[0].mxu0
      %v1917 = vpop.f32.mrb[0].mxu0
      %v1918 = vadd.f32 0.0, %v1917
      %v1919 = vpop.f32.mrb[0].mxu0
      %1920 = vmatprep.mubr.bf16.mxu0 0
      %1921 = vmatmul.mubr.bf16.gmra.mrb[0].mxu0 %v1826
      %v1922 = vpop.f32.mrb[0].mxu0
      %v1923 = vadd.f32 0.0, %v1922
      %v1924 = vpop.f32.mrb[0].mxu0
      %v1925 = vpop.f32.mrb[0].mxu0
      %v1926 = vadd.f32 0.0, %v1925
      %v1927 = vpop.f32.mrb[0].mxu0
      %1928 = vmatprep.mubr.bf16.mxu0 0
      %1929 = vmatmul.mubr.bf16.gmra.mrb[0].mxu0 %v1829
      %v1930 = vpop.f32.mrb[0].mxu0
      %v1931 = vadd.f32 0.0, %v1930
      %v1932 = vpop.f32.mrb[0].mxu0
      %v1933 = vpop.f32.mrb[0].mxu0
      %v1934 = vadd.f32 0.0, %v1933
      %v1935 = vpop.f32.mrb[0].mxu0
      %1936 = vmatprep.mubr.bf16.mxu0 0
      %1937 = vmatmul.mubr.bf16.gmra.mrb[0].mxu0 %v1832
      %v1938 = vpop.f32.mrb[0].mxu0
      %v1939 = vadd.f32 0.0, %v1938
      %v1940 = vpop.f32.mrb[0].mxu0
      %v1941 = vpop.f32.mrb[0].mxu0
      %v1942 = vadd.f32 0.0, %v1941
      %v1943 = vpop.f32.mrb[0].mxu0
      %1944 = vmatprep.mubr.bf16.mxu0 0
      %1945 = vmatmul.mubr.bf16.gmra.mrb[0].mxu0 %v1835
      %v1946 = vpop.f32.mrb[0].mxu0
      %v1947 = vadd.f32 0.0, %v1946
      %v1948 = vpop.f32.mrb[0].mxu0
      %v1949 = vpop.f32.mrb[0].mxu0
      %v1950 = vadd.f32 0.0, %v1949
      %v1951 = vpop.f32.mrb[0].mxu0
      %1952 = vmatprep.mubr.bf16.mxu0 0
      %1953 = vmatmul.mubr.bf16.gmra.mrb[0].mxu0 %v1838
      %v1954 = vpop.f32.mrb[0].mxu0
      %v1955 = vadd.f32 0.0, %v1954
      %v1956 = vpop.f32.mrb[0].mxu0
      %v1957 = vpop.f32.mrb[0].mxu0
      %v1958 = vadd.f32 0.0, %v1957
      %v1959 = vpop.f32.mrb[0].mxu0
      %1960 = vmatprep.mubr.bf16.mxu0 0
      %1961 = vmatmul.mubr.bf16.gmra.mrb[0].mxu0 %v1841
      %v1962 = vpop.f32.mrb[0].mxu0
      %v1963 = vadd.f32 0.0, %v1962
      %v1964 = vpop.f32.mrb[0].mxu0
      %v1965 = vpop.f32.mrb[0].mxu0
      %v1966 = vadd.f32 0.0, %v1965
      %v1967 = vpop.f32.mrb[0].mxu0
      %1968 = vmatprep.mubr.bf16.mxu0 0
      %1969 = vmatmul.mubr.bf16.gmra.mrb[0].mxu0 %v1844
      %v1970 = vpop.f32.mrb[0].mxu0
      %v1971 = vadd.f32 0.0, %v1970
      %v1972 = vpop.f32.mrb[0].mxu0
      %v1973 = vpop.f32.mrb[0].mxu0
      %v1974 = vadd.f32 0.0, %v1973
      %v1975 = vpop.f32.mrb[0].mxu0
      %1976 = vmatprep.mubr.bf16.mxu0 0
      %1977 = vmatmul.mubr.bf16.gmra.mrb[0].mxu0 %v1847
      %v1978 = vpop.f32.mrb[0].mxu0
      %v1979 = vadd.f32 0.0, %v1978
      %v1980 = vpop.f32.mrb[0].mxu0
      %v1981 = vpop.f32.mrb[0].mxu0
      %v1982 = vadd.f32 0.0, %v1981
      %v1983 = vpop.f32.mrb[0].mxu0
      %1984 = vmatprep.mubr.bf16.mxu0 0
      %1985 = vmatmul.mubr.bf16.gmra.mrb[0].mxu0 %v1850
      %v1986 = vpop.f32.mrb[0].mxu0
      %v1987 = vadd.f32 0.0, %v1986
      %v1988 = vpop.f32.mrb[0].mxu0
      %v1989 = vpop.f32.mrb[0].mxu0
      %v1990 = vadd.f32 0.0, %v1989
      %v1991 = vpop.f32.mrb[0].mxu0
      %1992 = vmatprep.mubr.bf16.mxu0 0
      %1993 = vmatmul.mubr.bf16.gmra.mrb[0].mxu0 %v1853
      %v1994 = vpop.f32.mrb[0].mxu0
      %v1995 = vadd.f32 0.0, %v1994
      %v1996 = vpop.f32.mrb[0].mxu0
      %v1997 = vpop.f32.mrb[0].mxu0
      %v1998 = vadd.f32 0.0, %v1997
      %v1999 = vpop.f32.mrb[0].mxu0
      %2000 = vmatprep.mubr.bf16.mxu0 0
      %2001 = vmatmul.mubr.bf16.gmra.mrb[0].mxu0 %v1856
      %v2002 = vpop.f32.mrb[0].mxu0
      %v2003 = vadd.f32 0.0, %v2002
      %v2004 = vpop.f32.mrb[0].mxu0
      %v2005 = vpop.f32.mrb[0].mxu0
      %v2006 = vadd.f32 0.0, %v2005
      %v2007 = vpop.f32.mrb[0].mxu0
      %2008 = vmatprep.mubr.bf16.mxu0 0
      %2009 = vmatmul.mubr.bf16.gmra.mrb[0].mxu0 %v1859
      %v2010 = vpop.f32.mrb[0].mxu0
      %v2011 = vadd.f32 0.0, %v2010
      %v2012 = vpop.f32.mrb[0].mxu0
      %v2013 = vpop.f32.mrb[0].mxu0
      %v2014 = vadd.f32 0.0, %v2013
      %v2015 = vpop.f32.mrb[0].mxu0
      %2016 = vmatprep.mubr.bf16.mxu0 0
      %2017 = vmatmul.mubr.bf16.gmra.mrb[0].mxu0 %v1862
      %v2018 = vpop.f32.mrb[0].mxu0
      %v2019 = vadd.f32 0.0, %v2018
      %v2020 = vpop.f32.mrb[0].mxu0
      %v2021 = vpop.f32.mrb[0].mxu0
      %v2022 = vadd.f32 0.0, %v2021
      %v2023 = vpop.f32.mrb[0].mxu0
      %2024 = vdwg.mxu0
      %v2025 = vadd.f32 %v1654, %v1899
      %v2026 = vadd.f32 %v1655, %v1902
      %v2027 = vadd.f32 %v1656, %v1907
      %v2028 = vadd.f32 %v1657, %v1910
      %v2029 = vadd.f32 %v1658, %v1915
      %v2030 = vadd.f32 %v1659, %v1918
      %v2031 = vadd.f32 %v1660, %v1923
      %v2032 = vadd.f32 %v1661, %v1926
      %v2033 = vadd.f32 %v1662, %v1931
      %v2034 = vadd.f32 %v1663, %v1934
      %v2035 = vadd.f32 %v1664, %v1939
      %v2036 = vadd.f32 %v1665, %v1942
      %v2037 = vadd.f32 %v1666, %v1947
      %v2038 = vadd.f32 %v1667, %v1950
      %v2039 = vadd.f32 %v1668, %v1955
      %v2040 = vadd.f32 %v1669, %v1958
      %v2041 = vadd.f32 %v1670, %v1963
      %v2042 = vadd.f32 %v1671, %v1966
      %v2043 = vadd.f32 %v1672, %v1971
      %v2044 = vadd.f32 %v1673, %v1974
      %v2045 = vadd.f32 %v1674, %v1979
      %v2046 = vadd.f32 %v1675, %v1982
      %v2047 = vadd.f32 %v1676, %v1987
      %v2048 = vadd.f32 %v1677, %v1990
      %v2049 = vadd.f32 %v1678, %v1995
      %v2050 = vadd.f32 %v1679, %v1998
      %v2051 = vadd.f32 %v1680, %v2003
      %v2052 = vadd.f32 %v1681, %v2006
      %v2053 = vadd.f32 %v1682, %v2011
      %v2054 = vadd.f32 %v1683, %v2014
      %v2055 = vadd.f32 %v1684, %v2019
      %v2056 = vadd.f32 %v1685, %v2022
      %v2057 = vld [vmem:[%s1686] sm:$0xf]
      %v2058 = vld [vmem:[%s1686 + $0x4] sm:$0xf]
      %v2059 = vld [vmem:[%s1686 + $0x8] sm:$0x1]
      %v2060 = vld [vmem:[%s1686 + $0xc] sm:$0xf]
      %v2061 = vld [vmem:[%s1686 + $0x10] sm:$0xf]
      %v2062 = vld [vmem:[%s1686 + $0x14] sm:$0x1]
      %v2063 = vld [vmem:[%s1686 + $0x18] sm:$0xf]
      %v2064 = vld [vmem:[%s1686 + $0x1c] sm:$0xf]
      %v2065 = vld [vmem:[%s1686 + $0x20] sm:$0x1]
      %v2066 = vld [vmem:[%s1686 + $0x24] sm:$0xf]
      %v2067 = vld [vmem:[%s1686 + $0x28] sm:$0xf]
      %v2068 = vld [vmem:[%s1686 + $0x2c] sm:$0x1]
      %v2069 = vld [vmem:[%s1686 + $0x30] sm:$0xf]
      %v2070 = vld [vmem:[%s1686 + $0x34] sm:$0xf]
      %v2071 = vld [vmem:[%s1686 + $0x38] sm:$0x1]
      %v2072 = vld [vmem:[%s1686 + $0x3c] sm:$0xf]
      %v2073 = vld [vmem:[%s1686 + $0x40] sm:$0xf]
      %v2074 = vld [vmem:[%s1686 + $0x44] sm:$0x1]
      %v2075 = vld [vmem:[%s1686 + $0x48] sm:$0xf]
      %v2076 = vld [vmem:[%s1686 + $0x4c] sm:$0xf]
      %v2077 = vld [vmem:[%s1686 + $0x50] sm:$0x1]
      %v2078 = vld [vmem:[%s1686 + $0x54] sm:$0xf]
      %v2079 = vld [vmem:[%s1686 + $0x58] sm:$0xf]
      %v2080 = vld [vmem:[%s1686 + $0x5c] sm:$0x1]
      %v2081 = vld [vmem:[%s1686 + $0x60] sm:$0xf]
      %v2082 = vld [vmem:[%s1686 + $0x64] sm:$0xf]
      %v2083 = vld [vmem:[%s1686 + $0x68] sm:$0x1]
      %v2084 = vld [vmem:[%s1686 + $0x6c] sm:$0xf]
      %v2085 = vld [vmem:[%s1686 + $0x70] sm:$0xf]
      %v2086 = vld [vmem:[%s1686 + $0x74] sm:$0x1]
      %v2087 = vld [vmem:[%s1686 + $0x78] sm:$0xf]
      %v2088 = vld [vmem:[%s1686 + $0x7c] sm:$0xf]
      %v2089 = vld [vmem:[%s1686 + $0x80] sm:$0x1]
      %v2090 = vld [vmem:[%s1686 + $0x84] sm:$0xf]
      %v2091 = vld [vmem:[%s1686 + $0x88] sm:$0xf]
      %v2092 = vld [vmem:[%s1686 + $0x8c] sm:$0x1]
      %v2093 = vld [vmem:[%s1686 + $0x90] sm:$0xf]
      %v2094 = vld [vmem:[%s1686 + $0x94] sm:$0xf]
      %v2095 = vld [vmem:[%s1686 + $0x98] sm:$0x1]
      %v2096 = vld [vmem:[%s1686 + $0x9c] sm:$0xf]
      %v2097 = vld [vmem:[%s1686 + $0xa0] sm:$0xf]
      %v2098 = vld [vmem:[%s1686 + $0xa4] sm:$0x1]
      %v2099 = vld [vmem:[%s1686 + $0xa8] sm:$0xf]
      %v2100 = vld [vmem:[%s1686 + $0xac] sm:$0xf]
      %v2101 = vld [vmem:[%s1686 + $0xb0] sm:$0x1]
      %v2102 = vld [vmem:[%s1686 + $0xb4] sm:$0xf]
      %v2103 = vld [vmem:[%s1686 + $0xb8] sm:$0xf]
      %v2104 = vld [vmem:[%s1686 + $0xbc] sm:$0x1]
      %v2106 = vshrl.u32 %v2057, 16
      %v2108 = vrot.slane %v2106, 4
      %v2109 = vshll.u32 %v2057, 16
      %v2111 = vrot.slane %v2109, 5
      %v2112 = vor.u32 %v2108, %v2111
      %v2113 = vrot.slane %v2112, 4
      %v2115 = vshll.u32 %v2058, 16
      %v2117 = vrot.slane %v2115, 5
      %v2118 = vsel %vm256, %v2113, %v2117
      %v2119 = vshrl.u32 %v2058, 16
      %v2121 = vrot.slane %v2119, 4
      %v2122 = vor.u32 %v2121, %v2117
      %v2123 = vrot.slane %v2122, 4
      %v2125 = vshll.u32 %v2059, 16
      %v2127 = vrot.slane %v2125, 5
      %v2128 = vsel %vm256, %v2123, %v2127
      %v2130 = vshrl.u32 %v2060, 16
      %v2132 = vrot.slane %v2130, 4
      %v2133 = vshll.u32 %v2060, 16
      %v2135 = vrot.slane %v2133, 5
      %v2136 = vor.u32 %v2132, %v2135
      %v2137 = vrot.slane %v2136, 4
      %v2139 = vshll.u32 %v2061, 16
      %v2141 = vrot.slane %v2139, 5
      %v2142 = vsel %vm256, %v2137, %v2141
      %v2143 = vshrl.u32 %v2061, 16
      %v2145 = vrot.slane %v2143, 4
      %v2146 = vor.u32 %v2145, %v2141
      %v2147 = vrot.slane %v2146, 4
      %v2149 = vshll.u32 %v2062, 16
      %v2151 = vrot.slane %v2149, 5
      %v2152 = vsel %vm256, %v2147, %v2151
      %v2154 = vshrl.u32 %v2063, 16
      %v2156 = vrot.slane %v2154, 4
      %v2157 = vshll.u32 %v2063, 16
      %v2159 = vrot.slane %v2157, 5
      %v2160 = vor.u32 %v2156, %v2159
      %v2161 = vrot.slane %v2160, 4
      %v2163 = vshll.u32 %v2064, 16
      %v2165 = vrot.slane %v2163, 5
      %v2166 = vsel %vm256, %v2161, %v2165
      %v2167 = vshrl.u32 %v2064, 16
      %v2169 = vrot.slane %v2167, 4
      %v2170 = vor.u32 %v2169, %v2165
      %v2171 = vrot.slane %v2170, 4
      %v2173 = vshll.u32 %v2065, 16
      %v2175 = vrot.slane %v2173, 5
      %v2176 = vsel %vm256, %v2171, %v2175
      %v2178 = vshrl.u32 %v2066, 16
      %v2180 = vrot.slane %v2178, 4
      %v2181 = vshll.u32 %v2066, 16
      %v2183 = vrot.slane %v2181, 5
      %v2184 = vor.u32 %v2180, %v2183
      %v2185 = vrot.slane %v2184, 4
      %v2187 = vshll.u32 %v2067, 16
      %v2189 = vrot.slane %v2187, 5
      %v2190 = vsel %vm256, %v2185, %v2189
      %v2191 = vshrl.u32 %v2067, 16
      %v2193 = vrot.slane %v2191, 4
      %v2194 = vor.u32 %v2193, %v2189
      %v2195 = vrot.slane %v2194, 4
      %v2197 = vshll.u32 %v2068, 16
      %v2199 = vrot.slane %v2197, 5
      %v2200 = vsel %vm256, %v2195, %v2199
      %v2202 = vshrl.u32 %v2069, 16
      %v2204 = vrot.slane %v2202, 4
      %v2205 = vshll.u32 %v2069, 16
      %v2207 = vrot.slane %v2205, 5
      %v2208 = vor.u32 %v2204, %v2207
      %v2209 = vrot.slane %v2208, 4
      %v2211 = vshll.u32 %v2070, 16
      %v2213 = vrot.slane %v2211, 5
      %v2214 = vsel %vm256, %v2209, %v2213
      %v2215 = vshrl.u32 %v2070, 16
      %v2217 = vrot.slane %v2215, 4
      %v2218 = vor.u32 %v2217, %v2213
      %v2219 = vrot.slane %v2218, 4
      %v2221 = vshll.u32 %v2071, 16
      %v2223 = vrot.slane %v2221, 5
      %v2224 = vsel %vm256, %v2219, %v2223
      %v2226 = vshrl.u32 %v2072, 16
      %v2228 = vrot.slane %v2226, 4
      %v2229 = vshll.u32 %v2072, 16
      %v2231 = vrot.slane %v2229, 5
      %v2232 = vor.u32 %v2228, %v2231
      %v2233 = vrot.slane %v2232, 4
      %v2235 = vshll.u32 %v2073, 16
      %v2237 = vrot.slane %v2235, 5
      %v2238 = vsel %vm256, %v2233, %v2237
      %v2239 = vshrl.u32 %v2073, 16
      %v2241 = vrot.slane %v2239, 4
      %v2242 = vor.u32 %v2241, %v2237
      %v2243 = vrot.slane %v2242, 4
      %v2245 = vshll.u32 %v2074, 16
      %v2247 = vrot.slane %v2245, 5
      %v2248 = vsel %vm256, %v2243, %v2247
      %v2250 = vshrl.u32 %v2075, 16
      %v2252 = vrot.slane %v2250, 4
      %v2253 = vshll.u32 %v2075, 16
      %v2255 = vrot.slane %v2253, 5
      %v2256 = vor.u32 %v2252, %v2255
      %v2257 = vrot.slane %v2256, 4
      %v2259 = vshll.u32 %v2076, 16
      %v2261 = vrot.slane %v2259, 5
      %v2262 = vsel %vm256, %v2257, %v2261
      %v2263 = vshrl.u32 %v2076, 16
      %v2265 = vrot.slane %v2263, 4
      %v2266 = vor.u32 %v2265, %v2261
      %v2267 = vrot.slane %v2266, 4
      %v2269 = vshll.u32 %v2077, 16
      %v2271 = vrot.slane %v2269, 5
      %v2272 = vsel %vm256, %v2267, %v2271
      %v2274 = vshrl.u32 %v2078, 16
      %v2276 = vrot.slane %v2274, 4
      %v2277 = vshll.u32 %v2078, 16
      %v2279 = vrot.slane %v2277, 5
      %v2280 = vor.u32 %v2276, %v2279
      %v2281 = vrot.slane %v2280, 4
      %v2283 = vshll.u32 %v2079, 16
      %v2285 = vrot.slane %v2283, 5
      %v2286 = vsel %vm256, %v2281, %v2285
      %v2287 = vshrl.u32 %v2079, 16
      %v2289 = vrot.slane %v2287, 4
      %v2290 = vor.u32 %v2289, %v2285
      %v2291 = vrot.slane %v2290, 4
      %v2293 = vshll.u32 %v2080, 16
      %v2295 = vrot.slane %v2293, 5
      %v2296 = vsel %vm256, %v2291, %v2295
      %v2298 = vshrl.u32 %v2081, 16
      %v2300 = vrot.slane %v2298, 4
      %v2301 = vshll.u32 %v2081, 16
      %v2303 = vrot.slane %v2301, 5
      %v2304 = vor.u32 %v2300, %v2303
      %v2305 = vrot.slane %v2304, 4
      %v2307 = vshll.u32 %v2082, 16
      %v2309 = vrot.slane %v2307, 5
      %v2310 = vsel %vm256, %v2305, %v2309
      %v2311 = vshrl.u32 %v2082, 16
      %v2313 = vrot.slane %v2311, 4
      %v2314 = vor.u32 %v2313, %v2309
      %v2315 = vrot.slane %v2314, 4
      %v2317 = vshll.u32 %v2083, 16
      %v2319 = vrot.slane %v2317, 5
      %v2320 = vsel %vm256, %v2315, %v2319
      %v2322 = vshrl.u32 %v2084, 16
      %v2324 = vrot.slane %v2322, 4
      %v2325 = vshll.u32 %v2084, 16
      %v2327 = vrot.slane %v2325, 5
      %v2328 = vor.u32 %v2324, %v2327
      %v2329 = vrot.slane %v2328, 4
      %v2331 = vshll.u32 %v2085, 16
      %v2333 = vrot.slane %v2331, 5
      %v2334 = vsel %vm256, %v2329, %v2333
      %v2335 = vshrl.u32 %v2085, 16
      %v2337 = vrot.slane %v2335, 4
      %v2338 = vor.u32 %v2337, %v2333
      %v2339 = vrot.slane %v2338, 4
      %v2341 = vshll.u32 %v2086, 16
      %v2343 = vrot.slane %v2341, 5
      %v2344 = vsel %vm256, %v2339, %v2343
      %v2346 = vshrl.u32 %v2087, 16
      %v2348 = vrot.slane %v2346, 4
      %v2349 = vshll.u32 %v2087, 16
      %v2351 = vrot.slane %v2349, 5
      %v2352 = vor.u32 %v2348, %v2351
      %v2353 = vrot.slane %v2352, 4
      %v2355 = vshll.u32 %v2088, 16
      %v2357 = vrot.slane %v2355, 5
      %v2358 = vsel %vm256, %v2353, %v2357
      %v2359 = vshrl.u32 %v2088, 16
      %v2361 = vrot.slane %v2359, 4
      %v2362 = vor.u32 %v2361, %v2357
      %v2363 = vrot.slane %v2362, 4
      %v2365 = vshll.u32 %v2089, 16
      %v2367 = vrot.slane %v2365, 5
      %v2368 = vsel %vm256, %v2363, %v2367
      %v2370 = vshrl.u32 %v2090, 16
      %v2372 = vrot.slane %v2370, 4
      %v2373 = vshll.u32 %v2090, 16
      %v2375 = vrot.slane %v2373, 5
      %v2376 = vor.u32 %v2372, %v2375
      %v2377 = vrot.slane %v2376, 4
      %v2379 = vshll.u32 %v2091, 16
      %v2381 = vrot.slane %v2379, 5
      %v2382 = vsel %vm256, %v2377, %v2381
      %v2383 = vshrl.u32 %v2091, 16
      %v2385 = vrot.slane %v2383, 4
      %v2386 = vor.u32 %v2385, %v2381
      %v2387 = vrot.slane %v2386, 4
      %v2389 = vshll.u32 %v2092, 16
      %v2391 = vrot.slane %v2389, 5
      %v2392 = vsel %vm256, %v2387, %v2391
      %v2394 = vshrl.u32 %v2093, 16
      %v2396 = vrot.slane %v2394, 4
      %v2397 = vshll.u32 %v2093, 16
      %v2399 = vrot.slane %v2397, 5
      %v2400 = vor.u32 %v2396, %v2399
      %v2401 = vrot.slane %v2400, 4
      %v2403 = vshll.u32 %v2094, 16
      %v2405 = vrot.slane %v2403, 5
      %v2406 = vsel %vm256, %v2401, %v2405
      %v2407 = vshrl.u32 %v2094, 16
      %v2409 = vrot.slane %v2407, 4
      %v2410 = vor.u32 %v2409, %v2405
      %v2411 = vrot.slane %v2410, 4
      %v2413 = vshll.u32 %v2095, 16
      %v2415 = vrot.slane %v2413, 5
      %v2416 = vsel %vm256, %v2411, %v2415
      %v2418 = vshrl.u32 %v2096, 16
      %v2420 = vrot.slane %v2418, 4
      %v2421 = vshll.u32 %v2096, 16
      %v2423 = vrot.slane %v2421, 5
      %v2424 = vor.u32 %v2420, %v2423
      %v2425 = vrot.slane %v2424, 4
      %v2427 = vshll.u32 %v2097, 16
      %v2429 = vrot.slane %v2427, 5
      %v2430 = vsel %vm256, %v2425, %v2429
      %v2431 = vshrl.u32 %v2097, 16
      %v2433 = vrot.slane %v2431, 4
      %v2434 = vor.u32 %v2433, %v2429
      %v2435 = vrot.slane %v2434, 4
      %v2437 = vshll.u32 %v2098, 16
      %v2439 = vrot.slane %v2437, 5
      %v2440 = vsel %vm256, %v2435, %v2439
      %v2442 = vshrl.u32 %v2099, 16
      %v2444 = vrot.slane %v2442, 4
      %v2445 = vshll.u32 %v2099, 16
      %v2447 = vrot.slane %v2445, 5
      %v2448 = vor.u32 %v2444, %v2447
      %v2449 = vrot.slane %v2448, 4
      %v2451 = vshll.u32 %v2100, 16
      %v2453 = vrot.slane %v2451, 5
      %v2454 = vsel %vm256, %v2449, %v2453
      %v2455 = vshrl.u32 %v2100, 16
      %v2457 = vrot.slane %v2455, 4
      %v2458 = vor.u32 %v2457, %v2453
      %v2459 = vrot.slane %v2458, 4
      %v2461 = vshll.u32 %v2101, 16
      %v2463 = vrot.slane %v2461, 5
      %v2464 = vsel %vm256, %v2459, %v2463
      %v2466 = vshrl.u32 %v2102, 16
      %v2468 = vrot.slane %v2466, 4
      %v2469 = vshll.u32 %v2102, 16
      %v2471 = vrot.slane %v2469, 5
      %v2472 = vor.u32 %v2468, %v2471
      %v2473 = vrot.slane %v2472, 4
      %v2475 = vshll.u32 %v2103, 16
      %v2477 = vrot.slane %v2475, 5
      %v2478 = vsel %vm256, %v2473, %v2477
      %v2479 = vshrl.u32 %v2103, 16
      %v2481 = vrot.slane %v2479, 4
      %v2482 = vor.u32 %v2481, %v2477
      %v2483 = vrot.slane %v2482, 4
      %v2485 = vshll.u32 %v2104, 16
      %v2487 = vrot.slane %v2485, 5
      %v2488 = vsel %vm256, %v2483, %v2487
      %s2489 = scalar_lea.vmem %s1, 64
      %v2490 = vld [vmem:[%s2489] sm:$0xf]
      %v2491 = vld [vmem:[%s2489 + $0x4] sm:$0xf]
      %v2492 = vld [vmem:[%s2489 + $0x8] sm:$0xf]
      %v2493 = vld [vmem:[%s2489 + $0xc] sm:$0xf]
      %v2494 = vunpack.c.l.b16 %v2118
      %v2495 = vunpack.c.l.b16 %v2128
      %v2496 = vunpack.c.l.b16 %v2142
      %v2497 = vunpack.c.l.b16 %v2152
      %v2498 = vunpack.c.l.b16 %v2166
      %v2499 = vunpack.c.l.b16 %v2176
      %v2500 = vunpack.c.l.b16 %v2190
      %v2501 = vunpack.c.l.b16 %v2200
      %v2502 = vunpack.c.l.b16 %v2214
      %v2503 = vunpack.c.l.b16 %v2224
      %v2504 = vunpack.c.l.b16 %v2238
      %v2505 = vunpack.c.l.b16 %v2248
      %v2506 = vunpack.c.l.b16 %v2262
      %v2507 = vunpack.c.l.b16 %v2272
      %v2508 = vunpack.c.l.b16 %v2286
      %v2509 = vunpack.c.l.b16 %v2296
      %v2510 = vunpack.c.l.b16 %v2310
      %v2511 = vunpack.c.l.b16 %v2320
      %v2512 = vunpack.c.l.b16 %v2334
      %v2513 = vunpack.c.l.b16 %v2344
      %v2514 = vunpack.c.l.b16 %v2358
      %v2515 = vunpack.c.l.b16 %v2368
      %v2516 = vunpack.c.l.b16 %v2382
      %v2517 = vunpack.c.l.b16 %v2392
      %v2518 = vunpack.c.l.b16 %v2406
      %v2519 = vunpack.c.l.b16 %v2416
      %v2520 = vunpack.c.l.b16 %v2430
      %v2521 = vunpack.c.l.b16 %v2440
      %v2522 = vunpack.c.l.b16 %v2454
      %v2523 = vunpack.c.l.b16 %v2464
      %v2524 = vunpack.c.l.b16 %v2478
      %v2525 = vunpack.c.l.b16 %v2488
      %v2526 = vpack.c.b16 %v2495, %v2494
      %v2527 = vpack.c.b16 %v2497, %v2496
      %v2528 = vpack.c.b16 %v2499, %v2498
      %v2529 = vpack.c.b16 %v2501, %v2500
      %v2530 = vpack.c.b16 %v2503, %v2502
      %v2531 = vpack.c.b16 %v2505, %v2504
      %v2532 = vpack.c.b16 %v2507, %v2506
      %v2533 = vpack.c.b16 %v2509, %v2508
      %v2534 = vpack.c.b16 %v2511, %v2510
      %v2535 = vpack.c.b16 %v2513, %v2512
      %v2536 = vpack.c.b16 %v2515, %v2514
      %v2537 = vpack.c.b16 %v2517, %v2516
      %v2538 = vpack.c.b16 %v2519, %v2518
      %v2539 = vpack.c.b16 %v2521, %v2520
      %v2540 = vpack.c.b16 %v2523, %v2522
      %v2541 = vpack.c.b16 %v2525, %v2524
      %v2546 = vunpack.c.l.b16 %v2490
      %v2547 = vunpack.c.l.b16 %v2491
      %v2548 = vunpack.c.l.b16 %v2492
      %v2549 = vunpack.c.l.b16 %v2493
      %v2550 = vpack.c.b16 %v2547, %v2546
      %v2551 = vpack.c.b16 %v2549, %v2548
      %v2555 = vsel %vm706, %v2526, 0
      %v2558 = vsel %vm706, %v2527, 0
      %v2561 = vsel %vm706, %v2528, 0
      %v2564 = vsel %vm706, %v2529, 0
      %v2567 = vsel %vm706, %v2530, 0
      %v2570 = vsel %vm706, %v2531, 0
      %v2573 = vsel %vm706, %v2532, 0
      %v2576 = vsel %vm706, %v2533, 0
      %v2579 = vsel %vm706, %v2534, 0
      %v2582 = vsel %vm706, %v2535, 0
      %v2585 = vsel %vm706, %v2536, 0
      %v2588 = vsel %vm706, %v2537, 0
      %v2591 = vsel %vm706, %v2538, 0
      %v2594 = vsel %vm706, %v2539, 0
      %v2597 = vsel %vm706, %v2540, 0
      %v2600 = vsel %vm706, %v2541, 0
      %2602 = vmatprep.subr.bf16.mxu0 0
      %2603 = vmatpush1.bf16.msra.mxu0 %v2550
      %2604 = vmatprep.subr.bf16.mxu0 0
      %2605 = vmatpush1.bf16.msra.mxu0 %v2551
      %2606 = vmatprep.subr.bf16.mxu0 0
      %2607 = vmatpush1.bf16.msra.mxu0 0
      %2608 = vmatprep.subr.bf16.mxu0 0
      %2609 = vmatpush1.bf16.msra.mxu0 0
      %2610 = vmatprep.subr.bf16.mxu0 0
      %2611 = vmatpush1.bf16.msra.mxu0 0
      %2612 = vmatprep.subr.bf16.mxu0 0
      %2613 = vmatpush1.bf16.msra.mxu0 0
      %2614 = vmatprep.subr.bf16.mxu0 0
      %2615 = vmatpush1.bf16.msra.mxu0 0
      %2616 = vmatprep.subr.bf16.mxu0 0
      %2617 = vmatpush1.bf16.msra.mxu0 0
      %2618 = vmatprep.subr.bf16.mxu0 0
      %2619 = vmatpush1.bf16.msra.mxu0 0
      %2620 = vmatprep.subr.bf16.mxu0 0
      %2621 = vmatpush1.bf16.msra.mxu0 0
      %2622 = vmatprep.subr.bf16.mxu0 0
      %2623 = vmatpush1.bf16.msra.mxu0 0
      %2624 = vmatprep.subr.bf16.mxu0 0
      %2625 = vmatpush1.bf16.msra.mxu0 0
      %2626 = vmatprep.subr.bf16.mxu0 0
      %2627 = vmatpush1.bf16.msra.mxu0 0
      %2628 = vmatprep.subr.bf16.mxu0 0
      %2629 = vmatpush1.bf16.msra.mxu0 0
      %2630 = vmatprep.subr.bf16.mxu0 0
      %2631 = vmatpush1.bf16.msra.mxu0 0
      %2632 = vmatprep.subr.bf16.mxu0 0
      %2633 = vmatpush1.bf16.msra.mxu0 0
      %2634 = vmatprep.mubr.bf16.mxu0 0
      %2635 = vmatmul.mubr.bf16.gmra.mrb[0].mxu0 %v2555
      %v2636 = vpop.f32.mrb[0].mxu0
      %v2637 = vadd.f32 0.0, %v2636
      %v2638 = vpop.f32.mrb[0].mxu0
      %v2639 = vpop.f32.mrb[0].mxu0
      %v2640 = vadd.f32 0.0, %v2639
      %v2641 = vpop.f32.mrb[0].mxu0
      %2642 = vmatprep.mubr.bf16.mxu0 0
      %2643 = vmatmul.mubr.bf16.gmra.mrb[0].mxu0 %v2558
      %v2644 = vpop.f32.mrb[0].mxu0
      %v2645 = vadd.f32 0.0, %v2644
      %v2646 = vpop.f32.mrb[0].mxu0
      %v2647 = vpop.f32.mrb[0].mxu0
      %v2648 = vadd.f32 0.0, %v2647
      %v2649 = vpop.f32.mrb[0].mxu0
      %2650 = vmatprep.mubr.bf16.mxu0 0
      %2651 = vmatmul.mubr.bf16.gmra.mrb[0].mxu0 %v2561
      %v2652 = vpop.f32.mrb[0].mxu0
      %v2653 = vadd.f32 0.0, %v2652
      %v2654 = vpop.f32.mrb[0].mxu0
      %v2655 = vpop.f32.mrb[0].mxu0
      %v2656 = vadd.f32 0.0, %v2655
      %v2657 = vpop.f32.mrb[0].mxu0
      %2658 = vmatprep.mubr.bf16.mxu0 0
      %2659 = vmatmul.mubr.bf16.gmra.mrb[0].mxu0 %v2564
      %v2660 = vpop.f32.mrb[0].mxu0
      %v2661 = vadd.f32 0.0, %v2660
      %v2662 = vpop.f32.mrb[0].mxu0
      %v2663 = vpop.f32.mrb[0].mxu0
      %v2664 = vadd.f32 0.0, %v2663
      %v2665 = vpop.f32.mrb[0].mxu0
      %2666 = vmatprep.mubr.bf16.mxu0 0
      %2667 = vmatmul.mubr.bf16.gmra.mrb[0].mxu0 %v2567
      %v2668 = vpop.f32.mrb[0].mxu0
      %v2669 = vadd.f32 0.0, %v2668
      %v2670 = vpop.f32.mrb[0].mxu0
      %v2671 = vpop.f32.mrb[0].mxu0
      %v2672 = vadd.f32 0.0, %v2671
      %v2673 = vpop.f32.mrb[0].mxu0
      %2674 = vmatprep.mubr.bf16.mxu0 0
      %2675 = vmatmul.mubr.bf16.gmra.mrb[0].mxu0 %v2570
      %v2676 = vpop.f32.mrb[0].mxu0
      %v2677 = vadd.f32 0.0, %v2676
      %v2678 = vpop.f32.mrb[0].mxu0
      %v2679 = vpop.f32.mrb[0].mxu0
      %v2680 = vadd.f32 0.0, %v2679
      %v2681 = vpop.f32.mrb[0].mxu0
      %2682 = vmatprep.mubr.bf16.mxu0 0
      %2683 = vmatmul.mubr.bf16.gmra.mrb[0].mxu0 %v2573
      %v2684 = vpop.f32.mrb[0].mxu0
      %v2685 = vadd.f32 0.0, %v2684
      %v2686 = vpop.f32.mrb[0].mxu0
      %v2687 = vpop.f32.mrb[0].mxu0
      %v2688 = vadd.f32 0.0, %v2687
      %v2689 = vpop.f32.mrb[0].mxu0
      %2690 = vmatprep.mubr.bf16.mxu0 0
      %2691 = vmatmul.mubr.bf16.gmra.mrb[0].mxu0 %v2576
      %v2692 = vpop.f32.mrb[0].mxu0
      %v2693 = vadd.f32 0.0, %v2692
      %v2694 = vpop.f32.mrb[0].mxu0
      %v2695 = vpop.f32.mrb[0].mxu0
      %v2696 = vadd.f32 0.0, %v2695
      %v2697 = vpop.f32.mrb[0].mxu0
      %2698 = vmatprep.mubr.bf16.mxu0 0
      %2699 = vmatmul.mubr.bf16.gmra.mrb[0].mxu0 %v2579
      %v2700 = vpop.f32.mrb[0].mxu0
      %v2701 = vadd.f32 0.0, %v2700
      %v2702 = vpop.f32.mrb[0].mxu0
      %v2703 = vpop.f32.mrb[0].mxu0
      %v2704 = vadd.f32 0.0, %v2703
      %v2705 = vpop.f32.mrb[0].mxu0
      %2706 = vmatprep.mubr.bf16.mxu0 0
      %2707 = vmatmul.mubr.bf16.gmra.mrb[0].mxu0 %v2582
      %v2708 = vpop.f32.mrb[0].mxu0
      %v2709 = vadd.f32 0.0, %v2708
      %v2710 = vpop.f32.mrb[0].mxu0
      %v2711 = vpop.f32.mrb[0].mxu0
      %v2712 = vadd.f32 0.0, %v2711
      %v2713 = vpop.f32.mrb[0].mxu0
      %2714 = vmatprep.mubr.bf16.mxu0 0
      %2715 = vmatmul.mubr.bf16.gmra.mrb[0].mxu0 %v2585
      %v2716 = vpop.f32.mrb[0].mxu0
      %v2717 = vadd.f32 0.0, %v2716
      %v2718 = vpop.f32.mrb[0].mxu0
      %v2719 = vpop.f32.mrb[0].mxu0
      %v2720 = vadd.f32 0.0, %v2719
      %v2721 = vpop.f32.mrb[0].mxu0
      %2722 = vmatprep.mubr.bf16.mxu0 0
      %2723 = vmatmul.mubr.bf16.gmra.mrb[0].mxu0 %v2588
      %v2724 = vpop.f32.mrb[0].mxu0
      %v2725 = vadd.f32 0.0, %v2724
      %v2726 = vpop.f32.mrb[0].mxu0
      %v2727 = vpop.f32.mrb[0].mxu0
      %v2728 = vadd.f32 0.0, %v2727
      %v2729 = vpop.f32.mrb[0].mxu0
      %2730 = vmatprep.mubr.bf16.mxu0 0
      %2731 = vmatmul.mubr.bf16.gmra.mrb[0].mxu0 %v2591
      %v2732 = vpop.f32.mrb[0].mxu0
      %v2733 = vadd.f32 0.0, %v2732
      %v2734 = vpop.f32.mrb[0].mxu0
      %v2735 = vpop.f32.mrb[0].mxu0
      %v2736 = vadd.f32 0.0, %v2735
      %v2737 = vpop.f32.mrb[0].mxu0
      %2738 = vmatprep.mubr.bf16.mxu0 0
      %2739 = vmatmul.mubr.bf16.gmra.mrb[0].mxu0 %v2594
      %v2740 = vpop.f32.mrb[0].mxu0
      %v2741 = vadd.f32 0.0, %v2740
      %v2742 = vpop.f32.mrb[0].mxu0
      %v2743 = vpop.f32.mrb[0].mxu0
      %v2744 = vadd.f32 0.0, %v2743
      %v2745 = vpop.f32.mrb[0].mxu0
      %2746 = vmatprep.mubr.bf16.mxu0 0
      %2747 = vmatmul.mubr.bf16.gmra.mrb[0].mxu0 %v2597
      %v2748 = vpop.f32.mrb[0].mxu0
      %v2749 = vadd.f32 0.0, %v2748
      %v2750 = vpop.f32.mrb[0].mxu0
      %v2751 = vpop.f32.mrb[0].mxu0
      %v2752 = vadd.f32 0.0, %v2751
      %v2753 = vpop.f32.mrb[0].mxu0
      %2754 = vmatprep.mubr.bf16.mxu0 0
      %2755 = vmatmul.mubr.bf16.gmra.mrb[0].mxu0 %v2600
      %v2756 = vpop.f32.mrb[0].mxu0
      %v2757 = vadd.f32 0.0, %v2756
      %v2758 = vpop.f32.mrb[0].mxu0
      %v2759 = vpop.f32.mrb[0].mxu0
      %v2760 = vadd.f32 0.0, %v2759
      %v2761 = vpop.f32.mrb[0].mxu0
      %2762 = vdwg.mxu0
      %v2763 = vadd.f32 %v2025, %v2637
      %v2764 = vadd.f32 %v2026, %v2640
      %v2765 = vadd.f32 %v2027, %v2645
      %v2766 = vadd.f32 %v2028, %v2648
      %v2767 = vadd.f32 %v2029, %v2653
      %v2768 = vadd.f32 %v2030, %v2656
      %v2769 = vadd.f32 %v2031, %v2661
      %v2770 = vadd.f32 %v2032, %v2664
      %v2771 = vadd.f32 %v2033, %v2669
      %v2772 = vadd.f32 %v2034, %v2672
      %v2773 = vadd.f32 %v2035, %v2677
      %v2774 = vadd.f32 %v2036, %v2680
      %v2775 = vadd.f32 %v2037, %v2685
      %v2776 = vadd.f32 %v2038, %v2688
      %v2777 = vadd.f32 %v2039, %v2693
      %v2778 = vadd.f32 %v2040, %v2696
      %v2779 = vadd.f32 %v2041, %v2701
      %v2780 = vadd.f32 %v2042, %v2704
      %v2781 = vadd.f32 %v2043, %v2709
      %v2782 = vadd.f32 %v2044, %v2712
      %v2783 = vadd.f32 %v2045, %v2717
      %v2784 = vadd.f32 %v2046, %v2720
      %v2785 = vadd.f32 %v2047, %v2725
      %v2786 = vadd.f32 %v2048, %v2728
      %v2787 = vadd.f32 %v2049, %v2733
      %v2788 = vadd.f32 %v2050, %v2736
      %v2789 = vadd.f32 %v2051, %v2741
      %v2790 = vadd.f32 %v2052, %v2744
      %v2791 = vadd.f32 %v2053, %v2749
      %v2792 = vadd.f32 %v2054, %v2752
      %v2793 = vadd.f32 %v2055, %v2757
      %v2794 = vadd.f32 %v2056, %v2760
      %v2795 = vld [vmem:[%s1686] sm:$0xe]
      %v2796 = vld [vmem:[%s1686 + $0xc] sm:$0xe]
      %v2797 = vld [vmem:[%s1686 + $0x18] sm:$0xe]
      %v2798 = vld [vmem:[%s1686 + $0x24] sm:$0xe]
      %v2799 = vld [vmem:[%s1686 + $0x30] sm:$0xe]
      %v2800 = vld [vmem:[%s1686 + $0x3c] sm:$0xe]
      %v2801 = vld [vmem:[%s1686 + $0x48] sm:$0xe]
      %v2802 = vld [vmem:[%s1686 + $0x54] sm:$0xe]
      %v2803 = vld [vmem:[%s1686 + $0x60] sm:$0xe]
      %v2804 = vld [vmem:[%s1686 + $0x6c] sm:$0xe]
      %v2805 = vld [vmem:[%s1686 + $0x78] sm:$0xe]
      %v2806 = vld [vmem:[%s1686 + $0x84] sm:$0xe]
      %v2807 = vld [vmem:[%s1686 + $0x90] sm:$0xe]
      %v2808 = vld [vmem:[%s1686 + $0x9c] sm:$0xe]
      %v2809 = vld [vmem:[%s1686 + $0xa8] sm:$0xe]
      %v2810 = vld [vmem:[%s1686 + $0xb4] sm:$0xe]
      %v2859 = vrot.slane %v2795, 5
      %v2860 = vrot.slane %v2859, 4
      %v2861 = vrot.slane %v2058, 5
      %v2862 = vsel %vm1267, %v2860, %v2861
      %v2863 = vrot.slane %v2861, 4
      %v2864 = vrot.slane %v2059, 5
      %v2865 = vsel %vm1267, %v2863, %v2864
      %v2866 = vrot.slane %v2796, 5
      %v2867 = vrot.slane %v2866, 4
      %v2868 = vrot.slane %v2061, 5
      %v2869 = vsel %vm1267, %v2867, %v2868
      %v2870 = vrot.slane %v2868, 4
      %v2871 = vrot.slane %v2062, 5
      %v2872 = vsel %vm1267, %v2870, %v2871
      %v2873 = vrot.slane %v2797, 5
      %v2874 = vrot.slane %v2873, 4
      %v2875 = vrot.slane %v2064, 5
      %v2876 = vsel %vm1267, %v2874, %v2875
      %v2877 = vrot.slane %v2875, 4
      %v2878 = vrot.slane %v2065, 5
      %v2879 = vsel %vm1267, %v2877, %v2878
      %v2880 = vrot.slane %v2798, 5
      %v2881 = vrot.slane %v2880, 4
      %v2882 = vrot.slane %v2067, 5
      %v2883 = vsel %vm1267, %v2881, %v2882
      %v2884 = vrot.slane %v2882, 4
      %v2885 = vrot.slane %v2068, 5
      %v2886 = vsel %vm1267, %v2884, %v2885
      %v2887 = vrot.slane %v2799, 5
      %v2888 = vrot.slane %v2887, 4
      %v2889 = vrot.slane %v2070, 5
      %v2890 = vsel %vm1267, %v2888, %v2889
      %v2891 = vrot.slane %v2889, 4
      %v2892 = vrot.slane %v2071, 5
      %v2893 = vsel %vm1267, %v2891, %v2892
      %v2894 = vrot.slane %v2800, 5
      %v2895 = vrot.slane %v2894, 4
      %v2896 = vrot.slane %v2073, 5
      %v2897 = vsel %vm1267, %v2895, %v2896
      %v2898 = vrot.slane %v2896, 4
      %v2899 = vrot.slane %v2074, 5
      %v2900 = vsel %vm1267, %v2898, %v2899
      %v2901 = vrot.slane %v2801, 5
      %v2902 = vrot.slane %v2901, 4
      %v2903 = vrot.slane %v2076, 5
      %v2904 = vsel %vm1267, %v2902, %v2903
      %v2905 = vrot.slane %v2903, 4
      %v2906 = vrot.slane %v2077, 5
      %v2907 = vsel %vm1267, %v2905, %v2906
      %v2908 = vrot.slane %v2802, 5
      %v2909 = vrot.slane %v2908, 4
      %v2910 = vrot.slane %v2079, 5
      %v2911 = vsel %vm1267, %v2909, %v2910
      %v2912 = vrot.slane %v2910, 4
      %v2913 = vrot.slane %v2080, 5
      %v2914 = vsel %vm1267, %v2912, %v2913
      %v2915 = vrot.slane %v2803, 5
      %v2916 = vrot.slane %v2915, 4
      %v2917 = vrot.slane %v2082, 5
      %v2918 = vsel %vm1267, %v2916, %v2917
      %v2919 = vrot.slane %v2917, 4
      %v2920 = vrot.slane %v2083, 5
      %v2921 = vsel %vm1267, %v2919, %v2920
      %v2922 = vrot.slane %v2804, 5
      %v2923 = vrot.slane %v2922, 4
      %v2924 = vrot.slane %v2085, 5
      %v2925 = vsel %vm1267, %v2923, %v2924
      %v2926 = vrot.slane %v2924, 4
      %v2927 = vrot.slane %v2086, 5
      %v2928 = vsel %vm1267, %v2926, %v2927
      %v2929 = vrot.slane %v2805, 5
      %v2930 = vrot.slane %v2929, 4
      %v2931 = vrot.slane %v2088, 5
      %v2932 = vsel %vm1267, %v2930, %v2931
      %v2933 = vrot.slane %v2931, 4
      %v2934 = vrot.slane %v2089, 5
      %v2935 = vsel %vm1267, %v2933, %v2934
      %v2936 = vrot.slane %v2806, 5
      %v2937 = vrot.slane %v2936, 4
      %v2938 = vrot.slane %v2091, 5
      %v2939 = vsel %vm1267, %v2937, %v2938
      %v2940 = vrot.slane %v2938, 4
      %v2941 = vrot.slane %v2092, 5
      %v2942 = vsel %vm1267, %v2940, %v2941
      %v2943 = vrot.slane %v2807, 5
      %v2944 = vrot.slane %v2943, 4
      %v2945 = vrot.slane %v2094, 5
      %v2946 = vsel %vm1267, %v2944, %v2945
      %v2947 = vrot.slane %v2945, 4
      %v2948 = vrot.slane %v2095, 5
      %v2949 = vsel %vm1267, %v2947, %v2948
      %v2950 = vrot.slane %v2808, 5
      %v2951 = vrot.slane %v2950, 4
      %v2952 = vrot.slane %v2097, 5
      %v2953 = vsel %vm1267, %v2951, %v2952
      %v2954 = vrot.slane %v2952, 4
      %v2955 = vrot.slane %v2098, 5
      %v2956 = vsel %vm1267, %v2954, %v2955
      %v2957 = vrot.slane %v2809, 5
      %v2958 = vrot.slane %v2957, 4
      %v2959 = vrot.slane %v2100, 5
      %v2960 = vsel %vm1267, %v2958, %v2959
      %v2961 = vrot.slane %v2959, 4
      %v2962 = vrot.slane %v2101, 5
      %v2963 = vsel %vm1267, %v2961, %v2962
      %v2964 = vrot.slane %v2810, 5
      %v2965 = vrot.slane %v2964, 4
      %v2966 = vrot.slane %v2103, 5
      %v2967 = vsel %vm1267, %v2965, %v2966
      %v2968 = vrot.slane %v2966, 4
      %v2969 = vrot.slane %v2104, 5
      %v2970 = vsel %vm1267, %v2968, %v2969
      %s2971 = scalar_lea.vmem %s1, 80
      %v2972 = vld [vmem:[%s2971] sm:$0xf]
      %v2973 = vld [vmem:[%s2971 + $0x4] sm:$0xf]
      %v2974 = vld [vmem:[%s2971 + $0x8] sm:$0xf]
      %v2975 = vld [vmem:[%s2971 + $0xc] sm:$0xf]
      %v2976 = vunpack.c.l.b16 %v2862
      %v2977 = vunpack.c.l.b16 %v2865
      %v2978 = vunpack.c.l.b16 %v2869
      %v2979 = vunpack.c.l.b16 %v2872
      %v2980 = vunpack.c.l.b16 %v2876
      %v2981 = vunpack.c.l.b16 %v2879
      %v2982 = vunpack.c.l.b16 %v2883
      %v2983 = vunpack.c.l.b16 %v2886
      %v2984 = vunpack.c.l.b16 %v2890
      %v2985 = vunpack.c.l.b16 %v2893
      %v2986 = vunpack.c.l.b16 %v2897
      %v2987 = vunpack.c.l.b16 %v2900
      %v2988 = vunpack.c.l.b16 %v2904
      %v2989 = vunpack.c.l.b16 %v2907
      %v2990 = vunpack.c.l.b16 %v2911
      %v2991 = vunpack.c.l.b16 %v2914
      %v2992 = vunpack.c.l.b16 %v2918
      %v2993 = vunpack.c.l.b16 %v2921
      %v2994 = vunpack.c.l.b16 %v2925
      %v2995 = vunpack.c.l.b16 %v2928
      %v2996 = vunpack.c.l.b16 %v2932
      %v2997 = vunpack.c.l.b16 %v2935
      %v2998 = vunpack.c.l.b16 %v2939
      %v2999 = vunpack.c.l.b16 %v2942
      %v3000 = vunpack.c.l.b16 %v2946
      %v3001 = vunpack.c.l.b16 %v2949
      %v3002 = vunpack.c.l.b16 %v2953
      %v3003 = vunpack.c.l.b16 %v2956
      %v3004 = vunpack.c.l.b16 %v2960
      %v3005 = vunpack.c.l.b16 %v2963
      %v3006 = vunpack.c.l.b16 %v2967
      %v3007 = vunpack.c.l.b16 %v2970
      %v3008 = vpack.c.b16 %v2977, %v2976
      %v3009 = vpack.c.b16 %v2979, %v2978
      %v3010 = vpack.c.b16 %v2981, %v2980
      %v3011 = vpack.c.b16 %v2983, %v2982
      %v3012 = vpack.c.b16 %v2985, %v2984
      %v3013 = vpack.c.b16 %v2987, %v2986
      %v3014 = vpack.c.b16 %v2989, %v2988
      %v3015 = vpack.c.b16 %v2991, %v2990
      %v3016 = vpack.c.b16 %v2993, %v2992
      %v3017 = vpack.c.b16 %v2995, %v2994
      %v3018 = vpack.c.b16 %v2997, %v2996
      %v3019 = vpack.c.b16 %v2999, %v2998
      %v3020 = vpack.c.b16 %v3001, %v3000
      %v3021 = vpack.c.b16 %v3003, %v3002
      %v3022 = vpack.c.b16 %v3005, %v3004
      %v3023 = vpack.c.b16 %v3007, %v3006
      %v3028 = vunpack.c.l.b16 %v2972
      %v3029 = vunpack.c.l.b16 %v2973
      %v3030 = vunpack.c.l.b16 %v2974
      %v3031 = vunpack.c.l.b16 %v2975
      %v3032 = vpack.c.b16 %v3029, %v3028
      %v3033 = vpack.c.b16 %v3031, %v3030
      %v3037 = vsel %vm706, %v3008, 0
      %v3040 = vsel %vm706, %v3009, 0
      %v3043 = vsel %vm706, %v3010, 0
      %v3046 = vsel %vm706, %v3011, 0
      %v3049 = vsel %vm706, %v3012, 0
      %v3052 = vsel %vm706, %v3013, 0
      %v3055 = vsel %vm706, %v3014, 0
      %v3058 = vsel %vm706, %v3015, 0
      %v3061 = vsel %vm706, %v3016, 0
      %v3064 = vsel %vm706, %v3017, 0
      %v3067 = vsel %vm706, %v3018, 0
      %v3070 = vsel %vm706, %v3019, 0
      %v3073 = vsel %vm706, %v3020, 0
      %v3076 = vsel %vm706, %v3021, 0
      %v3079 = vsel %vm706, %v3022, 0
      %v3082 = vsel %vm706, %v3023, 0
      %3084 = vmatprep.subr.bf16.mxu0 0
      %3085 = vmatpush1.bf16.msra.mxu0 %v3032
      %3086 = vmatprep.subr.bf16.mxu0 0
      %3087 = vmatpush1.bf16.msra.mxu0 %v3033
      %3088 = vmatprep.subr.bf16.mxu0 0
      %3089 = vmatpush1.bf16.msra.mxu0 0
      %3090 = vmatprep.subr.bf16.mxu0 0
      %3091 = vmatpush1.bf16.msra.mxu0 0
      %3092 = vmatprep.subr.bf16.mxu0 0
      %3093 = vmatpush1.bf16.msra.mxu0 0
      %3094 = vmatprep.subr.bf16.mxu0 0
      %3095 = vmatpush1.bf16.msra.mxu0 0
      %3096 = vmatprep.subr.bf16.mxu0 0
      %3097 = vmatpush1.bf16.msra.mxu0 0
      %3098 = vmatprep.subr.bf16.mxu0 0
      %3099 = vmatpush1.bf16.msra.mxu0 0
      %3100 = vmatprep.subr.bf16.mxu0 0
      %3101 = vmatpush1.bf16.msra.mxu0 0
      %3102 = vmatprep.subr.bf16.mxu0 0
      %3103 = vmatpush1.bf16.msra.mxu0 0
      %3104 = vmatprep.subr.bf16.mxu0 0
      %3105 = vmatpush1.bf16.msra.mxu0 0
      %3106 = vmatprep.subr.bf16.mxu0 0
      %3107 = vmatpush1.bf16.msra.mxu0 0
      %3108 = vmatprep.subr.bf16.mxu0 0
      %3109 = vmatpush1.bf16.msra.mxu0 0
      %3110 = vmatprep.subr.bf16.mxu0 0
      %3111 = vmatpush1.bf16.msra.mxu0 0
      %3112 = vmatprep.subr.bf16.mxu0 0
      %3113 = vmatpush1.bf16.msra.mxu0 0
      %3114 = vmatprep.subr.bf16.mxu0 0
      %3115 = vmatpush1.bf16.msra.mxu0 0
      %3116 = vmatprep.mubr.bf16.mxu0 0
      %3117 = vmatmul.mubr.bf16.gmra.mrb[0].mxu0 %v3037
      %v3118 = vpop.f32.mrb[0].mxu0
      %v3119 = vadd.f32 0.0, %v3118
      %v3120 = vpop.f32.mrb[0].mxu0
      %v3121 = vpop.f32.mrb[0].mxu0
      %v3122 = vadd.f32 0.0, %v3121
      %v3123 = vpop.f32.mrb[0].mxu0
      %3124 = vmatprep.mubr.bf16.mxu0 0
      %3125 = vmatmul.mubr.bf16.gmra.mrb[0].mxu0 %v3040
      %v3126 = vpop.f32.mrb[0].mxu0
      %v3127 = vadd.f32 0.0, %v3126
      %v3128 = vpop.f32.mrb[0].mxu0
      %v3129 = vpop.f32.mrb[0].mxu0
      %v3130 = vadd.f32 0.0, %v3129
      %v3131 = vpop.f32.mrb[0].mxu0
      %3132 = vmatprep.mubr.bf16.mxu0 0
      %3133 = vmatmul.mubr.bf16.gmra.mrb[0].mxu0 %v3043
      %v3134 = vpop.f32.mrb[0].mxu0
      %v3135 = vadd.f32 0.0, %v3134
      %v3136 = vpop.f32.mrb[0].mxu0
      %v3137 = vpop.f32.mrb[0].mxu0
      %v3138 = vadd.f32 0.0, %v3137
      %v3139 = vpop.f32.mrb[0].mxu0
      %3140 = vmatprep.mubr.bf16.mxu0 0
      %3141 = vmatmul.mubr.bf16.gmra.mrb[0].mxu0 %v3046
      %v3142 = vpop.f32.mrb[0].mxu0
      %v3143 = vadd.f32 0.0, %v3142
      %v3144 = vpop.f32.mrb[0].mxu0
      %v3145 = vpop.f32.mrb[0].mxu0
      %v3146 = vadd.f32 0.0, %v3145
      %v3147 = vpop.f32.mrb[0].mxu0
      %3148 = vmatprep.mubr.bf16.mxu0 0
      %3149 = vmatmul.mubr.bf16.gmra.mrb[0].mxu0 %v3049
      %v3150 = vpop.f32.mrb[0].mxu0
      %v3151 = vadd.f32 0.0, %v3150
      %v3152 = vpop.f32.mrb[0].mxu0
      %v3153 = vpop.f32.mrb[0].mxu0
      %v3154 = vadd.f32 0.0, %v3153
      %v3155 = vpop.f32.mrb[0].mxu0
      %3156 = vmatprep.mubr.bf16.mxu0 0
      %3157 = vmatmul.mubr.bf16.gmra.mrb[0].mxu0 %v3052
      %v3158 = vpop.f32.mrb[0].mxu0
      %v3159 = vadd.f32 0.0, %v3158
      %v3160 = vpop.f32.mrb[0].mxu0
      %v3161 = vpop.f32.mrb[0].mxu0
      %v3162 = vadd.f32 0.0, %v3161
      %v3163 = vpop.f32.mrb[0].mxu0
      %3164 = vmatprep.mubr.bf16.mxu0 0
      %3165 = vmatmul.mubr.bf16.gmra.mrb[0].mxu0 %v3055
      %v3166 = vpop.f32.mrb[0].mxu0
      %v3167 = vadd.f32 0.0, %v3166
      %v3168 = vpop.f32.mrb[0].mxu0
      %v3169 = vpop.f32.mrb[0].mxu0
      %v3170 = vadd.f32 0.0, %v3169
      %v3171 = vpop.f32.mrb[0].mxu0
      %3172 = vmatprep.mubr.bf16.mxu0 0
      %3173 = vmatmul.mubr.bf16.gmra.mrb[0].mxu0 %v3058
      %v3174 = vpop.f32.mrb[0].mxu0
      %v3175 = vadd.f32 0.0, %v3174
      %v3176 = vpop.f32.mrb[0].mxu0
      %v3177 = vpop.f32.mrb[0].mxu0
      %v3178 = vadd.f32 0.0, %v3177
      %v3179 = vpop.f32.mrb[0].mxu0
      %3180 = vmatprep.mubr.bf16.mxu0 0
      %3181 = vmatmul.mubr.bf16.gmra.mrb[0].mxu0 %v3061
      %v3182 = vpop.f32.mrb[0].mxu0
      %v3183 = vadd.f32 0.0, %v3182
      %v3184 = vpop.f32.mrb[0].mxu0
      %v3185 = vpop.f32.mrb[0].mxu0
      %v3186 = vadd.f32 0.0, %v3185
      %v3187 = vpop.f32.mrb[0].mxu0
      %3188 = vmatprep.mubr.bf16.mxu0 0
      %3189 = vmatmul.mubr.bf16.gmra.mrb[0].mxu0 %v3064
      %v3190 = vpop.f32.mrb[0].mxu0
      %v3191 = vadd.f32 0.0, %v3190
      %v3192 = vpop.f32.mrb[0].mxu0
      %v3193 = vpop.f32.mrb[0].mxu0
      %v3194 = vadd.f32 0.0, %v3193
      %v3195 = vpop.f32.mrb[0].mxu0
      %3196 = vmatprep.mubr.bf16.mxu0 0
      %3197 = vmatmul.mubr.bf16.gmra.mrb[0].mxu0 %v3067
      %v3198 = vpop.f32.mrb[0].mxu0
      %v3199 = vadd.f32 0.0, %v3198
      %v3200 = vpop.f32.mrb[0].mxu0
      %v3201 = vpop.f32.mrb[0].mxu0
      %v3202 = vadd.f32 0.0, %v3201
      %v3203 = vpop.f32.mrb[0].mxu0
      %3204 = vmatprep.mubr.bf16.mxu0 0
      %3205 = vmatmul.mubr.bf16.gmra.mrb[0].mxu0 %v3070
      %v3206 = vpop.f32.mrb[0].mxu0
      %v3207 = vadd.f32 0.0, %v3206
      %v3208 = vpop.f32.mrb[0].mxu0
      %v3209 = vpop.f32.mrb[0].mxu0
      %v3210 = vadd.f32 0.0, %v3209
      %v3211 = vpop.f32.mrb[0].mxu0
      %3212 = vmatprep.mubr.bf16.mxu0 0
      %3213 = vmatmul.mubr.bf16.gmra.mrb[0].mxu0 %v3073
      %v3214 = vpop.f32.mrb[0].mxu0
      %v3215 = vadd.f32 0.0, %v3214
      %v3216 = vpop.f32.mrb[0].mxu0
      %v3217 = vpop.f32.mrb[0].mxu0
      %v3218 = vadd.f32 0.0, %v3217
      %v3219 = vpop.f32.mrb[0].mxu0
      %3220 = vmatprep.mubr.bf16.mxu0 0
      %3221 = vmatmul.mubr.bf16.gmra.mrb[0].mxu0 %v3076
      %v3222 = vpop.f32.mrb[0].mxu0
      %v3223 = vadd.f32 0.0, %v3222
      %v3224 = vpop.f32.mrb[0].mxu0
      %v3225 = vpop.f32.mrb[0].mxu0
      %v3226 = vadd.f32 0.0, %v3225
      %v3227 = vpop.f32.mrb[0].mxu0
      %3228 = vmatprep.mubr.bf16.mxu0 0
      %3229 = vmatmul.mubr.bf16.gmra.mrb[0].mxu0 %v3079
      %v3230 = vpop.f32.mrb[0].mxu0
      %v3231 = vadd.f32 0.0, %v3230
      %v3232 = vpop.f32.mrb[0].mxu0
      %v3233 = vpop.f32.mrb[0].mxu0
      %v3234 = vadd.f32 0.0, %v3233
      %v3235 = vpop.f32.mrb[0].mxu0
      %3236 = vmatprep.mubr.bf16.mxu0 0
      %3237 = vmatmul.mubr.bf16.gmra.mrb[0].mxu0 %v3082
      %v3238 = vpop.f32.mrb[0].mxu0
      %v3239 = vadd.f32 0.0, %v3238
      %v3240 = vpop.f32.mrb[0].mxu0
      %v3241 = vpop.f32.mrb[0].mxu0
      %v3242 = vadd.f32 0.0, %v3241
      %v3243 = vpop.f32.mrb[0].mxu0
      %3244 = vdwg.mxu0
      %v3245 = vadd.f32 %v2763, %v3119
      %v3246 = vadd.f32 %v2764, %v3122
      %v3247 = vadd.f32 %v2765, %v3127
      %v3248 = vadd.f32 %v2766, %v3130
      %v3249 = vadd.f32 %v2767, %v3135
      %v3250 = vadd.f32 %v2768, %v3138
      %v3251 = vadd.f32 %v2769, %v3143
      %v3252 = vadd.f32 %v2770, %v3146
      %v3253 = vadd.f32 %v2771, %v3151
      %v3254 = vadd.f32 %v2772, %v3154
      %v3255 = vadd.f32 %v2773, %v3159
      %v3256 = vadd.f32 %v2774, %v3162
      %v3257 = vadd.f32 %v2775, %v3167
      %v3258 = vadd.f32 %v2776, %v3170
      %v3259 = vadd.f32 %v2777, %v3175
      %v3260 = vadd.f32 %v2778, %v3178
      %v3261 = vadd.f32 %v2779, %v3183
      %v3262 = vadd.f32 %v2780, %v3186
      %v3263 = vadd.f32 %v2781, %v3191
      %v3264 = vadd.f32 %v2782, %v3194
      %v3265 = vadd.f32 %v2783, %v3199
      %v3266 = vadd.f32 %v2784, %v3202
      %v3267 = vadd.f32 %v2785, %v3207
      %v3268 = vadd.f32 %v2786, %v3210
      %v3269 = vadd.f32 %v2787, %v3215
      %v3270 = vadd.f32 %v2788, %v3218
      %v3271 = vadd.f32 %v2789, %v3223
      %v3272 = vadd.f32 %v2790, %v3226
      %v3273 = vadd.f32 %v2791, %v3231
      %v3274 = vadd.f32 %v2792, %v3234
      %v3275 = vadd.f32 %v2793, %v3239
      %v3276 = vadd.f32 %v2794, %v3242
      %s3277 = scalar_lea.vmem %s187, 24
      %v3278 = vld [vmem:[%s3277] sm:$0xf]
      %v3279 = vld [vmem:[%s3277 + $0x4] sm:$0xf]
      %v3280 = vld [vmem:[%s3277 + $0xc] sm:$0xf]
      %v3281 = vld [vmem:[%s3277 + $0x10] sm:$0xf]
      %v3282 = vld [vmem:[%s3277 + $0x18] sm:$0xf]
      %v3283 = vld [vmem:[%s3277 + $0x1c] sm:$0xf]
      %v3284 = vld [vmem:[%s3277 + $0x24] sm:$0xf]
      %v3285 = vld [vmem:[%s3277 + $0x28] sm:$0xf]
      %v3286 = vld [vmem:[%s3277 + $0x30] sm:$0xf]
      %v3287 = vld [vmem:[%s3277 + $0x34] sm:$0xf]
      %v3288 = vld [vmem:[%s3277 + $0x3c] sm:$0xf]
      %v3289 = vld [vmem:[%s3277 + $0x40] sm:$0xf]
      %v3290 = vld [vmem:[%s3277 + $0x48] sm:$0xf]
      %v3291 = vld [vmem:[%s3277 + $0x4c] sm:$0xf]
      %v3292 = vld [vmem:[%s3277 + $0x54] sm:$0xf]
      %v3293 = vld [vmem:[%s3277 + $0x58] sm:$0xf]
      %v3294 = vld [vmem:[%s3277 + $0x60] sm:$0xf]
      %v3295 = vld [vmem:[%s3277 + $0x64] sm:$0xf]
      %v3296 = vld [vmem:[%s3277 + $0x6c] sm:$0xf]
      %v3297 = vld [vmem:[%s3277 + $0x70] sm:$0xf]
      %v3298 = vld [vmem:[%s3277 + $0x78] sm:$0xf]
      %v3299 = vld [vmem:[%s3277 + $0x7c] sm:$0xf]
      %v3300 = vld [vmem:[%s3277 + $0x84] sm:$0xf]
      %v3301 = vld [vmem:[%s3277 + $0x88] sm:$0xf]
      %v3302 = vld [vmem:[%s3277 + $0x90] sm:$0xf]
      %v3303 = vld [vmem:[%s3277 + $0x94] sm:$0xf]
      %v3304 = vld [vmem:[%s3277 + $0x9c] sm:$0xf]
      %v3305 = vld [vmem:[%s3277 + $0xa0] sm:$0xf]
      %v3306 = vld [vmem:[%s3277 + $0xa8] sm:$0xf]
      %v3307 = vld [vmem:[%s3277 + $0xac] sm:$0xf]
      %v3308 = vld [vmem:[%s3277 + $0xb4] sm:$0xf]
      %v3309 = vld [vmem:[%s3277 + $0xb8] sm:$0xf]
      %s3310 = scalar_lea.vmem %s1, 96
      %v3311 = vld [vmem:[%s3310] sm:$0xf]
      %v3312 = vld [vmem:[%s3310 + $0x4] sm:$0xf]
      %v3313 = vld [vmem:[%s3310 + $0x8] sm:$0xf]
      %v3314 = vld [vmem:[%s3310 + $0xc] sm:$0xf]
      %v3347 = vunpack.c.l.b16 %v3278
      %v3348 = vunpack.c.l.b16 %v3279
      %v3349 = vunpack.c.l.b16 %v3280
      %v3350 = vunpack.c.l.b16 %v3281
      %v3351 = vunpack.c.l.b16 %v3282
      %v3352 = vunpack.c.l.b16 %v3283
      %v3353 = vunpack.c.l.b16 %v3284
      %v3354 = vunpack.c.l.b16 %v3285
      %v3355 = vunpack.c.l.b16 %v3286
      %v3356 = vunpack.c.l.b16 %v3287
      %v3357 = vunpack.c.l.b16 %v3288
      %v3358 = vunpack.c.l.b16 %v3289
      %v3359 = vunpack.c.l.b16 %v3290
      %v3360 = vunpack.c.l.b16 %v3291
      %v3361 = vunpack.c.l.b16 %v3292
      %v3362 = vunpack.c.l.b16 %v3293
      %v3363 = vunpack.c.l.b16 %v3294
      %v3364 = vunpack.c.l.b16 %v3295
      %v3365 = vunpack.c.l.b16 %v3296
      %v3366 = vunpack.c.l.b16 %v3297
      %v3367 = vunpack.c.l.b16 %v3298
      %v3368 = vunpack.c.l.b16 %v3299
      %v3369 = vunpack.c.l.b16 %v3300
      %v3370 = vunpack.c.l.b16 %v3301
      %v3371 = vunpack.c.l.b16 %v3302
      %v3372 = vunpack.c.l.b16 %v3303
      %v3373 = vunpack.c.l.b16 %v3304
      %v3374 = vunpack.c.l.b16 %v3305
      %v3375 = vunpack.c.l.b16 %v3306
      %v3376 = vunpack.c.l.b16 %v3307
      %v3377 = vunpack.c.l.b16 %v3308
      %v3378 = vunpack.c.l.b16 %v3309
      %v3379 = vpack.c.b16 %v3348, %v3347
      %v3380 = vpack.c.b16 %v3350, %v3349
      %v3381 = vpack.c.b16 %v3352, %v3351
      %v3382 = vpack.c.b16 %v3354, %v3353
      %v3383 = vpack.c.b16 %v3356, %v3355
      %v3384 = vpack.c.b16 %v3358, %v3357
      %v3385 = vpack.c.b16 %v3360, %v3359
      %v3386 = vpack.c.b16 %v3362, %v3361
      %v3387 = vpack.c.b16 %v3364, %v3363
      %v3388 = vpack.c.b16 %v3366, %v3365
      %v3389 = vpack.c.b16 %v3368, %v3367
      %v3390 = vpack.c.b16 %v3370, %v3369
      %v3391 = vpack.c.b16 %v3372, %v3371
      %v3392 = vpack.c.b16 %v3374, %v3373
      %v3393 = vpack.c.b16 %v3376, %v3375
      %v3394 = vpack.c.b16 %v3378, %v3377
      %v3399 = vunpack.c.l.b16 %v3311
      %v3400 = vunpack.c.l.b16 %v3312
      %v3401 = vunpack.c.l.b16 %v3313
      %v3402 = vunpack.c.l.b16 %v3314
      %v3403 = vpack.c.b16 %v3400, %v3399
      %v3404 = vpack.c.b16 %v3402, %v3401
      %v3408 = vsel %vm706, %v3379, 0
      %v3411 = vsel %vm706, %v3380, 0
      %v3414 = vsel %vm706, %v3381, 0
      %v3417 = vsel %vm706, %v3382, 0
      %v3420 = vsel %vm706, %v3383, 0
      %v3423 = vsel %vm706, %v3384, 0
      %v3426 = vsel %vm706, %v3385, 0
      %v3429 = vsel %vm706, %v3386, 0
      %v3432 = vsel %vm706, %v3387, 0
      %v3435 = vsel %vm706, %v3388, 0
      %v3438 = vsel %vm706, %v3389, 0
      %v3441 = vsel %vm706, %v3390, 0
      %v3444 = vsel %vm706, %v3391, 0
      %v3447 = vsel %vm706, %v3392, 0
      %v3450 = vsel %vm706, %v3393, 0
      %v3453 = vsel %vm706, %v3394, 0
      %3455 = vmatprep.subr.bf16.mxu0 0
      %3456 = vmatpush1.bf16.msra.mxu0 %v3403
      %3457 = vmatprep.subr.bf16.mxu0 0
      %3458 = vmatpush1.bf16.msra.mxu0 %v3404
      %3459 = vmatprep.subr.bf16.mxu0 0
      %3460 = vmatpush1.bf16.msra.mxu0 0
      %3461 = vmatprep.subr.bf16.mxu0 0
      %3462 = vmatpush1.bf16.msra.mxu0 0
      %3463 = vmatprep.subr.bf16.mxu0 0
      %3464 = vmatpush1.bf16.msra.mxu0 0
      %3465 = vmatprep.subr.bf16.mxu0 0
      %3466 = vmatpush1.bf16.msra.mxu0 0
      %3467 = vmatprep.subr.bf16.mxu0 0
      %3468 = vmatpush1.bf16.msra.mxu0 0
      %3469 = vmatprep.subr.bf16.mxu0 0
      %3470 = vmatpush1.bf16.msra.mxu0 0
      %3471 = vmatprep.subr.bf16.mxu0 0
      %3472 = vmatpush1.bf16.msra.mxu0 0
      %3473 = vmatprep.subr.bf16.mxu0 0
      %3474 = vmatpush1.bf16.msra.mxu0 0
      %3475 = vmatprep.subr.bf16.mxu0 0
      %3476 = vmatpush1.bf16.msra.mxu0 0
      %3477 = vmatprep.subr.bf16.mxu0 0
      %3478 = vmatpush1.bf16.msra.mxu0 0
      %3479 = vmatprep.subr.bf16.mxu0 0
      %3480 = vmatpush1.bf16.msra.mxu0 0
      %3481 = vmatprep.subr.bf16.mxu0 0
      %3482 = vmatpush1.bf16.msra.mxu0 0
      %3483 = vmatprep.subr.bf16.mxu0 0
      %3484 = vmatpush1.bf16.msra.mxu0 0
      %3485 = vmatprep.subr.bf16.mxu0 0
      %3486 = vmatpush1.bf16.msra.mxu0 0
      %3487 = vmatprep.mubr.bf16.mxu0 0
      %3488 = vmatmul.mubr.bf16.gmra.mrb[0].mxu0 %v3408
      %v3489 = vpop.f32.mrb[0].mxu0
      %v3490 = vadd.f32 0.0, %v3489
      %v3491 = vpop.f32.mrb[0].mxu0
      %v3492 = vpop.f32.mrb[0].mxu0
      %v3493 = vadd.f32 0.0, %v3492
      %v3494 = vpop.f32.mrb[0].mxu0
      %3495 = vmatprep.mubr.bf16.mxu0 0
      %3496 = vmatmul.mubr.bf16.gmra.mrb[0].mxu0 %v3411
      %v3497 = vpop.f32.mrb[0].mxu0
      %v3498 = vadd.f32 0.0, %v3497
      %v3499 = vpop.f32.mrb[0].mxu0
      %v3500 = vpop.f32.mrb[0].mxu0
      %v3501 = vadd.f32 0.0, %v3500
      %v3502 = vpop.f32.mrb[0].mxu0
      %3503 = vmatprep.mubr.bf16.mxu0 0
      %3504 = vmatmul.mubr.bf16.gmra.mrb[0].mxu0 %v3414
      %v3505 = vpop.f32.mrb[0].mxu0
      %v3506 = vadd.f32 0.0, %v3505
      %v3507 = vpop.f32.mrb[0].mxu0
      %v3508 = vpop.f32.mrb[0].mxu0
      %v3509 = vadd.f32 0.0, %v3508
      %v3510 = vpop.f32.mrb[0].mxu0
      %3511 = vmatprep.mubr.bf16.mxu0 0
      %3512 = vmatmul.mubr.bf16.gmra.mrb[0].mxu0 %v3417
      %v3513 = vpop.f32.mrb[0].mxu0
      %v3514 = vadd.f32 0.0, %v3513
      %v3515 = vpop.f32.mrb[0].mxu0
      %v3516 = vpop.f32.mrb[0].mxu0
      %v3517 = vadd.f32 0.0, %v3516
      %v3518 = vpop.f32.mrb[0].mxu0
      %3519 = vmatprep.mubr.bf16.mxu0 0
      %3520 = vmatmul.mubr.bf16.gmra.mrb[0].mxu0 %v3420
      %v3521 = vpop.f32.mrb[0].mxu0
      %v3522 = vadd.f32 0.0, %v3521
      %v3523 = vpop.f32.mrb[0].mxu0
      %v3524 = vpop.f32.mrb[0].mxu0
      %v3525 = vadd.f32 0.0, %v3524
      %v3526 = vpop.f32.mrb[0].mxu0
      %3527 = vmatprep.mubr.bf16.mxu0 0
      %3528 = vmatmul.mubr.bf16.gmra.mrb[0].mxu0 %v3423
      %v3529 = vpop.f32.mrb[0].mxu0
      %v3530 = vadd.f32 0.0, %v3529
      %v3531 = vpop.f32.mrb[0].mxu0
      %v3532 = vpop.f32.mrb[0].mxu0
      %v3533 = vadd.f32 0.0, %v3532
      %v3534 = vpop.f32.mrb[0].mxu0
      %3535 = vmatprep.mubr.bf16.mxu0 0
      %3536 = vmatmul.mubr.bf16.gmra.mrb[0].mxu0 %v3426
      %v3537 = vpop.f32.mrb[0].mxu0
      %v3538 = vadd.f32 0.0, %v3537
      %v3539 = vpop.f32.mrb[0].mxu0
      %v3540 = vpop.f32.mrb[0].mxu0
      %v3541 = vadd.f32 0.0, %v3540
      %v3542 = vpop.f32.mrb[0].mxu0
      %3543 = vmatprep.mubr.bf16.mxu0 0
      %3544 = vmatmul.mubr.bf16.gmra.mrb[0].mxu0 %v3429
      %v3545 = vpop.f32.mrb[0].mxu0
      %v3546 = vadd.f32 0.0, %v3545
      %v3547 = vpop.f32.mrb[0].mxu0
      %v3548 = vpop.f32.mrb[0].mxu0
      %v3549 = vadd.f32 0.0, %v3548
      %v3550 = vpop.f32.mrb[0].mxu0
      %3551 = vmatprep.mubr.bf16.mxu0 0
      %3552 = vmatmul.mubr.bf16.gmra.mrb[0].mxu0 %v3432
      %v3553 = vpop.f32.mrb[0].mxu0
      %v3554 = vadd.f32 0.0, %v3553
      %v3555 = vpop.f32.mrb[0].mxu0
      %v3556 = vpop.f32.mrb[0].mxu0
      %v3557 = vadd.f32 0.0, %v3556
      %v3558 = vpop.f32.mrb[0].mxu0
      %3559 = vmatprep.mubr.bf16.mxu0 0
      %3560 = vmatmul.mubr.bf16.gmra.mrb[0].mxu0 %v3435
      %v3561 = vpop.f32.mrb[0].mxu0
      %v3562 = vadd.f32 0.0, %v3561
      %v3563 = vpop.f32.mrb[0].mxu0
      %v3564 = vpop.f32.mrb[0].mxu0
      %v3565 = vadd.f32 0.0, %v3564
      %v3566 = vpop.f32.mrb[0].mxu0
      %3567 = vmatprep.mubr.bf16.mxu0 0
      %3568 = vmatmul.mubr.bf16.gmra.mrb[0].mxu0 %v3438
      %v3569 = vpop.f32.mrb[0].mxu0
      %v3570 = vadd.f32 0.0, %v3569
      %v3571 = vpop.f32.mrb[0].mxu0
      %v3572 = vpop.f32.mrb[0].mxu0
      %v3573 = vadd.f32 0.0, %v3572
      %v3574 = vpop.f32.mrb[0].mxu0
      %3575 = vmatprep.mubr.bf16.mxu0 0
      %3576 = vmatmul.mubr.bf16.gmra.mrb[0].mxu0 %v3441
      %v3577 = vpop.f32.mrb[0].mxu0
      %v3578 = vadd.f32 0.0, %v3577
      %v3579 = vpop.f32.mrb[0].mxu0
      %v3580 = vpop.f32.mrb[0].mxu0
      %v3581 = vadd.f32 0.0, %v3580
      %v3582 = vpop.f32.mrb[0].mxu0
      %3583 = vmatprep.mubr.bf16.mxu0 0
      %3584 = vmatmul.mubr.bf16.gmra.mrb[0].mxu0 %v3444
      %v3585 = vpop.f32.mrb[0].mxu0
      %v3586 = vadd.f32 0.0, %v3585
      %v3587 = vpop.f32.mrb[0].mxu0
      %v3588 = vpop.f32.mrb[0].mxu0
      %v3589 = vadd.f32 0.0, %v3588
      %v3590 = vpop.f32.mrb[0].mxu0
      %3591 = vmatprep.mubr.bf16.mxu0 0
      %3592 = vmatmul.mubr.bf16.gmra.mrb[0].mxu0 %v3447
      %v3593 = vpop.f32.mrb[0].mxu0
      %v3594 = vadd.f32 0.0, %v3593
      %v3595 = vpop.f32.mrb[0].mxu0
      %v3596 = vpop.f32.mrb[0].mxu0
      %v3597 = vadd.f32 0.0, %v3596
      %v3598 = vpop.f32.mrb[0].mxu0
      %3599 = vmatprep.mubr.bf16.mxu0 0
      %3600 = vmatmul.mubr.bf16.gmra.mrb[0].mxu0 %v3450
      %v3601 = vpop.f32.mrb[0].mxu0
      %v3602 = vadd.f32 0.0, %v3601
      %v3603 = vpop.f32.mrb[0].mxu0
      %v3604 = vpop.f32.mrb[0].mxu0
      %v3605 = vadd.f32 0.0, %v3604
      %v3606 = vpop.f32.mrb[0].mxu0
      %3607 = vmatprep.mubr.bf16.mxu0 0
      %3608 = vmatmul.mubr.bf16.gmra.mrb[0].mxu0 %v3453
      %v3609 = vpop.f32.mrb[0].mxu0
      %v3610 = vadd.f32 0.0, %v3609
      %v3611 = vpop.f32.mrb[0].mxu0
      %v3612 = vpop.f32.mrb[0].mxu0
      %v3613 = vadd.f32 0.0, %v3612
      %v3614 = vpop.f32.mrb[0].mxu0
      %3615 = vdwg.mxu0
      %v3616 = vadd.f32 %v3245, %v3490
      %v3617 = vadd.f32 %v3246, %v3493
      %v3618 = vadd.f32 %v3247, %v3498
      %v3619 = vadd.f32 %v3248, %v3501
      %v3620 = vadd.f32 %v3249, %v3506
      %v3621 = vadd.f32 %v3250, %v3509
      %v3622 = vadd.f32 %v3251, %v3514
      %v3623 = vadd.f32 %v3252, %v3517
      %v3624 = vadd.f32 %v3253, %v3522
      %v3625 = vadd.f32 %v3254, %v3525
      %v3626 = vadd.f32 %v3255, %v3530
      %v3627 = vadd.f32 %v3256, %v3533
      %v3628 = vadd.f32 %v3257, %v3538
      %v3629 = vadd.f32 %v3258, %v3541
      %v3630 = vadd.f32 %v3259, %v3546
      %v3631 = vadd.f32 %v3260, %v3549
      %v3632 = vadd.f32 %v3261, %v3554
      %v3633 = vadd.f32 %v3262, %v3557
      %v3634 = vadd.f32 %v3263, %v3562
      %v3635 = vadd.f32 %v3264, %v3565
      %v3636 = vadd.f32 %v3265, %v3570
      %v3637 = vadd.f32 %v3266, %v3573
      %v3638 = vadd.f32 %v3267, %v3578
      %v3639 = vadd.f32 %v3268, %v3581
      %v3640 = vadd.f32 %v3269, %v3586
      %v3641 = vadd.f32 %v3270, %v3589
      %v3642 = vadd.f32 %v3271, %v3594
      %v3643 = vadd.f32 %v3272, %v3597
      %v3644 = vadd.f32 %v3273, %v3602
      %v3645 = vadd.f32 %v3274, %v3605
      %v3646 = vadd.f32 %v3275, %v3610
      %v3647 = vadd.f32 %v3276, %v3613
      %v3648 = vld [vmem:[%s3277] sm:$0xf]
      %v3649 = vld [vmem:[%s3277 + $0x4] sm:$0xf]
      %v3650 = vld [vmem:[%s3277 + $0x8] sm:$0x1]
      %v3651 = vld [vmem:[%s3277 + $0xc] sm:$0xf]
      %v3652 = vld [vmem:[%s3277 + $0x10] sm:$0xf]
      %v3653 = vld [vmem:[%s3277 + $0x14] sm:$0x1]
      %v3654 = vld [vmem:[%s3277 + $0x18] sm:$0xf]
      %v3655 = vld [vmem:[%s3277 + $0x1c] sm:$0xf]
      %v3656 = vld [vmem:[%s3277 + $0x20] sm:$0x1]
      %v3657 = vld [vmem:[%s3277 + $0x24] sm:$0xf]
      %v3658 = vld [vmem:[%s3277 + $0x28] sm:$0xf]
      %v3659 = vld [vmem:[%s3277 + $0x2c] sm:$0x1]
      %v3660 = vld [vmem:[%s3277 + $0x30] sm:$0xf]
      %v3661 = vld [vmem:[%s3277 + $0x34] sm:$0xf]
      %v3662 = vld [vmem:[%s3277 + $0x38] sm:$0x1]
      %v3663 = vld [vmem:[%s3277 + $0x3c] sm:$0xf]
      %v3664 = vld [vmem:[%s3277 + $0x40] sm:$0xf]
      %v3665 = vld [vmem:[%s3277 + $0x44] sm:$0x1]
      %v3666 = vld [vmem:[%s3277 + $0x48] sm:$0xf]
      %v3667 = vld [vmem:[%s3277 + $0x4c] sm:$0xf]
      %v3668 = vld [vmem:[%s3277 + $0x50] sm:$0x1]
      %v3669 = vld [vmem:[%s3277 + $0x54] sm:$0xf]
      %v3670 = vld [vmem:[%s3277 + $0x58] sm:$0xf]
      %v3671 = vld [vmem:[%s3277 + $0x5c] sm:$0x1]
      %v3672 = vld [vmem:[%s3277 + $0x60] sm:$0xf]
      %v3673 = vld [vmem:[%s3277 + $0x64] sm:$0xf]
      %v3674 = vld [vmem:[%s3277 + $0x68] sm:$0x1]
      %v3675 = vld [vmem:[%s3277 + $0x6c] sm:$0xf]
      %v3676 = vld [vmem:[%s3277 + $0x70] sm:$0xf]
      %v3677 = vld [vmem:[%s3277 + $0x74] sm:$0x1]
      %v3678 = vld [vmem:[%s3277 + $0x78] sm:$0xf]
      %v3679 = vld [vmem:[%s3277 + $0x7c] sm:$0xf]
      %v3680 = vld [vmem:[%s3277 + $0x80] sm:$0x1]
      %v3681 = vld [vmem:[%s3277 + $0x84] sm:$0xf]
      %v3682 = vld [vmem:[%s3277 + $0x88] sm:$0xf]
      %v3683 = vld [vmem:[%s3277 + $0x8c] sm:$0x1]
      %v3684 = vld [vmem:[%s3277 + $0x90] sm:$0xf]
      %v3685 = vld [vmem:[%s3277 + $0x94] sm:$0xf]
      %v3686 = vld [vmem:[%s3277 + $0x98] sm:$0x1]
      %v3687 = vld [vmem:[%s3277 + $0x9c] sm:$0xf]
      %v3688 = vld [vmem:[%s3277 + $0xa0] sm:$0xf]
      %v3689 = vld [vmem:[%s3277 + $0xa4] sm:$0x1]
      %v3690 = vld [vmem:[%s3277 + $0xa8] sm:$0xf]
      %v3691 = vld [vmem:[%s3277 + $0xac] sm:$0xf]
      %v3692 = vld [vmem:[%s3277 + $0xb0] sm:$0x1]
      %v3693 = vld [vmem:[%s3277 + $0xb4] sm:$0xf]
      %v3694 = vld [vmem:[%s3277 + $0xb8] sm:$0xf]
      %v3695 = vld [vmem:[%s3277 + $0xbc] sm:$0x1]
      %v3697 = vshrl.u32 %v3648, 16
      %v3699 = vrot.slane %v3697, 4
      %v3700 = vshll.u32 %v3648, 16
      %v3702 = vrot.slane %v3700, 5
      %v3703 = vor.u32 %v3699, %v3702
      %v3704 = vrot.slane %v3703, 4
      %v3706 = vshll.u32 %v3649, 16
      %v3708 = vrot.slane %v3706, 5
      %v3709 = vsel %vm256, %v3704, %v3708
      %v3710 = vshrl.u32 %v3649, 16
      %v3712 = vrot.slane %v3710, 4
      %v3713 = vor.u32 %v3712, %v3708
      %v3714 = vrot.slane %v3713, 4
      %v3716 = vshll.u32 %v3650, 16
      %v3718 = vrot.slane %v3716, 5
      %v3719 = vsel %vm256, %v3714, %v3718
      %v3721 = vshrl.u32 %v3651, 16
      %v3723 = vrot.slane %v3721, 4
      %v3724 = vshll.u32 %v3651, 16
      %v3726 = vrot.slane %v3724, 5
      %v3727 = vor.u32 %v3723, %v3726
      %v3728 = vrot.slane %v3727, 4
      %v3730 = vshll.u32 %v3652, 16
      %v3732 = vrot.slane %v3730, 5
      %v3733 = vsel %vm256, %v3728, %v3732
      %v3734 = vshrl.u32 %v3652, 16
      %v3736 = vrot.slane %v3734, 4
      %v3737 = vor.u32 %v3736, %v3732
      %v3738 = vrot.slane %v3737, 4
      %v3740 = vshll.u32 %v3653, 16
      %v3742 = vrot.slane %v3740, 5
      %v3743 = vsel %vm256, %v3738, %v3742
      %v3745 = vshrl.u32 %v3654, 16
      %v3747 = vrot.slane %v3745, 4
      %v3748 = vshll.u32 %v3654, 16
      %v3750 = vrot.slane %v3748, 5
      %v3751 = vor.u32 %v3747, %v3750
      %v3752 = vrot.slane %v3751, 4
      %v3754 = vshll.u32 %v3655, 16
      %v3756 = vrot.slane %v3754, 5
      %v3757 = vsel %vm256, %v3752, %v3756
      %v3758 = vshrl.u32 %v3655, 16
      %v3760 = vrot.slane %v3758, 4
      %v3761 = vor.u32 %v3760, %v3756
      %v3762 = vrot.slane %v3761, 4
      %v3764 = vshll.u32 %v3656, 16
      %v3766 = vrot.slane %v3764, 5
      %v3767 = vsel %vm256, %v3762, %v3766
      %v3769 = vshrl.u32 %v3657, 16
      %v3771 = vrot.slane %v3769, 4
      %v3772 = vshll.u32 %v3657, 16
      %v3774 = vrot.slane %v3772, 5
      %v3775 = vor.u32 %v3771, %v3774
      %v3776 = vrot.slane %v3775, 4
      %v3778 = vshll.u32 %v3658, 16
      %v3780 = vrot.slane %v3778, 5
      %v3781 = vsel %vm256, %v3776, %v3780
      %v3782 = vshrl.u32 %v3658, 16
      %v3784 = vrot.slane %v3782, 4
      %v3785 = vor.u32 %v3784, %v3780
      %v3786 = vrot.slane %v3785, 4
      %v3788 = vshll.u32 %v3659, 16
      %v3790 = vrot.slane %v3788, 5
      %v3791 = vsel %vm256, %v3786, %v3790
      %v3793 = vshrl.u32 %v3660, 16
      %v3795 = vrot.slane %v3793, 4
      %v3796 = vshll.u32 %v3660, 16
      %v3798 = vrot.slane %v3796, 5
      %v3799 = vor.u32 %v3795, %v3798
      %v3800 = vrot.slane %v3799, 4
      %v3802 = vshll.u32 %v3661, 16
      %v3804 = vrot.slane %v3802, 5
      %v3805 = vsel %vm256, %v3800, %v3804
      %v3806 = vshrl.u32 %v3661, 16
      %v3808 = vrot.slane %v3806, 4
      %v3809 = vor.u32 %v3808, %v3804
      %v3810 = vrot.slane %v3809, 4
      %v3812 = vshll.u32 %v3662, 16
      %v3814 = vrot.slane %v3812, 5
      %v3815 = vsel %vm256, %v3810, %v3814
      %v3817 = vshrl.u32 %v3663, 16
      %v3819 = vrot.slane %v3817, 4
      %v3820 = vshll.u32 %v3663, 16
      %v3822 = vrot.slane %v3820, 5
      %v3823 = vor.u32 %v3819, %v3822
      %v3824 = vrot.slane %v3823, 4
      %v3826 = vshll.u32 %v3664, 16
      %v3828 = vrot.slane %v3826, 5
      %v3829 = vsel %vm256, %v3824, %v3828
      %v3830 = vshrl.u32 %v3664, 16
      %v3832 = vrot.slane %v3830, 4
      %v3833 = vor.u32 %v3832, %v3828
      %v3834 = vrot.slane %v3833, 4
      %v3836 = vshll.u32 %v3665, 16
      %v3838 = vrot.slane %v3836, 5
      %v3839 = vsel %vm256, %v3834, %v3838
      %v3841 = vshrl.u32 %v3666, 16
      %v3843 = vrot.slane %v3841, 4
      %v3844 = vshll.u32 %v3666, 16
      %v3846 = vrot.slane %v3844, 5
      %v3847 = vor.u32 %v3843, %v3846
      %v3848 = vrot.slane %v3847, 4
      %v3850 = vshll.u32 %v3667, 16
      %v3852 = vrot.slane %v3850, 5
      %v3853 = vsel %vm256, %v3848, %v3852
      %v3854 = vshrl.u32 %v3667, 16
      %v3856 = vrot.slane %v3854, 4
      %v3857 = vor.u32 %v3856, %v3852
      %v3858 = vrot.slane %v3857, 4
      %v3860 = vshll.u32 %v3668, 16
      %v3862 = vrot.slane %v3860, 5
      %v3863 = vsel %vm256, %v3858, %v3862
      %v3865 = vshrl.u32 %v3669, 16
      %v3867 = vrot.slane %v3865, 4
      %v3868 = vshll.u32 %v3669, 16
      %v3870 = vrot.slane %v3868, 5
      %v3871 = vor.u32 %v3867, %v3870
      %v3872 = vrot.slane %v3871, 4
      %v3874 = vshll.u32 %v3670, 16
      %v3876 = vrot.slane %v3874, 5
      %v3877 = vsel %vm256, %v3872, %v3876
      %v3878 = vshrl.u32 %v3670, 16
      %v3880 = vrot.slane %v3878, 4
      %v3881 = vor.u32 %v3880, %v3876
      %v3882 = vrot.slane %v3881, 4
      %v3884 = vshll.u32 %v3671, 16
      %v3886 = vrot.slane %v3884, 5
      %v3887 = vsel %vm256, %v3882, %v3886
      %v3889 = vshrl.u32 %v3672, 16
      %v3891 = vrot.slane %v3889, 4
      %v3892 = vshll.u32 %v3672, 16
      %v3894 = vrot.slane %v3892, 5
      %v3895 = vor.u32 %v3891, %v3894
      %v3896 = vrot.slane %v3895, 4
      %v3898 = vshll.u32 %v3673, 16
      %v3900 = vrot.slane %v3898, 5
      %v3901 = vsel %vm256, %v3896, %v3900
      %v3902 = vshrl.u32 %v3673, 16
      %v3904 = vrot.slane %v3902, 4
      %v3905 = vor.u32 %v3904, %v3900
      %v3906 = vrot.slane %v3905, 4
      %v3908 = vshll.u32 %v3674, 16
      %v3910 = vrot.slane %v3908, 5
      %v3911 = vsel %vm256, %v3906, %v3910
      %v3913 = vshrl.u32 %v3675, 16
      %v3915 = vrot.slane %v3913, 4
      %v3916 = vshll.u32 %v3675, 16
      %v3918 = vrot.slane %v3916, 5
      %v3919 = vor.u32 %v3915, %v3918
      %v3920 = vrot.slane %v3919, 4
      %v3922 = vshll.u32 %v3676, 16
      %v3924 = vrot.slane %v3922, 5
      %v3925 = vsel %vm256, %v3920, %v3924
      %v3926 = vshrl.u32 %v3676, 16
      %v3928 = vrot.slane %v3926, 4
      %v3929 = vor.u32 %v3928, %v3924
      %v3930 = vrot.slane %v3929, 4
      %v3932 = vshll.u32 %v3677, 16
      %v3934 = vrot.slane %v3932, 5
      %v3935 = vsel %vm256, %v3930, %v3934
      %v3937 = vshrl.u32 %v3678, 16
      %v3939 = vrot.slane %v3937, 4
      %v3940 = vshll.u32 %v3678, 16
      %v3942 = vrot.slane %v3940, 5
      %v3943 = vor.u32 %v3939, %v3942
      %v3944 = vrot.slane %v3943, 4
      %v3946 = vshll.u32 %v3679, 16
      %v3948 = vrot.slane %v3946, 5
      %v3949 = vsel %vm256, %v3944, %v3948
      %v3950 = vshrl.u32 %v3679, 16
      %v3952 = vrot.slane %v3950, 4
      %v3953 = vor.u32 %v3952, %v3948
      %v3954 = vrot.slane %v3953, 4
      %v3956 = vshll.u32 %v3680, 16
      %v3958 = vrot.slane %v3956, 5
      %v3959 = vsel %vm256, %v3954, %v3958
      %v3961 = vshrl.u32 %v3681, 16
      %v3963 = vrot.slane %v3961, 4
      %v3964 = vshll.u32 %v3681, 16
      %v3966 = vrot.slane %v3964, 5
      %v3967 = vor.u32 %v3963, %v3966
      %v3968 = vrot.slane %v3967, 4
      %v3970 = vshll.u32 %v3682, 16
      %v3972 = vrot.slane %v3970, 5
      %v3973 = vsel %vm256, %v3968, %v3972
      %v3974 = vshrl.u32 %v3682, 16
      %v3976 = vrot.slane %v3974, 4
      %v3977 = vor.u32 %v3976, %v3972
      %v3978 = vrot.slane %v3977, 4
      %v3980 = vshll.u32 %v3683, 16
      %v3982 = vrot.slane %v3980, 5
      %v3983 = vsel %vm256, %v3978, %v3982
      %v3985 = vshrl.u32 %v3684, 16
      %v3987 = vrot.slane %v3985, 4
      %v3988 = vshll.u32 %v3684, 16
      %v3990 = vrot.slane %v3988, 5
      %v3991 = vor.u32 %v3987, %v3990
      %v3992 = vrot.slane %v3991, 4
      %v3994 = vshll.u32 %v3685, 16
      %v3996 = vrot.slane %v3994, 5
      %v3997 = vsel %vm256, %v3992, %v3996
      %v3998 = vshrl.u32 %v3685, 16
      %v4000 = vrot.slane %v3998, 4
      %v4001 = vor.u32 %v4000, %v3996
      %v4002 = vrot.slane %v4001, 4
      %v4004 = vshll.u32 %v3686, 16
      %v4006 = vrot.slane %v4004, 5
      %v4007 = vsel %vm256, %v4002, %v4006
      %v4009 = vshrl.u32 %v3687, 16
      %v4011 = vrot.slane %v4009, 4
      %v4012 = vshll.u32 %v3687, 16
      %v4014 = vrot.slane %v4012, 5
      %v4015 = vor.u32 %v4011, %v4014
      %v4016 = vrot.slane %v4015, 4
      %v4018 = vshll.u32 %v3688, 16
      %v4020 = vrot.slane %v4018, 5
      %v4021 = vsel %vm256, %v4016, %v4020
      %v4022 = vshrl.u32 %v3688, 16
      %v4024 = vrot.slane %v4022, 4
      %v4025 = vor.u32 %v4024, %v4020
      %v4026 = vrot.slane %v4025, 4
      %v4028 = vshll.u32 %v3689, 16
      %v4030 = vrot.slane %v4028, 5
      %v4031 = vsel %vm256, %v4026, %v4030
      %v4033 = vshrl.u32 %v3690, 16
      %v4035 = vrot.slane %v4033, 4
      %v4036 = vshll.u32 %v3690, 16
      %v4038 = vrot.slane %v4036, 5
      %v4039 = vor.u32 %v4035, %v4038
      %v4040 = vrot.slane %v4039, 4
      %v4042 = vshll.u32 %v3691, 16
      %v4044 = vrot.slane %v4042, 5
      %v4045 = vsel %vm256, %v4040, %v4044
      %v4046 = vshrl.u32 %v3691, 16
      %v4048 = vrot.slane %v4046, 4
      %v4049 = vor.u32 %v4048, %v4044
      %v4050 = vrot.slane %v4049, 4
      %v4052 = vshll.u32 %v3692, 16
      %v4054 = vrot.slane %v4052, 5
      %v4055 = vsel %vm256, %v4050, %v4054
      %v4057 = vshrl.u32 %v3693, 16
      %v4059 = vrot.slane %v4057, 4
      %v4060 = vshll.u32 %v3693, 16
      %v4062 = vrot.slane %v4060, 5
      %v4063 = vor.u32 %v4059, %v4062
      %v4064 = vrot.slane %v4063, 4
      %v4066 = vshll.u32 %v3694, 16
      %v4068 = vrot.slane %v4066, 5
      %v4069 = vsel %vm256, %v4064, %v4068
      %v4070 = vshrl.u32 %v3694, 16
      %v4072 = vrot.slane %v4070, 4
      %v4073 = vor.u32 %v4072, %v4068
      %v4074 = vrot.slane %v4073, 4
      %v4076 = vshll.u32 %v3695, 16
      %v4078 = vrot.slane %v4076, 5
      %v4079 = vsel %vm256, %v4074, %v4078
      %s4080 = scalar_lea.vmem %s1, 112
      %v4081 = vld [vmem:[%s4080] sm:$0xf]
      %v4082 = vld [vmem:[%s4080 + $0x4] sm:$0xf]
      %v4083 = vld [vmem:[%s4080 + $0x8] sm:$0xf]
      %v4084 = vld [vmem:[%s4080 + $0xc] sm:$0xf]
      %v4085 = vunpack.c.l.b16 %v3709
      %v4086 = vunpack.c.l.b16 %v3719
      %v4087 = vunpack.c.l.b16 %v3733
      %v4088 = vunpack.c.l.b16 %v3743
      %v4089 = vunpack.c.l.b16 %v3757
      %v4090 = vunpack.c.l.b16 %v3767
      %v4091 = vunpack.c.l.b16 %v3781
      %v4092 = vunpack.c.l.b16 %v3791
      %v4093 = vunpack.c.l.b16 %v3805
      %v4094 = vunpack.c.l.b16 %v3815
      %v4095 = vunpack.c.l.b16 %v3829
      %v4096 = vunpack.c.l.b16 %v3839
      %v4097 = vunpack.c.l.b16 %v3853
      %v4098 = vunpack.c.l.b16 %v3863
      %v4099 = vunpack.c.l.b16 %v3877
      %v4100 = vunpack.c.l.b16 %v3887
      %v4101 = vunpack.c.l.b16 %v3901
      %v4102 = vunpack.c.l.b16 %v3911
      %v4103 = vunpack.c.l.b16 %v3925
      %v4104 = vunpack.c.l.b16 %v3935
      %v4105 = vunpack.c.l.b16 %v3949
      %v4106 = vunpack.c.l.b16 %v3959
      %v4107 = vunpack.c.l.b16 %v3973
      %v4108 = vunpack.c.l.b16 %v3983
      %v4109 = vunpack.c.l.b16 %v3997
      %v4110 = vunpack.c.l.b16 %v4007
      %v4111 = vunpack.c.l.b16 %v4021
      %v4112 = vunpack.c.l.b16 %v4031
      %v4113 = vunpack.c.l.b16 %v4045
      %v4114 = vunpack.c.l.b16 %v4055
      %v4115 = vunpack.c.l.b16 %v4069
      %v4116 = vunpack.c.l.b16 %v4079
      %v4117 = vpack.c.b16 %v4086, %v4085
      %v4118 = vpack.c.b16 %v4088, %v4087
      %v4119 = vpack.c.b16 %v4090, %v4089
      %v4120 = vpack.c.b16 %v4092, %v4091
      %v4121 = vpack.c.b16 %v4094, %v4093
      %v4122 = vpack.c.b16 %v4096, %v4095
      %v4123 = vpack.c.b16 %v4098, %v4097
      %v4124 = vpack.c.b16 %v4100, %v4099
      %v4125 = vpack.c.b16 %v4102, %v4101
      %v4126 = vpack.c.b16 %v4104, %v4103
      %v4127 = vpack.c.b16 %v4106, %v4105
      %v4128 = vpack.c.b16 %v4108, %v4107
      %v4129 = vpack.c.b16 %v4110, %v4109
      %v4130 = vpack.c.b16 %v4112, %v4111
      %v4131 = vpack.c.b16 %v4114, %v4113
      %v4132 = vpack.c.b16 %v4116, %v4115
      %v4137 = vunpack.c.l.b16 %v4081
      %v4138 = vunpack.c.l.b16 %v4082
      %v4139 = vunpack.c.l.b16 %v4083
      %v4140 = vunpack.c.l.b16 %v4084
      %v4141 = vpack.c.b16 %v4138, %v4137
      %v4142 = vpack.c.b16 %v4140, %v4139
      %v4146 = vsel %vm706, %v4117, 0
      %v4149 = vsel %vm706, %v4118, 0
      %v4152 = vsel %vm706, %v4119, 0
      %v4155 = vsel %vm706, %v4120, 0
      %v4158 = vsel %vm706, %v4121, 0
      %v4161 = vsel %vm706, %v4122, 0
      %v4164 = vsel %vm706, %v4123, 0
      %v4167 = vsel %vm706, %v4124, 0
      %v4170 = vsel %vm706, %v4125, 0
      %v4173 = vsel %vm706, %v4126, 0
      %v4176 = vsel %vm706, %v4127, 0
      %v4179 = vsel %vm706, %v4128, 0
      %v4182 = vsel %vm706, %v4129, 0
      %v4185 = vsel %vm706, %v4130, 0
      %v4188 = vsel %vm706, %v4131, 0
      %v4191 = vsel %vm706, %v4132, 0
      %4193 = vmatprep.subr.bf16.mxu0 0
      %4194 = vmatpush1.bf16.msra.mxu0 %v4141
      %4195 = vmatprep.subr.bf16.mxu0 0
      %4196 = vmatpush1.bf16.msra.mxu0 %v4142
      %4197 = vmatprep.subr.bf16.mxu0 0
      %4198 = vmatpush1.bf16.msra.mxu0 0
      %4199 = vmatprep.subr.bf16.mxu0 0
      %4200 = vmatpush1.bf16.msra.mxu0 0
      %4201 = vmatprep.subr.bf16.mxu0 0
      %4202 = vmatpush1.bf16.msra.mxu0 0
      %4203 = vmatprep.subr.bf16.mxu0 0
      %4204 = vmatpush1.bf16.msra.mxu0 0
      %4205 = vmatprep.subr.bf16.mxu0 0
      %4206 = vmatpush1.bf16.msra.mxu0 0
      %4207 = vmatprep.subr.bf16.mxu0 0
      %4208 = vmatpush1.bf16.msra.mxu0 0
      %4209 = vmatprep.subr.bf16.mxu0 0
      %4210 = vmatpush1.bf16.msra.mxu0 0
      %4211 = vmatprep.subr.bf16.mxu0 0
      %4212 = vmatpush1.bf16.msra.mxu0 0
      %4213 = vmatprep.subr.bf16.mxu0 0
      %4214 = vmatpush1.bf16.msra.mxu0 0
      %4215 = vmatprep.subr.bf16.mxu0 0
      %4216 = vmatpush1.bf16.msra.mxu0 0
      %4217 = vmatprep.subr.bf16.mxu0 0
      %4218 = vmatpush1.bf16.msra.mxu0 0
      %4219 = vmatprep.subr.bf16.mxu0 0
      %4220 = vmatpush1.bf16.msra.mxu0 0
      %4221 = vmatprep.subr.bf16.mxu0 0
      %4222 = vmatpush1.bf16.msra.mxu0 0
      %4223 = vmatprep.subr.bf16.mxu0 0
      %4224 = vmatpush1.bf16.msra.mxu0 0
      %4225 = vmatprep.mubr.bf16.mxu0 0
      %4226 = vmatmul.mubr.bf16.gmra.mrb[0].mxu0 %v4146
      %v4227 = vpop.f32.mrb[0].mxu0
      %v4228 = vadd.f32 0.0, %v4227
      %v4229 = vpop.f32.mrb[0].mxu0
      %v4230 = vpop.f32.mrb[0].mxu0
      %v4231 = vadd.f32 0.0, %v4230
      %v4232 = vpop.f32.mrb[0].mxu0
      %4233 = vmatprep.mubr.bf16.mxu0 0
      %4234 = vmatmul.mubr.bf16.gmra.mrb[0].mxu0 %v4149
      %v4235 = vpop.f32.mrb[0].mxu0
      %v4236 = vadd.f32 0.0, %v4235
      %v4237 = vpop.f32.mrb[0].mxu0
      %v4238 = vpop.f32.mrb[0].mxu0
      %v4239 = vadd.f32 0.0, %v4238
      %v4240 = vpop.f32.mrb[0].mxu0
      %4241 = vmatprep.mubr.bf16.mxu0 0
      %4242 = vmatmul.mubr.bf16.gmra.mrb[0].mxu0 %v4152
      %v4243 = vpop.f32.mrb[0].mxu0
      %v4244 = vadd.f32 0.0, %v4243
      %v4245 = vpop.f32.mrb[0].mxu0
      %v4246 = vpop.f32.mrb[0].mxu0
      %v4247 = vadd.f32 0.0, %v4246
      %v4248 = vpop.f32.mrb[0].mxu0
      %4249 = vmatprep.mubr.bf16.mxu0 0
      %4250 = vmatmul.mubr.bf16.gmra.mrb[0].mxu0 %v4155
      %v4251 = vpop.f32.mrb[0].mxu0
      %v4252 = vadd.f32 0.0, %v4251
      %v4253 = vpop.f32.mrb[0].mxu0
      %v4254 = vpop.f32.mrb[0].mxu0
      %v4255 = vadd.f32 0.0, %v4254
      %v4256 = vpop.f32.mrb[0].mxu0
      %4257 = vmatprep.mubr.bf16.mxu0 0
      %4258 = vmatmul.mubr.bf16.gmra.mrb[0].mxu0 %v4158
      %v4259 = vpop.f32.mrb[0].mxu0
      %v4260 = vadd.f32 0.0, %v4259
      %v4261 = vpop.f32.mrb[0].mxu0
      %v4262 = vpop.f32.mrb[0].mxu0
      %v4263 = vadd.f32 0.0, %v4262
      %v4264 = vpop.f32.mrb[0].mxu0
      %4265 = vmatprep.mubr.bf16.mxu0 0
      %4266 = vmatmul.mubr.bf16.gmra.mrb[0].mxu0 %v4161
      %v4267 = vpop.f32.mrb[0].mxu0
      %v4268 = vadd.f32 0.0, %v4267
      %v4269 = vpop.f32.mrb[0].mxu0
      %v4270 = vpop.f32.mrb[0].mxu0
      %v4271 = vadd.f32 0.0, %v4270
      %v4272 = vpop.f32.mrb[0].mxu0
      %4273 = vmatprep.mubr.bf16.mxu0 0
      %4274 = vmatmul.mubr.bf16.gmra.mrb[0].mxu0 %v4164
      %v4275 = vpop.f32.mrb[0].mxu0
      %v4276 = vadd.f32 0.0, %v4275
      %v4277 = vpop.f32.mrb[0].mxu0
      %v4278 = vpop.f32.mrb[0].mxu0
      %v4279 = vadd.f32 0.0, %v4278
      %v4280 = vpop.f32.mrb[0].mxu0
      %4281 = vmatprep.mubr.bf16.mxu0 0
      %4282 = vmatmul.mubr.bf16.gmra.mrb[0].mxu0 %v4167
      %v4283 = vpop.f32.mrb[0].mxu0
      %v4284 = vadd.f32 0.0, %v4283
      %v4285 = vpop.f32.mrb[0].mxu0
      %v4286 = vpop.f32.mrb[0].mxu0
      %v4287 = vadd.f32 0.0, %v4286
      %v4288 = vpop.f32.mrb[0].mxu0
      %4289 = vmatprep.mubr.bf16.mxu0 0
      %4290 = vmatmul.mubr.bf16.gmra.mrb[0].mxu0 %v4170
      %v4291 = vpop.f32.mrb[0].mxu0
      %v4292 = vadd.f32 0.0, %v4291
      %v4293 = vpop.f32.mrb[0].mxu0
      %v4294 = vpop.f32.mrb[0].mxu0
      %v4295 = vadd.f32 0.0, %v4294
      %v4296 = vpop.f32.mrb[0].mxu0
      %4297 = vmatprep.mubr.bf16.mxu0 0
      %4298 = vmatmul.mubr.bf16.gmra.mrb[0].mxu0 %v4173
      %v4299 = vpop.f32.mrb[0].mxu0
      %v4300 = vadd.f32 0.0, %v4299
      %v4301 = vpop.f32.mrb[0].mxu0
      %v4302 = vpop.f32.mrb[0].mxu0
      %v4303 = vadd.f32 0.0, %v4302
      %v4304 = vpop.f32.mrb[0].mxu0
      %4305 = vmatprep.mubr.bf16.mxu0 0
      %4306 = vmatmul.mubr.bf16.gmra.mrb[0].mxu0 %v4176
      %v4307 = vpop.f32.mrb[0].mxu0
      %v4308 = vadd.f32 0.0, %v4307
      %v4309 = vpop.f32.mrb[0].mxu0
      %v4310 = vpop.f32.mrb[0].mxu0
      %v4311 = vadd.f32 0.0, %v4310
      %v4312 = vpop.f32.mrb[0].mxu0
      %4313 = vmatprep.mubr.bf16.mxu0 0
      %4314 = vmatmul.mubr.bf16.gmra.mrb[0].mxu0 %v4179
      %v4315 = vpop.f32.mrb[0].mxu0
      %v4316 = vadd.f32 0.0, %v4315
      %v4317 = vpop.f32.mrb[0].mxu0
      %v4318 = vpop.f32.mrb[0].mxu0
      %v4319 = vadd.f32 0.0, %v4318
      %v4320 = vpop.f32.mrb[0].mxu0
      %4321 = vmatprep.mubr.bf16.mxu0 0
      %4322 = vmatmul.mubr.bf16.gmra.mrb[0].mxu0 %v4182
      %v4323 = vpop.f32.mrb[0].mxu0
      %v4324 = vadd.f32 0.0, %v4323
      %v4325 = vpop.f32.mrb[0].mxu0
      %v4326 = vpop.f32.mrb[0].mxu0
      %v4327 = vadd.f32 0.0, %v4326
      %v4328 = vpop.f32.mrb[0].mxu0
      %4329 = vmatprep.mubr.bf16.mxu0 0
      %4330 = vmatmul.mubr.bf16.gmra.mrb[0].mxu0 %v4185
      %v4331 = vpop.f32.mrb[0].mxu0
      %v4332 = vadd.f32 0.0, %v4331
      %v4333 = vpop.f32.mrb[0].mxu0
      %v4334 = vpop.f32.mrb[0].mxu0
      %v4335 = vadd.f32 0.0, %v4334
      %v4336 = vpop.f32.mrb[0].mxu0
      %4337 = vmatprep.mubr.bf16.mxu0 0
      %4338 = vmatmul.mubr.bf16.gmra.mrb[0].mxu0 %v4188
      %v4339 = vpop.f32.mrb[0].mxu0
      %v4340 = vadd.f32 0.0, %v4339
      %v4341 = vpop.f32.mrb[0].mxu0
      %v4342 = vpop.f32.mrb[0].mxu0
      %v4343 = vadd.f32 0.0, %v4342
      %v4344 = vpop.f32.mrb[0].mxu0
      %4345 = vmatprep.mubr.bf16.mxu0 0
      %4346 = vmatmul.mubr.bf16.gmra.mrb[0].mxu0 %v4191
      %v4347 = vpop.f32.mrb[0].mxu0
      %v4348 = vadd.f32 0.0, %v4347
      %v4349 = vpop.f32.mrb[0].mxu0
      %v4350 = vpop.f32.mrb[0].mxu0
      %v4351 = vadd.f32 0.0, %v4350
      %v4352 = vpop.f32.mrb[0].mxu0
      %4353 = vdwg.mxu0
      %v4354 = vadd.f32 %v3616, %v4228
      %v4355 = vadd.f32 %v3617, %v4231
      %v4356 = vadd.f32 %v3618, %v4236
      %v4357 = vadd.f32 %v3619, %v4239
      %v4358 = vadd.f32 %v3620, %v4244
      %v4359 = vadd.f32 %v3621, %v4247
      %v4360 = vadd.f32 %v3622, %v4252
      %v4361 = vadd.f32 %v3623, %v4255
      %v4362 = vadd.f32 %v3624, %v4260
      %v4363 = vadd.f32 %v3625, %v4263
      %v4364 = vadd.f32 %v3626, %v4268
      %v4365 = vadd.f32 %v3627, %v4271
      %v4366 = vadd.f32 %v3628, %v4276
      %v4367 = vadd.f32 %v3629, %v4279
      %v4368 = vadd.f32 %v3630, %v4284
      %v4369 = vadd.f32 %v3631, %v4287
      %v4370 = vadd.f32 %v3632, %v4292
      %v4371 = vadd.f32 %v3633, %v4295
      %v4372 = vadd.f32 %v3634, %v4300
      %v4373 = vadd.f32 %v3635, %v4303
      %v4374 = vadd.f32 %v3636, %v4308
      %v4375 = vadd.f32 %v3637, %v4311
      %v4376 = vadd.f32 %v3638, %v4316
      %v4377 = vadd.f32 %v3639, %v4319
      %v4378 = vadd.f32 %v3640, %v4324
      %v4379 = vadd.f32 %v3641, %v4327
      %v4380 = vadd.f32 %v3642, %v4332
      %v4381 = vadd.f32 %v3643, %v4335
      %v4382 = vadd.f32 %v3644, %v4340
      %v4383 = vadd.f32 %v3645, %v4343
      %v4384 = vadd.f32 %v3646, %v4348
      %v4385 = vadd.f32 %v3647, %v4351
      %v4386 = vld [vmem:[%s3277] sm:$0xe]
      %v4387 = vld [vmem:[%s3277 + $0xc] sm:$0xe]
      %v4388 = vld [vmem:[%s3277 + $0x18] sm:$0xe]
      %v4389 = vld [vmem:[%s3277 + $0x24] sm:$0xe]
      %v4390 = vld [vmem:[%s3277 + $0x30] sm:$0xe]
      %v4391 = vld [vmem:[%s3277 + $0x3c] sm:$0xe]
      %v4392 = vld [vmem:[%s3277 + $0x48] sm:$0xe]
      %v4393 = vld [vmem:[%s3277 + $0x54] sm:$0xe]
      %v4394 = vld [vmem:[%s3277 + $0x60] sm:$0xe]
      %v4395 = vld [vmem:[%s3277 + $0x6c] sm:$0xe]
      %v4396 = vld [vmem:[%s3277 + $0x78] sm:$0xe]
      %v4397 = vld [vmem:[%s3277 + $0x84] sm:$0xe]
      %v4398 = vld [vmem:[%s3277 + $0x90] sm:$0xe]
      %v4399 = vld [vmem:[%s3277 + $0x9c] sm:$0xe]
      %v4400 = vld [vmem:[%s3277 + $0xa8] sm:$0xe]
      %v4401 = vld [vmem:[%s3277 + $0xb4] sm:$0xe]
      %v4450 = vrot.slane %v4386, 5
      %v4451 = vrot.slane %v4450, 4
      %v4452 = vrot.slane %v3649, 5
      %v4453 = vsel %vm1267, %v4451, %v4452
      %v4454 = vrot.slane %v4452, 4
      %v4455 = vrot.slane %v3650, 5
      %v4456 = vsel %vm1267, %v4454, %v4455
      %v4457 = vrot.slane %v4387, 5
      %v4458 = vrot.slane %v4457, 4
      %v4459 = vrot.slane %v3652, 5
      %v4460 = vsel %vm1267, %v4458, %v4459
      %v4461 = vrot.slane %v4459, 4
      %v4462 = vrot.slane %v3653, 5
      %v4463 = vsel %vm1267, %v4461, %v4462
      %v4464 = vrot.slane %v4388, 5
      %v4465 = vrot.slane %v4464, 4
      %v4466 = vrot.slane %v3655, 5
      %v4467 = vsel %vm1267, %v4465, %v4466
      %v4468 = vrot.slane %v4466, 4
      %v4469 = vrot.slane %v3656, 5
      %v4470 = vsel %vm1267, %v4468, %v4469
      %v4471 = vrot.slane %v4389, 5
      %v4472 = vrot.slane %v4471, 4
      %v4473 = vrot.slane %v3658, 5
      %v4474 = vsel %vm1267, %v4472, %v4473
      %v4475 = vrot.slane %v4473, 4
      %v4476 = vrot.slane %v3659, 5
      %v4477 = vsel %vm1267, %v4475, %v4476
      %v4478 = vrot.slane %v4390, 5
      %v4479 = vrot.slane %v4478, 4
      %v4480 = vrot.slane %v3661, 5
      %v4481 = vsel %vm1267, %v4479, %v4480
      %v4482 = vrot.slane %v4480, 4
      %v4483 = vrot.slane %v3662, 5
      %v4484 = vsel %vm1267, %v4482, %v4483
      %v4485 = vrot.slane %v4391, 5
      %v4486 = vrot.slane %v4485, 4
      %v4487 = vrot.slane %v3664, 5
      %v4488 = vsel %vm1267, %v4486, %v4487
      %v4489 = vrot.slane %v4487, 4
      %v4490 = vrot.slane %v3665, 5
      %v4491 = vsel %vm1267, %v4489, %v4490
      %v4492 = vrot.slane %v4392, 5
      %v4493 = vrot.slane %v4492, 4
      %v4494 = vrot.slane %v3667, 5
      %v4495 = vsel %vm1267, %v4493, %v4494
      %v4496 = vrot.slane %v4494, 4
      %v4497 = vrot.slane %v3668, 5
      %v4498 = vsel %vm1267, %v4496, %v4497
      %v4499 = vrot.slane %v4393, 5
      %v4500 = vrot.slane %v4499, 4
      %v4501 = vrot.slane %v3670, 5
      %v4502 = vsel %vm1267, %v4500, %v4501
      %v4503 = vrot.slane %v4501, 4
      %v4504 = vrot.slane %v3671, 5
      %v4505 = vsel %vm1267, %v4503, %v4504
      %v4506 = vrot.slane %v4394, 5
      %v4507 = vrot.slane %v4506, 4
      %v4508 = vrot.slane %v3673, 5
      %v4509 = vsel %vm1267, %v4507, %v4508
      %v4510 = vrot.slane %v4508, 4
      %v4511 = vrot.slane %v3674, 5
      %v4512 = vsel %vm1267, %v4510, %v4511
      %v4513 = vrot.slane %v4395, 5
      %v4514 = vrot.slane %v4513, 4
      %v4515 = vrot.slane %v3676, 5
      %v4516 = vsel %vm1267, %v4514, %v4515
      %v4517 = vrot.slane %v4515, 4
      %v4518 = vrot.slane %v3677, 5
      %v4519 = vsel %vm1267, %v4517, %v4518
      %v4520 = vrot.slane %v4396, 5
      %v4521 = vrot.slane %v4520, 4
      %v4522 = vrot.slane %v3679, 5
      %v4523 = vsel %vm1267, %v4521, %v4522
      %v4524 = vrot.slane %v4522, 4
      %v4525 = vrot.slane %v3680, 5
      %v4526 = vsel %vm1267, %v4524, %v4525
      %v4527 = vrot.slane %v4397, 5
      %v4528 = vrot.slane %v4527, 4
      %v4529 = vrot.slane %v3682, 5
      %v4530 = vsel %vm1267, %v4528, %v4529
      %v4531 = vrot.slane %v4529, 4
      %v4532 = vrot.slane %v3683, 5
      %v4533 = vsel %vm1267, %v4531, %v4532
      %v4534 = vrot.slane %v4398, 5
      %v4535 = vrot.slane %v4534, 4
      %v4536 = vrot.slane %v3685, 5
      %v4537 = vsel %vm1267, %v4535, %v4536
      %v4538 = vrot.slane %v4536, 4
      %v4539 = vrot.slane %v3686, 5
      %v4540 = vsel %vm1267, %v4538, %v4539
      %v4541 = vrot.slane %v4399, 5
      %v4542 = vrot.slane %v4541, 4
      %v4543 = vrot.slane %v3688, 5
      %v4544 = vsel %vm1267, %v4542, %v4543
      %v4545 = vrot.slane %v4543, 4
      %v4546 = vrot.slane %v3689, 5
      %v4547 = vsel %vm1267, %v4545, %v4546
      %v4548 = vrot.slane %v4400, 5
      %v4549 = vrot.slane %v4548, 4
      %v4550 = vrot.slane %v3691, 5
      %v4551 = vsel %vm1267, %v4549, %v4550
      %v4552 = vrot.slane %v4550, 4
      %v4553 = vrot.slane %v3692, 5
      %v4554 = vsel %vm1267, %v4552, %v4553
      %v4555 = vrot.slane %v4401, 5
      %v4556 = vrot.slane %v4555, 4
      %v4557 = vrot.slane %v3694, 5
      %v4558 = vsel %vm1267, %v4556, %v4557
      %v4559 = vrot.slane %v4557, 4
      %v4560 = vrot.slane %v3695, 5
      %v4561 = vsel %vm1267, %v4559, %v4560
      %s4562 = scalar_lea.vmem %s1, 128
      %v4563 = vld [vmem:[%s4562] sm:$0xf]
      %v4564 = vld [vmem:[%s4562 + $0x4] sm:$0xf]
      %v4565 = vld [vmem:[%s4562 + $0x8] sm:$0xf]
      %v4566 = vld [vmem:[%s4562 + $0xc] sm:$0xf]
      %v4567 = vunpack.c.l.b16 %v4453
      %v4568 = vunpack.c.l.b16 %v4456
      %v4569 = vunpack.c.l.b16 %v4460
      %v4570 = vunpack.c.l.b16 %v4463
      %v4571 = vunpack.c.l.b16 %v4467
      %v4572 = vunpack.c.l.b16 %v4470
      %v4573 = vunpack.c.l.b16 %v4474
      %v4574 = vunpack.c.l.b16 %v4477
      %v4575 = vunpack.c.l.b16 %v4481
      %v4576 = vunpack.c.l.b16 %v4484
      %v4577 = vunpack.c.l.b16 %v4488
      %v4578 = vunpack.c.l.b16 %v4491
      %v4579 = vunpack.c.l.b16 %v4495
      %v4580 = vunpack.c.l.b16 %v4498
      %v4581 = vunpack.c.l.b16 %v4502
      %v4582 = vunpack.c.l.b16 %v4505
      %v4583 = vunpack.c.l.b16 %v4509
      %v4584 = vunpack.c.l.b16 %v4512
      %v4585 = vunpack.c.l.b16 %v4516
      %v4586 = vunpack.c.l.b16 %v4519
      %v4587 = vunpack.c.l.b16 %v4523
      %v4588 = vunpack.c.l.b16 %v4526
      %v4589 = vunpack.c.l.b16 %v4530
      %v4590 = vunpack.c.l.b16 %v4533
      %v4591 = vunpack.c.l.b16 %v4537
      %v4592 = vunpack.c.l.b16 %v4540
      %v4593 = vunpack.c.l.b16 %v4544
      %v4594 = vunpack.c.l.b16 %v4547
      %v4595 = vunpack.c.l.b16 %v4551
      %v4596 = vunpack.c.l.b16 %v4554
      %v4597 = vunpack.c.l.b16 %v4558
      %v4598 = vunpack.c.l.b16 %v4561
      %v4599 = vpack.c.b16 %v4568, %v4567
      %v4600 = vpack.c.b16 %v4570, %v4569
      %v4601 = vpack.c.b16 %v4572, %v4571
      %v4602 = vpack.c.b16 %v4574, %v4573
      %v4603 = vpack.c.b16 %v4576, %v4575
      %v4604 = vpack.c.b16 %v4578, %v4577
      %v4605 = vpack.c.b16 %v4580, %v4579
      %v4606 = vpack.c.b16 %v4582, %v4581
      %v4607 = vpack.c.b16 %v4584, %v4583
      %v4608 = vpack.c.b16 %v4586, %v4585
      %v4609 = vpack.c.b16 %v4588, %v4587
      %v4610 = vpack.c.b16 %v4590, %v4589
      %v4611 = vpack.c.b16 %v4592, %v4591
      %v4612 = vpack.c.b16 %v4594, %v4593
      %v4613 = vpack.c.b16 %v4596, %v4595
      %v4614 = vpack.c.b16 %v4598, %v4597
      %v4619 = vunpack.c.l.b16 %v4563
      %v4620 = vunpack.c.l.b16 %v4564
      %v4621 = vunpack.c.l.b16 %v4565
      %v4622 = vunpack.c.l.b16 %v4566
      %v4623 = vpack.c.b16 %v4620, %v4619
      %v4624 = vpack.c.b16 %v4622, %v4621
      %v4628 = vsel %vm706, %v4599, 0
      %v4631 = vsel %vm706, %v4600, 0
      %v4634 = vsel %vm706, %v4601, 0
      %v4637 = vsel %vm706, %v4602, 0
      %v4640 = vsel %vm706, %v4603, 0
      %v4643 = vsel %vm706, %v4604, 0
      %v4646 = vsel %vm706, %v4605, 0
      %v4649 = vsel %vm706, %v4606, 0
      %v4652 = vsel %vm706, %v4607, 0
      %v4655 = vsel %vm706, %v4608, 0
      %v4658 = vsel %vm706, %v4609, 0
      %v4661 = vsel %vm706, %v4610, 0
      %v4664 = vsel %vm706, %v4611, 0
      %v4667 = vsel %vm706, %v4612, 0
      %v4670 = vsel %vm706, %v4613, 0
      %v4673 = vsel %vm706, %v4614, 0
      %4675 = vmatprep.subr.bf16.mxu0 0
      %4676 = vmatpush1.bf16.msra.mxu0 %v4623
      %4677 = vmatprep.subr.bf16.mxu0 0
      %4678 = vmatpush1.bf16.msra.mxu0 %v4624
      %4679 = vmatprep.subr.bf16.mxu0 0
      %4680 = vmatpush1.bf16.msra.mxu0 0
      %4681 = vmatprep.subr.bf16.mxu0 0
      %4682 = vmatpush1.bf16.msra.mxu0 0
      %4683 = vmatprep.subr.bf16.mxu0 0
      %4684 = vmatpush1.bf16.msra.mxu0 0
      %4685 = vmatprep.subr.bf16.mxu0 0
      %4686 = vmatpush1.bf16.msra.mxu0 0
      %4687 = vmatprep.subr.bf16.mxu0 0
      %4688 = vmatpush1.bf16.msra.mxu0 0
      %4689 = vmatprep.subr.bf16.mxu0 0
      %4690 = vmatpush1.bf16.msra.mxu0 0
      %4691 = vmatprep.subr.bf16.mxu0 0
      %4692 = vmatpush1.bf16.msra.mxu0 0
      %4693 = vmatprep.subr.bf16.mxu0 0
      %4694 = vmatpush1.bf16.msra.mxu0 0
      %4695 = vmatprep.subr.bf16.mxu0 0
      %4696 = vmatpush1.bf16.msra.mxu0 0
      %4697 = vmatprep.subr.bf16.mxu0 0
      %4698 = vmatpush1.bf16.msra.mxu0 0
      %4699 = vmatprep.subr.bf16.mxu0 0
      %4700 = vmatpush1.bf16.msra.mxu0 0
      %4701 = vmatprep.subr.bf16.mxu0 0
      %4702 = vmatpush1.bf16.msra.mxu0 0
      %4703 = vmatprep.subr.bf16.mxu0 0
      %4704 = vmatpush1.bf16.msra.mxu0 0
      %4705 = vmatprep.subr.bf16.mxu0 0
      %4706 = vmatpush1.bf16.msra.mxu0 0
      %4707 = vmatprep.mubr.bf16.mxu0 0
      %4708 = vmatmul.mubr.bf16.gmra.mrb[0].mxu0 %v4628
      %v4709 = vpop.f32.mrb[0].mxu0
      %v4710 = vadd.f32 0.0, %v4709
      %v4711 = vpop.f32.mrb[0].mxu0
      %v4712 = vpop.f32.mrb[0].mxu0
      %v4713 = vadd.f32 0.0, %v4712
      %v4714 = vpop.f32.mrb[0].mxu0
      %4715 = vmatprep.mubr.bf16.mxu0 0
      %4716 = vmatmul.mubr.bf16.gmra.mrb[0].mxu0 %v4631
      %v4717 = vpop.f32.mrb[0].mxu0
      %v4718 = vadd.f32 0.0, %v4717
      %v4719 = vpop.f32.mrb[0].mxu0
      %v4720 = vpop.f32.mrb[0].mxu0
      %v4721 = vadd.f32 0.0, %v4720
      %v4722 = vpop.f32.mrb[0].mxu0
      %4723 = vmatprep.mubr.bf16.mxu0 0
      %4724 = vmatmul.mubr.bf16.gmra.mrb[0].mxu0 %v4634
      %v4725 = vpop.f32.mrb[0].mxu0
      %v4726 = vadd.f32 0.0, %v4725
      %v4727 = vpop.f32.mrb[0].mxu0
      %v4728 = vpop.f32.mrb[0].mxu0
      %v4729 = vadd.f32 0.0, %v4728
      %v4730 = vpop.f32.mrb[0].mxu0
      %4731 = vmatprep.mubr.bf16.mxu0 0
      %4732 = vmatmul.mubr.bf16.gmra.mrb[0].mxu0 %v4637
      %v4733 = vpop.f32.mrb[0].mxu0
      %v4734 = vadd.f32 0.0, %v4733
      %v4735 = vpop.f32.mrb[0].mxu0
      %v4736 = vpop.f32.mrb[0].mxu0
      %v4737 = vadd.f32 0.0, %v4736
      %v4738 = vpop.f32.mrb[0].mxu0
      %4739 = vmatprep.mubr.bf16.mxu0 0
      %4740 = vmatmul.mubr.bf16.gmra.mrb[0].mxu0 %v4640
      %v4741 = vpop.f32.mrb[0].mxu0
      %v4742 = vadd.f32 0.0, %v4741
      %v4743 = vpop.f32.mrb[0].mxu0
      %v4744 = vpop.f32.mrb[0].mxu0
      %v4745 = vadd.f32 0.0, %v4744
      %v4746 = vpop.f32.mrb[0].mxu0
      %4747 = vmatprep.mubr.bf16.mxu0 0
      %4748 = vmatmul.mubr.bf16.gmra.mrb[0].mxu0 %v4643
      %v4749 = vpop.f32.mrb[0].mxu0
      %v4750 = vadd.f32 0.0, %v4749
      %v4751 = vpop.f32.mrb[0].mxu0
      %v4752 = vpop.f32.mrb[0].mxu0
      %v4753 = vadd.f32 0.0, %v4752
      %v4754 = vpop.f32.mrb[0].mxu0
      %4755 = vmatprep.mubr.bf16.mxu0 0
      %4756 = vmatmul.mubr.bf16.gmra.mrb[0].mxu0 %v4646
      %v4757 = vpop.f32.mrb[0].mxu0
      %v4758 = vadd.f32 0.0, %v4757
      %v4759 = vpop.f32.mrb[0].mxu0
      %v4760 = vpop.f32.mrb[0].mxu0
      %v4761 = vadd.f32 0.0, %v4760
      %v4762 = vpop.f32.mrb[0].mxu0
      %4763 = vmatprep.mubr.bf16.mxu0 0
      %4764 = vmatmul.mubr.bf16.gmra.mrb[0].mxu0 %v4649
      %v4765 = vpop.f32.mrb[0].mxu0
      %v4766 = vadd.f32 0.0, %v4765
      %v4767 = vpop.f32.mrb[0].mxu0
      %v4768 = vpop.f32.mrb[0].mxu0
      %v4769 = vadd.f32 0.0, %v4768
      %v4770 = vpop.f32.mrb[0].mxu0
      %4771 = vmatprep.mubr.bf16.mxu0 0
      %4772 = vmatmul.mubr.bf16.gmra.mrb[0].mxu0 %v4652
      %v4773 = vpop.f32.mrb[0].mxu0
      %v4774 = vadd.f32 0.0, %v4773
      %v4775 = vpop.f32.mrb[0].mxu0
      %v4776 = vpop.f32.mrb[0].mxu0
      %v4777 = vadd.f32 0.0, %v4776
      %v4778 = vpop.f32.mrb[0].mxu0
      %4779 = vmatprep.mubr.bf16.mxu0 0
      %4780 = vmatmul.mubr.bf16.gmra.mrb[0].mxu0 %v4655
      %v4781 = vpop.f32.mrb[0].mxu0
      %v4782 = vadd.f32 0.0, %v4781
      %v4783 = vpop.f32.mrb[0].mxu0
      %v4784 = vpop.f32.mrb[0].mxu0
      %v4785 = vadd.f32 0.0, %v4784
      %v4786 = vpop.f32.mrb[0].mxu0
      %4787 = vmatprep.mubr.bf16.mxu0 0
      %4788 = vmatmul.mubr.bf16.gmra.mrb[0].mxu0 %v4658
      %v4789 = vpop.f32.mrb[0].mxu0
      %v4790 = vadd.f32 0.0, %v4789
      %v4791 = vpop.f32.mrb[0].mxu0
      %v4792 = vpop.f32.mrb[0].mxu0
      %v4793 = vadd.f32 0.0, %v4792
      %v4794 = vpop.f32.mrb[0].mxu0
      %4795 = vmatprep.mubr.bf16.mxu0 0
      %4796 = vmatmul.mubr.bf16.gmra.mrb[0].mxu0 %v4661
      %v4797 = vpop.f32.mrb[0].mxu0
      %v4798 = vadd.f32 0.0, %v4797
      %v4799 = vpop.f32.mrb[0].mxu0
      %v4800 = vpop.f32.mrb[0].mxu0
      %v4801 = vadd.f32 0.0, %v4800
      %v4802 = vpop.f32.mrb[0].mxu0
      %4803 = vmatprep.mubr.bf16.mxu0 0
      %4804 = vmatmul.mubr.bf16.gmra.mrb[0].mxu0 %v4664
      %v4805 = vpop.f32.mrb[0].mxu0
      %v4806 = vadd.f32 0.0, %v4805
      %v4807 = vpop.f32.mrb[0].mxu0
      %v4808 = vpop.f32.mrb[0].mxu0
      %v4809 = vadd.f32 0.0, %v4808
      %v4810 = vpop.f32.mrb[0].mxu0
      %4811 = vmatprep.mubr.bf16.mxu0 0
      %4812 = vmatmul.mubr.bf16.gmra.mrb[0].mxu0 %v4667
      %v4813 = vpop.f32.mrb[0].mxu0
      %v4814 = vadd.f32 0.0, %v4813
      %v4815 = vpop.f32.mrb[0].mxu0
      %v4816 = vpop.f32.mrb[0].mxu0
      %v4817 = vadd.f32 0.0, %v4816
      %v4818 = vpop.f32.mrb[0].mxu0
      %4819 = vmatprep.mubr.bf16.mxu0 0
      %4820 = vmatmul.mubr.bf16.gmra.mrb[0].mxu0 %v4670
      %v4821 = vpop.f32.mrb[0].mxu0
      %v4822 = vadd.f32 0.0, %v4821
      %v4823 = vpop.f32.mrb[0].mxu0
      %v4824 = vpop.f32.mrb[0].mxu0
      %v4825 = vadd.f32 0.0, %v4824
      %v4826 = vpop.f32.mrb[0].mxu0
      %4827 = vmatprep.mubr.bf16.mxu0 0
      %4828 = vmatmul.mubr.bf16.gmra.mrb[0].mxu0 %v4673
      %v4829 = vpop.f32.mrb[0].mxu0
      %v4830 = vadd.f32 0.0, %v4829
      %v4831 = vpop.f32.mrb[0].mxu0
      %v4832 = vpop.f32.mrb[0].mxu0
      %v4833 = vadd.f32 0.0, %v4832
      %v4834 = vpop.f32.mrb[0].mxu0
      %4835 = vdwg.mxu0
      %v4836 = vadd.f32 %v4354, %v4710
      %v4837 = vadd.f32 %v4355, %v4713
      %v4838 = vadd.f32 %v4356, %v4718
      %v4839 = vadd.f32 %v4357, %v4721
      %v4840 = vadd.f32 %v4358, %v4726
      %v4841 = vadd.f32 %v4359, %v4729
      %v4842 = vadd.f32 %v4360, %v4734
      %v4843 = vadd.f32 %v4361, %v4737
      %v4844 = vadd.f32 %v4362, %v4742
      %v4845 = vadd.f32 %v4363, %v4745
      %v4846 = vadd.f32 %v4364, %v4750
      %v4847 = vadd.f32 %v4365, %v4753
      %v4848 = vadd.f32 %v4366, %v4758
      %v4849 = vadd.f32 %v4367, %v4761
      %v4850 = vadd.f32 %v4368, %v4766
      %v4851 = vadd.f32 %v4369, %v4769
      %v4852 = vadd.f32 %v4370, %v4774
      %v4853 = vadd.f32 %v4371, %v4777
      %v4854 = vadd.f32 %v4372, %v4782
      %v4855 = vadd.f32 %v4373, %v4785
      %v4856 = vadd.f32 %v4374, %v4790
      %v4857 = vadd.f32 %v4375, %v4793
      %v4858 = vadd.f32 %v4376, %v4798
      %v4859 = vadd.f32 %v4377, %v4801
      %v4860 = vadd.f32 %v4378, %v4806
      %v4861 = vadd.f32 %v4379, %v4809
      %v4862 = vadd.f32 %v4380, %v4814
      %v4863 = vadd.f32 %v4381, %v4817
      %v4864 = vadd.f32 %v4382, %v4822
      %v4865 = vadd.f32 %v4383, %v4825
      %v4866 = vadd.f32 %v4384, %v4830
      %v4867 = vadd.f32 %v4385, %v4833
      %v4868 = vpack.c.bf16 %v4837, %v4836
      %v4869 = vpack.c.bf16 %v4839, %v4838
      %v4870 = vpack.c.bf16 %v4841, %v4840
      %v4871 = vpack.c.bf16 %v4843, %v4842
      %v4872 = vpack.c.bf16 %v4845, %v4844
      %v4873 = vpack.c.bf16 %v4847, %v4846
      %v4874 = vpack.c.bf16 %v4849, %v4848
      %v4875 = vpack.c.bf16 %v4851, %v4850
      %v4876 = vpack.c.bf16 %v4853, %v4852
      %v4877 = vpack.c.bf16 %v4855, %v4854
      %v4878 = vpack.c.bf16 %v4857, %v4856
      %v4879 = vpack.c.bf16 %v4859, %v4858
      %v4880 = vpack.c.bf16 %v4861, %v4860
      %v4881 = vpack.c.bf16 %v4863, %v4862
      %v4882 = vpack.c.bf16 %v4865, %v4864
      %v4883 = vpack.c.bf16 %v4867, %v4866
      %v4900 = vunpack.c.l.b16 %v4868
      %v4901 = vunpack.c.h.b16 %v4868
      %v4902 = vunpack.c.l.b16 %v4869
      %v4903 = vunpack.c.h.b16 %v4869
      %v4904 = vunpack.c.l.b16 %v4870
      %v4905 = vunpack.c.h.b16 %v4870
      %v4906 = vunpack.c.l.b16 %v4871
      %v4907 = vunpack.c.h.b16 %v4871
      %v4908 = vunpack.c.l.b16 %v4872
      %v4909 = vunpack.c.h.b16 %v4872
      %v4910 = vunpack.c.l.b16 %v4873
      %v4911 = vunpack.c.h.b16 %v4873
      %v4912 = vunpack.c.l.b16 %v4874
      %v4913 = vunpack.c.h.b16 %v4874
      %v4914 = vunpack.c.l.b16 %v4875
      %v4915 = vunpack.c.h.b16 %v4875
      %v4916 = vunpack.c.l.b16 %v4876
      %v4917 = vunpack.c.h.b16 %v4876
      %v4918 = vunpack.c.l.b16 %v4877
      %v4919 = vunpack.c.h.b16 %v4877
      %v4920 = vunpack.c.l.b16 %v4878
      %v4921 = vunpack.c.h.b16 %v4878
      %v4922 = vunpack.c.l.b16 %v4879
      %v4923 = vunpack.c.h.b16 %v4879
      %v4924 = vunpack.c.l.b16 %v4880
      %v4925 = vunpack.c.h.b16 %v4880
      %v4926 = vunpack.c.l.b16 %v4881
      %v4927 = vunpack.c.h.b16 %v4881
      %v4928 = vunpack.c.l.b16 %v4882
      %v4929 = vunpack.c.h.b16 %v4882
      %v4930 = vunpack.c.l.b16 %v4883
      %v4931 = vunpack.c.h.b16 %v4883
      %v4932 = vpack.c.b16 %v4900, %v4900
      %v4933 = vpack.c.b16 %v4901, %v4901
      %v4934 = vpack.c.b16 %v4902, %v4902
      %v4935 = vpack.c.b16 %v4903, %v4903
      %v4936 = vpack.c.b16 %v4904, %v4904
      %v4937 = vpack.c.b16 %v4905, %v4905
      %v4938 = vpack.c.b16 %v4906, %v4906
      %v4939 = vpack.c.b16 %v4907, %v4907
      %v4940 = vpack.c.b16 %v4908, %v4908
      %v4941 = vpack.c.b16 %v4909, %v4909
      %v4942 = vpack.c.b16 %v4910, %v4910
      %v4943 = vpack.c.b16 %v4911, %v4911
      %v4944 = vpack.c.b16 %v4912, %v4912
      %v4945 = vpack.c.b16 %v4913, %v4913
      %v4946 = vpack.c.b16 %v4914, %v4914
      %v4947 = vpack.c.b16 %v4915, %v4915
      %v4948 = vpack.c.b16 %v4916, %v4916
      %v4949 = vpack.c.b16 %v4917, %v4917
      %v4950 = vpack.c.b16 %v4918, %v4918
      %v4951 = vpack.c.b16 %v4919, %v4919
      %v4952 = vpack.c.b16 %v4920, %v4920
      %v4953 = vpack.c.b16 %v4921, %v4921
      %v4954 = vpack.c.b16 %v4922, %v4922
      %v4955 = vpack.c.b16 %v4923, %v4923
      %v4956 = vpack.c.b16 %v4924, %v4924
      %v4957 = vpack.c.b16 %v4925, %v4925
      %v4958 = vpack.c.b16 %v4926, %v4926
      %v4959 = vpack.c.b16 %v4927, %v4927
      %v4960 = vpack.c.b16 %v4928, %v4928
      %v4961 = vpack.c.b16 %v4929, %v4929
      %v4962 = vpack.c.b16 %v4930, %v4930
      %v4963 = vpack.c.b16 %v4931, %v4931
      %vm4996 = vcmask 257024
      %4997 = vst.msk [vmem:[%s192] sm:$0xf] %vm4996, %v4932
      %4998 = vst.msk [vmem:[%s192 + $0x4] sm:$0xf] %vm4996, %v4933
      %4999 = vst.msk [vmem:[%s192 + $0x8] sm:$0xf] %vm4996, %v4934
      %5000 = vst.msk [vmem:[%s192 + $0xc] sm:$0xf] %vm4996, %v4935
      %5001 = vst.msk [vmem:[%s192 + $0x10] sm:$0xf] %vm4996, %v4936
      %5002 = vst.msk [vmem:[%s192 + $0x14] sm:$0xf] %vm4996, %v4937
      %5003 = vst.msk [vmem:[%s192 + $0x18] sm:$0xf] %vm4996, %v4938
      %5004 = vst.msk [vmem:[%s192 + $0x1c] sm:$0xf] %vm4996, %v4939
      %5005 = vst.msk [vmem:[%s192 + $0x20] sm:$0xf] %vm4996, %v4940
      %5006 = vst.msk [vmem:[%s192 + $0x24] sm:$0xf] %vm4996, %v4941
      %5007 = vst.msk [vmem:[%s192 + $0x28] sm:$0xf] %vm4996, %v4942
      %5008 = vst.msk [vmem:[%s192 + $0x2c] sm:$0xf] %vm4996, %v4943
      %5009 = vst.msk [vmem:[%s192 + $0x30] sm:$0xf] %vm4996, %v4944
      %5010 = vst.msk [vmem:[%s192 + $0x34] sm:$0xf] %vm4996, %v4945
      %5011 = vst.msk [vmem:[%s192 + $0x38] sm:$0xf] %vm4996, %v4946
      %5012 = vst.msk [vmem:[%s192 + $0x3c] sm:$0xf] %vm4996, %v4947
      %5013 = vst.msk [vmem:[%s192 + $0x40] sm:$0xf] %vm4996, %v4948
      %5014 = vst.msk [vmem:[%s192 + $0x44] sm:$0xf] %vm4996, %v4949
      %5015 = vst.msk [vmem:[%s192 + $0x48] sm:$0xf] %vm4996, %v4950
      %5016 = vst.msk [vmem:[%s192 + $0x4c] sm:$0xf] %vm4996, %v4951
      %5017 = vst.msk [vmem:[%s192 + $0x50] sm:$0xf] %vm4996, %v4952
      %5018 = vst.msk [vmem:[%s192 + $0x54] sm:$0xf] %vm4996, %v4953
      %5019 = vst.msk [vmem:[%s192 + $0x58] sm:$0xf] %vm4996, %v4954
      %5020 = vst.msk [vmem:[%s192 + $0x5c] sm:$0xf] %vm4996, %v4955
      %5021 = vst.msk [vmem:[%s192 + $0x60] sm:$0xf] %vm4996, %v4956
      %5022 = vst.msk [vmem:[%s192 + $0x64] sm:$0xf] %vm4996, %v4957
      %5023 = vst.msk [vmem:[%s192 + $0x68] sm:$0xf] %vm4996, %v4958
      %5024 = vst.msk [vmem:[%s192 + $0x6c] sm:$0xf] %vm4996, %v4959
      %5025 = vst.msk [vmem:[%s192 + $0x70] sm:$0xf] %vm4996, %v4960
      %5026 = vst.msk [vmem:[%s192 + $0x74] sm:$0xf] %vm4996, %v4961
      %5027 = vst.msk [vmem:[%s192 + $0x78] sm:$0xf] %vm4996, %v4962
      %5028 = vst.msk [vmem:[%s192 + $0x7c] sm:$0xf] %vm4996, %v4963
      %v5029 = vld [vmem:[%s3] sm:$0x1]
      %v5030 = vsel %vm706, %v4836, 0.0
      %v5031 = vsel %vm706, %v4837, 0.0
      %v5032 = vadd.f32 %v5030, %v5031
      %v5033 = vsel %vm706, %v4838, 0.0
      %v5034 = vadd.f32 %v5032, %v5033
      %v5035 = vsel %vm706, %v4839, 0.0
      %v5036 = vadd.f32 %v5034, %v5035
      %v5037 = vsel %vm706, %v4840, 0.0
      %v5038 = vadd.f32 %v5036, %v5037
      %v5039 = vsel %vm706, %v4841, 0.0
      %v5040 = vadd.f32 %v5038, %v5039
      %v5041 = vsel %vm706, %v4842, 0.0
      %v5042 = vadd.f32 %v5040, %v5041
      %v5043 = vsel %vm706, %v4843, 0.0
      %v5044 = vadd.f32 %v5042, %v5043
      %v5045 = vsel %vm706, %v4844, 0.0
      %v5046 = vadd.f32 %v5044, %v5045
      %v5047 = vsel %vm706, %v4845, 0.0
      %v5048 = vadd.f32 %v5046, %v5047
      %v5049 = vsel %vm706, %v4846, 0.0
      %v5050 = vadd.f32 %v5048, %v5049
      %v5051 = vsel %vm706, %v4847, 0.0
      %v5052 = vadd.f32 %v5050, %v5051
      %v5053 = vsel %vm706, %v4848, 0.0
      %v5054 = vadd.f32 %v5052, %v5053
      %v5055 = vsel %vm706, %v4849, 0.0
      %v5056 = vadd.f32 %v5054, %v5055
      %v5057 = vsel %vm706, %v4850, 0.0
      %v5058 = vadd.f32 %v5056, %v5057
      %v5059 = vsel %vm706, %v4851, 0.0
      %v5060 = vadd.f32 %v5058, %v5059
      %v5061 = vsel %vm706, %v4852, 0.0
      %v5062 = vadd.f32 %v5060, %v5061
      %v5063 = vsel %vm706, %v4853, 0.0
      %v5064 = vadd.f32 %v5062, %v5063
      %v5065 = vsel %vm706, %v4854, 0.0
      %v5066 = vadd.f32 %v5064, %v5065
      %v5067 = vsel %vm706, %v4855, 0.0
      %v5068 = vadd.f32 %v5066, %v5067
      %v5069 = vsel %vm706, %v4856, 0.0
      %v5070 = vadd.f32 %v5068, %v5069
      %v5071 = vsel %vm706, %v4857, 0.0
      %v5072 = vadd.f32 %v5070, %v5071
      %v5073 = vsel %vm706, %v4858, 0.0
      %v5074 = vadd.f32 %v5072, %v5073
      %v5075 = vsel %vm706, %v4859, 0.0
      %v5076 = vadd.f32 %v5074, %v5075
      %v5077 = vsel %vm706, %v4860, 0.0
      %v5078 = vadd.f32 %v5076, %v5077
      %v5079 = vsel %vm706, %v4861, 0.0
      %v5080 = vadd.f32 %v5078, %v5079
      %v5081 = vsel %vm706, %v4862, 0.0
      %v5082 = vadd.f32 %v5080, %v5081
      %v5083 = vsel %vm706, %v4863, 0.0
      %v5084 = vadd.f32 %v5082, %v5083
      %v5085 = vsel %vm706, %v4864, 0.0
      %v5086 = vadd.f32 %v5084, %v5085
      %v5087 = vsel %vm706, %v4865, 0.0
      %v5088 = vadd.f32 %v5086, %v5087
      %v5089 = vsel %vm706, %v4866, 0.0
      %v5090 = vadd.f32 %v5088, %v5089
      %v5091 = vsel %vm706, %v4867, 0.0
      %v5092 = vadd.f32 %v5090, %v5091
      %v5093 = vrot.slane %v5092, 4
      %v5094 = vadd.f32 %v5092, %v5093
      %v5095 = vrot.slane %v5094, 2
      %v5096 = vadd.f32 %v5094, %v5095
      %v5097 = vrot.slane %v5096, 1
      %v5098 = vadd.f32 %v5096, %v5097
      %v5099 = vadd.f32 %v5029, %v5098
      %vm5100 = vcmask 253952
      %5101 = vst.msk [vmem:[%s3] sm:$0x1] %vm5100, %v5099
      %v5102 = vld [vmem:[%s4] sm:$0x1]
      %v5103 = vmul.f32 %v4836, %v4836
      %v5104 = vmul.f32 %v4837, %v4837
      %v5105 = vmul.f32 %v4838, %v4838
      %v5106 = vmul.f32 %v4839, %v4839
      %v5107 = vmul.f32 %v4840, %v4840
      %v5108 = vmul.f32 %v4841, %v4841
      %v5109 = vmul.f32 %v4842, %v4842
      %v5110 = vmul.f32 %v4843, %v4843
      %v5111 = vmul.f32 %v4844, %v4844
      %v5112 = vmul.f32 %v4845, %v4845
      %v5113 = vmul.f32 %v4846, %v4846
      %v5114 = vmul.f32 %v4847, %v4847
      %v5115 = vmul.f32 %v4848, %v4848
      %v5116 = vmul.f32 %v4849, %v4849
      %v5117 = vmul.f32 %v4850, %v4850
      %v5118 = vmul.f32 %v4851, %v4851
      %v5119 = vmul.f32 %v4852, %v4852
      %v5120 = vmul.f32 %v4853, %v4853
      %v5121 = vmul.f32 %v4854, %v4854
      %v5122 = vmul.f32 %v4855, %v4855
      %v5123 = vmul.f32 %v4856, %v4856
      %v5124 = vmul.f32 %v4857, %v4857
      %v5125 = vmul.f32 %v4858, %v4858
      %v5126 = vmul.f32 %v4859, %v4859
      %v5127 = vmul.f32 %v4860, %v4860
      %v5128 = vmul.f32 %v4861, %v4861
      %v5129 = vmul.f32 %v4862, %v4862
      %v5130 = vmul.f32 %v4863, %v4863
      %v5131 = vmul.f32 %v4864, %v4864
      %v5132 = vmul.f32 %v4865, %v4865
      %v5133 = vmul.f32 %v4866, %v4866
      %v5134 = vmul.f32 %v4867, %v4867
      %v5135 = vsel %vm706, %v5103, 0.0
      %v5136 = vsel %vm706, %v5104, 0.0
      %v5137 = vadd.f32 %v5135, %v5136
      %v5138 = vsel %vm706, %v5105, 0.0
      %v5139 = vadd.f32 %v5137, %v5138
      %v5140 = vsel %vm706, %v5106, 0.0
      %v5141 = vadd.f32 %v5139, %v5140
      %v5142 = vsel %vm706, %v5107, 0.0
      %v5143 = vadd.f32 %v5141, %v5142
      %v5144 = vsel %vm706, %v5108, 0.0
      %v5145 = vadd.f32 %v5143, %v5144
      %v5146 = vsel %vm706, %v5109, 0.0
      %v5147 = vadd.f32 %v5145, %v5146
      %v5148 = vsel %vm706, %v5110, 0.0
      %v5149 = vadd.f32 %v5147, %v5148
      %v5150 = vsel %vm706, %v5111, 0.0
      %v5151 = vadd.f32 %v5149, %v5150
      %v5152 = vsel %vm706, %v5112, 0.0
      %v5153 = vadd.f32 %v5151, %v5152
      %v5154 = vsel %vm706, %v5113, 0.0
      %v5155 = vadd.f32 %v5153, %v5154
      %v5156 = vsel %vm706, %v5114, 0.0
      %v5157 = vadd.f32 %v5155, %v5156
      %v5158 = vsel %vm706, %v5115, 0.0
      %v5159 = vadd.f32 %v5157, %v5158
      %v5160 = vsel %vm706, %v5116, 0.0
      %v5161 = vadd.f32 %v5159, %v5160
      %v5162 = vsel %vm706, %v5117, 0.0
      %v5163 = vadd.f32 %v5161, %v5162
      %v5164 = vsel %vm706, %v5118, 0.0
      %v5165 = vadd.f32 %v5163, %v5164
      %v5166 = vsel %vm706, %v5119, 0.0
      %v5167 = vadd.f32 %v5165, %v5166
      %v5168 = vsel %vm706, %v5120, 0.0
      %v5169 = vadd.f32 %v5167, %v5168
      %v5170 = vsel %vm706, %v5121, 0.0
      %v5171 = vadd.f32 %v5169, %v5170
      %v5172 = vsel %vm706, %v5122, 0.0
      %v5173 = vadd.f32 %v5171, %v5172
      %v5174 = vsel %vm706, %v5123, 0.0
      %v5175 = vadd.f32 %v5173, %v5174
      %v5176 = vsel %vm706, %v5124, 0.0
      %v5177 = vadd.f32 %v5175, %v5176
      %v5178 = vsel %vm706, %v5125, 0.0
      %v5179 = vadd.f32 %v5177, %v5178
      %v5180 = vsel %vm706, %v5126, 0.0
      %v5181 = vadd.f32 %v5179, %v5180
      %v5182 = vsel %vm706, %v5127, 0.0
      %v5183 = vadd.f32 %v5181, %v5182
      %v5184 = vsel %vm706, %v5128, 0.0
      %v5185 = vadd.f32 %v5183, %v5184
      %v5186 = vsel %vm706, %v5129, 0.0
      %v5187 = vadd.f32 %v5185, %v5186
      %v5188 = vsel %vm706, %v5130, 0.0
      %v5189 = vadd.f32 %v5187, %v5188
      %v5190 = vsel %vm706, %v5131, 0.0
      %v5191 = vadd.f32 %v5189, %v5190
      %v5192 = vsel %vm706, %v5132, 0.0
      %v5193 = vadd.f32 %v5191, %v5192
      %v5194 = vsel %vm706, %v5133, 0.0
      %v5195 = vadd.f32 %v5193, %v5194
      %v5196 = vsel %vm706, %v5134, 0.0
      %v5197 = vadd.f32 %v5195, %v5196
      %v5198 = vrot.slane %v5197, 4
      %v5199 = vadd.f32 %v5197, %v5198
      %v5200 = vrot.slane %v5199, 2
      %v5201 = vadd.f32 %v5199, %v5200
      %v5202 = vrot.slane %v5201, 1
      %v5203 = vadd.f32 %v5201, %v5202
      %v5204 = vadd.f32 %v5102, %v5203
      %5205 = vst.msk [vmem:[%s4] sm:$0x1] %vm5100, %v5204
      %s5206 = smul.u32 32, %s16
      %p5207 = scmp.lt.s32.totalorder %s5206, 63
      %s5208 = scalar_select %p5207, %s5206, 63
      %s5209 = smul.addr %s5208, 4
      %s5210 = scalar_lea.vmem %s2, %s5209
      // Predicated region
      $region33: #{se_bottleneck_forward.8} parent=27 // pred_check
        %p5211 = pneg %p81
      $region34: #{se_bottleneck_forward.8} parent=27 // pred_check_branch
        %5213 = sbr.rel (%p5211) target = $region36
      $region35: #{se_bottleneck_forward.8} parent=27 // pred_region
        %s5214 = smul.u32 32, %s16
      $region36: #{se_bottleneck_forward.8} parent=27 // pred_fallthru
        _
      // Predicated region
      $region37: #{se_bottleneck_forward.8} parent=27 // pred_check
        %p5215 = pneg %p102
      $region38: #{se_bottleneck_forward.8} parent=27 // pred_check_branch
        %5217 = sbr.rel (%p5215) target = $region40
      $region39: #{se_bottleneck_forward.8} parent=27 // pred_region
        _
      $region40: #{se_bottleneck_forward.8} parent=27 // pred_fallthru
        _
      // Predicated region
      $region41: #{se_bottleneck_forward.8} parent=27 // pred_check
        %p5218 = pneg %p123
      $region42: #{se_bottleneck_forward.8} parent=27 // pred_check_branch
        %5220 = sbr.rel (%p5218) target = $region44
      $region43: #{se_bottleneck_forward.8} parent=27 // pred_region
        _
      $region44: #{se_bottleneck_forward.8} parent=27 // pred_fallthru
        _
      // Predicated region
      $region45: #{se_bottleneck_forward.8} parent=27 // pred_check
        %p5221 = pneg %p102
      $region46: #{se_bottleneck_forward.8} parent=27 // pred_check_branch
        %5223 = sbr.rel (%p5221) target = $region48
      $region47: #{se_bottleneck_forward.8} parent=27 // pred_region
        _
      $region48: #{se_bottleneck_forward.8} parent=27 // pred_fallthru
        _
      // Predicated region
      $region49: #{se_bottleneck_forward.8} parent=27 // pred_check
        %p5224 = pneg %p123
      $region50: #{se_bottleneck_forward.8} parent=27 // pred_check_branch
        %5226 = sbr.rel (%p5224) target = $region52
      $region51: #{se_bottleneck_forward.8} parent=27 // pred_region
        _
      $region52: #{se_bottleneck_forward.8} parent=27 // pred_fallthru
        _
    $region28: #{se_bottleneck_forward.8} parent=5 // pred_fallthru
      _
    %p5227 = scmp.le.s32.totalorder 2, %s11
    // Predicated region
    $region53: #{se_bottleneck_forward.8} parent=5 // pred_check
      %p5228 = pneg %p5227
    $region54: #{se_bottleneck_forward.8} parent=5 // pred_check_branch
      %5230 = sbr.rel (%p5228) target = $region56
    $region55: #{se_bottleneck_forward.8} parent=5 // pred_region
      %s5231 = ssub.s32 %s11, 2
      // Predicated region
      $region57: #{se_bottleneck_forward.8} parent=55 // pred_check
        %p5232 = pneg %p87
      $region58: #{se_bottleneck_forward.8} parent=55 // pred_check_branch
        %5234 = sbr.rel (%p5232) target = $region60
      $region59: #{se_bottleneck_forward.8} parent=55 // pred_region
        %s5235 = smul.u32 32, %s17
        %p5236 = scmp.lt.s32.totalorder %s5235, 63
        %s5237 = scalar_select %p5236, %s5235, 63
        %s5238 = smul.addr %s5237, 4
        %s5239 = scalar_lea.vmem %s2, %s5238
      $region60: #{se_bottleneck_forward.8} parent=55 // pred_fallthru
        _
    $region56: #{se_bottleneck_forward.8} parent=5 // pred_fallthru
      _
  $region6: #{se_bottleneck_forward.8} parent=0 // loop_footer
    %s15 = sadd.s32 1, %s11
  $region7: #{se_bottleneck_forward.8} parent=0 // loop_footer_branch
    %10 = sbr.rel target = $region3
  $region8: #{se_bottleneck_forward.8} parent=0 // loop_exit
    _

</llo_original>
